<compile_context>
chip_gen: v5e
topology: v5e:2x2
jax: 0.10.0
libtpu: 0.0.40
codegen_flags: <defaults>
</compile_context>

<pallas_src>
import functools

import jax
import jax.numpy as jnp
import numpy as np
from jax import lax
from jax.experimental import pallas as pl
from jax.experimental.pallas import tpu as pltpu

_LANES = 128


def _radial_bessel_kernel(n_radial, d_ref, w_ref, o_ref):
    # d_ref: (block_p, 128)           f32  -- 128 consecutive distances per row
    # w_ref: (n_radial, 128, 128)     f32  -- per-column-block select*scale matrices
    # o_ref: (block_p, 128*n_radial)  f32  -- final memory order (lane = s*NR + g)
    d = d_ref[...]
    for q in range(n_radial):                       # static unroll (n_radial = 16)
        arg = lax.dot_general(
            d, w_ref[q],
            dimension_numbers=(((1,), (0,)), ((), ())),
            precision=lax.Precision.HIGHEST,        # keep f32 product accuracy
            preferred_element_type=jnp.float32,
        )
        o_ref[:, q * _LANES:(q + 1) * _LANES] = jnp.sin(arg)


def _build_w(n_radial, cutoff):
    """W[q, l, L] = (pi*(g+1)/cutoff) * [l == q*s_per + L//n_radial], g = L%n_radial."""
    s_per = _LANES // n_radial                      # distances per 128-lane group
    freqs = np.arange(1, n_radial + 1, dtype=np.float64) * np.pi
    scaled = (freqs / float(cutoff)).astype(np.float32)
    w = np.zeros((n_radial, _LANES, _LANES), dtype=np.float32)
    for q in range(n_radial):
        for col in range(_LANES):
            w[q, q * s_per + col // n_radial, col] = scaled[col % n_radial]
    return jnp.asarray(w)


@functools.partial(jax.jit, static_argnames=("n_radial", "cutoff"))
def radial_bessel(distances, n_radial=16, cutoff=5.0):
    """distances: (N_b, N_at, N_nbh) -> (N_b, N_at, N_nbh, n_radial), float32."""
    if _LANES % n_radial != 0:
        # TODO(synk): generalize the lane interleave for n_radial not dividing 128.
        raise NotImplementedError("n_radial must divide 128 (default 16 is supported).")

    nb, nat, nnbh = distances.shape
    m = nb * nat * nnbh
    out_cols = _LANES * n_radial

    # Rows of the (rows, 128) distance view / (rows, 128*n_radial) output view.
    p_exact = -(-m // _LANES)                                   # ceil(m / 128)
    # >= 2 grid blocks when possible (v7x megacore), <= 512 rows (4 MiB out block).
    block_p = max(8, min(512, ((-(-p_exact // 2) + 7) // 8) * 8))
    num_blocks = -(-p_exact // block_p)
    p_pad = num_blocks * block_p
    m_pad = p_pad * _LANES

    # Zero-pad the (tiny) input so the selection matmul never touches garbage.
    d_flat = distances.reshape(-1).astype(jnp.float32)
    if m_pad > m:
        d_flat = jnp.pad(d_flat, (0, m_pad - m))
    d2 = d_flat.reshape(p_pad, _LANES)

    w = _build_w(n_radial, cutoff)                  # baked compile-time constant
    kernel = functools.partial(_radial_bessel_kernel, n_radial)

    cost = pl.CostEstimate(
        flops=2 * p_pad * _LANES * _LANES * n_radial,
        transcendentals=m_pad * n_radial,
        bytes_accessed=4 * m_pad + 4 * m_pad * n_radial + int(w.size) * 4,
    )

    out2d = pl.pallas_call(
        kernel,
        out_shape=jax.ShapeDtypeStruct((p_exact, out_cols), jnp.float32),
        grid=(num_blocks,),
        in_specs=[
            pl.BlockSpec((block_p, _LANES), lambda i: (i, 0)),            # distances
            pl.BlockSpec((n_radial, _LANES, _LANES), lambda i: (0, 0, 0)),  # W (resident)
        ],
        out_specs=pl.BlockSpec((block_p, out_cols), lambda i: (i, 0)),
        compiler_params=pltpu.CompilerParams(
            dimension_semantics=("parallel",),
            vmem_limit_bytes=32 * 1024 * 1024,
        ),
        cost_estimate=cost,
    )(d2, w)

    # Free row-major view back to (..., n_radial); trim only if m % 128 != 0.
    out_flat = out2d.reshape(p_exact * _LANES, n_radial)
    if p_exact * _LANES != m:
        out_flat = out_flat[:m]
    return out_flat.reshape(nb, nat, nnbh, n_radial)


if __name__ == "__main__":
    n_radial = 16
    cutoff = 5.0

    # Non-trainable buffer from the module's __init__: arange(1, n+1) * pi
    frequencies = jnp.asarray(np.arange(1, n_radial + 1) * np.pi, dtype=jnp.float32)

    key = jax.random.PRNGKey(0)
    # First shape: m = 128 (no trim path).  Second shape: m = 105 (ragged trim path).
    for shape in [(2, 4, 16), (3, 5, 7)]:
        key, sub = jax.random.split(key)
        distances = jax.random.uniform(
            sub, shape, dtype=jnp.float32, minval=0.0, maxval=cutoff
        )

        out = jax.block_until_ready(
            radial_bessel(distances, n_radial=n_radial, cutoff=cutoff)
        )

        # float32 reference following the module's op order:
        # d_scaled = d * (1/cutoff); out = sin(freq * d_scaled[..., None])
        ref = jnp.sin(
            frequencies * (distances * jnp.float32(1.0 / cutoff))[..., None]
        )
        assert out.shape == shape + (n_radial,)
        np.testing.assert_allclose(
            np.asarray(out), np.asarray(ref), atol=1e-4, rtol=1e-4
        )

    print("KERNEL_OK")
</pallas_src>

<mosaic_0001>
module attributes {stable_mosaic.version = 11 : i64} {
  func.func @_radial_bessel_kernel(%arg0: i32, %arg1: memref<8x128xf32, #tpu.memory_space<vmem>>, %arg2: memref<16x128x128xf32, #tpu.memory_space<vmem>>, %arg3: memref<8x2048xf32, #tpu.memory_space<vmem>>) attributes {dimension_semantics = [#tpu.dimension_semantics<parallel>], iteration_bounds = array<i64: 1>, scalar_prefetch = 0 : i64, scratch_operands = 0 : i64, tpu.core_type = #tpu.core_type<tc>, window_params = [{transform_indices = @transform_0, window_bounds = array<i64: 8, 128>}, {pipeline_mode = #tpu.pipeline_mode<synchronous>, transform_indices = @transform_1, window_bounds = array<i64: 16, 128, 128>}, {transform_indices = @transform_2, window_bounds = array<i64: 8, 2048>}]} {
    %c0 = arith.constant 0 : index
    %c0_0 = arith.constant 0 : index
    %0 = vector.load %arg1[%c0, %c0_0] : memref<8x128xf32, #tpu.memory_space<vmem>>, vector<8x128xf32>
    %c0_1 = arith.constant 0 : index
    %c0_2 = arith.constant 0 : index
    %c0_3 = arith.constant 0 : index
    %1 = vector.load %arg2[%c0_1, %c0_2, %c0_3] : memref<16x128x128xf32, #tpu.memory_space<vmem>>, vector<1x128x128xf32>
    %2 = vector.shape_cast %1 : vector<1x128x128xf32> to vector<128x128xf32>
    %cst = arith.constant dense<0.000000e+00> : vector<8x128xf32>
    %3 = tpu.matmul %0, %2, %cst {dimension_numbers = #tpu.dot_dimension_numbers<[1], [0], [0], [1], [0, 0, 1, 1], [], []>, precision = #tpu.contract_precision<fp32>} : vector<8x128xf32>, vector<128x128xf32>, vector<8x128xf32> -> vector<8x128xf32>
    %4 = math.sin %3 : vector<8x128xf32>
    %c0_4 = arith.constant 0 : index
    %c0_5 = arith.constant 0 : index
    %5 = vector.load %arg3[%c0_4, %c0_5] : memref<8x2048xf32, #tpu.memory_space<vmem>>, vector<8x128xf32>
    tpu.vector_store %arg3[%c0_4, %c0_5], %4 {strides = array<i32>} : memref<8x2048xf32, #tpu.memory_space<vmem>>, vector<8x128xf32>,
    %c1 = arith.constant 1 : index
    %c0_6 = arith.constant 0 : index
    %c0_7 = arith.constant 0 : index
    %6 = vector.load %arg2[%c1, %c0_6, %c0_7] : memref<16x128x128xf32, #tpu.memory_space<vmem>>, vector<1x128x128xf32>
    %7 = vector.shape_cast %6 : vector<1x128x128xf32> to vector<128x128xf32>
    %cst_8 = arith.constant dense<0.000000e+00> : vector<8x128xf32>
    %8 = tpu.matmul %0, %7, %cst_8 {dimension_numbers = #tpu.dot_dimension_numbers<[1], [0], [0], [1], [0, 0, 1, 1], [], []>, precision = #tpu.contract_precision<fp32>} : vector<8x128xf32>, vector<128x128xf32>, vector<8x128xf32> -> vector<8x128xf32>
    %9 = math.sin %8 : vector<8x128xf32>
    %c0_9 = arith.constant 0 : index
    %c128 = arith.constant 128 : index
    %10 = vector.load %arg3[%c0_9, %c128] : memref<8x2048xf32, #tpu.memory_space<vmem>>, vector<8x128xf32>
    tpu.vector_store %arg3[%c0_9, %c128], %9 {strides = array<i32>} : memref<8x2048xf32, #tpu.memory_space<vmem>>, vector<8x128xf32>,
    %c2 = arith.constant 2 : index
    %c0_10 = arith.constant 0 : index
    %c0_11 = arith.constant 0 : index
    %11 = vector.load %arg2[%c2, %c0_10, %c0_11] : memref<16x128x128xf32, #tpu.memory_space<vmem>>, vector<1x128x128xf32>
    %12 = vector.shape_cast %11 : vector<1x128x128xf32> to vector<128x128xf32>
    %cst_12 = arith.constant dense<0.000000e+00> : vector<8x128xf32>
    %13 = tpu.matmul %0, %12, %cst_12 {dimension_numbers = #tpu.dot_dimension_numbers<[1], [0], [0], [1], [0, 0, 1, 1], [], []>, precision = #tpu.contract_precision<fp32>} : vector<8x128xf32>, vector<128x128xf32>, vector<8x128xf32> -> vector<8x128xf32>
    %14 = math.sin %13 : vector<8x128xf32>
    %c0_13 = arith.constant 0 : index
    %c256 = arith.constant 256 : index
    %15 = vector.load %arg3[%c0_13, %c256] : memref<8x2048xf32, #tpu.memory_space<vmem>>, vector<8x128xf32>
    tpu.vector_store %arg3[%c0_13, %c256], %14 {strides = array<i32>} : memref<8x2048xf32, #tpu.memory_space<vmem>>, vector<8x128xf32>,
    %c3 = arith.constant 3 : index
    %c0_14 = arith.constant 0 : index
    %c0_15 = arith.constant 0 : index
    %16 = vector.load %arg2[%c3, %c0_14, %c0_15] : memref<16x128x128xf32, #tpu.memory_space<vmem>>, vector<1x128x128xf32>
    %17 = vector.shape_cast %16 : vector<1x128x128xf32> to vector<128x128xf32>
    %cst_16 = arith.constant dense<0.000000e+00> : vector<8x128xf32>
    %18 = tpu.matmul %0, %17, %cst_16 {dimension_numbers = #tpu.dot_dimension_numbers<[1], [0], [0], [1], [0, 0, 1, 1], [], []>, precision = #tpu.contract_precision<fp32>} : vector<8x128xf32>, vector<128x128xf32>, vector<8x128xf32> -> vector<8x128xf32>
    %19 = math.sin %18 : vector<8x128xf32>
    %c0_17 = arith.constant 0 : index
    %c384 = arith.constant 384 : index
    %20 = vector.load %arg3[%c0_17, %c384] : memref<8x2048xf32, #tpu.memory_space<vmem>>, vector<8x128xf32>
    tpu.vector_store %arg3[%c0_17, %c384], %19 {strides = array<i32>} : memref<8x2048xf32, #tpu.memory_space<vmem>>, vector<8x128xf32>,
    %c4 = arith.constant 4 : index
    %c0_18 = arith.constant 0 : index
    %c0_19 = arith.constant 0 : index
    %21 = vector.load %arg2[%c4, %c0_18, %c0_19] : memref<16x128x128xf32, #tpu.memory_space<vmem>>, vector<1x128x128xf32>
    %22 = vector.shape_cast %21 : vector<1x128x128xf32> to vector<128x128xf32>
    %cst_20 = arith.constant dense<0.000000e+00> : vector<8x128xf32>
    %23 = tpu.matmul %0, %22, %cst_20 {dimension_numbers = #tpu.dot_dimension_numbers<[1], [0], [0], [1], [0, 0, 1, 1], [], []>, precision = #tpu.contract_precision<fp32>} : vector<8x128xf32>, vector<128x128xf32>, vector<8x128xf32> -> vector<8x128xf32>
    %24 = math.sin %23 : vector<8x128xf32>
    %c0_21 = arith.constant 0 : index
    %c512 = arith.constant 512 : index
    %25 = vector.load %arg3[%c0_21, %c512] : memref<8x2048xf32, #tpu.memory_space<vmem>>, vector<8x128xf32>
    tpu.vector_store %arg3[%c0_21, %c512], %24 {strides = array<i32>} : memref<8x2048xf32, #tpu.memory_space<vmem>>, vector<8x128xf32>,
    %c5 = arith.constant 5 : index
    %c0_22 = arith.constant 0 : index
    %c0_23 = arith.constant 0 : index
    %26 = vector.load %arg2[%c5, %c0_22, %c0_23] : memref<16x128x128xf32, #tpu.memory_space<vmem>>, vector<1x128x128xf32>
    %27 = vector.shape_cast %26 : vector<1x128x128xf32> to vector<128x128xf32>
    %cst_24 = arith.constant dense<0.000000e+00> : vector<8x128xf32>
    %28 = tpu.matmul %0, %27, %cst_24 {dimension_numbers = #tpu.dot_dimension_numbers<[1], [0], [0], [1], [0, 0, 1, 1], [], []>, precision = #tpu.contract_precision<fp32>} : vector<8x128xf32>, vector<128x128xf32>, vector<8x128xf32> -> vector<8x128xf32>
    %29 = math.sin %28 : vector<8x128xf32>
    %c0_25 = arith.constant 0 : index
    %c640 = arith.constant 640 : index
    %30 = vector.load %arg3[%c0_25, %c640] : memref<8x2048xf32, #tpu.memory_space<vmem>>, vector<8x128xf32>
    tpu.vector_store %arg3[%c0_25, %c640], %29 {strides = array<i32>} : memref<8x2048xf32, #tpu.memory_space<vmem>>, vector<8x128xf32>,
    %c6 = arith.constant 6 : index
    %c0_26 = arith.constant 0 : index
    %c0_27 = arith.constant 0 : index
    %31 = vector.load %arg2[%c6, %c0_26, %c0_27] : memref<16x128x128xf32, #tpu.memory_space<vmem>>, vector<1x128x128xf32>
    %32 = vector.shape_cast %31 : vector<1x128x128xf32> to vector<128x128xf32>
    %cst_28 = arith.constant dense<0.000000e+00> : vector<8x128xf32>
    %33 = tpu.matmul %0, %32, %cst_28 {dimension_numbers = #tpu.dot_dimension_numbers<[1], [0], [0], [1], [0, 0, 1, 1], [], []>, precision = #tpu.contract_precision<fp32>} : vector<8x128xf32>, vector<128x128xf32>, vector<8x128xf32> -> vector<8x128xf32>
    %34 = math.sin %33 : vector<8x128xf32>
    %c0_29 = arith.constant 0 : index
    %c768 = arith.constant 768 : index
    %35 = vector.load %arg3[%c0_29, %c768] : memref<8x2048xf32, #tpu.memory_space<vmem>>, vector<8x128xf32>
    tpu.vector_store %arg3[%c0_29, %c768], %34 {strides = array<i32>} : memref<8x2048xf32, #tpu.memory_space<vmem>>, vector<8x128xf32>,
    %c7 = arith.constant 7 : index
    %c0_30 = arith.constant 0 : index
    %c0_31 = arith.constant 0 : index
    %36 = vector.load %arg2[%c7, %c0_30, %c0_31] : memref<16x128x128xf32, #tpu.memory_space<vmem>>, vector<1x128x128xf32>
    %37 = vector.shape_cast %36 : vector<1x128x128xf32> to vector<128x128xf32>
    %cst_32 = arith.constant dense<0.000000e+00> : vector<8x128xf32>
    %38 = tpu.matmul %0, %37, %cst_32 {dimension_numbers = #tpu.dot_dimension_numbers<[1], [0], [0], [1], [0, 0, 1, 1], [], []>, precision = #tpu.contract_precision<fp32>} : vector<8x128xf32>, vector<128x128xf32>, vector<8x128xf32> -> vector<8x128xf32>
    %39 = math.sin %38 : vector<8x128xf32>
    %c0_33 = arith.constant 0 : index
    %c896 = arith.constant 896 : index
    %40 = vector.load %arg3[%c0_33, %c896] : memref<8x2048xf32, #tpu.memory_space<vmem>>, vector<8x128xf32>
    tpu.vector_store %arg3[%c0_33, %c896], %39 {strides = array<i32>} : memref<8x2048xf32, #tpu.memory_space<vmem>>, vector<8x128xf32>,
    %c8 = arith.constant 8 : index
    %c0_34 = arith.constant 0 : index
    %c0_35 = arith.constant 0 : index
    %41 = vector.load %arg2[%c8, %c0_34, %c0_35] : memref<16x128x128xf32, #tpu.memory_space<vmem>>, vector<1x128x128xf32>
    %42 = vector.shape_cast %41 : vector<1x128x128xf32> to vector<128x128xf32>
    %cst_36 = arith.constant dense<0.000000e+00> : vector<8x128xf32>
    %43 = tpu.matmul %0, %42, %cst_36 {dimension_numbers = #tpu.dot_dimension_numbers<[1], [0], [0], [1], [0, 0, 1, 1], [], []>, precision = #tpu.contract_precision<fp32>} : vector<8x128xf32>, vector<128x128xf32>, vector<8x128xf32> -> vector<8x128xf32>
    %44 = math.sin %43 : vector<8x128xf32>
    %c0_37 = arith.constant 0 : index
    %c1024 = arith.constant 1024 : index
    %45 = vector.load %arg3[%c0_37, %c1024] : memref<8x2048xf32, #tpu.memory_space<vmem>>, vector<8x128xf32>
    tpu.vector_store %arg3[%c0_37, %c1024], %44 {strides = array<i32>} : memref<8x2048xf32, #tpu.memory_space<vmem>>, vector<8x128xf32>,
    %c9 = arith.constant 9 : index
    %c0_38 = arith.constant 0 : index
    %c0_39 = arith.constant 0 : index
    %46 = vector.load %arg2[%c9, %c0_38, %c0_39] : memref<16x128x128xf32, #tpu.memory_space<vmem>>, vector<1x128x128xf32>
    %47 = vector.shape_cast %46 : vector<1x128x128xf32> to vector<128x128xf32>
    %cst_40 = arith.constant dense<0.000000e+00> : vector<8x128xf32>
    %48 = tpu.matmul %0, %47, %cst_40 {dimension_numbers = #tpu.dot_dimension_numbers<[1], [0], [0], [1], [0, 0, 1, 1], [], []>, precision = #tpu.contract_precision<fp32>} : vector<8x128xf32>, vector<128x128xf32>, vector<8x128xf32> -> vector<8x128xf32>
    %49 = math.sin %48 : vector<8x128xf32>
    %c0_41 = arith.constant 0 : index
    %c1152 = arith.constant 1152 : index
    %50 = vector.load %arg3[%c0_41, %c1152] : memref<8x2048xf32, #tpu.memory_space<vmem>>, vector<8x128xf32>
    tpu.vector_store %arg3[%c0_41, %c1152], %49 {strides = array<i32>} : memref<8x2048xf32, #tpu.memory_space<vmem>>, vector<8x128xf32>,
    %c10 = arith.constant 10 : index
    %c0_42 = arith.constant 0 : index
    %c0_43 = arith.constant 0 : index
    %51 = vector.load %arg2[%c10, %c0_42, %c0_43] : memref<16x128x128xf32, #tpu.memory_space<vmem>>, vector<1x128x128xf32>
    %52 = vector.shape_cast %51 : vector<1x128x128xf32> to vector<128x128xf32>
    %cst_44 = arith.constant dense<0.000000e+00> : vector<8x128xf32>
    %53 = tpu.matmul %0, %52, %cst_44 {dimension_numbers = #tpu.dot_dimension_numbers<[1], [0], [0], [1], [0, 0, 1, 1], [], []>, precision = #tpu.contract_precision<fp32>} : vector<8x128xf32>, vector<128x128xf32>, vector<8x128xf32> -> vector<8x128xf32>
    %54 = math.sin %53 : vector<8x128xf32>
    %c0_45 = arith.constant 0 : index
    %c1280 = arith.constant 1280 : index
    %55 = vector.load %arg3[%c0_45, %c1280] : memref<8x2048xf32, #tpu.memory_space<vmem>>, vector<8x128xf32>
    tpu.vector_store %arg3[%c0_45, %c1280], %54 {strides = array<i32>} : memref<8x2048xf32, #tpu.memory_space<vmem>>, vector<8x128xf32>,
    %c11 = arith.constant 11 : index
    %c0_46 = arith.constant 0 : index
    %c0_47 = arith.constant 0 : index
    %56 = vector.load %arg2[%c11, %c0_46, %c0_47] : memref<16x128x128xf32, #tpu.memory_space<vmem>>, vector<1x128x128xf32>
    %57 = vector.shape_cast %56 : vector<1x128x128xf32> to vector<128x128xf32>
    %cst_48 = arith.constant dense<0.000000e+00> : vector<8x128xf32>
    %58 = tpu.matmul %0, %57, %cst_48 {dimension_numbers = #tpu.dot_dimension_numbers<[1], [0], [0], [1], [0, 0, 1, 1], [], []>, precision = #tpu.contract_precision<fp32>} : vector<8x128xf32>, vector<128x128xf32>, vector<8x128xf32> -> vector<8x128xf32>
    %59 = math.sin %58 : vector<8x128xf32>
    %c0_49 = arith.constant 0 : index
    %c1408 = arith.constant 1408 : index
    %60 = vector.load %arg3[%c0_49, %c1408] : memref<8x2048xf32, #tpu.memory_space<vmem>>, vector<8x128xf32>
    tpu.vector_store %arg3[%c0_49, %c1408], %59 {strides = array<i32>} : memref<8x2048xf32, #tpu.memory_space<vmem>>, vector<8x128xf32>,
    %c12 = arith.constant 12 : index
    %c0_50 = arith.constant 0 : index
    %c0_51 = arith.constant 0 : index
    %61 = vector.load %arg2[%c12, %c0_50, %c0_51] : memref<16x128x128xf32, #tpu.memory_space<vmem>>, vector<1x128x128xf32>
    %62 = vector.shape_cast %61 : vector<1x128x128xf32> to vector<128x128xf32>
    %cst_52 = arith.constant dense<0.000000e+00> : vector<8x128xf32>
    %63 = tpu.matmul %0, %62, %cst_52 {dimension_numbers = #tpu.dot_dimension_numbers<[1], [0], [0], [1], [0, 0, 1, 1], [], []>, precision = #tpu.contract_precision<fp32>} : vector<8x128xf32>, vector<128x128xf32>, vector<8x128xf32> -> vector<8x128xf32>
    %64 = math.sin %63 : vector<8x128xf32>
    %c0_53 = arith.constant 0 : index
    %c1536 = arith.constant 1536 : index
    %65 = vector.load %arg3[%c0_53, %c1536] : memref<8x2048xf32, #tpu.memory_space<vmem>>, vector<8x128xf32>
    tpu.vector_store %arg3[%c0_53, %c1536], %64 {strides = array<i32>} : memref<8x2048xf32, #tpu.memory_space<vmem>>, vector<8x128xf32>,
    %c13 = arith.constant 13 : index
    %c0_54 = arith.constant 0 : index
    %c0_55 = arith.constant 0 : index
    %66 = vector.load %arg2[%c13, %c0_54, %c0_55] : memref<16x128x128xf32, #tpu.memory_space<vmem>>, vector<1x128x128xf32>
    %67 = vector.shape_cast %66 : vector<1x128x128xf32> to vector<128x128xf32>
    %cst_56 = arith.constant dense<0.000000e+00> : vector<8x128xf32>
    %68 = tpu.matmul %0, %67, %cst_56 {dimension_numbers = #tpu.dot_dimension_numbers<[1], [0], [0], [1], [0, 0, 1, 1], [], []>, precision = #tpu.contract_precision<fp32>} : vector<8x128xf32>, vector<128x128xf32>, vector<8x128xf32> -> vector<8x128xf32>
    %69 = math.sin %68 : vector<8x128xf32>
    %c0_57 = arith.constant 0 : index
    %c1664 = arith.constant 1664 : index
    %70 = vector.load %arg3[%c0_57, %c1664] : memref<8x2048xf32, #tpu.memory_space<vmem>>, vector<8x128xf32>
    tpu.vector_store %arg3[%c0_57, %c1664], %69 {strides = array<i32>} : memref<8x2048xf32, #tpu.memory_space<vmem>>, vector<8x128xf32>,
    %c14 = arith.constant 14 : index
    %c0_58 = arith.constant 0 : index
    %c0_59 = arith.constant 0 : index
    %71 = vector.load %arg2[%c14, %c0_58, %c0_59] : memref<16x128x128xf32, #tpu.memory_space<vmem>>, vector<1x128x128xf32>
    %72 = vector.shape_cast %71 : vector<1x128x128xf32> to vector<128x128xf32>
    %cst_60 = arith.constant dense<0.000000e+00> : vector<8x128xf32>
    %73 = tpu.matmul %0, %72, %cst_60 {dimension_numbers = #tpu.dot_dimension_numbers<[1], [0], [0], [1], [0, 0, 1, 1], [], []>, precision = #tpu.contract_precision<fp32>} : vector<8x128xf32>, vector<128x128xf32>, vector<8x128xf32> -> vector<8x128xf32>
    %74 = math.sin %73 : vector<8x128xf32>
    %c0_61 = arith.constant 0 : index
    %c1792 = arith.constant 1792 : index
    %75 = vector.load %arg3[%c0_61, %c1792] : memref<8x2048xf32, #tpu.memory_space<vmem>>, vector<8x128xf32>
    tpu.vector_store %arg3[%c0_61, %c1792], %74 {strides = array<i32>} : memref<8x2048xf32, #tpu.memory_space<vmem>>, vector<8x128xf32>,
    %c15 = arith.constant 15 : index
    %c0_62 = arith.constant 0 : index
    %c0_63 = arith.constant 0 : index
    %76 = vector.load %arg2[%c15, %c0_62, %c0_63] : memref<16x128x128xf32, #tpu.memory_space<vmem>>, vector<1x128x128xf32>
    %77 = vector.shape_cast %76 : vector<1x128x128xf32> to vector<128x128xf32>
    %cst_64 = arith.constant dense<0.000000e+00> : vector<8x128xf32>
    %78 = tpu.matmul %0, %77, %cst_64 {dimension_numbers = #tpu.dot_dimension_numbers<[1], [0], [0], [1], [0, 0, 1, 1], [], []>, precision = #tpu.contract_precision<fp32>} : vector<8x128xf32>, vector<128x128xf32>, vector<8x128xf32> -> vector<8x128xf32>
    %79 = math.sin %78 : vector<8x128xf32>
    %c0_65 = arith.constant 0 : index
    %c1920 = arith.constant 1920 : index
    %80 = vector.load %arg3[%c0_65, %c1920] : memref<8x2048xf32, #tpu.memory_space<vmem>>, vector<8x128xf32>
    tpu.vector_store %arg3[%c0_65, %c1920], %79 {strides = array<i32>} : memref<8x2048xf32, #tpu.memory_space<vmem>>, vector<8x128xf32>,
    return
  }
  func.func @transform_0(%arg0: i32) -> (i32, i32) {
    %c0_i32 = arith.constant 0 : i32
    %c0_i32_0 = arith.constant 0 : i32
    return %arg0, %c0_i32 : i32, i32
  }
  func.func @transform_1(%arg0: i32) -> (i32, i32, i32) {
    %c0_i32 = arith.constant 0 : i32
    %c0_i32_0 = arith.constant 0 : i32
    %c0_i32_1 = arith.constant 0 : i32
    %c0_i32_2 = arith.constant 0 : i32
    return %c0_i32, %c0_i32_0, %c0_i32_1 : i32, i32, i32
  }
  func.func @transform_2(%arg0: i32) -> (i32, i32) {
    %c0_i32 = arith.constant 0 : i32
    %c0_i32_0 = arith.constant 0 : i32
    return %arg0, %c0_i32 : i32, i32
  }
}

</mosaic_0001>

<llo_original>
// kernel: radial_bessel.1
$region0: #{radial_bessel.1}
  #allocation0 [shape = 'u32[]', space=smem, size = 0x4, offset = 0x4, fixed_abs, tag = 'smem constant byte address 0x4 - core index']
  #allocation1 [shape = 'u32[72,128]{1,0:T(1,128)}', space=vmem, size = 0x9000, scoped, tag = 'internal scratch']
  %s0 = inlined_call_operand.vmem [shape: f32[8,128], index: 0, kind: input, shape index: {}]
  %s1 = inlined_call_operand.hbm [shape: f32[16,128,128], index: 1, kind: input, shape index: {}]
  %s2 = inlined_call_operand.vmem [shape: f32[1,2048], index: 2, kind: output, shape index: {}]
  %s3 = sld [smem:[#allocation0]]
  $region41: #{radial_bessel.1} parent=0
    _
  %s5 = ssub.s32 1, %s3
  %s6 = scalar_select 0, %s5, %s3
  $region1: #{radial_bessel.1} parent=0
    #allocation2 [shape = 'u8[1048576]{0}', space=vmem, size = 0x100000, scoped, tag = 'input window, operand 1, single buffered']
    #allocation3 [shape = 's32[1]{0}', space=sflag, size = 0x4, scoped, tag = 'scoped memory for radial_bessel.1']
    #allocation4 [shape = 'u8[65536]{0}', space=vmem, size = 0x10000, scoped, tag = 'output window, operand 0, single buffered']
    %7 = vsyncpa [#allocation3], 0
    // Predicated region
    $region2: #{radial_bessel.1} parent=1 // pred_check
      _
    $region3: #{radial_bessel.1} parent=1 // pred_check_branch
      %9 = sbr.rel (0) target = $region5
    $region4: #{radial_bessel.1} parent=1 // pred_region
      _
    $region5: #{radial_bessel.1} parent=1 // pred_fallthru
      _
    // Predicated region
    $region6: #{radial_bessel.1} parent=1 // pred_check
      _
    $region7: #{radial_bessel.1} parent=1 // pred_check_branch
      %11 = sbr.rel (0) target = $region9
    $region8: #{radial_bessel.1} parent=1 // pred_region
      %13 = vsyncadd [#allocation3], 0
      %s14 = sshll.u32 %s1, 4
      %s15 = int_to_ptr.hbm [resolvable:$true] %s14
      %s16 = sshll.u32 [#allocation2], 4
      %s17 = int_to_ptr.vmem [resolvable:$true] %s16
      %22 = dma.hbm_to_vmem [thread:$0]  %s15, 32768, %s17, [#allocation3], 128, 128, 8
    $region9: #{radial_bessel.1} parent=1 // pred_fallthru
      _
    // Predicated region
    $region10: #{radial_bessel.1} parent=1 // pred_check
      _
    $region11: #{radial_bessel.1} parent=1 // pred_check_branch
      %24 = sbr.rel (0) target = $region13
    $region12: #{radial_bessel.1} parent=1 // pred_region
      %26 = dma.done [#allocation3], 32768
    $region13: #{radial_bessel.1} parent=1 // pred_fallthru
      _
    %v27 = vld [vmem:[%s0] sm:$0xff]
    %v28 = vld [vmem:[#allocation2] sm:$0xff]
    %v29 = vld [vmem:[#allocation2 + $0x8] sm:$0xff]
    %v30 = vld [vmem:[#allocation2 + $0x10] sm:$0xff]
    %v31 = vld [vmem:[#allocation2 + $0x18] sm:$0xff]
    %v32 = vld [vmem:[#allocation2 + $0x20] sm:$0xff]
    %v33 = vld [vmem:[#allocation2 + $0x28] sm:$0xff]
    %v34 = vld [vmem:[#allocation2 + $0x30] sm:$0xff]
    %v35 = vld [vmem:[#allocation2 + $0x38] sm:$0xff]
    %v36 = vld [vmem:[#allocation2 + $0x40] sm:$0xff]
    %v37 = vld [vmem:[#allocation2 + $0x48] sm:$0xff]
    %v38 = vld [vmem:[#allocation2 + $0x50] sm:$0xff]
    %v39 = vld [vmem:[#allocation2 + $0x58] sm:$0xff]
    %v40 = vld [vmem:[#allocation2 + $0x60] sm:$0xff]
    %v41 = vld [vmem:[#allocation2 + $0x68] sm:$0xff]
    %v42 = vld [vmem:[#allocation2 + $0x70] sm:$0xff]
    %v43 = vld [vmem:[#allocation2 + $0x78] sm:$0xff]
    %v44 = vand.u32 %v43, 4294901760
    %45 = vmatpush.msra.mxu0 %v44
    %v46 = vand.u32 %v42, 4294901760
    %47 = vmatpush.msra.mxu0 %v46
    %v48 = vand.u32 %v41, 4294901760
    %49 = vmatpush.msra.mxu0 %v48
    %v50 = vand.u32 %v40, 4294901760
    %51 = vmatpush.msra.mxu0 %v50
    %v52 = vand.u32 %v39, 4294901760
    %53 = vmatpush.msra.mxu0 %v52
    %v54 = vand.u32 %v38, 4294901760
    %55 = vmatpush.msra.mxu0 %v54
    %v56 = vand.u32 %v37, 4294901760
    %57 = vmatpush.msra.mxu0 %v56
    %v58 = vand.u32 %v36, 4294901760
    %59 = vmatpush.msra.mxu0 %v58
    %v60 = vand.u32 %v35, 4294901760
    %61 = vmatpush.msra.mxu0 %v60
    %v62 = vand.u32 %v34, 4294901760
    %63 = vmatpush.msra.mxu0 %v62
    %v64 = vand.u32 %v33, 4294901760
    %65 = vmatpush.msra.mxu0 %v64
    %v66 = vand.u32 %v32, 4294901760
    %67 = vmatpush.msra.mxu0 %v66
    %v68 = vand.u32 %v31, 4294901760
    %69 = vmatpush.msra.mxu0 %v68
    %v70 = vand.u32 %v30, 4294901760
    %71 = vmatpush.msra.mxu0 %v70
    %v72 = vand.u32 %v29, 4294901760
    %73 = vmatpush.msra.mxu0 %v72
    %v74 = vand.u32 %v28, 4294901760
    %75 = vmatpush.msra.mxu0 %v74
    %v76 = vand.u32 %v27, 4294901760
    %v77 = vsub.f32 %v27, %v76
    %v78 = vand.u32 %v77, 4294901760
    %v79 = vsub.f32 %v77, %v78
    %v80 = vand.u32 %v79, 4294901760
    %81 = vmatmul.f32.gmra.mxu0 %v80
    %v82 = vpop.f32.mrf.mxu0
    %v83 = vadd.f32 0.0, %v82
    %84 = vdwg.mxu0
    %v85 = vand.u32 %v43, 4294901760
    %v86 = vsub.f32 %v43, %v85
    %v87 = vand.u32 %v86, 4294901760
    %v88 = vsub.f32 %v86, %v87
    %v89 = vand.u32 %v88, 4294901760
    %90 = vmatpush.msra.mxu0 %v89
    %v91 = vand.u32 %v42, 4294901760
    %v92 = vsub.f32 %v42, %v91
    %v93 = vand.u32 %v92, 4294901760
    %v94 = vsub.f32 %v92, %v93
    %v95 = vand.u32 %v94, 4294901760
    %96 = vmatpush.msra.mxu0 %v95
    %v97 = vand.u32 %v41, 4294901760
    %v98 = vsub.f32 %v41, %v97
    %v99 = vand.u32 %v98, 4294901760
    %v100 = vsub.f32 %v98, %v99
    %v101 = vand.u32 %v100, 4294901760
    %102 = vmatpush.msra.mxu0 %v101
    %v103 = vand.u32 %v40, 4294901760
    %v104 = vsub.f32 %v40, %v103
    %v105 = vand.u32 %v104, 4294901760
    %v106 = vsub.f32 %v104, %v105
    %v107 = vand.u32 %v106, 4294901760
    %108 = vmatpush.msra.mxu0 %v107
    %v109 = vand.u32 %v39, 4294901760
    %v110 = vsub.f32 %v39, %v109
    %v111 = vand.u32 %v110, 4294901760
    %v112 = vsub.f32 %v110, %v111
    %v113 = vand.u32 %v112, 4294901760
    %114 = vmatpush.msra.mxu0 %v113
    %v115 = vand.u32 %v38, 4294901760
    %v116 = vsub.f32 %v38, %v115
    %v117 = vand.u32 %v116, 4294901760
    %v118 = vsub.f32 %v116, %v117
    %v119 = vand.u32 %v118, 4294901760
    %120 = vmatpush.msra.mxu0 %v119
    %v121 = vand.u32 %v37, 4294901760
    %v122 = vsub.f32 %v37, %v121
    %v123 = vand.u32 %v122, 4294901760
    %v124 = vsub.f32 %v122, %v123
    %v125 = vand.u32 %v124, 4294901760
    %126 = vmatpush.msra.mxu0 %v125
    %v127 = vand.u32 %v36, 4294901760
    %v128 = vsub.f32 %v36, %v127
    %v129 = vand.u32 %v128, 4294901760
    %v130 = vsub.f32 %v128, %v129
    %v131 = vand.u32 %v130, 4294901760
    %132 = vmatpush.msra.mxu0 %v131
    %v133 = vand.u32 %v35, 4294901760
    %v134 = vsub.f32 %v35, %v133
    %v135 = vand.u32 %v134, 4294901760
    %v136 = vsub.f32 %v134, %v135
    %v137 = vand.u32 %v136, 4294901760
    %138 = vmatpush.msra.mxu0 %v137
    %v139 = vand.u32 %v34, 4294901760
    %v140 = vsub.f32 %v34, %v139
    %v141 = vand.u32 %v140, 4294901760
    %v142 = vsub.f32 %v140, %v141
    %v143 = vand.u32 %v142, 4294901760
    %144 = vmatpush.msra.mxu0 %v143
    %v145 = vand.u32 %v33, 4294901760
    %v146 = vsub.f32 %v33, %v145
    %v147 = vand.u32 %v146, 4294901760
    %v148 = vsub.f32 %v146, %v147
    %v149 = vand.u32 %v148, 4294901760
    %150 = vmatpush.msra.mxu0 %v149
    %v151 = vand.u32 %v32, 4294901760
    %v152 = vsub.f32 %v32, %v151
    %v153 = vand.u32 %v152, 4294901760
    %v154 = vsub.f32 %v152, %v153
    %v155 = vand.u32 %v154, 4294901760
    %156 = vmatpush.msra.mxu0 %v155
    %v157 = vand.u32 %v31, 4294901760
    %v158 = vsub.f32 %v31, %v157
    %v159 = vand.u32 %v158, 4294901760
    %v160 = vsub.f32 %v158, %v159
    %v161 = vand.u32 %v160, 4294901760
    %162 = vmatpush.msra.mxu0 %v161
    %v163 = vand.u32 %v30, 4294901760
    %v164 = vsub.f32 %v30, %v163
    %v165 = vand.u32 %v164, 4294901760
    %v166 = vsub.f32 %v164, %v165
    %v167 = vand.u32 %v166, 4294901760
    %168 = vmatpush.msra.mxu0 %v167
    %v169 = vand.u32 %v29, 4294901760
    %v170 = vsub.f32 %v29, %v169
    %v171 = vand.u32 %v170, 4294901760
    %v172 = vsub.f32 %v170, %v171
    %v173 = vand.u32 %v172, 4294901760
    %174 = vmatpush.msra.mxu0 %v173
    %v175 = vand.u32 %v28, 4294901760
    %v176 = vsub.f32 %v28, %v175
    %v177 = vand.u32 %v176, 4294901760
    %v178 = vsub.f32 %v176, %v177
    %v179 = vand.u32 %v178, 4294901760
    %180 = vmatpush.msra.mxu0 %v179
    %v181 = vand.u32 %v27, 4294901760
    %182 = vmatmul.f32.gmra.mxu0 %v181
    %v183 = vpop.f32.mrf.mxu0
    %v184 = vadd.f32 %v83, %v183
    %185 = vdwg.mxu0
    %v186 = vand.u32 %v43, 4294901760
    %v187 = vsub.f32 %v43, %v186
    %188 = vmatpush.msra.mxu0 %v187
    %v189 = vand.u32 %v42, 4294901760
    %v190 = vsub.f32 %v42, %v189
    %191 = vmatpush.msra.mxu0 %v190
    %v192 = vand.u32 %v41, 4294901760
    %v193 = vsub.f32 %v41, %v192
    %194 = vmatpush.msra.mxu0 %v193
    %v195 = vand.u32 %v40, 4294901760
    %v196 = vsub.f32 %v40, %v195
    %197 = vmatpush.msra.mxu0 %v196
    %v198 = vand.u32 %v39, 4294901760
    %v199 = vsub.f32 %v39, %v198
    %200 = vmatpush.msra.mxu0 %v199
    %v201 = vand.u32 %v38, 4294901760
    %v202 = vsub.f32 %v38, %v201
    %203 = vmatpush.msra.mxu0 %v202
    %v204 = vand.u32 %v37, 4294901760
    %v205 = vsub.f32 %v37, %v204
    %206 = vmatpush.msra.mxu0 %v205
    %v207 = vand.u32 %v36, 4294901760
    %v208 = vsub.f32 %v36, %v207
    %209 = vmatpush.msra.mxu0 %v208
    %v210 = vand.u32 %v35, 4294901760
    %v211 = vsub.f32 %v35, %v210
    %212 = vmatpush.msra.mxu0 %v211
    %v213 = vand.u32 %v34, 4294901760
    %v214 = vsub.f32 %v34, %v213
    %215 = vmatpush.msra.mxu0 %v214
    %v216 = vand.u32 %v33, 4294901760
    %v217 = vsub.f32 %v33, %v216
    %218 = vmatpush.msra.mxu0 %v217
    %v219 = vand.u32 %v32, 4294901760
    %v220 = vsub.f32 %v32, %v219
    %221 = vmatpush.msra.mxu0 %v220
    %v222 = vand.u32 %v31, 4294901760
    %v223 = vsub.f32 %v31, %v222
    %224 = vmatpush.msra.mxu0 %v223
    %v225 = vand.u32 %v30, 4294901760
    %v226 = vsub.f32 %v30, %v225
    %227 = vmatpush.msra.mxu0 %v226
    %v228 = vand.u32 %v29, 4294901760
    %v229 = vsub.f32 %v29, %v228
    %230 = vmatpush.msra.mxu0 %v229
    %v231 = vand.u32 %v28, 4294901760
    %v232 = vsub.f32 %v28, %v231
    %233 = vmatpush.msra.mxu0 %v232
    %v234 = vand.u32 %v27, 4294901760
    %v235 = vsub.f32 %v27, %v234
    %236 = vmatmul.f32.gmra.mxu0 %v235
    %v237 = vpop.f32.mrf.mxu0
    %v238 = vadd.f32 %v184, %v237
    %239 = vdwg.mxu0
    %v240 = vand.u32 %v43, 4294901760
    %241 = vmatpush.msra.mxu0 %v240
    %v242 = vand.u32 %v42, 4294901760
    %243 = vmatpush.msra.mxu0 %v242
    %v244 = vand.u32 %v41, 4294901760
    %245 = vmatpush.msra.mxu0 %v244
    %v246 = vand.u32 %v40, 4294901760
    %247 = vmatpush.msra.mxu0 %v246
    %v248 = vand.u32 %v39, 4294901760
    %249 = vmatpush.msra.mxu0 %v248
    %v250 = vand.u32 %v38, 4294901760
    %251 = vmatpush.msra.mxu0 %v250
    %v252 = vand.u32 %v37, 4294901760
    %253 = vmatpush.msra.mxu0 %v252
    %v254 = vand.u32 %v36, 4294901760
    %255 = vmatpush.msra.mxu0 %v254
    %v256 = vand.u32 %v35, 4294901760
    %257 = vmatpush.msra.mxu0 %v256
    %v258 = vand.u32 %v34, 4294901760
    %259 = vmatpush.msra.mxu0 %v258
    %v260 = vand.u32 %v33, 4294901760
    %261 = vmatpush.msra.mxu0 %v260
    %v262 = vand.u32 %v32, 4294901760
    %263 = vmatpush.msra.mxu0 %v262
    %v264 = vand.u32 %v31, 4294901760
    %265 = vmatpush.msra.mxu0 %v264
    %v266 = vand.u32 %v30, 4294901760
    %267 = vmatpush.msra.mxu0 %v266
    %v268 = vand.u32 %v29, 4294901760
    %269 = vmatpush.msra.mxu0 %v268
    %v270 = vand.u32 %v28, 4294901760
    %271 = vmatpush.msra.mxu0 %v270
    %v272 = vand.u32 %v27, 4294901760
    %v273 = vsub.f32 %v27, %v272
    %v274 = vand.u32 %v273, 4294901760
    %275 = vmatmul.f32.gmra.mxu0 %v274
    %v276 = vpop.f32.mrf.mxu0
    %v277 = vadd.f32 %v238, %v276
    %278 = vdwg.mxu0
    %v279 = vand.u32 %v43, 4294901760
    %v280 = vsub.f32 %v43, %v279
    %v281 = vand.u32 %v280, 4294901760
    %282 = vmatpush.msra.mxu0 %v281
    %v283 = vand.u32 %v42, 4294901760
    %v284 = vsub.f32 %v42, %v283
    %v285 = vand.u32 %v284, 4294901760
    %286 = vmatpush.msra.mxu0 %v285
    %v287 = vand.u32 %v41, 4294901760
    %v288 = vsub.f32 %v41, %v287
    %v289 = vand.u32 %v288, 4294901760
    %290 = vmatpush.msra.mxu0 %v289
    %v291 = vand.u32 %v40, 4294901760
    %v292 = vsub.f32 %v40, %v291
    %v293 = vand.u32 %v292, 4294901760
    %294 = vmatpush.msra.mxu0 %v293
    %v295 = vand.u32 %v39, 4294901760
    %v296 = vsub.f32 %v39, %v295
    %v297 = vand.u32 %v296, 4294901760
    %298 = vmatpush.msra.mxu0 %v297
    %v299 = vand.u32 %v38, 4294901760
    %v300 = vsub.f32 %v38, %v299
    %v301 = vand.u32 %v300, 4294901760
    %302 = vmatpush.msra.mxu0 %v301
    %v303 = vand.u32 %v37, 4294901760
    %v304 = vsub.f32 %v37, %v303
    %v305 = vand.u32 %v304, 4294901760
    %306 = vmatpush.msra.mxu0 %v305
    %v307 = vand.u32 %v36, 4294901760
    %v308 = vsub.f32 %v36, %v307
    %v309 = vand.u32 %v308, 4294901760
    %310 = vmatpush.msra.mxu0 %v309
    %v311 = vand.u32 %v35, 4294901760
    %v312 = vsub.f32 %v35, %v311
    %v313 = vand.u32 %v312, 4294901760
    %314 = vmatpush.msra.mxu0 %v313
    %v315 = vand.u32 %v34, 4294901760
    %v316 = vsub.f32 %v34, %v315
    %v317 = vand.u32 %v316, 4294901760
    %318 = vmatpush.msra.mxu0 %v317
    %v319 = vand.u32 %v33, 4294901760
    %v320 = vsub.f32 %v33, %v319
    %v321 = vand.u32 %v320, 4294901760
    %322 = vmatpush.msra.mxu0 %v321
    %v323 = vand.u32 %v32, 4294901760
    %v324 = vsub.f32 %v32, %v323
    %v325 = vand.u32 %v324, 4294901760
    %326 = vmatpush.msra.mxu0 %v325
    %v327 = vand.u32 %v31, 4294901760
    %v328 = vsub.f32 %v31, %v327
    %v329 = vand.u32 %v328, 4294901760
    %330 = vmatpush.msra.mxu0 %v329
    %v331 = vand.u32 %v30, 4294901760
    %v332 = vsub.f32 %v30, %v331
    %v333 = vand.u32 %v332, 4294901760
    %334 = vmatpush.msra.mxu0 %v333
    %v335 = vand.u32 %v29, 4294901760
    %v336 = vsub.f32 %v29, %v335
    %v337 = vand.u32 %v336, 4294901760
    %338 = vmatpush.msra.mxu0 %v337
    %v339 = vand.u32 %v28, 4294901760
    %v340 = vsub.f32 %v28, %v339
    %v341 = vand.u32 %v340, 4294901760
    %342 = vmatpush.msra.mxu0 %v341
    %v343 = vand.u32 %v27, 4294901760
    %344 = vmatmul.f32.gmra.mxu0 %v343
    %v345 = vpop.f32.mrf.mxu0
    %v346 = vadd.f32 %v277, %v345
    %347 = vdwg.mxu0
    %v348 = vand.u32 %v43, 4294901760
    %349 = vmatpush.msra.mxu0 %v348
    %v350 = vand.u32 %v42, 4294901760
    %351 = vmatpush.msra.mxu0 %v350
    %v352 = vand.u32 %v41, 4294901760
    %353 = vmatpush.msra.mxu0 %v352
    %v354 = vand.u32 %v40, 4294901760
    %355 = vmatpush.msra.mxu0 %v354
    %v356 = vand.u32 %v39, 4294901760
    %357 = vmatpush.msra.mxu0 %v356
    %v358 = vand.u32 %v38, 4294901760
    %359 = vmatpush.msra.mxu0 %v358
    %v360 = vand.u32 %v37, 4294901760
    %361 = vmatpush.msra.mxu0 %v360
    %v362 = vand.u32 %v36, 4294901760
    %363 = vmatpush.msra.mxu0 %v362
    %v364 = vand.u32 %v35, 4294901760
    %365 = vmatpush.msra.mxu0 %v364
    %v366 = vand.u32 %v34, 4294901760
    %367 = vmatpush.msra.mxu0 %v366
    %v368 = vand.u32 %v33, 4294901760
    %369 = vmatpush.msra.mxu0 %v368
    %v370 = vand.u32 %v32, 4294901760
    %371 = vmatpush.msra.mxu0 %v370
    %v372 = vand.u32 %v31, 4294901760
    %373 = vmatpush.msra.mxu0 %v372
    %v374 = vand.u32 %v30, 4294901760
    %375 = vmatpush.msra.mxu0 %v374
    %v376 = vand.u32 %v29, 4294901760
    %377 = vmatpush.msra.mxu0 %v376
    %v378 = vand.u32 %v28, 4294901760
    %379 = vmatpush.msra.mxu0 %v378
    %v380 = vand.u32 %v27, 4294901760
    %381 = vmatmul.f32.gmra.mxu0 %v380
    %v382 = vpop.f32.mrf.mxu0
    %v383 = vadd.f32 %v346, %v382
    %384 = vdwg.mxu0
    %v385 = vand.u32 2147483647, %v383
    %vm386 = vcmp.le.f32.partialorder %v385, 0.7853982
    %vm387 = vcmp.lt.s32.totalorder %v383, 0
    %v388 = vand.u32 %v383, 2139095040
    %v389 = vshrl.u32 %v388, 23
    %v390 = vsub.s32 %v389, 127
    %v391 = vand.u32 2147483647, %v383
    %v392 = vand.u32 %v391, 8388607
    %v393 = vor.u32 %v392, 8388608
    %v394 = vsub.s32 0, %v393
    %v395 = vadd.s32 %v390, 1
    %vm396 = vcmp.gt.s32.totalorder %v395, 0
    %v397 = vsel %vm396, %v395, 0
    %v398 = vshrl.u32 %v397, 5
    %v399 = vand.u32 %v397, 31
    %v400 = vsub.s32 32, %v399
    %v401 = vshrl.u32 683565275, %v400
    %v402 = vshll.u32 683565275, %v399
    %v403 = vshrl.u32 2475754826, %v400
    %v404 = vor.u32 %v402, %v403
    %v405 = vshll.u32 2475754826, %v399
    %v406 = vshrl.u32 2131351028, %v400
    %v407 = vor.u32 %v405, %v406
    %v408 = vshll.u32 2131351028, %v399
    %v409 = vshrl.u32 2102212464, %v400
    %v410 = vor.u32 %v408, %v409
    %v411 = vshll.u32 2102212464, %v399
    %v412 = vshrl.u32 920167782, %v400
    %v413 = vor.u32 %v411, %v412
    %v414 = vshll.u32 920167782, %v399
    %v415 = vshrl.u32 1326507024, %v400
    %v416 = vor.u32 %v414, %v415
    %vm417 = vcmp.lt.s32.totalorder %v398, 1
    %vm418 = vcmp.lt.s32.totalorder %v398, 2
    %vm419 = vcmp.lt.s32.totalorder %v398, 3
    %vm420 = vcmp.lt.s32.totalorder %v398, 4
    %v421 = vsel %vm417, %v401, %v404
    %v422 = vsel %vm420, %v410, 2102212464
    %v423 = vsel %vm419, %v407, %v422
    %v424 = vsel %vm418, %v421, %v423
    %v425 = vsel %vm417, %v404, %v407
    %v426 = vsel %vm420, %v413, 920167782
    %v427 = vsel %vm419, %v410, %v426
    %v428 = vsel %vm418, %v425, %v427
    %v429 = vsel %vm417, %v407, %v410
    %v430 = vsel %vm420, %v416, 1326507024
    %v431 = vsel %vm419, %v413, %v430
    %v432 = vsel %vm418, %v429, %v431
    %v433 = vshll.u32 %v393, 8
    %v434 = vand.u32 %v433, 65535
    %v435 = vshrl.u32 %v433, 16
    %v436 = vand.u32 %v432, 65535
    %v437 = vshrl.u32 %v432, 16
    %v438 = vmul.u32 %v434, %v436
    %v439 = vmul.u32 %v434, %v437
    %v440 = vmul.u32 %v435, %v436
    %v441 = vmul.u32 %v435, %v437
    %v442 = vshll.u32 %v439, 16
    %v443 = vshrl.u32 %v439, 16
    %v444 = vshll.u32 %v440, 16
    %v445 = vshrl.u32 %v440, 16
    %vm446 = vc.u32 %v438, %v442
    %v447 = vsel %vm446, 1, 0
    %v448 = vadd.s32 %v438, %v442
    %v449 = vadd.s32 %v441, %v447
    %vm450 = vc.u32 %v448, %v444
    %v451 = vsel %vm450, 1, 0
    %v452 = vadd.s32 %v448, %v444
    %v453 = vadd.s32 %v449, %v451
    %v454 = vadd.s32 %v453, %v443
    %v455 = vadd.s32 %v454, %v445
    %v456 = vand.u32 %v433, 65535
    %v457 = vshrl.u32 %v433, 16
    %v458 = vand.u32 %v428, 65535
    %v459 = vshrl.u32 %v428, 16
    %v460 = vmul.u32 %v456, %v458
    %v461 = vmul.u32 %v456, %v459
    %v462 = vmul.u32 %v457, %v458
    %v463 = vmul.u32 %v457, %v459
    %v464 = vshll.u32 %v461, 16
    %v465 = vshrl.u32 %v461, 16
    %v466 = vshll.u32 %v462, 16
    %v467 = vshrl.u32 %v462, 16
    %vm468 = vc.u32 %v460, %v464
    %v469 = vsel %vm468, 1, 0
    %v470 = vadd.s32 %v460, %v464
    %v471 = vadd.s32 %v463, %v469
    %vm472 = vc.u32 %v470, %v466
    %v473 = vsel %vm472, 1, 0
    %v474 = vadd.s32 %v470, %v466
    %v475 = vadd.s32 %v471, %v473
    %v476 = vadd.s32 %v475, %v465
    %v477 = vadd.s32 %v476, %v467
    %v478 = vmul.u32 %v433, %v424
    %v479 = vadd.s32 %v455, %v474
    %vm480 = vc.u32 %v455, %v474
    %v481 = vadd.s32 %v477, 1
    %v482 = vsel %vm480, %v481, %v477
    %v483 = vadd.s32 %v478, %v482
    %v484 = vadd.s32 %v483, 536870912
    %v485 = vshrl.u32 %v484, 30
    %v486 = vshll.u32 %v485, 30
    %v487 = vsub.s32 %v483, %v486
    %vm488 = vcmp.lt.s32.totalorder %v487, 0
    %v489 = vsub.s32 0, %v487
    %v490 = vsel %vm488, %v489, %v487
    %v491 = vclz %v490
    %v492 = vsub.s32 %v491, 2
    %vm493 = vcmp.gt.s32.totalorder 0, %v492
    %v494 = vsel %vm493, 0, %v492
    %v495 = vsub.s32 32, %v494
    %v496 = vshll.u32 %v487, %v494
    %v497 = vshrl.u32 %v479, %v495
    %v498 = vor.u32 %v496, %v497
    %v499 = vsub.s32 4294967266, %v494
    %v500 = vadd.s32 %v499, 127
    %v501 = vshll.u32 %v500, 23
    %v502 = vor.u32 4788187, %v501
    %v503 = vand.u32 2147483647, %v502
    %v505 = vcvt.s32.f32 %v498
    %v506 = vmul.f32 %v505, %v503
    %v507 = vxor.u32 %v506, 2147483648
    %v508 = vsel %vm387, %v507, %v506
    %v509 = vsub.s32 4, %v485
    %v510 = vsel %vm387, %v509, %v485
    %v511 = vsel %vm386, %v383, %v508
    %v512 = vsel %vm386, 0, %v510
    %v513 = vmul.f32 %v511, %v511
    %v514 = vmul.f32 %v513, -0.001358992
    %v515 = vadd.f32 %v514, 0.041655596
    %v516 = vmul.f32 %v513, %v515
    %v517 = vadd.f32 %v516, -0.4999988
    %v518 = vmul.f32 %v513, %v517
    %v519 = vadd.f32 1.0, %v518
    %v520 = vmul.f32 %v511, %v511
    %v521 = vmul.f32 %v520, -0.00019511016
    %v522 = vadd.f32 %v521, 0.008332121
    %v523 = vmul.f32 %v520, %v522
    %v524 = vadd.f32 %v523, -0.16666654
    %v525 = vmul.f32 %v520, %v524
    %v526 = vadd.f32 %v525, 1.0
    %v527 = vmul.f32 %v526, %v511
    %vm528 = vweird.f32 %v383
    %v529 = vadd.s32 %v512, 3
    %v530 = vand.u32 %v529, 3
    %vm531 = vcmp.lt.s32.totalorder %v530, 2
    %vm532 = vcmp.eq.s32.totalorder %v530, 0
    %v533 = vxor.u32 %v527, 2147483648
    %v534 = vsel %vm532, %v519, %v533
    %vm535 = vcmp.eq.s32.totalorder %v530, 2
    %v536 = vxor.u32 %v519, 2147483648
    %v537 = vsel %vm535, %v536, %v527
    %v538 = vsel %vm531, %v534, %v537
    %v539 = vsel %vm528, nan, %v538
    %v541 = vrot.slane %v539, 1
    %v542 = vrot.slane %v539, 2
    %v543 = vrot.slane %v539, 3
    %v544 = vrot.slane %v539, 4
    %v545 = vrot.slane %v539, 5
    %v546 = vrot.slane %v539, 6
    %v547 = vrot.slane %v539, 7
    %v555 = vlaneseq
    %vm556 = vcmp.ge.s32.totalorder %v555, 0
    %vm557 = vcmp.lt.s32.totalorder %v555, 128
    %vm558 = vmand %vm556, %vm557
    %559 = vst.msk [vmem:[#allocation4] sm:$0x1] %vm558, %v539
    %560 = vst.msk [vmem:[#allocation4 + $0x10] sm:$0x1] %vm558, %v541
    %561 = vst.msk [vmem:[#allocation4 + $0x20] sm:$0x1] %vm558, %v542
    %562 = vst.msk [vmem:[#allocation4 + $0x30] sm:$0x1] %vm558, %v543
    %563 = vst.msk [vmem:[#allocation4 + $0x40] sm:$0x1] %vm558, %v544
    %564 = vst.msk [vmem:[#allocation4 + $0x50] sm:$0x1] %vm558, %v545
    %565 = vst.msk [vmem:[#allocation4 + $0x60] sm:$0x1] %vm558, %v546
    %566 = vst.msk [vmem:[#allocation4 + $0x70] sm:$0x1] %vm558, %v547
    %s567 = scalar_lea.vmem [#allocation2], 128
    %v568 = vld [vmem:[%s567] sm:$0xff]
    %v569 = vld [vmem:[%s567 + $0x8] sm:$0xff]
    %v570 = vld [vmem:[%s567 + $0x10] sm:$0xff]
    %v571 = vld [vmem:[%s567 + $0x18] sm:$0xff]
    %v572 = vld [vmem:[%s567 + $0x20] sm:$0xff]
    %v573 = vld [vmem:[%s567 + $0x28] sm:$0xff]
    %v574 = vld [vmem:[%s567 + $0x30] sm:$0xff]
    %v575 = vld [vmem:[%s567 + $0x38] sm:$0xff]
    %v576 = vld [vmem:[%s567 + $0x40] sm:$0xff]
    %v577 = vld [vmem:[%s567 + $0x48] sm:$0xff]
    %v578 = vld [vmem:[%s567 + $0x50] sm:$0xff]
    %v579 = vld [vmem:[%s567 + $0x58] sm:$0xff]
    %v580 = vld [vmem:[%s567 + $0x60] sm:$0xff]
    %v581 = vld [vmem:[%s567 + $0x68] sm:$0xff]
    %v582 = vld [vmem:[%s567 + $0x70] sm:$0xff]
    %v583 = vld [vmem:[%s567 + $0x78] sm:$0xff]
    %v584 = vand.u32 %v583, 4294901760
    %585 = vmatpush.msra.mxu0 %v584
    %v586 = vand.u32 %v582, 4294901760
    %587 = vmatpush.msra.mxu0 %v586
    %v588 = vand.u32 %v581, 4294901760
    %589 = vmatpush.msra.mxu0 %v588
    %v590 = vand.u32 %v580, 4294901760
    %591 = vmatpush.msra.mxu0 %v590
    %v592 = vand.u32 %v579, 4294901760
    %593 = vmatpush.msra.mxu0 %v592
    %v594 = vand.u32 %v578, 4294901760
    %595 = vmatpush.msra.mxu0 %v594
    %v596 = vand.u32 %v577, 4294901760
    %597 = vmatpush.msra.mxu0 %v596
    %v598 = vand.u32 %v576, 4294901760
    %599 = vmatpush.msra.mxu0 %v598
    %v600 = vand.u32 %v575, 4294901760
    %601 = vmatpush.msra.mxu0 %v600
    %v602 = vand.u32 %v574, 4294901760
    %603 = vmatpush.msra.mxu0 %v602
    %v604 = vand.u32 %v573, 4294901760
    %605 = vmatpush.msra.mxu0 %v604
    %v606 = vand.u32 %v572, 4294901760
    %607 = vmatpush.msra.mxu0 %v606
    %v608 = vand.u32 %v571, 4294901760
    %609 = vmatpush.msra.mxu0 %v608
    %v610 = vand.u32 %v570, 4294901760
    %611 = vmatpush.msra.mxu0 %v610
    %v612 = vand.u32 %v569, 4294901760
    %613 = vmatpush.msra.mxu0 %v612
    %v614 = vand.u32 %v568, 4294901760
    %615 = vmatpush.msra.mxu0 %v614
    %v616 = vand.u32 %v27, 4294901760
    %v617 = vsub.f32 %v27, %v616
    %v618 = vand.u32 %v617, 4294901760
    %v619 = vsub.f32 %v617, %v618
    %v620 = vand.u32 %v619, 4294901760
    %621 = vmatmul.f32.gmra.mxu0 %v620
    %v622 = vpop.f32.mrf.mxu0
    %v623 = vadd.f32 0.0, %v622
    %624 = vdwg.mxu0
    %v625 = vand.u32 %v583, 4294901760
    %v626 = vsub.f32 %v583, %v625
    %v627 = vand.u32 %v626, 4294901760
    %v628 = vsub.f32 %v626, %v627
    %v629 = vand.u32 %v628, 4294901760
    %630 = vmatpush.msra.mxu0 %v629
    %v631 = vand.u32 %v582, 4294901760
    %v632 = vsub.f32 %v582, %v631
    %v633 = vand.u32 %v632, 4294901760
    %v634 = vsub.f32 %v632, %v633
    %v635 = vand.u32 %v634, 4294901760
    %636 = vmatpush.msra.mxu0 %v635
    %v637 = vand.u32 %v581, 4294901760
    %v638 = vsub.f32 %v581, %v637
    %v639 = vand.u32 %v638, 4294901760
    %v640 = vsub.f32 %v638, %v639
    %v641 = vand.u32 %v640, 4294901760
    %642 = vmatpush.msra.mxu0 %v641
    %v643 = vand.u32 %v580, 4294901760
    %v644 = vsub.f32 %v580, %v643
    %v645 = vand.u32 %v644, 4294901760
    %v646 = vsub.f32 %v644, %v645
    %v647 = vand.u32 %v646, 4294901760
    %648 = vmatpush.msra.mxu0 %v647
    %v649 = vand.u32 %v579, 4294901760
    %v650 = vsub.f32 %v579, %v649
    %v651 = vand.u32 %v650, 4294901760
    %v652 = vsub.f32 %v650, %v651
    %v653 = vand.u32 %v652, 4294901760
    %654 = vmatpush.msra.mxu0 %v653
    %v655 = vand.u32 %v578, 4294901760
    %v656 = vsub.f32 %v578, %v655
    %v657 = vand.u32 %v656, 4294901760
    %v658 = vsub.f32 %v656, %v657
    %v659 = vand.u32 %v658, 4294901760
    %660 = vmatpush.msra.mxu0 %v659
    %v661 = vand.u32 %v577, 4294901760
    %v662 = vsub.f32 %v577, %v661
    %v663 = vand.u32 %v662, 4294901760
    %v664 = vsub.f32 %v662, %v663
    %v665 = vand.u32 %v664, 4294901760
    %666 = vmatpush.msra.mxu0 %v665
    %v667 = vand.u32 %v576, 4294901760
    %v668 = vsub.f32 %v576, %v667
    %v669 = vand.u32 %v668, 4294901760
    %v670 = vsub.f32 %v668, %v669
    %v671 = vand.u32 %v670, 4294901760
    %672 = vmatpush.msra.mxu0 %v671
    %v673 = vand.u32 %v575, 4294901760
    %v674 = vsub.f32 %v575, %v673
    %v675 = vand.u32 %v674, 4294901760
    %v676 = vsub.f32 %v674, %v675
    %v677 = vand.u32 %v676, 4294901760
    %678 = vmatpush.msra.mxu0 %v677
    %v679 = vand.u32 %v574, 4294901760
    %v680 = vsub.f32 %v574, %v679
    %v681 = vand.u32 %v680, 4294901760
    %v682 = vsub.f32 %v680, %v681
    %v683 = vand.u32 %v682, 4294901760
    %684 = vmatpush.msra.mxu0 %v683
    %v685 = vand.u32 %v573, 4294901760
    %v686 = vsub.f32 %v573, %v685
    %v687 = vand.u32 %v686, 4294901760
    %v688 = vsub.f32 %v686, %v687
    %v689 = vand.u32 %v688, 4294901760
    %690 = vmatpush.msra.mxu0 %v689
    %v691 = vand.u32 %v572, 4294901760
    %v692 = vsub.f32 %v572, %v691
    %v693 = vand.u32 %v692, 4294901760
    %v694 = vsub.f32 %v692, %v693
    %v695 = vand.u32 %v694, 4294901760
    %696 = vmatpush.msra.mxu0 %v695
    %v697 = vand.u32 %v571, 4294901760
    %v698 = vsub.f32 %v571, %v697
    %v699 = vand.u32 %v698, 4294901760
    %v700 = vsub.f32 %v698, %v699
    %v701 = vand.u32 %v700, 4294901760
    %702 = vmatpush.msra.mxu0 %v701
    %v703 = vand.u32 %v570, 4294901760
    %v704 = vsub.f32 %v570, %v703
    %v705 = vand.u32 %v704, 4294901760
    %v706 = vsub.f32 %v704, %v705
    %v707 = vand.u32 %v706, 4294901760
    %708 = vmatpush.msra.mxu0 %v707
    %v709 = vand.u32 %v569, 4294901760
    %v710 = vsub.f32 %v569, %v709
    %v711 = vand.u32 %v710, 4294901760
    %v712 = vsub.f32 %v710, %v711
    %v713 = vand.u32 %v712, 4294901760
    %714 = vmatpush.msra.mxu0 %v713
    %v715 = vand.u32 %v568, 4294901760
    %v716 = vsub.f32 %v568, %v715
    %v717 = vand.u32 %v716, 4294901760
    %v718 = vsub.f32 %v716, %v717
    %v719 = vand.u32 %v718, 4294901760
    %720 = vmatpush.msra.mxu0 %v719
    %v721 = vand.u32 %v27, 4294901760
    %722 = vmatmul.f32.gmra.mxu0 %v721
    %v723 = vpop.f32.mrf.mxu0
    %v724 = vadd.f32 %v623, %v723
    %725 = vdwg.mxu0
    %v726 = vand.u32 %v583, 4294901760
    %v727 = vsub.f32 %v583, %v726
    %728 = vmatpush.msra.mxu0 %v727
    %v729 = vand.u32 %v582, 4294901760
    %v730 = vsub.f32 %v582, %v729
    %731 = vmatpush.msra.mxu0 %v730
    %v732 = vand.u32 %v581, 4294901760
    %v733 = vsub.f32 %v581, %v732
    %734 = vmatpush.msra.mxu0 %v733
    %v735 = vand.u32 %v580, 4294901760
    %v736 = vsub.f32 %v580, %v735
    %737 = vmatpush.msra.mxu0 %v736
    %v738 = vand.u32 %v579, 4294901760
    %v739 = vsub.f32 %v579, %v738
    %740 = vmatpush.msra.mxu0 %v739
    %v741 = vand.u32 %v578, 4294901760
    %v742 = vsub.f32 %v578, %v741
    %743 = vmatpush.msra.mxu0 %v742
    %v744 = vand.u32 %v577, 4294901760
    %v745 = vsub.f32 %v577, %v744
    %746 = vmatpush.msra.mxu0 %v745
    %v747 = vand.u32 %v576, 4294901760
    %v748 = vsub.f32 %v576, %v747
    %749 = vmatpush.msra.mxu0 %v748
    %v750 = vand.u32 %v575, 4294901760
    %v751 = vsub.f32 %v575, %v750
    %752 = vmatpush.msra.mxu0 %v751
    %v753 = vand.u32 %v574, 4294901760
    %v754 = vsub.f32 %v574, %v753
    %755 = vmatpush.msra.mxu0 %v754
    %v756 = vand.u32 %v573, 4294901760
    %v757 = vsub.f32 %v573, %v756
    %758 = vmatpush.msra.mxu0 %v757
    %v759 = vand.u32 %v572, 4294901760
    %v760 = vsub.f32 %v572, %v759
    %761 = vmatpush.msra.mxu0 %v760
    %v762 = vand.u32 %v571, 4294901760
    %v763 = vsub.f32 %v571, %v762
    %764 = vmatpush.msra.mxu0 %v763
    %v765 = vand.u32 %v570, 4294901760
    %v766 = vsub.f32 %v570, %v765
    %767 = vmatpush.msra.mxu0 %v766
    %v768 = vand.u32 %v569, 4294901760
    %v769 = vsub.f32 %v569, %v768
    %770 = vmatpush.msra.mxu0 %v769
    %v771 = vand.u32 %v568, 4294901760
    %v772 = vsub.f32 %v568, %v771
    %773 = vmatpush.msra.mxu0 %v772
    %v774 = vand.u32 %v27, 4294901760
    %v775 = vsub.f32 %v27, %v774
    %776 = vmatmul.f32.gmra.mxu0 %v775
    %v777 = vpop.f32.mrf.mxu0
    %v778 = vadd.f32 %v724, %v777
    %779 = vdwg.mxu0
    %v780 = vand.u32 %v583, 4294901760
    %781 = vmatpush.msra.mxu0 %v780
    %v782 = vand.u32 %v582, 4294901760
    %783 = vmatpush.msra.mxu0 %v782
    %v784 = vand.u32 %v581, 4294901760
    %785 = vmatpush.msra.mxu0 %v784
    %v786 = vand.u32 %v580, 4294901760
    %787 = vmatpush.msra.mxu0 %v786
    %v788 = vand.u32 %v579, 4294901760
    %789 = vmatpush.msra.mxu0 %v788
    %v790 = vand.u32 %v578, 4294901760
    %791 = vmatpush.msra.mxu0 %v790
    %v792 = vand.u32 %v577, 4294901760
    %793 = vmatpush.msra.mxu0 %v792
    %v794 = vand.u32 %v576, 4294901760
    %795 = vmatpush.msra.mxu0 %v794
    %v796 = vand.u32 %v575, 4294901760
    %797 = vmatpush.msra.mxu0 %v796
    %v798 = vand.u32 %v574, 4294901760
    %799 = vmatpush.msra.mxu0 %v798
    %v800 = vand.u32 %v573, 4294901760
    %801 = vmatpush.msra.mxu0 %v800
    %v802 = vand.u32 %v572, 4294901760
    %803 = vmatpush.msra.mxu0 %v802
    %v804 = vand.u32 %v571, 4294901760
    %805 = vmatpush.msra.mxu0 %v804
    %v806 = vand.u32 %v570, 4294901760
    %807 = vmatpush.msra.mxu0 %v806
    %v808 = vand.u32 %v569, 4294901760
    %809 = vmatpush.msra.mxu0 %v808
    %v810 = vand.u32 %v568, 4294901760
    %811 = vmatpush.msra.mxu0 %v810
    %v812 = vand.u32 %v27, 4294901760
    %v813 = vsub.f32 %v27, %v812
    %v814 = vand.u32 %v813, 4294901760
    %815 = vmatmul.f32.gmra.mxu0 %v814
    %v816 = vpop.f32.mrf.mxu0
    %v817 = vadd.f32 %v778, %v816
    %818 = vdwg.mxu0
    %v819 = vand.u32 %v583, 4294901760
    %v820 = vsub.f32 %v583, %v819
    %v821 = vand.u32 %v820, 4294901760
    %822 = vmatpush.msra.mxu0 %v821
    %v823 = vand.u32 %v582, 4294901760
    %v824 = vsub.f32 %v582, %v823
    %v825 = vand.u32 %v824, 4294901760
    %826 = vmatpush.msra.mxu0 %v825
    %v827 = vand.u32 %v581, 4294901760
    %v828 = vsub.f32 %v581, %v827
    %v829 = vand.u32 %v828, 4294901760
    %830 = vmatpush.msra.mxu0 %v829
    %v831 = vand.u32 %v580, 4294901760
    %v832 = vsub.f32 %v580, %v831
    %v833 = vand.u32 %v832, 4294901760
    %834 = vmatpush.msra.mxu0 %v833
    %v835 = vand.u32 %v579, 4294901760
    %v836 = vsub.f32 %v579, %v835
    %v837 = vand.u32 %v836, 4294901760
    %838 = vmatpush.msra.mxu0 %v837
    %v839 = vand.u32 %v578, 4294901760
    %v840 = vsub.f32 %v578, %v839
    %v841 = vand.u32 %v840, 4294901760
    %842 = vmatpush.msra.mxu0 %v841
    %v843 = vand.u32 %v577, 4294901760
    %v844 = vsub.f32 %v577, %v843
    %v845 = vand.u32 %v844, 4294901760
    %846 = vmatpush.msra.mxu0 %v845
    %v847 = vand.u32 %v576, 4294901760
    %v848 = vsub.f32 %v576, %v847
    %v849 = vand.u32 %v848, 4294901760
    %850 = vmatpush.msra.mxu0 %v849
    %v851 = vand.u32 %v575, 4294901760
    %v852 = vsub.f32 %v575, %v851
    %v853 = vand.u32 %v852, 4294901760
    %854 = vmatpush.msra.mxu0 %v853
    %v855 = vand.u32 %v574, 4294901760
    %v856 = vsub.f32 %v574, %v855
    %v857 = vand.u32 %v856, 4294901760
    %858 = vmatpush.msra.mxu0 %v857
    %v859 = vand.u32 %v573, 4294901760
    %v860 = vsub.f32 %v573, %v859
    %v861 = vand.u32 %v860, 4294901760
    %862 = vmatpush.msra.mxu0 %v861
    %v863 = vand.u32 %v572, 4294901760
    %v864 = vsub.f32 %v572, %v863
    %v865 = vand.u32 %v864, 4294901760
    %866 = vmatpush.msra.mxu0 %v865
    %v867 = vand.u32 %v571, 4294901760
    %v868 = vsub.f32 %v571, %v867
    %v869 = vand.u32 %v868, 4294901760
    %870 = vmatpush.msra.mxu0 %v869
    %v871 = vand.u32 %v570, 4294901760
    %v872 = vsub.f32 %v570, %v871
    %v873 = vand.u32 %v872, 4294901760
    %874 = vmatpush.msra.mxu0 %v873
    %v875 = vand.u32 %v569, 4294901760
    %v876 = vsub.f32 %v569, %v875
    %v877 = vand.u32 %v876, 4294901760
    %878 = vmatpush.msra.mxu0 %v877
    %v879 = vand.u32 %v568, 4294901760
    %v880 = vsub.f32 %v568, %v879
    %v881 = vand.u32 %v880, 4294901760
    %882 = vmatpush.msra.mxu0 %v881
    %v883 = vand.u32 %v27, 4294901760
    %884 = vmatmul.f32.gmra.mxu0 %v883
    %v885 = vpop.f32.mrf.mxu0
    %v886 = vadd.f32 %v817, %v885
    %887 = vdwg.mxu0
    %v888 = vand.u32 %v583, 4294901760
    %889 = vmatpush.msra.mxu0 %v888
    %v890 = vand.u32 %v582, 4294901760
    %891 = vmatpush.msra.mxu0 %v890
    %v892 = vand.u32 %v581, 4294901760
    %893 = vmatpush.msra.mxu0 %v892
    %v894 = vand.u32 %v580, 4294901760
    %895 = vmatpush.msra.mxu0 %v894
    %v896 = vand.u32 %v579, 4294901760
    %897 = vmatpush.msra.mxu0 %v896
    %v898 = vand.u32 %v578, 4294901760
    %899 = vmatpush.msra.mxu0 %v898
    %v900 = vand.u32 %v577, 4294901760
    %901 = vmatpush.msra.mxu0 %v900
    %v902 = vand.u32 %v576, 4294901760
    %903 = vmatpush.msra.mxu0 %v902
    %v904 = vand.u32 %v575, 4294901760
    %905 = vmatpush.msra.mxu0 %v904
    %v906 = vand.u32 %v574, 4294901760
    %907 = vmatpush.msra.mxu0 %v906
    %v908 = vand.u32 %v573, 4294901760
    %909 = vmatpush.msra.mxu0 %v908
    %v910 = vand.u32 %v572, 4294901760
    %911 = vmatpush.msra.mxu0 %v910
    %v912 = vand.u32 %v571, 4294901760
    %913 = vmatpush.msra.mxu0 %v912
    %v914 = vand.u32 %v570, 4294901760
    %915 = vmatpush.msra.mxu0 %v914
    %v916 = vand.u32 %v569, 4294901760
    %917 = vmatpush.msra.mxu0 %v916
    %v918 = vand.u32 %v568, 4294901760
    %919 = vmatpush.msra.mxu0 %v918
    %v920 = vand.u32 %v27, 4294901760
    %921 = vmatmul.f32.gmra.mxu0 %v920
    %v922 = vpop.f32.mrf.mxu0
    %v923 = vadd.f32 %v886, %v922
    %924 = vdwg.mxu0
    %v925 = vand.u32 2147483647, %v923
    %vm926 = vcmp.le.f32.partialorder %v925, 0.7853982
    %vm927 = vcmp.lt.s32.totalorder %v923, 0
    %v928 = vand.u32 %v923, 2139095040
    %v929 = vshrl.u32 %v928, 23
    %v930 = vsub.s32 %v929, 127
    %v931 = vand.u32 2147483647, %v923
    %v932 = vand.u32 %v931, 8388607
    %v933 = vor.u32 %v932, 8388608
    %v934 = vsub.s32 0, %v933
    %v935 = vadd.s32 %v930, 1
    %vm936 = vcmp.gt.s32.totalorder %v935, 0
    %v937 = vsel %vm936, %v935, 0
    %v938 = vshrl.u32 %v937, 5
    %v939 = vand.u32 %v937, 31
    %v940 = vsub.s32 32, %v939
    %v941 = vshrl.u32 683565275, %v940
    %v942 = vshll.u32 683565275, %v939
    %v943 = vshrl.u32 2475754826, %v940
    %v944 = vor.u32 %v942, %v943
    %v945 = vshll.u32 2475754826, %v939
    %v946 = vshrl.u32 2131351028, %v940
    %v947 = vor.u32 %v945, %v946
    %v948 = vshll.u32 2131351028, %v939
    %v949 = vshrl.u32 2102212464, %v940
    %v950 = vor.u32 %v948, %v949
    %v951 = vshll.u32 2102212464, %v939
    %v952 = vshrl.u32 920167782, %v940
    %v953 = vor.u32 %v951, %v952
    %v954 = vshll.u32 920167782, %v939
    %v955 = vshrl.u32 1326507024, %v940
    %v956 = vor.u32 %v954, %v955
    %vm957 = vcmp.lt.s32.totalorder %v938, 1
    %vm958 = vcmp.lt.s32.totalorder %v938, 2
    %vm959 = vcmp.lt.s32.totalorder %v938, 3
    %vm960 = vcmp.lt.s32.totalorder %v938, 4
    %v961 = vsel %vm957, %v941, %v944
    %v962 = vsel %vm960, %v950, 2102212464
    %v963 = vsel %vm959, %v947, %v962
    %v964 = vsel %vm958, %v961, %v963
    %v965 = vsel %vm957, %v944, %v947
    %v966 = vsel %vm960, %v953, 920167782
    %v967 = vsel %vm959, %v950, %v966
    %v968 = vsel %vm958, %v965, %v967
    %v969 = vsel %vm957, %v947, %v950
    %v970 = vsel %vm960, %v956, 1326507024
    %v971 = vsel %vm959, %v953, %v970
    %v972 = vsel %vm958, %v969, %v971
    %v973 = vshll.u32 %v933, 8
    %v974 = vand.u32 %v973, 65535
    %v975 = vshrl.u32 %v973, 16
    %v976 = vand.u32 %v972, 65535
    %v977 = vshrl.u32 %v972, 16
    %v978 = vmul.u32 %v974, %v976
    %v979 = vmul.u32 %v974, %v977
    %v980 = vmul.u32 %v975, %v976
    %v981 = vmul.u32 %v975, %v977
    %v982 = vshll.u32 %v979, 16
    %v983 = vshrl.u32 %v979, 16
    %v984 = vshll.u32 %v980, 16
    %v985 = vshrl.u32 %v980, 16
    %vm986 = vc.u32 %v978, %v982
    %v987 = vsel %vm986, 1, 0
    %v988 = vadd.s32 %v978, %v982
    %v989 = vadd.s32 %v981, %v987
    %vm990 = vc.u32 %v988, %v984
    %v991 = vsel %vm990, 1, 0
    %v992 = vadd.s32 %v988, %v984
    %v993 = vadd.s32 %v989, %v991
    %v994 = vadd.s32 %v993, %v983
    %v995 = vadd.s32 %v994, %v985
    %v996 = vand.u32 %v973, 65535
    %v997 = vshrl.u32 %v973, 16
    %v998 = vand.u32 %v968, 65535
    %v999 = vshrl.u32 %v968, 16
    %v1000 = vmul.u32 %v996, %v998
    %v1001 = vmul.u32 %v996, %v999
    %v1002 = vmul.u32 %v997, %v998
    %v1003 = vmul.u32 %v997, %v999
    %v1004 = vshll.u32 %v1001, 16
    %v1005 = vshrl.u32 %v1001, 16
    %v1006 = vshll.u32 %v1002, 16
    %v1007 = vshrl.u32 %v1002, 16
    %vm1008 = vc.u32 %v1000, %v1004
    %v1009 = vsel %vm1008, 1, 0
    %v1010 = vadd.s32 %v1000, %v1004
    %v1011 = vadd.s32 %v1003, %v1009
    %vm1012 = vc.u32 %v1010, %v1006
    %v1013 = vsel %vm1012, 1, 0
    %v1014 = vadd.s32 %v1010, %v1006
    %v1015 = vadd.s32 %v1011, %v1013
    %v1016 = vadd.s32 %v1015, %v1005
    %v1017 = vadd.s32 %v1016, %v1007
    %v1018 = vmul.u32 %v973, %v964
    %v1019 = vadd.s32 %v995, %v1014
    %vm1020 = vc.u32 %v995, %v1014
    %v1021 = vadd.s32 %v1017, 1
    %v1022 = vsel %vm1020, %v1021, %v1017
    %v1023 = vadd.s32 %v1018, %v1022
    %v1024 = vadd.s32 %v1023, 536870912
    %v1025 = vshrl.u32 %v1024, 30
    %v1026 = vshll.u32 %v1025, 30
    %v1027 = vsub.s32 %v1023, %v1026
    %vm1028 = vcmp.lt.s32.totalorder %v1027, 0
    %v1029 = vsub.s32 0, %v1027
    %v1030 = vsel %vm1028, %v1029, %v1027
    %v1031 = vclz %v1030
    %v1032 = vsub.s32 %v1031, 2
    %vm1033 = vcmp.gt.s32.totalorder 0, %v1032
    %v1034 = vsel %vm1033, 0, %v1032
    %v1035 = vsub.s32 32, %v1034
    %v1036 = vshll.u32 %v1027, %v1034
    %v1037 = vshrl.u32 %v1019, %v1035
    %v1038 = vor.u32 %v1036, %v1037
    %v1039 = vsub.s32 4294967266, %v1034
    %v1040 = vadd.s32 %v1039, 127
    %v1041 = vshll.u32 %v1040, 23
    %v1042 = vor.u32 4788187, %v1041
    %v1043 = vand.u32 2147483647, %v1042
    %v1045 = vcvt.s32.f32 %v1038
    %v1046 = vmul.f32 %v1045, %v1043
    %v1047 = vxor.u32 %v1046, 2147483648
    %v1048 = vsel %vm927, %v1047, %v1046
    %v1049 = vsub.s32 4, %v1025
    %v1050 = vsel %vm927, %v1049, %v1025
    %v1051 = vsel %vm926, %v923, %v1048
    %v1052 = vsel %vm926, 0, %v1050
    %v1053 = vmul.f32 %v1051, %v1051
    %v1054 = vmul.f32 %v1053, -0.001358992
    %v1055 = vadd.f32 %v1054, 0.041655596
    %v1056 = vmul.f32 %v1053, %v1055
    %v1057 = vadd.f32 %v1056, -0.4999988
    %v1058 = vmul.f32 %v1053, %v1057
    %v1059 = vadd.f32 1.0, %v1058
    %v1060 = vmul.f32 %v1051, %v1051
    %v1061 = vmul.f32 %v1060, -0.00019511016
    %v1062 = vadd.f32 %v1061, 0.008332121
    %v1063 = vmul.f32 %v1060, %v1062
    %v1064 = vadd.f32 %v1063, -0.16666654
    %v1065 = vmul.f32 %v1060, %v1064
    %v1066 = vadd.f32 %v1065, 1.0
    %v1067 = vmul.f32 %v1066, %v1051
    %vm1068 = vweird.f32 %v923
    %v1069 = vadd.s32 %v1052, 3
    %v1070 = vand.u32 %v1069, 3
    %vm1071 = vcmp.lt.s32.totalorder %v1070, 2
    %vm1072 = vcmp.eq.s32.totalorder %v1070, 0
    %v1073 = vxor.u32 %v1067, 2147483648
    %v1074 = vsel %vm1072, %v1059, %v1073
    %vm1075 = vcmp.eq.s32.totalorder %v1070, 2
    %v1076 = vxor.u32 %v1059, 2147483648
    %v1077 = vsel %vm1075, %v1076, %v1067
    %v1078 = vsel %vm1071, %v1074, %v1077
    %v1079 = vsel %vm1068, nan, %v1078
    %v1081 = vrot.slane %v1079, 1
    %v1082 = vrot.slane %v1079, 2
    %v1083 = vrot.slane %v1079, 3
    %v1084 = vrot.slane %v1079, 4
    %v1085 = vrot.slane %v1079, 5
    %v1086 = vrot.slane %v1079, 6
    %v1087 = vrot.slane %v1079, 7
    %1095 = vst.msk [vmem:[#allocation4 + $0x1] sm:$0x1] %vm558, %v1079
    %1096 = vst.msk [vmem:[#allocation4 + $0x11] sm:$0x1] %vm558, %v1081
    %1097 = vst.msk [vmem:[#allocation4 + $0x21] sm:$0x1] %vm558, %v1082
    %1098 = vst.msk [vmem:[#allocation4 + $0x31] sm:$0x1] %vm558, %v1083
    %1099 = vst.msk [vmem:[#allocation4 + $0x41] sm:$0x1] %vm558, %v1084
    %1100 = vst.msk [vmem:[#allocation4 + $0x51] sm:$0x1] %vm558, %v1085
    %1101 = vst.msk [vmem:[#allocation4 + $0x61] sm:$0x1] %vm558, %v1086
    %1102 = vst.msk [vmem:[#allocation4 + $0x71] sm:$0x1] %vm558, %v1087
    %s1103 = scalar_lea.vmem [#allocation2], 256
    %v1104 = vld [vmem:[%s1103] sm:$0xff]
    %v1105 = vld [vmem:[%s1103 + $0x8] sm:$0xff]
    %v1106 = vld [vmem:[%s1103 + $0x10] sm:$0xff]
    %v1107 = vld [vmem:[%s1103 + $0x18] sm:$0xff]
    %v1108 = vld [vmem:[%s1103 + $0x20] sm:$0xff]
    %v1109 = vld [vmem:[%s1103 + $0x28] sm:$0xff]
    %v1110 = vld [vmem:[%s1103 + $0x30] sm:$0xff]
    %v1111 = vld [vmem:[%s1103 + $0x38] sm:$0xff]
    %v1112 = vld [vmem:[%s1103 + $0x40] sm:$0xff]
    %v1113 = vld [vmem:[%s1103 + $0x48] sm:$0xff]
    %v1114 = vld [vmem:[%s1103 + $0x50] sm:$0xff]
    %v1115 = vld [vmem:[%s1103 + $0x58] sm:$0xff]
    %v1116 = vld [vmem:[%s1103 + $0x60] sm:$0xff]
    %v1117 = vld [vmem:[%s1103 + $0x68] sm:$0xff]
    %v1118 = vld [vmem:[%s1103 + $0x70] sm:$0xff]
    %v1119 = vld [vmem:[%s1103 + $0x78] sm:$0xff]
    %v1120 = vand.u32 %v1119, 4294901760
    %1121 = vmatpush.msra.mxu0 %v1120
    %v1122 = vand.u32 %v1118, 4294901760
    %1123 = vmatpush.msra.mxu0 %v1122
    %v1124 = vand.u32 %v1117, 4294901760
    %1125 = vmatpush.msra.mxu0 %v1124
    %v1126 = vand.u32 %v1116, 4294901760
    %1127 = vmatpush.msra.mxu0 %v1126
    %v1128 = vand.u32 %v1115, 4294901760
    %1129 = vmatpush.msra.mxu0 %v1128
    %v1130 = vand.u32 %v1114, 4294901760
    %1131 = vmatpush.msra.mxu0 %v1130
    %v1132 = vand.u32 %v1113, 4294901760
    %1133 = vmatpush.msra.mxu0 %v1132
    %v1134 = vand.u32 %v1112, 4294901760
    %1135 = vmatpush.msra.mxu0 %v1134
    %v1136 = vand.u32 %v1111, 4294901760
    %1137 = vmatpush.msra.mxu0 %v1136
    %v1138 = vand.u32 %v1110, 4294901760
    %1139 = vmatpush.msra.mxu0 %v1138
    %v1140 = vand.u32 %v1109, 4294901760
    %1141 = vmatpush.msra.mxu0 %v1140
    %v1142 = vand.u32 %v1108, 4294901760
    %1143 = vmatpush.msra.mxu0 %v1142
    %v1144 = vand.u32 %v1107, 4294901760
    %1145 = vmatpush.msra.mxu0 %v1144
    %v1146 = vand.u32 %v1106, 4294901760
    %1147 = vmatpush.msra.mxu0 %v1146
    %v1148 = vand.u32 %v1105, 4294901760
    %1149 = vmatpush.msra.mxu0 %v1148
    %v1150 = vand.u32 %v1104, 4294901760
    %1151 = vmatpush.msra.mxu0 %v1150
    %v1152 = vand.u32 %v27, 4294901760
    %v1153 = vsub.f32 %v27, %v1152
    %v1154 = vand.u32 %v1153, 4294901760
    %v1155 = vsub.f32 %v1153, %v1154
    %v1156 = vand.u32 %v1155, 4294901760
    %1157 = vmatmul.f32.gmra.mxu0 %v1156
    %v1158 = vpop.f32.mrf.mxu0
    %v1159 = vadd.f32 0.0, %v1158
    %1160 = vdwg.mxu0
    %v1161 = vand.u32 %v1119, 4294901760
    %v1162 = vsub.f32 %v1119, %v1161
    %v1163 = vand.u32 %v1162, 4294901760
    %v1164 = vsub.f32 %v1162, %v1163
    %v1165 = vand.u32 %v1164, 4294901760
    %1166 = vmatpush.msra.mxu0 %v1165
    %v1167 = vand.u32 %v1118, 4294901760
    %v1168 = vsub.f32 %v1118, %v1167
    %v1169 = vand.u32 %v1168, 4294901760
    %v1170 = vsub.f32 %v1168, %v1169
    %v1171 = vand.u32 %v1170, 4294901760
    %1172 = vmatpush.msra.mxu0 %v1171
    %v1173 = vand.u32 %v1117, 4294901760
    %v1174 = vsub.f32 %v1117, %v1173
    %v1175 = vand.u32 %v1174, 4294901760
    %v1176 = vsub.f32 %v1174, %v1175
    %v1177 = vand.u32 %v1176, 4294901760
    %1178 = vmatpush.msra.mxu0 %v1177
    %v1179 = vand.u32 %v1116, 4294901760
    %v1180 = vsub.f32 %v1116, %v1179
    %v1181 = vand.u32 %v1180, 4294901760
    %v1182 = vsub.f32 %v1180, %v1181
    %v1183 = vand.u32 %v1182, 4294901760
    %1184 = vmatpush.msra.mxu0 %v1183
    %v1185 = vand.u32 %v1115, 4294901760
    %v1186 = vsub.f32 %v1115, %v1185
    %v1187 = vand.u32 %v1186, 4294901760
    %v1188 = vsub.f32 %v1186, %v1187
    %v1189 = vand.u32 %v1188, 4294901760
    %1190 = vmatpush.msra.mxu0 %v1189
    %v1191 = vand.u32 %v1114, 4294901760
    %v1192 = vsub.f32 %v1114, %v1191
    %v1193 = vand.u32 %v1192, 4294901760
    %v1194 = vsub.f32 %v1192, %v1193
    %v1195 = vand.u32 %v1194, 4294901760
    %1196 = vmatpush.msra.mxu0 %v1195
    %v1197 = vand.u32 %v1113, 4294901760
    %v1198 = vsub.f32 %v1113, %v1197
    %v1199 = vand.u32 %v1198, 4294901760
    %v1200 = vsub.f32 %v1198, %v1199
    %v1201 = vand.u32 %v1200, 4294901760
    %1202 = vmatpush.msra.mxu0 %v1201
    %v1203 = vand.u32 %v1112, 4294901760
    %v1204 = vsub.f32 %v1112, %v1203
    %v1205 = vand.u32 %v1204, 4294901760
    %v1206 = vsub.f32 %v1204, %v1205
    %v1207 = vand.u32 %v1206, 4294901760
    %1208 = vmatpush.msra.mxu0 %v1207
    %v1209 = vand.u32 %v1111, 4294901760
    %v1210 = vsub.f32 %v1111, %v1209
    %v1211 = vand.u32 %v1210, 4294901760
    %v1212 = vsub.f32 %v1210, %v1211
    %v1213 = vand.u32 %v1212, 4294901760
    %1214 = vmatpush.msra.mxu0 %v1213
    %v1215 = vand.u32 %v1110, 4294901760
    %v1216 = vsub.f32 %v1110, %v1215
    %v1217 = vand.u32 %v1216, 4294901760
    %v1218 = vsub.f32 %v1216, %v1217
    %v1219 = vand.u32 %v1218, 4294901760
    %1220 = vmatpush.msra.mxu0 %v1219
    %v1221 = vand.u32 %v1109, 4294901760
    %v1222 = vsub.f32 %v1109, %v1221
    %v1223 = vand.u32 %v1222, 4294901760
    %v1224 = vsub.f32 %v1222, %v1223
    %v1225 = vand.u32 %v1224, 4294901760
    %1226 = vmatpush.msra.mxu0 %v1225
    %v1227 = vand.u32 %v1108, 4294901760
    %v1228 = vsub.f32 %v1108, %v1227
    %v1229 = vand.u32 %v1228, 4294901760
    %v1230 = vsub.f32 %v1228, %v1229
    %v1231 = vand.u32 %v1230, 4294901760
    %1232 = vmatpush.msra.mxu0 %v1231
    %v1233 = vand.u32 %v1107, 4294901760
    %v1234 = vsub.f32 %v1107, %v1233
    %v1235 = vand.u32 %v1234, 4294901760
    %v1236 = vsub.f32 %v1234, %v1235
    %v1237 = vand.u32 %v1236, 4294901760
    %1238 = vmatpush.msra.mxu0 %v1237
    %v1239 = vand.u32 %v1106, 4294901760
    %v1240 = vsub.f32 %v1106, %v1239
    %v1241 = vand.u32 %v1240, 4294901760
    %v1242 = vsub.f32 %v1240, %v1241
    %v1243 = vand.u32 %v1242, 4294901760
    %1244 = vmatpush.msra.mxu0 %v1243
    %v1245 = vand.u32 %v1105, 4294901760
    %v1246 = vsub.f32 %v1105, %v1245
    %v1247 = vand.u32 %v1246, 4294901760
    %v1248 = vsub.f32 %v1246, %v1247
    %v1249 = vand.u32 %v1248, 4294901760
    %1250 = vmatpush.msra.mxu0 %v1249
    %v1251 = vand.u32 %v1104, 4294901760
    %v1252 = vsub.f32 %v1104, %v1251
    %v1253 = vand.u32 %v1252, 4294901760
    %v1254 = vsub.f32 %v1252, %v1253
    %v1255 = vand.u32 %v1254, 4294901760
    %1256 = vmatpush.msra.mxu0 %v1255
    %v1257 = vand.u32 %v27, 4294901760
    %1258 = vmatmul.f32.gmra.mxu0 %v1257
    %v1259 = vpop.f32.mrf.mxu0
    %v1260 = vadd.f32 %v1159, %v1259
    %1261 = vdwg.mxu0
    %v1262 = vand.u32 %v1119, 4294901760
    %v1263 = vsub.f32 %v1119, %v1262
    %1264 = vmatpush.msra.mxu0 %v1263
    %v1265 = vand.u32 %v1118, 4294901760
    %v1266 = vsub.f32 %v1118, %v1265
    %1267 = vmatpush.msra.mxu0 %v1266
    %v1268 = vand.u32 %v1117, 4294901760
    %v1269 = vsub.f32 %v1117, %v1268
    %1270 = vmatpush.msra.mxu0 %v1269
    %v1271 = vand.u32 %v1116, 4294901760
    %v1272 = vsub.f32 %v1116, %v1271
    %1273 = vmatpush.msra.mxu0 %v1272
    %v1274 = vand.u32 %v1115, 4294901760
    %v1275 = vsub.f32 %v1115, %v1274
    %1276 = vmatpush.msra.mxu0 %v1275
    %v1277 = vand.u32 %v1114, 4294901760
    %v1278 = vsub.f32 %v1114, %v1277
    %1279 = vmatpush.msra.mxu0 %v1278
    %v1280 = vand.u32 %v1113, 4294901760
    %v1281 = vsub.f32 %v1113, %v1280
    %1282 = vmatpush.msra.mxu0 %v1281
    %v1283 = vand.u32 %v1112, 4294901760
    %v1284 = vsub.f32 %v1112, %v1283
    %1285 = vmatpush.msra.mxu0 %v1284
    %v1286 = vand.u32 %v1111, 4294901760
    %v1287 = vsub.f32 %v1111, %v1286
    %1288 = vmatpush.msra.mxu0 %v1287
    %v1289 = vand.u32 %v1110, 4294901760
    %v1290 = vsub.f32 %v1110, %v1289
    %1291 = vmatpush.msra.mxu0 %v1290
    %v1292 = vand.u32 %v1109, 4294901760
    %v1293 = vsub.f32 %v1109, %v1292
    %1294 = vmatpush.msra.mxu0 %v1293
    %v1295 = vand.u32 %v1108, 4294901760
    %v1296 = vsub.f32 %v1108, %v1295
    %1297 = vmatpush.msra.mxu0 %v1296
    %v1298 = vand.u32 %v1107, 4294901760
    %v1299 = vsub.f32 %v1107, %v1298
    %1300 = vmatpush.msra.mxu0 %v1299
    %v1301 = vand.u32 %v1106, 4294901760
    %v1302 = vsub.f32 %v1106, %v1301
    %1303 = vmatpush.msra.mxu0 %v1302
    %v1304 = vand.u32 %v1105, 4294901760
    %v1305 = vsub.f32 %v1105, %v1304
    %1306 = vmatpush.msra.mxu0 %v1305
    %v1307 = vand.u32 %v1104, 4294901760
    %v1308 = vsub.f32 %v1104, %v1307
    %1309 = vmatpush.msra.mxu0 %v1308
    %v1310 = vand.u32 %v27, 4294901760
    %v1311 = vsub.f32 %v27, %v1310
    %1312 = vmatmul.f32.gmra.mxu0 %v1311
    %v1313 = vpop.f32.mrf.mxu0
    %v1314 = vadd.f32 %v1260, %v1313
    %1315 = vdwg.mxu0
    %v1316 = vand.u32 %v1119, 4294901760
    %1317 = vmatpush.msra.mxu0 %v1316
    %v1318 = vand.u32 %v1118, 4294901760
    %1319 = vmatpush.msra.mxu0 %v1318
    %v1320 = vand.u32 %v1117, 4294901760
    %1321 = vmatpush.msra.mxu0 %v1320
    %v1322 = vand.u32 %v1116, 4294901760
    %1323 = vmatpush.msra.mxu0 %v1322
    %v1324 = vand.u32 %v1115, 4294901760
    %1325 = vmatpush.msra.mxu0 %v1324
    %v1326 = vand.u32 %v1114, 4294901760
    %1327 = vmatpush.msra.mxu0 %v1326
    %v1328 = vand.u32 %v1113, 4294901760
    %1329 = vmatpush.msra.mxu0 %v1328
    %v1330 = vand.u32 %v1112, 4294901760
    %1331 = vmatpush.msra.mxu0 %v1330
    %v1332 = vand.u32 %v1111, 4294901760
    %1333 = vmatpush.msra.mxu0 %v1332
    %v1334 = vand.u32 %v1110, 4294901760
    %1335 = vmatpush.msra.mxu0 %v1334
    %v1336 = vand.u32 %v1109, 4294901760
    %1337 = vmatpush.msra.mxu0 %v1336
    %v1338 = vand.u32 %v1108, 4294901760
    %1339 = vmatpush.msra.mxu0 %v1338
    %v1340 = vand.u32 %v1107, 4294901760
    %1341 = vmatpush.msra.mxu0 %v1340
    %v1342 = vand.u32 %v1106, 4294901760
    %1343 = vmatpush.msra.mxu0 %v1342
    %v1344 = vand.u32 %v1105, 4294901760
    %1345 = vmatpush.msra.mxu0 %v1344
    %v1346 = vand.u32 %v1104, 4294901760
    %1347 = vmatpush.msra.mxu0 %v1346
    %v1348 = vand.u32 %v27, 4294901760
    %v1349 = vsub.f32 %v27, %v1348
    %v1350 = vand.u32 %v1349, 4294901760
    %1351 = vmatmul.f32.gmra.mxu0 %v1350
    %v1352 = vpop.f32.mrf.mxu0
    %v1353 = vadd.f32 %v1314, %v1352
    %1354 = vdwg.mxu0
    %v1355 = vand.u32 %v1119, 4294901760
    %v1356 = vsub.f32 %v1119, %v1355
    %v1357 = vand.u32 %v1356, 4294901760
    %1358 = vmatpush.msra.mxu0 %v1357
    %v1359 = vand.u32 %v1118, 4294901760
    %v1360 = vsub.f32 %v1118, %v1359
    %v1361 = vand.u32 %v1360, 4294901760
    %1362 = vmatpush.msra.mxu0 %v1361
    %v1363 = vand.u32 %v1117, 4294901760
    %v1364 = vsub.f32 %v1117, %v1363
    %v1365 = vand.u32 %v1364, 4294901760
    %1366 = vmatpush.msra.mxu0 %v1365
    %v1367 = vand.u32 %v1116, 4294901760
    %v1368 = vsub.f32 %v1116, %v1367
    %v1369 = vand.u32 %v1368, 4294901760
    %1370 = vmatpush.msra.mxu0 %v1369
    %v1371 = vand.u32 %v1115, 4294901760
    %v1372 = vsub.f32 %v1115, %v1371
    %v1373 = vand.u32 %v1372, 4294901760
    %1374 = vmatpush.msra.mxu0 %v1373
    %v1375 = vand.u32 %v1114, 4294901760
    %v1376 = vsub.f32 %v1114, %v1375
    %v1377 = vand.u32 %v1376, 4294901760
    %1378 = vmatpush.msra.mxu0 %v1377
    %v1379 = vand.u32 %v1113, 4294901760
    %v1380 = vsub.f32 %v1113, %v1379
    %v1381 = vand.u32 %v1380, 4294901760
    %1382 = vmatpush.msra.mxu0 %v1381
    %v1383 = vand.u32 %v1112, 4294901760
    %v1384 = vsub.f32 %v1112, %v1383
    %v1385 = vand.u32 %v1384, 4294901760
    %1386 = vmatpush.msra.mxu0 %v1385
    %v1387 = vand.u32 %v1111, 4294901760
    %v1388 = vsub.f32 %v1111, %v1387
    %v1389 = vand.u32 %v1388, 4294901760
    %1390 = vmatpush.msra.mxu0 %v1389
    %v1391 = vand.u32 %v1110, 4294901760
    %v1392 = vsub.f32 %v1110, %v1391
    %v1393 = vand.u32 %v1392, 4294901760
    %1394 = vmatpush.msra.mxu0 %v1393
    %v1395 = vand.u32 %v1109, 4294901760
    %v1396 = vsub.f32 %v1109, %v1395
    %v1397 = vand.u32 %v1396, 4294901760
    %1398 = vmatpush.msra.mxu0 %v1397
    %v1399 = vand.u32 %v1108, 4294901760
    %v1400 = vsub.f32 %v1108, %v1399
    %v1401 = vand.u32 %v1400, 4294901760
    %1402 = vmatpush.msra.mxu0 %v1401
    %v1403 = vand.u32 %v1107, 4294901760
    %v1404 = vsub.f32 %v1107, %v1403
    %v1405 = vand.u32 %v1404, 4294901760
    %1406 = vmatpush.msra.mxu0 %v1405
    %v1407 = vand.u32 %v1106, 4294901760
    %v1408 = vsub.f32 %v1106, %v1407
    %v1409 = vand.u32 %v1408, 4294901760
    %1410 = vmatpush.msra.mxu0 %v1409
    %v1411 = vand.u32 %v1105, 4294901760
    %v1412 = vsub.f32 %v1105, %v1411
    %v1413 = vand.u32 %v1412, 4294901760
    %1414 = vmatpush.msra.mxu0 %v1413
    %v1415 = vand.u32 %v1104, 4294901760
    %v1416 = vsub.f32 %v1104, %v1415
    %v1417 = vand.u32 %v1416, 4294901760
    %1418 = vmatpush.msra.mxu0 %v1417
    %v1419 = vand.u32 %v27, 4294901760
    %1420 = vmatmul.f32.gmra.mxu0 %v1419
    %v1421 = vpop.f32.mrf.mxu0
    %v1422 = vadd.f32 %v1353, %v1421
    %1423 = vdwg.mxu0
    %v1424 = vand.u32 %v1119, 4294901760
    %1425 = vmatpush.msra.mxu0 %v1424
    %v1426 = vand.u32 %v1118, 4294901760
    %1427 = vmatpush.msra.mxu0 %v1426
    %v1428 = vand.u32 %v1117, 4294901760
    %1429 = vmatpush.msra.mxu0 %v1428
    %v1430 = vand.u32 %v1116, 4294901760
    %1431 = vmatpush.msra.mxu0 %v1430
    %v1432 = vand.u32 %v1115, 4294901760
    %1433 = vmatpush.msra.mxu0 %v1432
    %v1434 = vand.u32 %v1114, 4294901760
    %1435 = vmatpush.msra.mxu0 %v1434
    %v1436 = vand.u32 %v1113, 4294901760
    %1437 = vmatpush.msra.mxu0 %v1436
    %v1438 = vand.u32 %v1112, 4294901760
    %1439 = vmatpush.msra.mxu0 %v1438
    %v1440 = vand.u32 %v1111, 4294901760
    %1441 = vmatpush.msra.mxu0 %v1440
    %v1442 = vand.u32 %v1110, 4294901760
    %1443 = vmatpush.msra.mxu0 %v1442
    %v1444 = vand.u32 %v1109, 4294901760
    %1445 = vmatpush.msra.mxu0 %v1444
    %v1446 = vand.u32 %v1108, 4294901760
    %1447 = vmatpush.msra.mxu0 %v1446
    %v1448 = vand.u32 %v1107, 4294901760
    %1449 = vmatpush.msra.mxu0 %v1448
    %v1450 = vand.u32 %v1106, 4294901760
    %1451 = vmatpush.msra.mxu0 %v1450
    %v1452 = vand.u32 %v1105, 4294901760
    %1453 = vmatpush.msra.mxu0 %v1452
    %v1454 = vand.u32 %v1104, 4294901760
    %1455 = vmatpush.msra.mxu0 %v1454
    %v1456 = vand.u32 %v27, 4294901760
    %1457 = vmatmul.f32.gmra.mxu0 %v1456
    %v1458 = vpop.f32.mrf.mxu0
    %v1459 = vadd.f32 %v1422, %v1458
    %1460 = vdwg.mxu0
    %v1461 = vand.u32 2147483647, %v1459
    %vm1462 = vcmp.le.f32.partialorder %v1461, 0.7853982
    %vm1463 = vcmp.lt.s32.totalorder %v1459, 0
    %v1464 = vand.u32 %v1459, 2139095040
    %v1465 = vshrl.u32 %v1464, 23
    %v1466 = vsub.s32 %v1465, 127
    %v1467 = vand.u32 2147483647, %v1459
    %v1468 = vand.u32 %v1467, 8388607
    %v1469 = vor.u32 %v1468, 8388608
    %v1470 = vsub.s32 0, %v1469
    %v1471 = vadd.s32 %v1466, 1
    %vm1472 = vcmp.gt.s32.totalorder %v1471, 0
    %v1473 = vsel %vm1472, %v1471, 0
    %v1474 = vshrl.u32 %v1473, 5
    %v1475 = vand.u32 %v1473, 31
    %v1476 = vsub.s32 32, %v1475
    %v1477 = vshrl.u32 683565275, %v1476
    %v1478 = vshll.u32 683565275, %v1475
    %v1479 = vshrl.u32 2475754826, %v1476
    %v1480 = vor.u32 %v1478, %v1479
    %v1481 = vshll.u32 2475754826, %v1475
    %v1482 = vshrl.u32 2131351028, %v1476
    %v1483 = vor.u32 %v1481, %v1482
    %v1484 = vshll.u32 2131351028, %v1475
    %v1485 = vshrl.u32 2102212464, %v1476
    %v1486 = vor.u32 %v1484, %v1485
    %v1487 = vshll.u32 2102212464, %v1475
    %v1488 = vshrl.u32 920167782, %v1476
    %v1489 = vor.u32 %v1487, %v1488
    %v1490 = vshll.u32 920167782, %v1475
    %v1491 = vshrl.u32 1326507024, %v1476
    %v1492 = vor.u32 %v1490, %v1491
    %vm1493 = vcmp.lt.s32.totalorder %v1474, 1
    %vm1494 = vcmp.lt.s32.totalorder %v1474, 2
    %vm1495 = vcmp.lt.s32.totalorder %v1474, 3
    %vm1496 = vcmp.lt.s32.totalorder %v1474, 4
    %v1497 = vsel %vm1493, %v1477, %v1480
    %v1498 = vsel %vm1496, %v1486, 2102212464
    %v1499 = vsel %vm1495, %v1483, %v1498
    %v1500 = vsel %vm1494, %v1497, %v1499
    %v1501 = vsel %vm1493, %v1480, %v1483
    %v1502 = vsel %vm1496, %v1489, 920167782
    %v1503 = vsel %vm1495, %v1486, %v1502
    %v1504 = vsel %vm1494, %v1501, %v1503
    %v1505 = vsel %vm1493, %v1483, %v1486
    %v1506 = vsel %vm1496, %v1492, 1326507024
    %v1507 = vsel %vm1495, %v1489, %v1506
    %v1508 = vsel %vm1494, %v1505, %v1507
    %v1509 = vshll.u32 %v1469, 8
    %v1510 = vand.u32 %v1509, 65535
    %v1511 = vshrl.u32 %v1509, 16
    %v1512 = vand.u32 %v1508, 65535
    %v1513 = vshrl.u32 %v1508, 16
    %v1514 = vmul.u32 %v1510, %v1512
    %v1515 = vmul.u32 %v1510, %v1513
    %v1516 = vmul.u32 %v1511, %v1512
    %v1517 = vmul.u32 %v1511, %v1513
    %v1518 = vshll.u32 %v1515, 16
    %v1519 = vshrl.u32 %v1515, 16
    %v1520 = vshll.u32 %v1516, 16
    %v1521 = vshrl.u32 %v1516, 16
    %vm1522 = vc.u32 %v1514, %v1518
    %v1523 = vsel %vm1522, 1, 0
    %v1524 = vadd.s32 %v1514, %v1518
    %v1525 = vadd.s32 %v1517, %v1523
    %vm1526 = vc.u32 %v1524, %v1520
    %v1527 = vsel %vm1526, 1, 0
    %v1528 = vadd.s32 %v1524, %v1520
    %v1529 = vadd.s32 %v1525, %v1527
    %v1530 = vadd.s32 %v1529, %v1519
    %v1531 = vadd.s32 %v1530, %v1521
    %v1532 = vand.u32 %v1509, 65535
    %v1533 = vshrl.u32 %v1509, 16
    %v1534 = vand.u32 %v1504, 65535
    %v1535 = vshrl.u32 %v1504, 16
    %v1536 = vmul.u32 %v1532, %v1534
    %v1537 = vmul.u32 %v1532, %v1535
    %v1538 = vmul.u32 %v1533, %v1534
    %v1539 = vmul.u32 %v1533, %v1535
    %v1540 = vshll.u32 %v1537, 16
    %v1541 = vshrl.u32 %v1537, 16
    %v1542 = vshll.u32 %v1538, 16
    %v1543 = vshrl.u32 %v1538, 16
    %vm1544 = vc.u32 %v1536, %v1540
    %v1545 = vsel %vm1544, 1, 0
    %v1546 = vadd.s32 %v1536, %v1540
    %v1547 = vadd.s32 %v1539, %v1545
    %vm1548 = vc.u32 %v1546, %v1542
    %v1549 = vsel %vm1548, 1, 0
    %v1550 = vadd.s32 %v1546, %v1542
    %v1551 = vadd.s32 %v1547, %v1549
    %v1552 = vadd.s32 %v1551, %v1541
    %v1553 = vadd.s32 %v1552, %v1543
    %v1554 = vmul.u32 %v1509, %v1500
    %v1555 = vadd.s32 %v1531, %v1550
    %vm1556 = vc.u32 %v1531, %v1550
    %v1557 = vadd.s32 %v1553, 1
    %v1558 = vsel %vm1556, %v1557, %v1553
    %v1559 = vadd.s32 %v1554, %v1558
    %v1560 = vadd.s32 %v1559, 536870912
    %v1561 = vshrl.u32 %v1560, 30
    %v1562 = vshll.u32 %v1561, 30
    %v1563 = vsub.s32 %v1559, %v1562
    %vm1564 = vcmp.lt.s32.totalorder %v1563, 0
    %v1565 = vsub.s32 0, %v1563
    %v1566 = vsel %vm1564, %v1565, %v1563
    %v1567 = vclz %v1566
    %v1568 = vsub.s32 %v1567, 2
    %vm1569 = vcmp.gt.s32.totalorder 0, %v1568
    %v1570 = vsel %vm1569, 0, %v1568
    %v1571 = vsub.s32 32, %v1570
    %v1572 = vshll.u32 %v1563, %v1570
    %v1573 = vshrl.u32 %v1555, %v1571
    %v1574 = vor.u32 %v1572, %v1573
    %v1575 = vsub.s32 4294967266, %v1570
    %v1576 = vadd.s32 %v1575, 127
    %v1577 = vshll.u32 %v1576, 23
    %v1578 = vor.u32 4788187, %v1577
    %v1579 = vand.u32 2147483647, %v1578
    %v1581 = vcvt.s32.f32 %v1574
    %v1582 = vmul.f32 %v1581, %v1579
    %v1583 = vxor.u32 %v1582, 2147483648
    %v1584 = vsel %vm1463, %v1583, %v1582
    %v1585 = vsub.s32 4, %v1561
    %v1586 = vsel %vm1463, %v1585, %v1561
    %v1587 = vsel %vm1462, %v1459, %v1584
    %v1588 = vsel %vm1462, 0, %v1586
    %v1589 = vmul.f32 %v1587, %v1587
    %v1590 = vmul.f32 %v1589, -0.001358992
    %v1591 = vadd.f32 %v1590, 0.041655596
    %v1592 = vmul.f32 %v1589, %v1591
    %v1593 = vadd.f32 %v1592, -0.4999988
    %v1594 = vmul.f32 %v1589, %v1593
    %v1595 = vadd.f32 1.0, %v1594
    %v1596 = vmul.f32 %v1587, %v1587
    %v1597 = vmul.f32 %v1596, -0.00019511016
    %v1598 = vadd.f32 %v1597, 0.008332121
    %v1599 = vmul.f32 %v1596, %v1598
    %v1600 = vadd.f32 %v1599, -0.16666654
    %v1601 = vmul.f32 %v1596, %v1600
    %v1602 = vadd.f32 %v1601, 1.0
    %v1603 = vmul.f32 %v1602, %v1587
    %vm1604 = vweird.f32 %v1459
    %v1605 = vadd.s32 %v1588, 3
    %v1606 = vand.u32 %v1605, 3
    %vm1607 = vcmp.lt.s32.totalorder %v1606, 2
    %vm1608 = vcmp.eq.s32.totalorder %v1606, 0
    %v1609 = vxor.u32 %v1603, 2147483648
    %v1610 = vsel %vm1608, %v1595, %v1609
    %vm1611 = vcmp.eq.s32.totalorder %v1606, 2
    %v1612 = vxor.u32 %v1595, 2147483648
    %v1613 = vsel %vm1611, %v1612, %v1603
    %v1614 = vsel %vm1607, %v1610, %v1613
    %v1615 = vsel %vm1604, nan, %v1614
    %v1617 = vrot.slane %v1615, 1
    %v1618 = vrot.slane %v1615, 2
    %v1619 = vrot.slane %v1615, 3
    %v1620 = vrot.slane %v1615, 4
    %v1621 = vrot.slane %v1615, 5
    %v1622 = vrot.slane %v1615, 6
    %v1623 = vrot.slane %v1615, 7
    %1631 = vst.msk [vmem:[#allocation4 + $0x2] sm:$0x1] %vm558, %v1615
    %1632 = vst.msk [vmem:[#allocation4 + $0x12] sm:$0x1] %vm558, %v1617
    %1633 = vst.msk [vmem:[#allocation4 + $0x22] sm:$0x1] %vm558, %v1618
    %1634 = vst.msk [vmem:[#allocation4 + $0x32] sm:$0x1] %vm558, %v1619
    %1635 = vst.msk [vmem:[#allocation4 + $0x42] sm:$0x1] %vm558, %v1620
    %1636 = vst.msk [vmem:[#allocation4 + $0x52] sm:$0x1] %vm558, %v1621
    %1637 = vst.msk [vmem:[#allocation4 + $0x62] sm:$0x1] %vm558, %v1622
    %1638 = vst.msk [vmem:[#allocation4 + $0x72] sm:$0x1] %vm558, %v1623
    %s1639 = scalar_lea.vmem [#allocation2], 384
    %v1640 = vld [vmem:[%s1639] sm:$0xff]
    %v1641 = vld [vmem:[%s1639 + $0x8] sm:$0xff]
    %v1642 = vld [vmem:[%s1639 + $0x10] sm:$0xff]
    %v1643 = vld [vmem:[%s1639 + $0x18] sm:$0xff]
    %v1644 = vld [vmem:[%s1639 + $0x20] sm:$0xff]
    %v1645 = vld [vmem:[%s1639 + $0x28] sm:$0xff]
    %v1646 = vld [vmem:[%s1639 + $0x30] sm:$0xff]
    %v1647 = vld [vmem:[%s1639 + $0x38] sm:$0xff]
    %v1648 = vld [vmem:[%s1639 + $0x40] sm:$0xff]
    %v1649 = vld [vmem:[%s1639 + $0x48] sm:$0xff]
    %v1650 = vld [vmem:[%s1639 + $0x50] sm:$0xff]
    %v1651 = vld [vmem:[%s1639 + $0x58] sm:$0xff]
    %v1652 = vld [vmem:[%s1639 + $0x60] sm:$0xff]
    %v1653 = vld [vmem:[%s1639 + $0x68] sm:$0xff]
    %v1654 = vld [vmem:[%s1639 + $0x70] sm:$0xff]
    %v1655 = vld [vmem:[%s1639 + $0x78] sm:$0xff]
    %v1656 = vand.u32 %v1655, 4294901760
    %1657 = vmatpush.msra.mxu0 %v1656
    %v1658 = vand.u32 %v1654, 4294901760
    %1659 = vmatpush.msra.mxu0 %v1658
    %v1660 = vand.u32 %v1653, 4294901760
    %1661 = vmatpush.msra.mxu0 %v1660
    %v1662 = vand.u32 %v1652, 4294901760
    %1663 = vmatpush.msra.mxu0 %v1662
    %v1664 = vand.u32 %v1651, 4294901760
    %1665 = vmatpush.msra.mxu0 %v1664
    %v1666 = vand.u32 %v1650, 4294901760
    %1667 = vmatpush.msra.mxu0 %v1666
    %v1668 = vand.u32 %v1649, 4294901760
    %1669 = vmatpush.msra.mxu0 %v1668
    %v1670 = vand.u32 %v1648, 4294901760
    %1671 = vmatpush.msra.mxu0 %v1670
    %v1672 = vand.u32 %v1647, 4294901760
    %1673 = vmatpush.msra.mxu0 %v1672
    %v1674 = vand.u32 %v1646, 4294901760
    %1675 = vmatpush.msra.mxu0 %v1674
    %v1676 = vand.u32 %v1645, 4294901760
    %1677 = vmatpush.msra.mxu0 %v1676
    %v1678 = vand.u32 %v1644, 4294901760
    %1679 = vmatpush.msra.mxu0 %v1678
    %v1680 = vand.u32 %v1643, 4294901760
    %1681 = vmatpush.msra.mxu0 %v1680
    %v1682 = vand.u32 %v1642, 4294901760
    %1683 = vmatpush.msra.mxu0 %v1682
    %v1684 = vand.u32 %v1641, 4294901760
    %1685 = vmatpush.msra.mxu0 %v1684
    %v1686 = vand.u32 %v1640, 4294901760
    %1687 = vmatpush.msra.mxu0 %v1686
    %v1688 = vand.u32 %v27, 4294901760
    %v1689 = vsub.f32 %v27, %v1688
    %v1690 = vand.u32 %v1689, 4294901760
    %v1691 = vsub.f32 %v1689, %v1690
    %v1692 = vand.u32 %v1691, 4294901760
    %1693 = vmatmul.f32.gmra.mxu0 %v1692
    %v1694 = vpop.f32.mrf.mxu0
    %v1695 = vadd.f32 0.0, %v1694
    %1696 = vdwg.mxu0
    %v1697 = vand.u32 %v1655, 4294901760
    %v1698 = vsub.f32 %v1655, %v1697
    %v1699 = vand.u32 %v1698, 4294901760
    %v1700 = vsub.f32 %v1698, %v1699
    %v1701 = vand.u32 %v1700, 4294901760
    %1702 = vmatpush.msra.mxu0 %v1701
    %v1703 = vand.u32 %v1654, 4294901760
    %v1704 = vsub.f32 %v1654, %v1703
    %v1705 = vand.u32 %v1704, 4294901760
    %v1706 = vsub.f32 %v1704, %v1705
    %v1707 = vand.u32 %v1706, 4294901760
    %1708 = vmatpush.msra.mxu0 %v1707
    %v1709 = vand.u32 %v1653, 4294901760
    %v1710 = vsub.f32 %v1653, %v1709
    %v1711 = vand.u32 %v1710, 4294901760
    %v1712 = vsub.f32 %v1710, %v1711
    %v1713 = vand.u32 %v1712, 4294901760
    %1714 = vmatpush.msra.mxu0 %v1713
    %v1715 = vand.u32 %v1652, 4294901760
    %v1716 = vsub.f32 %v1652, %v1715
    %v1717 = vand.u32 %v1716, 4294901760
    %v1718 = vsub.f32 %v1716, %v1717
    %v1719 = vand.u32 %v1718, 4294901760
    %1720 = vmatpush.msra.mxu0 %v1719
    %v1721 = vand.u32 %v1651, 4294901760
    %v1722 = vsub.f32 %v1651, %v1721
    %v1723 = vand.u32 %v1722, 4294901760
    %v1724 = vsub.f32 %v1722, %v1723
    %v1725 = vand.u32 %v1724, 4294901760
    %1726 = vmatpush.msra.mxu0 %v1725
    %v1727 = vand.u32 %v1650, 4294901760
    %v1728 = vsub.f32 %v1650, %v1727
    %v1729 = vand.u32 %v1728, 4294901760
    %v1730 = vsub.f32 %v1728, %v1729
    %v1731 = vand.u32 %v1730, 4294901760
    %1732 = vmatpush.msra.mxu0 %v1731
    %v1733 = vand.u32 %v1649, 4294901760
    %v1734 = vsub.f32 %v1649, %v1733
    %v1735 = vand.u32 %v1734, 4294901760
    %v1736 = vsub.f32 %v1734, %v1735
    %v1737 = vand.u32 %v1736, 4294901760
    %1738 = vmatpush.msra.mxu0 %v1737
    %v1739 = vand.u32 %v1648, 4294901760
    %v1740 = vsub.f32 %v1648, %v1739
    %v1741 = vand.u32 %v1740, 4294901760
    %v1742 = vsub.f32 %v1740, %v1741
    %v1743 = vand.u32 %v1742, 4294901760
    %1744 = vmatpush.msra.mxu0 %v1743
    %v1745 = vand.u32 %v1647, 4294901760
    %v1746 = vsub.f32 %v1647, %v1745
    %v1747 = vand.u32 %v1746, 4294901760
    %v1748 = vsub.f32 %v1746, %v1747
    %v1749 = vand.u32 %v1748, 4294901760
    %1750 = vmatpush.msra.mxu0 %v1749
    %v1751 = vand.u32 %v1646, 4294901760
    %v1752 = vsub.f32 %v1646, %v1751
    %v1753 = vand.u32 %v1752, 4294901760
    %v1754 = vsub.f32 %v1752, %v1753
    %v1755 = vand.u32 %v1754, 4294901760
    %1756 = vmatpush.msra.mxu0 %v1755
    %v1757 = vand.u32 %v1645, 4294901760
    %v1758 = vsub.f32 %v1645, %v1757
    %v1759 = vand.u32 %v1758, 4294901760
    %v1760 = vsub.f32 %v1758, %v1759
    %v1761 = vand.u32 %v1760, 4294901760
    %1762 = vmatpush.msra.mxu0 %v1761
    %v1763 = vand.u32 %v1644, 4294901760
    %v1764 = vsub.f32 %v1644, %v1763
    %v1765 = vand.u32 %v1764, 4294901760
    %v1766 = vsub.f32 %v1764, %v1765
    %v1767 = vand.u32 %v1766, 4294901760
    %1768 = vmatpush.msra.mxu0 %v1767
    %v1769 = vand.u32 %v1643, 4294901760
    %v1770 = vsub.f32 %v1643, %v1769
    %v1771 = vand.u32 %v1770, 4294901760
    %v1772 = vsub.f32 %v1770, %v1771
    %v1773 = vand.u32 %v1772, 4294901760
    %1774 = vmatpush.msra.mxu0 %v1773
    %v1775 = vand.u32 %v1642, 4294901760
    %v1776 = vsub.f32 %v1642, %v1775
    %v1777 = vand.u32 %v1776, 4294901760
    %v1778 = vsub.f32 %v1776, %v1777
    %v1779 = vand.u32 %v1778, 4294901760
    %1780 = vmatpush.msra.mxu0 %v1779
    %v1781 = vand.u32 %v1641, 4294901760
    %v1782 = vsub.f32 %v1641, %v1781
    %v1783 = vand.u32 %v1782, 4294901760
    %v1784 = vsub.f32 %v1782, %v1783
    %v1785 = vand.u32 %v1784, 4294901760
    %1786 = vmatpush.msra.mxu0 %v1785
    %v1787 = vand.u32 %v1640, 4294901760
    %v1788 = vsub.f32 %v1640, %v1787
    %v1789 = vand.u32 %v1788, 4294901760
    %v1790 = vsub.f32 %v1788, %v1789
    %v1791 = vand.u32 %v1790, 4294901760
    %1792 = vmatpush.msra.mxu0 %v1791
    %v1793 = vand.u32 %v27, 4294901760
    %1794 = vmatmul.f32.gmra.mxu0 %v1793
    %v1795 = vpop.f32.mrf.mxu0
    %v1796 = vadd.f32 %v1695, %v1795
    %1797 = vdwg.mxu0
    %v1798 = vand.u32 %v1655, 4294901760
    %v1799 = vsub.f32 %v1655, %v1798
    %1800 = vmatpush.msra.mxu0 %v1799
    %v1801 = vand.u32 %v1654, 4294901760
    %v1802 = vsub.f32 %v1654, %v1801
    %1803 = vmatpush.msra.mxu0 %v1802
    %v1804 = vand.u32 %v1653, 4294901760
    %v1805 = vsub.f32 %v1653, %v1804
    %1806 = vmatpush.msra.mxu0 %v1805
    %v1807 = vand.u32 %v1652, 4294901760
    %v1808 = vsub.f32 %v1652, %v1807
    %1809 = vmatpush.msra.mxu0 %v1808
    %v1810 = vand.u32 %v1651, 4294901760
    %v1811 = vsub.f32 %v1651, %v1810
    %1812 = vmatpush.msra.mxu0 %v1811
    %v1813 = vand.u32 %v1650, 4294901760
    %v1814 = vsub.f32 %v1650, %v1813
    %1815 = vmatpush.msra.mxu0 %v1814
    %v1816 = vand.u32 %v1649, 4294901760
    %v1817 = vsub.f32 %v1649, %v1816
    %1818 = vmatpush.msra.mxu0 %v1817
    %v1819 = vand.u32 %v1648, 4294901760
    %v1820 = vsub.f32 %v1648, %v1819
    %1821 = vmatpush.msra.mxu0 %v1820
    %v1822 = vand.u32 %v1647, 4294901760
    %v1823 = vsub.f32 %v1647, %v1822
    %1824 = vmatpush.msra.mxu0 %v1823
    %v1825 = vand.u32 %v1646, 4294901760
    %v1826 = vsub.f32 %v1646, %v1825
    %1827 = vmatpush.msra.mxu0 %v1826
    %v1828 = vand.u32 %v1645, 4294901760
    %v1829 = vsub.f32 %v1645, %v1828
    %1830 = vmatpush.msra.mxu0 %v1829
    %v1831 = vand.u32 %v1644, 4294901760
    %v1832 = vsub.f32 %v1644, %v1831
    %1833 = vmatpush.msra.mxu0 %v1832
    %v1834 = vand.u32 %v1643, 4294901760
    %v1835 = vsub.f32 %v1643, %v1834
    %1836 = vmatpush.msra.mxu0 %v1835
    %v1837 = vand.u32 %v1642, 4294901760
    %v1838 = vsub.f32 %v1642, %v1837
    %1839 = vmatpush.msra.mxu0 %v1838
    %v1840 = vand.u32 %v1641, 4294901760
    %v1841 = vsub.f32 %v1641, %v1840
    %1842 = vmatpush.msra.mxu0 %v1841
    %v1843 = vand.u32 %v1640, 4294901760
    %v1844 = vsub.f32 %v1640, %v1843
    %1845 = vmatpush.msra.mxu0 %v1844
    %v1846 = vand.u32 %v27, 4294901760
    %v1847 = vsub.f32 %v27, %v1846
    %1848 = vmatmul.f32.gmra.mxu0 %v1847
    %v1849 = vpop.f32.mrf.mxu0
    %v1850 = vadd.f32 %v1796, %v1849
    %1851 = vdwg.mxu0
    %v1852 = vand.u32 %v1655, 4294901760
    %1853 = vmatpush.msra.mxu0 %v1852
    %v1854 = vand.u32 %v1654, 4294901760
    %1855 = vmatpush.msra.mxu0 %v1854
    %v1856 = vand.u32 %v1653, 4294901760
    %1857 = vmatpush.msra.mxu0 %v1856
    %v1858 = vand.u32 %v1652, 4294901760
    %1859 = vmatpush.msra.mxu0 %v1858
    %v1860 = vand.u32 %v1651, 4294901760
    %1861 = vmatpush.msra.mxu0 %v1860
    %v1862 = vand.u32 %v1650, 4294901760
    %1863 = vmatpush.msra.mxu0 %v1862
    %v1864 = vand.u32 %v1649, 4294901760
    %1865 = vmatpush.msra.mxu0 %v1864
    %v1866 = vand.u32 %v1648, 4294901760
    %1867 = vmatpush.msra.mxu0 %v1866
    %v1868 = vand.u32 %v1647, 4294901760
    %1869 = vmatpush.msra.mxu0 %v1868
    %v1870 = vand.u32 %v1646, 4294901760
    %1871 = vmatpush.msra.mxu0 %v1870
    %v1872 = vand.u32 %v1645, 4294901760
    %1873 = vmatpush.msra.mxu0 %v1872
    %v1874 = vand.u32 %v1644, 4294901760
    %1875 = vmatpush.msra.mxu0 %v1874
    %v1876 = vand.u32 %v1643, 4294901760
    %1877 = vmatpush.msra.mxu0 %v1876
    %v1878 = vand.u32 %v1642, 4294901760
    %1879 = vmatpush.msra.mxu0 %v1878
    %v1880 = vand.u32 %v1641, 4294901760
    %1881 = vmatpush.msra.mxu0 %v1880
    %v1882 = vand.u32 %v1640, 4294901760
    %1883 = vmatpush.msra.mxu0 %v1882
    %v1884 = vand.u32 %v27, 4294901760
    %v1885 = vsub.f32 %v27, %v1884
    %v1886 = vand.u32 %v1885, 4294901760
    %1887 = vmatmul.f32.gmra.mxu0 %v1886
    %v1888 = vpop.f32.mrf.mxu0
    %v1889 = vadd.f32 %v1850, %v1888
    %1890 = vdwg.mxu0
    %v1891 = vand.u32 %v1655, 4294901760
    %v1892 = vsub.f32 %v1655, %v1891
    %v1893 = vand.u32 %v1892, 4294901760
    %1894 = vmatpush.msra.mxu0 %v1893
    %v1895 = vand.u32 %v1654, 4294901760
    %v1896 = vsub.f32 %v1654, %v1895
    %v1897 = vand.u32 %v1896, 4294901760
    %1898 = vmatpush.msra.mxu0 %v1897
    %v1899 = vand.u32 %v1653, 4294901760
    %v1900 = vsub.f32 %v1653, %v1899
    %v1901 = vand.u32 %v1900, 4294901760
    %1902 = vmatpush.msra.mxu0 %v1901
    %v1903 = vand.u32 %v1652, 4294901760
    %v1904 = vsub.f32 %v1652, %v1903
    %v1905 = vand.u32 %v1904, 4294901760
    %1906 = vmatpush.msra.mxu0 %v1905
    %v1907 = vand.u32 %v1651, 4294901760
    %v1908 = vsub.f32 %v1651, %v1907
    %v1909 = vand.u32 %v1908, 4294901760
    %1910 = vmatpush.msra.mxu0 %v1909
    %v1911 = vand.u32 %v1650, 4294901760
    %v1912 = vsub.f32 %v1650, %v1911
    %v1913 = vand.u32 %v1912, 4294901760
    %1914 = vmatpush.msra.mxu0 %v1913
    %v1915 = vand.u32 %v1649, 4294901760
    %v1916 = vsub.f32 %v1649, %v1915
    %v1917 = vand.u32 %v1916, 4294901760
    %1918 = vmatpush.msra.mxu0 %v1917
    %v1919 = vand.u32 %v1648, 4294901760
    %v1920 = vsub.f32 %v1648, %v1919
    %v1921 = vand.u32 %v1920, 4294901760
    %1922 = vmatpush.msra.mxu0 %v1921
    %v1923 = vand.u32 %v1647, 4294901760
    %v1924 = vsub.f32 %v1647, %v1923
    %v1925 = vand.u32 %v1924, 4294901760
    %1926 = vmatpush.msra.mxu0 %v1925
    %v1927 = vand.u32 %v1646, 4294901760
    %v1928 = vsub.f32 %v1646, %v1927
    %v1929 = vand.u32 %v1928, 4294901760
    %1930 = vmatpush.msra.mxu0 %v1929
    %v1931 = vand.u32 %v1645, 4294901760
    %v1932 = vsub.f32 %v1645, %v1931
    %v1933 = vand.u32 %v1932, 4294901760
    %1934 = vmatpush.msra.mxu0 %v1933
    %v1935 = vand.u32 %v1644, 4294901760
    %v1936 = vsub.f32 %v1644, %v1935
    %v1937 = vand.u32 %v1936, 4294901760
    %1938 = vmatpush.msra.mxu0 %v1937
    %v1939 = vand.u32 %v1643, 4294901760
    %v1940 = vsub.f32 %v1643, %v1939
    %v1941 = vand.u32 %v1940, 4294901760
    %1942 = vmatpush.msra.mxu0 %v1941
    %v1943 = vand.u32 %v1642, 4294901760
    %v1944 = vsub.f32 %v1642, %v1943
    %v1945 = vand.u32 %v1944, 4294901760
    %1946 = vmatpush.msra.mxu0 %v1945
    %v1947 = vand.u32 %v1641, 4294901760
    %v1948 = vsub.f32 %v1641, %v1947
    %v1949 = vand.u32 %v1948, 4294901760
    %1950 = vmatpush.msra.mxu0 %v1949
    %v1951 = vand.u32 %v1640, 4294901760
    %v1952 = vsub.f32 %v1640, %v1951
    %v1953 = vand.u32 %v1952, 4294901760
    %1954 = vmatpush.msra.mxu0 %v1953
    %v1955 = vand.u32 %v27, 4294901760
    %1956 = vmatmul.f32.gmra.mxu0 %v1955
    %v1957 = vpop.f32.mrf.mxu0
    %v1958 = vadd.f32 %v1889, %v1957
    %1959 = vdwg.mxu0
    %v1960 = vand.u32 %v1655, 4294901760
    %1961 = vmatpush.msra.mxu0 %v1960
    %v1962 = vand.u32 %v1654, 4294901760
    %1963 = vmatpush.msra.mxu0 %v1962
    %v1964 = vand.u32 %v1653, 4294901760
    %1965 = vmatpush.msra.mxu0 %v1964
    %v1966 = vand.u32 %v1652, 4294901760
    %1967 = vmatpush.msra.mxu0 %v1966
    %v1968 = vand.u32 %v1651, 4294901760
    %1969 = vmatpush.msra.mxu0 %v1968
    %v1970 = vand.u32 %v1650, 4294901760
    %1971 = vmatpush.msra.mxu0 %v1970
    %v1972 = vand.u32 %v1649, 4294901760
    %1973 = vmatpush.msra.mxu0 %v1972
    %v1974 = vand.u32 %v1648, 4294901760
    %1975 = vmatpush.msra.mxu0 %v1974
    %v1976 = vand.u32 %v1647, 4294901760
    %1977 = vmatpush.msra.mxu0 %v1976
    %v1978 = vand.u32 %v1646, 4294901760
    %1979 = vmatpush.msra.mxu0 %v1978
    %v1980 = vand.u32 %v1645, 4294901760
    %1981 = vmatpush.msra.mxu0 %v1980
    %v1982 = vand.u32 %v1644, 4294901760
    %1983 = vmatpush.msra.mxu0 %v1982
    %v1984 = vand.u32 %v1643, 4294901760
    %1985 = vmatpush.msra.mxu0 %v1984
    %v1986 = vand.u32 %v1642, 4294901760
    %1987 = vmatpush.msra.mxu0 %v1986
    %v1988 = vand.u32 %v1641, 4294901760
    %1989 = vmatpush.msra.mxu0 %v1988
    %v1990 = vand.u32 %v1640, 4294901760
    %1991 = vmatpush.msra.mxu0 %v1990
    %v1992 = vand.u32 %v27, 4294901760
    %1993 = vmatmul.f32.gmra.mxu0 %v1992
    %v1994 = vpop.f32.mrf.mxu0
    %v1995 = vadd.f32 %v1958, %v1994
    %1996 = vdwg.mxu0
    %v1997 = vand.u32 2147483647, %v1995
    %vm1998 = vcmp.le.f32.partialorder %v1997, 0.7853982
    %vm1999 = vcmp.lt.s32.totalorder %v1995, 0
    %v2000 = vand.u32 %v1995, 2139095040
    %v2001 = vshrl.u32 %v2000, 23
    %v2002 = vsub.s32 %v2001, 127
    %v2003 = vand.u32 2147483647, %v1995
    %v2004 = vand.u32 %v2003, 8388607
    %v2005 = vor.u32 %v2004, 8388608
    %v2006 = vsub.s32 0, %v2005
    %v2007 = vadd.s32 %v2002, 1
    %vm2008 = vcmp.gt.s32.totalorder %v2007, 0
    %v2009 = vsel %vm2008, %v2007, 0
    %v2010 = vshrl.u32 %v2009, 5
    %v2011 = vand.u32 %v2009, 31
    %v2012 = vsub.s32 32, %v2011
    %v2013 = vshrl.u32 683565275, %v2012
    %v2014 = vshll.u32 683565275, %v2011
    %v2015 = vshrl.u32 2475754826, %v2012
    %v2016 = vor.u32 %v2014, %v2015
    %v2017 = vshll.u32 2475754826, %v2011
    %v2018 = vshrl.u32 2131351028, %v2012
    %v2019 = vor.u32 %v2017, %v2018
    %v2020 = vshll.u32 2131351028, %v2011
    %v2021 = vshrl.u32 2102212464, %v2012
    %v2022 = vor.u32 %v2020, %v2021
    %v2023 = vshll.u32 2102212464, %v2011
    %v2024 = vshrl.u32 920167782, %v2012
    %v2025 = vor.u32 %v2023, %v2024
    %v2026 = vshll.u32 920167782, %v2011
    %v2027 = vshrl.u32 1326507024, %v2012
    %v2028 = vor.u32 %v2026, %v2027
    %vm2029 = vcmp.lt.s32.totalorder %v2010, 1
    %vm2030 = vcmp.lt.s32.totalorder %v2010, 2
    %vm2031 = vcmp.lt.s32.totalorder %v2010, 3
    %vm2032 = vcmp.lt.s32.totalorder %v2010, 4
    %v2033 = vsel %vm2029, %v2013, %v2016
    %v2034 = vsel %vm2032, %v2022, 2102212464
    %v2035 = vsel %vm2031, %v2019, %v2034
    %v2036 = vsel %vm2030, %v2033, %v2035
    %v2037 = vsel %vm2029, %v2016, %v2019
    %v2038 = vsel %vm2032, %v2025, 920167782
    %v2039 = vsel %vm2031, %v2022, %v2038
    %v2040 = vsel %vm2030, %v2037, %v2039
    %v2041 = vsel %vm2029, %v2019, %v2022
    %v2042 = vsel %vm2032, %v2028, 1326507024
    %v2043 = vsel %vm2031, %v2025, %v2042
    %v2044 = vsel %vm2030, %v2041, %v2043
    %v2045 = vshll.u32 %v2005, 8
    %v2046 = vand.u32 %v2045, 65535
    %v2047 = vshrl.u32 %v2045, 16
    %v2048 = vand.u32 %v2044, 65535
    %v2049 = vshrl.u32 %v2044, 16
    %v2050 = vmul.u32 %v2046, %v2048
    %v2051 = vmul.u32 %v2046, %v2049
    %v2052 = vmul.u32 %v2047, %v2048
    %v2053 = vmul.u32 %v2047, %v2049
    %v2054 = vshll.u32 %v2051, 16
    %v2055 = vshrl.u32 %v2051, 16
    %v2056 = vshll.u32 %v2052, 16
    %v2057 = vshrl.u32 %v2052, 16
    %vm2058 = vc.u32 %v2050, %v2054
    %v2059 = vsel %vm2058, 1, 0
    %v2060 = vadd.s32 %v2050, %v2054
    %v2061 = vadd.s32 %v2053, %v2059
    %vm2062 = vc.u32 %v2060, %v2056
    %v2063 = vsel %vm2062, 1, 0
    %v2064 = vadd.s32 %v2060, %v2056
    %v2065 = vadd.s32 %v2061, %v2063
    %v2066 = vadd.s32 %v2065, %v2055
    %v2067 = vadd.s32 %v2066, %v2057
    %v2068 = vand.u32 %v2045, 65535
    %v2069 = vshrl.u32 %v2045, 16
    %v2070 = vand.u32 %v2040, 65535
    %v2071 = vshrl.u32 %v2040, 16
    %v2072 = vmul.u32 %v2068, %v2070
    %v2073 = vmul.u32 %v2068, %v2071
    %v2074 = vmul.u32 %v2069, %v2070
    %v2075 = vmul.u32 %v2069, %v2071
    %v2076 = vshll.u32 %v2073, 16
    %v2077 = vshrl.u32 %v2073, 16
    %v2078 = vshll.u32 %v2074, 16
    %v2079 = vshrl.u32 %v2074, 16
    %vm2080 = vc.u32 %v2072, %v2076
    %v2081 = vsel %vm2080, 1, 0
    %v2082 = vadd.s32 %v2072, %v2076
    %v2083 = vadd.s32 %v2075, %v2081
    %vm2084 = vc.u32 %v2082, %v2078
    %v2085 = vsel %vm2084, 1, 0
    %v2086 = vadd.s32 %v2082, %v2078
    %v2087 = vadd.s32 %v2083, %v2085
    %v2088 = vadd.s32 %v2087, %v2077
    %v2089 = vadd.s32 %v2088, %v2079
    %v2090 = vmul.u32 %v2045, %v2036
    %v2091 = vadd.s32 %v2067, %v2086
    %vm2092 = vc.u32 %v2067, %v2086
    %v2093 = vadd.s32 %v2089, 1
    %v2094 = vsel %vm2092, %v2093, %v2089
    %v2095 = vadd.s32 %v2090, %v2094
    %v2096 = vadd.s32 %v2095, 536870912
    %v2097 = vshrl.u32 %v2096, 30
    %v2098 = vshll.u32 %v2097, 30
    %v2099 = vsub.s32 %v2095, %v2098
    %vm2100 = vcmp.lt.s32.totalorder %v2099, 0
    %v2101 = vsub.s32 0, %v2099
    %v2102 = vsel %vm2100, %v2101, %v2099
    %v2103 = vclz %v2102
    %v2104 = vsub.s32 %v2103, 2
    %vm2105 = vcmp.gt.s32.totalorder 0, %v2104
    %v2106 = vsel %vm2105, 0, %v2104
    %v2107 = vsub.s32 32, %v2106
    %v2108 = vshll.u32 %v2099, %v2106
    %v2109 = vshrl.u32 %v2091, %v2107
    %v2110 = vor.u32 %v2108, %v2109
    %v2111 = vsub.s32 4294967266, %v2106
    %v2112 = vadd.s32 %v2111, 127
    %v2113 = vshll.u32 %v2112, 23
    %v2114 = vor.u32 4788187, %v2113
    %v2115 = vand.u32 2147483647, %v2114
    %v2117 = vcvt.s32.f32 %v2110
    %v2118 = vmul.f32 %v2117, %v2115
    %v2119 = vxor.u32 %v2118, 2147483648
    %v2120 = vsel %vm1999, %v2119, %v2118
    %v2121 = vsub.s32 4, %v2097
    %v2122 = vsel %vm1999, %v2121, %v2097
    %v2123 = vsel %vm1998, %v1995, %v2120
    %v2124 = vsel %vm1998, 0, %v2122
    %v2125 = vmul.f32 %v2123, %v2123
    %v2126 = vmul.f32 %v2125, -0.001358992
    %v2127 = vadd.f32 %v2126, 0.041655596
    %v2128 = vmul.f32 %v2125, %v2127
    %v2129 = vadd.f32 %v2128, -0.4999988
    %v2130 = vmul.f32 %v2125, %v2129
    %v2131 = vadd.f32 1.0, %v2130
    %v2132 = vmul.f32 %v2123, %v2123
    %v2133 = vmul.f32 %v2132, -0.00019511016
    %v2134 = vadd.f32 %v2133, 0.008332121
    %v2135 = vmul.f32 %v2132, %v2134
    %v2136 = vadd.f32 %v2135, -0.16666654
    %v2137 = vmul.f32 %v2132, %v2136
    %v2138 = vadd.f32 %v2137, 1.0
    %v2139 = vmul.f32 %v2138, %v2123
    %vm2140 = vweird.f32 %v1995
    %v2141 = vadd.s32 %v2124, 3
    %v2142 = vand.u32 %v2141, 3
    %vm2143 = vcmp.lt.s32.totalorder %v2142, 2
    %vm2144 = vcmp.eq.s32.totalorder %v2142, 0
    %v2145 = vxor.u32 %v2139, 2147483648
    %v2146 = vsel %vm2144, %v2131, %v2145
    %vm2147 = vcmp.eq.s32.totalorder %v2142, 2
    %v2148 = vxor.u32 %v2131, 2147483648
    %v2149 = vsel %vm2147, %v2148, %v2139
    %v2150 = vsel %vm2143, %v2146, %v2149
    %v2151 = vsel %vm2140, nan, %v2150
    %v2153 = vrot.slane %v2151, 1
    %v2154 = vrot.slane %v2151, 2
    %v2155 = vrot.slane %v2151, 3
    %v2156 = vrot.slane %v2151, 4
    %v2157 = vrot.slane %v2151, 5
    %v2158 = vrot.slane %v2151, 6
    %v2159 = vrot.slane %v2151, 7
    %2167 = vst.msk [vmem:[#allocation4 + $0x3] sm:$0x1] %vm558, %v2151
    %2168 = vst.msk [vmem:[#allocation4 + $0x13] sm:$0x1] %vm558, %v2153
    %2169 = vst.msk [vmem:[#allocation4 + $0x23] sm:$0x1] %vm558, %v2154
    %2170 = vst.msk [vmem:[#allocation4 + $0x33] sm:$0x1] %vm558, %v2155
    %2171 = vst.msk [vmem:[#allocation4 + $0x43] sm:$0x1] %vm558, %v2156
    %2172 = vst.msk [vmem:[#allocation4 + $0x53] sm:$0x1] %vm558, %v2157
    %2173 = vst.msk [vmem:[#allocation4 + $0x63] sm:$0x1] %vm558, %v2158
    %2174 = vst.msk [vmem:[#allocation4 + $0x73] sm:$0x1] %vm558, %v2159
    %s2175 = scalar_lea.vmem [#allocation2], 512
    %v2176 = vld [vmem:[%s2175] sm:$0xff]
    %v2177 = vld [vmem:[%s2175 + $0x8] sm:$0xff]
    %v2178 = vld [vmem:[%s2175 + $0x10] sm:$0xff]
    %v2179 = vld [vmem:[%s2175 + $0x18] sm:$0xff]
    %v2180 = vld [vmem:[%s2175 + $0x20] sm:$0xff]
    %v2181 = vld [vmem:[%s2175 + $0x28] sm:$0xff]
    %v2182 = vld [vmem:[%s2175 + $0x30] sm:$0xff]
    %v2183 = vld [vmem:[%s2175 + $0x38] sm:$0xff]
    %v2184 = vld [vmem:[%s2175 + $0x40] sm:$0xff]
    %v2185 = vld [vmem:[%s2175 + $0x48] sm:$0xff]
    %v2186 = vld [vmem:[%s2175 + $0x50] sm:$0xff]
    %v2187 = vld [vmem:[%s2175 + $0x58] sm:$0xff]
    %v2188 = vld [vmem:[%s2175 + $0x60] sm:$0xff]
    %v2189 = vld [vmem:[%s2175 + $0x68] sm:$0xff]
    %v2190 = vld [vmem:[%s2175 + $0x70] sm:$0xff]
    %v2191 = vld [vmem:[%s2175 + $0x78] sm:$0xff]
    %v2192 = vand.u32 %v2191, 4294901760
    %2193 = vmatpush.msra.mxu0 %v2192
    %v2194 = vand.u32 %v2190, 4294901760
    %2195 = vmatpush.msra.mxu0 %v2194
    %v2196 = vand.u32 %v2189, 4294901760
    %2197 = vmatpush.msra.mxu0 %v2196
    %v2198 = vand.u32 %v2188, 4294901760
    %2199 = vmatpush.msra.mxu0 %v2198
    %v2200 = vand.u32 %v2187, 4294901760
    %2201 = vmatpush.msra.mxu0 %v2200
    %v2202 = vand.u32 %v2186, 4294901760
    %2203 = vmatpush.msra.mxu0 %v2202
    %v2204 = vand.u32 %v2185, 4294901760
    %2205 = vmatpush.msra.mxu0 %v2204
    %v2206 = vand.u32 %v2184, 4294901760
    %2207 = vmatpush.msra.mxu0 %v2206
    %v2208 = vand.u32 %v2183, 4294901760
    %2209 = vmatpush.msra.mxu0 %v2208
    %v2210 = vand.u32 %v2182, 4294901760
    %2211 = vmatpush.msra.mxu0 %v2210
    %v2212 = vand.u32 %v2181, 4294901760
    %2213 = vmatpush.msra.mxu0 %v2212
    %v2214 = vand.u32 %v2180, 4294901760
    %2215 = vmatpush.msra.mxu0 %v2214
    %v2216 = vand.u32 %v2179, 4294901760
    %2217 = vmatpush.msra.mxu0 %v2216
    %v2218 = vand.u32 %v2178, 4294901760
    %2219 = vmatpush.msra.mxu0 %v2218
    %v2220 = vand.u32 %v2177, 4294901760
    %2221 = vmatpush.msra.mxu0 %v2220
    %v2222 = vand.u32 %v2176, 4294901760
    %2223 = vmatpush.msra.mxu0 %v2222
    %v2224 = vand.u32 %v27, 4294901760
    %v2225 = vsub.f32 %v27, %v2224
    %v2226 = vand.u32 %v2225, 4294901760
    %v2227 = vsub.f32 %v2225, %v2226
    %v2228 = vand.u32 %v2227, 4294901760
    %2229 = vmatmul.f32.gmra.mxu0 %v2228
    %v2230 = vpop.f32.mrf.mxu0
    %v2231 = vadd.f32 0.0, %v2230
    %2232 = vdwg.mxu0
    %v2233 = vand.u32 %v2191, 4294901760
    %v2234 = vsub.f32 %v2191, %v2233
    %v2235 = vand.u32 %v2234, 4294901760
    %v2236 = vsub.f32 %v2234, %v2235
    %v2237 = vand.u32 %v2236, 4294901760
    %2238 = vmatpush.msra.mxu0 %v2237
    %v2239 = vand.u32 %v2190, 4294901760
    %v2240 = vsub.f32 %v2190, %v2239
    %v2241 = vand.u32 %v2240, 4294901760
    %v2242 = vsub.f32 %v2240, %v2241
    %v2243 = vand.u32 %v2242, 4294901760
    %2244 = vmatpush.msra.mxu0 %v2243
    %v2245 = vand.u32 %v2189, 4294901760
    %v2246 = vsub.f32 %v2189, %v2245
    %v2247 = vand.u32 %v2246, 4294901760
    %v2248 = vsub.f32 %v2246, %v2247
    %v2249 = vand.u32 %v2248, 4294901760
    %2250 = vmatpush.msra.mxu0 %v2249
    %v2251 = vand.u32 %v2188, 4294901760
    %v2252 = vsub.f32 %v2188, %v2251
    %v2253 = vand.u32 %v2252, 4294901760
    %v2254 = vsub.f32 %v2252, %v2253
    %v2255 = vand.u32 %v2254, 4294901760
    %2256 = vmatpush.msra.mxu0 %v2255
    %v2257 = vand.u32 %v2187, 4294901760
    %v2258 = vsub.f32 %v2187, %v2257
    %v2259 = vand.u32 %v2258, 4294901760
    %v2260 = vsub.f32 %v2258, %v2259
    %v2261 = vand.u32 %v2260, 4294901760
    %2262 = vmatpush.msra.mxu0 %v2261
    %v2263 = vand.u32 %v2186, 4294901760
    %v2264 = vsub.f32 %v2186, %v2263
    %v2265 = vand.u32 %v2264, 4294901760
    %v2266 = vsub.f32 %v2264, %v2265
    %v2267 = vand.u32 %v2266, 4294901760
    %2268 = vmatpush.msra.mxu0 %v2267
    %v2269 = vand.u32 %v2185, 4294901760
    %v2270 = vsub.f32 %v2185, %v2269
    %v2271 = vand.u32 %v2270, 4294901760
    %v2272 = vsub.f32 %v2270, %v2271
    %v2273 = vand.u32 %v2272, 4294901760
    %2274 = vmatpush.msra.mxu0 %v2273
    %v2275 = vand.u32 %v2184, 4294901760
    %v2276 = vsub.f32 %v2184, %v2275
    %v2277 = vand.u32 %v2276, 4294901760
    %v2278 = vsub.f32 %v2276, %v2277
    %v2279 = vand.u32 %v2278, 4294901760
    %2280 = vmatpush.msra.mxu0 %v2279
    %v2281 = vand.u32 %v2183, 4294901760
    %v2282 = vsub.f32 %v2183, %v2281
    %v2283 = vand.u32 %v2282, 4294901760
    %v2284 = vsub.f32 %v2282, %v2283
    %v2285 = vand.u32 %v2284, 4294901760
    %2286 = vmatpush.msra.mxu0 %v2285
    %v2287 = vand.u32 %v2182, 4294901760
    %v2288 = vsub.f32 %v2182, %v2287
    %v2289 = vand.u32 %v2288, 4294901760
    %v2290 = vsub.f32 %v2288, %v2289
    %v2291 = vand.u32 %v2290, 4294901760
    %2292 = vmatpush.msra.mxu0 %v2291
    %v2293 = vand.u32 %v2181, 4294901760
    %v2294 = vsub.f32 %v2181, %v2293
    %v2295 = vand.u32 %v2294, 4294901760
    %v2296 = vsub.f32 %v2294, %v2295
    %v2297 = vand.u32 %v2296, 4294901760
    %2298 = vmatpush.msra.mxu0 %v2297
    %v2299 = vand.u32 %v2180, 4294901760
    %v2300 = vsub.f32 %v2180, %v2299
    %v2301 = vand.u32 %v2300, 4294901760
    %v2302 = vsub.f32 %v2300, %v2301
    %v2303 = vand.u32 %v2302, 4294901760
    %2304 = vmatpush.msra.mxu0 %v2303
    %v2305 = vand.u32 %v2179, 4294901760
    %v2306 = vsub.f32 %v2179, %v2305
    %v2307 = vand.u32 %v2306, 4294901760
    %v2308 = vsub.f32 %v2306, %v2307
    %v2309 = vand.u32 %v2308, 4294901760
    %2310 = vmatpush.msra.mxu0 %v2309
    %v2311 = vand.u32 %v2178, 4294901760
    %v2312 = vsub.f32 %v2178, %v2311
    %v2313 = vand.u32 %v2312, 4294901760
    %v2314 = vsub.f32 %v2312, %v2313
    %v2315 = vand.u32 %v2314, 4294901760
    %2316 = vmatpush.msra.mxu0 %v2315
    %v2317 = vand.u32 %v2177, 4294901760
    %v2318 = vsub.f32 %v2177, %v2317
    %v2319 = vand.u32 %v2318, 4294901760
    %v2320 = vsub.f32 %v2318, %v2319
    %v2321 = vand.u32 %v2320, 4294901760
    %2322 = vmatpush.msra.mxu0 %v2321
    %v2323 = vand.u32 %v2176, 4294901760
    %v2324 = vsub.f32 %v2176, %v2323
    %v2325 = vand.u32 %v2324, 4294901760
    %v2326 = vsub.f32 %v2324, %v2325
    %v2327 = vand.u32 %v2326, 4294901760
    %2328 = vmatpush.msra.mxu0 %v2327
    %v2329 = vand.u32 %v27, 4294901760
    %2330 = vmatmul.f32.gmra.mxu0 %v2329
    %v2331 = vpop.f32.mrf.mxu0
    %v2332 = vadd.f32 %v2231, %v2331
    %2333 = vdwg.mxu0
    %v2334 = vand.u32 %v2191, 4294901760
    %v2335 = vsub.f32 %v2191, %v2334
    %2336 = vmatpush.msra.mxu0 %v2335
    %v2337 = vand.u32 %v2190, 4294901760
    %v2338 = vsub.f32 %v2190, %v2337
    %2339 = vmatpush.msra.mxu0 %v2338
    %v2340 = vand.u32 %v2189, 4294901760
    %v2341 = vsub.f32 %v2189, %v2340
    %2342 = vmatpush.msra.mxu0 %v2341
    %v2343 = vand.u32 %v2188, 4294901760
    %v2344 = vsub.f32 %v2188, %v2343
    %2345 = vmatpush.msra.mxu0 %v2344
    %v2346 = vand.u32 %v2187, 4294901760
    %v2347 = vsub.f32 %v2187, %v2346
    %2348 = vmatpush.msra.mxu0 %v2347
    %v2349 = vand.u32 %v2186, 4294901760
    %v2350 = vsub.f32 %v2186, %v2349
    %2351 = vmatpush.msra.mxu0 %v2350
    %v2352 = vand.u32 %v2185, 4294901760
    %v2353 = vsub.f32 %v2185, %v2352
    %2354 = vmatpush.msra.mxu0 %v2353
    %v2355 = vand.u32 %v2184, 4294901760
    %v2356 = vsub.f32 %v2184, %v2355
    %2357 = vmatpush.msra.mxu0 %v2356
    %v2358 = vand.u32 %v2183, 4294901760
    %v2359 = vsub.f32 %v2183, %v2358
    %2360 = vmatpush.msra.mxu0 %v2359
    %v2361 = vand.u32 %v2182, 4294901760
    %v2362 = vsub.f32 %v2182, %v2361
    %2363 = vmatpush.msra.mxu0 %v2362
    %v2364 = vand.u32 %v2181, 4294901760
    %v2365 = vsub.f32 %v2181, %v2364
    %2366 = vmatpush.msra.mxu0 %v2365
    %v2367 = vand.u32 %v2180, 4294901760
    %v2368 = vsub.f32 %v2180, %v2367
    %2369 = vmatpush.msra.mxu0 %v2368
    %v2370 = vand.u32 %v2179, 4294901760
    %v2371 = vsub.f32 %v2179, %v2370
    %2372 = vmatpush.msra.mxu0 %v2371
    %v2373 = vand.u32 %v2178, 4294901760
    %v2374 = vsub.f32 %v2178, %v2373
    %2375 = vmatpush.msra.mxu0 %v2374
    %v2376 = vand.u32 %v2177, 4294901760
    %v2377 = vsub.f32 %v2177, %v2376
    %2378 = vmatpush.msra.mxu0 %v2377
    %v2379 = vand.u32 %v2176, 4294901760
    %v2380 = vsub.f32 %v2176, %v2379
    %2381 = vmatpush.msra.mxu0 %v2380
    %v2382 = vand.u32 %v27, 4294901760
    %v2383 = vsub.f32 %v27, %v2382
    %2384 = vmatmul.f32.gmra.mxu0 %v2383
    %v2385 = vpop.f32.mrf.mxu0
    %v2386 = vadd.f32 %v2332, %v2385
    %2387 = vdwg.mxu0
    %v2388 = vand.u32 %v2191, 4294901760
    %2389 = vmatpush.msra.mxu0 %v2388
    %v2390 = vand.u32 %v2190, 4294901760
    %2391 = vmatpush.msra.mxu0 %v2390
    %v2392 = vand.u32 %v2189, 4294901760
    %2393 = vmatpush.msra.mxu0 %v2392
    %v2394 = vand.u32 %v2188, 4294901760
    %2395 = vmatpush.msra.mxu0 %v2394
    %v2396 = vand.u32 %v2187, 4294901760
    %2397 = vmatpush.msra.mxu0 %v2396
    %v2398 = vand.u32 %v2186, 4294901760
    %2399 = vmatpush.msra.mxu0 %v2398
    %v2400 = vand.u32 %v2185, 4294901760
    %2401 = vmatpush.msra.mxu0 %v2400
    %v2402 = vand.u32 %v2184, 4294901760
    %2403 = vmatpush.msra.mxu0 %v2402
    %v2404 = vand.u32 %v2183, 4294901760
    %2405 = vmatpush.msra.mxu0 %v2404
    %v2406 = vand.u32 %v2182, 4294901760
    %2407 = vmatpush.msra.mxu0 %v2406
    %v2408 = vand.u32 %v2181, 4294901760
    %2409 = vmatpush.msra.mxu0 %v2408
    %v2410 = vand.u32 %v2180, 4294901760
    %2411 = vmatpush.msra.mxu0 %v2410
    %v2412 = vand.u32 %v2179, 4294901760
    %2413 = vmatpush.msra.mxu0 %v2412
    %v2414 = vand.u32 %v2178, 4294901760
    %2415 = vmatpush.msra.mxu0 %v2414
    %v2416 = vand.u32 %v2177, 4294901760
    %2417 = vmatpush.msra.mxu0 %v2416
    %v2418 = vand.u32 %v2176, 4294901760
    %2419 = vmatpush.msra.mxu0 %v2418
    %v2420 = vand.u32 %v27, 4294901760
    %v2421 = vsub.f32 %v27, %v2420
    %v2422 = vand.u32 %v2421, 4294901760
    %2423 = vmatmul.f32.gmra.mxu0 %v2422
    %v2424 = vpop.f32.mrf.mxu0
    %v2425 = vadd.f32 %v2386, %v2424
    %2426 = vdwg.mxu0
    %v2427 = vand.u32 %v2191, 4294901760
    %v2428 = vsub.f32 %v2191, %v2427
    %v2429 = vand.u32 %v2428, 4294901760
    %2430 = vmatpush.msra.mxu0 %v2429
    %v2431 = vand.u32 %v2190, 4294901760
    %v2432 = vsub.f32 %v2190, %v2431
    %v2433 = vand.u32 %v2432, 4294901760
    %2434 = vmatpush.msra.mxu0 %v2433
    %v2435 = vand.u32 %v2189, 4294901760
    %v2436 = vsub.f32 %v2189, %v2435
    %v2437 = vand.u32 %v2436, 4294901760
    %2438 = vmatpush.msra.mxu0 %v2437
    %v2439 = vand.u32 %v2188, 4294901760
    %v2440 = vsub.f32 %v2188, %v2439
    %v2441 = vand.u32 %v2440, 4294901760
    %2442 = vmatpush.msra.mxu0 %v2441
    %v2443 = vand.u32 %v2187, 4294901760
    %v2444 = vsub.f32 %v2187, %v2443
    %v2445 = vand.u32 %v2444, 4294901760
    %2446 = vmatpush.msra.mxu0 %v2445
    %v2447 = vand.u32 %v2186, 4294901760
    %v2448 = vsub.f32 %v2186, %v2447
    %v2449 = vand.u32 %v2448, 4294901760
    %2450 = vmatpush.msra.mxu0 %v2449
    %v2451 = vand.u32 %v2185, 4294901760
    %v2452 = vsub.f32 %v2185, %v2451
    %v2453 = vand.u32 %v2452, 4294901760
    %2454 = vmatpush.msra.mxu0 %v2453
    %v2455 = vand.u32 %v2184, 4294901760
    %v2456 = vsub.f32 %v2184, %v2455
    %v2457 = vand.u32 %v2456, 4294901760
    %2458 = vmatpush.msra.mxu0 %v2457
    %v2459 = vand.u32 %v2183, 4294901760
    %v2460 = vsub.f32 %v2183, %v2459
    %v2461 = vand.u32 %v2460, 4294901760
    %2462 = vmatpush.msra.mxu0 %v2461
    %v2463 = vand.u32 %v2182, 4294901760
    %v2464 = vsub.f32 %v2182, %v2463
    %v2465 = vand.u32 %v2464, 4294901760
    %2466 = vmatpush.msra.mxu0 %v2465
    %v2467 = vand.u32 %v2181, 4294901760
    %v2468 = vsub.f32 %v2181, %v2467
    %v2469 = vand.u32 %v2468, 4294901760
    %2470 = vmatpush.msra.mxu0 %v2469
    %v2471 = vand.u32 %v2180, 4294901760
    %v2472 = vsub.f32 %v2180, %v2471
    %v2473 = vand.u32 %v2472, 4294901760
    %2474 = vmatpush.msra.mxu0 %v2473
    %v2475 = vand.u32 %v2179, 4294901760
    %v2476 = vsub.f32 %v2179, %v2475
    %v2477 = vand.u32 %v2476, 4294901760
    %2478 = vmatpush.msra.mxu0 %v2477
    %v2479 = vand.u32 %v2178, 4294901760
    %v2480 = vsub.f32 %v2178, %v2479
    %v2481 = vand.u32 %v2480, 4294901760
    %2482 = vmatpush.msra.mxu0 %v2481
    %v2483 = vand.u32 %v2177, 4294901760
    %v2484 = vsub.f32 %v2177, %v2483
    %v2485 = vand.u32 %v2484, 4294901760
    %2486 = vmatpush.msra.mxu0 %v2485
    %v2487 = vand.u32 %v2176, 4294901760
    %v2488 = vsub.f32 %v2176, %v2487
    %v2489 = vand.u32 %v2488, 4294901760
    %2490 = vmatpush.msra.mxu0 %v2489
    %v2491 = vand.u32 %v27, 4294901760
    %2492 = vmatmul.f32.gmra.mxu0 %v2491
    %v2493 = vpop.f32.mrf.mxu0
    %v2494 = vadd.f32 %v2425, %v2493
    %2495 = vdwg.mxu0
    %v2496 = vand.u32 %v2191, 4294901760
    %2497 = vmatpush.msra.mxu0 %v2496
    %v2498 = vand.u32 %v2190, 4294901760
    %2499 = vmatpush.msra.mxu0 %v2498
    %v2500 = vand.u32 %v2189, 4294901760
    %2501 = vmatpush.msra.mxu0 %v2500
    %v2502 = vand.u32 %v2188, 4294901760
    %2503 = vmatpush.msra.mxu0 %v2502
    %v2504 = vand.u32 %v2187, 4294901760
    %2505 = vmatpush.msra.mxu0 %v2504
    %v2506 = vand.u32 %v2186, 4294901760
    %2507 = vmatpush.msra.mxu0 %v2506
    %v2508 = vand.u32 %v2185, 4294901760
    %2509 = vmatpush.msra.mxu0 %v2508
    %v2510 = vand.u32 %v2184, 4294901760
    %2511 = vmatpush.msra.mxu0 %v2510
    %v2512 = vand.u32 %v2183, 4294901760
    %2513 = vmatpush.msra.mxu0 %v2512
    %v2514 = vand.u32 %v2182, 4294901760
    %2515 = vmatpush.msra.mxu0 %v2514
    %v2516 = vand.u32 %v2181, 4294901760
    %2517 = vmatpush.msra.mxu0 %v2516
    %v2518 = vand.u32 %v2180, 4294901760
    %2519 = vmatpush.msra.mxu0 %v2518
    %v2520 = vand.u32 %v2179, 4294901760
    %2521 = vmatpush.msra.mxu0 %v2520
    %v2522 = vand.u32 %v2178, 4294901760
    %2523 = vmatpush.msra.mxu0 %v2522
    %v2524 = vand.u32 %v2177, 4294901760
    %2525 = vmatpush.msra.mxu0 %v2524
    %v2526 = vand.u32 %v2176, 4294901760
    %2527 = vmatpush.msra.mxu0 %v2526
    %v2528 = vand.u32 %v27, 4294901760
    %2529 = vmatmul.f32.gmra.mxu0 %v2528
    %v2530 = vpop.f32.mrf.mxu0
    %v2531 = vadd.f32 %v2494, %v2530
    %2532 = vdwg.mxu0
    %v2533 = vand.u32 2147483647, %v2531
    %vm2534 = vcmp.le.f32.partialorder %v2533, 0.7853982
    %vm2535 = vcmp.lt.s32.totalorder %v2531, 0
    %v2536 = vand.u32 %v2531, 2139095040
    %v2537 = vshrl.u32 %v2536, 23
    %v2538 = vsub.s32 %v2537, 127
    %v2539 = vand.u32 2147483647, %v2531
    %v2540 = vand.u32 %v2539, 8388607
    %v2541 = vor.u32 %v2540, 8388608
    %v2542 = vsub.s32 0, %v2541
    %v2543 = vadd.s32 %v2538, 1
    %vm2544 = vcmp.gt.s32.totalorder %v2543, 0
    %v2545 = vsel %vm2544, %v2543, 0
    %v2546 = vshrl.u32 %v2545, 5
    %v2547 = vand.u32 %v2545, 31
    %v2548 = vsub.s32 32, %v2547
    %v2549 = vshrl.u32 683565275, %v2548
    %v2550 = vshll.u32 683565275, %v2547
    %v2551 = vshrl.u32 2475754826, %v2548
    %v2552 = vor.u32 %v2550, %v2551
    %v2553 = vshll.u32 2475754826, %v2547
    %v2554 = vshrl.u32 2131351028, %v2548
    %v2555 = vor.u32 %v2553, %v2554
    %v2556 = vshll.u32 2131351028, %v2547
    %v2557 = vshrl.u32 2102212464, %v2548
    %v2558 = vor.u32 %v2556, %v2557
    %v2559 = vshll.u32 2102212464, %v2547
    %v2560 = vshrl.u32 920167782, %v2548
    %v2561 = vor.u32 %v2559, %v2560
    %v2562 = vshll.u32 920167782, %v2547
    %v2563 = vshrl.u32 1326507024, %v2548
    %v2564 = vor.u32 %v2562, %v2563
    %vm2565 = vcmp.lt.s32.totalorder %v2546, 1
    %vm2566 = vcmp.lt.s32.totalorder %v2546, 2
    %vm2567 = vcmp.lt.s32.totalorder %v2546, 3
    %vm2568 = vcmp.lt.s32.totalorder %v2546, 4
    %v2569 = vsel %vm2565, %v2549, %v2552
    %v2570 = vsel %vm2568, %v2558, 2102212464
    %v2571 = vsel %vm2567, %v2555, %v2570
    %v2572 = vsel %vm2566, %v2569, %v2571
    %v2573 = vsel %vm2565, %v2552, %v2555
    %v2574 = vsel %vm2568, %v2561, 920167782
    %v2575 = vsel %vm2567, %v2558, %v2574
    %v2576 = vsel %vm2566, %v2573, %v2575
    %v2577 = vsel %vm2565, %v2555, %v2558
    %v2578 = vsel %vm2568, %v2564, 1326507024
    %v2579 = vsel %vm2567, %v2561, %v2578
    %v2580 = vsel %vm2566, %v2577, %v2579
    %v2581 = vshll.u32 %v2541, 8
    %v2582 = vand.u32 %v2581, 65535
    %v2583 = vshrl.u32 %v2581, 16
    %v2584 = vand.u32 %v2580, 65535
    %v2585 = vshrl.u32 %v2580, 16
    %v2586 = vmul.u32 %v2582, %v2584
    %v2587 = vmul.u32 %v2582, %v2585
    %v2588 = vmul.u32 %v2583, %v2584
    %v2589 = vmul.u32 %v2583, %v2585
    %v2590 = vshll.u32 %v2587, 16
    %v2591 = vshrl.u32 %v2587, 16
    %v2592 = vshll.u32 %v2588, 16
    %v2593 = vshrl.u32 %v2588, 16
    %vm2594 = vc.u32 %v2586, %v2590
    %v2595 = vsel %vm2594, 1, 0
    %v2596 = vadd.s32 %v2586, %v2590
    %v2597 = vadd.s32 %v2589, %v2595
    %vm2598 = vc.u32 %v2596, %v2592
    %v2599 = vsel %vm2598, 1, 0
    %v2600 = vadd.s32 %v2596, %v2592
    %v2601 = vadd.s32 %v2597, %v2599
    %v2602 = vadd.s32 %v2601, %v2591
    %v2603 = vadd.s32 %v2602, %v2593
    %v2604 = vand.u32 %v2581, 65535
    %v2605 = vshrl.u32 %v2581, 16
    %v2606 = vand.u32 %v2576, 65535
    %v2607 = vshrl.u32 %v2576, 16
    %v2608 = vmul.u32 %v2604, %v2606
    %v2609 = vmul.u32 %v2604, %v2607
    %v2610 = vmul.u32 %v2605, %v2606
    %v2611 = vmul.u32 %v2605, %v2607
    %v2612 = vshll.u32 %v2609, 16
    %v2613 = vshrl.u32 %v2609, 16
    %v2614 = vshll.u32 %v2610, 16
    %v2615 = vshrl.u32 %v2610, 16
    %vm2616 = vc.u32 %v2608, %v2612
    %v2617 = vsel %vm2616, 1, 0
    %v2618 = vadd.s32 %v2608, %v2612
    %v2619 = vadd.s32 %v2611, %v2617
    %vm2620 = vc.u32 %v2618, %v2614
    %v2621 = vsel %vm2620, 1, 0
    %v2622 = vadd.s32 %v2618, %v2614
    %v2623 = vadd.s32 %v2619, %v2621
    %v2624 = vadd.s32 %v2623, %v2613
    %v2625 = vadd.s32 %v2624, %v2615
    %v2626 = vmul.u32 %v2581, %v2572
    %v2627 = vadd.s32 %v2603, %v2622
    %vm2628 = vc.u32 %v2603, %v2622
    %v2629 = vadd.s32 %v2625, 1
    %v2630 = vsel %vm2628, %v2629, %v2625
    %v2631 = vadd.s32 %v2626, %v2630
    %v2632 = vadd.s32 %v2631, 536870912
    %v2633 = vshrl.u32 %v2632, 30
    %v2634 = vshll.u32 %v2633, 30
    %v2635 = vsub.s32 %v2631, %v2634
    %vm2636 = vcmp.lt.s32.totalorder %v2635, 0
    %v2637 = vsub.s32 0, %v2635
    %v2638 = vsel %vm2636, %v2637, %v2635
    %v2639 = vclz %v2638
    %v2640 = vsub.s32 %v2639, 2
    %vm2641 = vcmp.gt.s32.totalorder 0, %v2640
    %v2642 = vsel %vm2641, 0, %v2640
    %v2643 = vsub.s32 32, %v2642
    %v2644 = vshll.u32 %v2635, %v2642
    %v2645 = vshrl.u32 %v2627, %v2643
    %v2646 = vor.u32 %v2644, %v2645
    %v2647 = vsub.s32 4294967266, %v2642
    %v2648 = vadd.s32 %v2647, 127
    %v2649 = vshll.u32 %v2648, 23
    %v2650 = vor.u32 4788187, %v2649
    %v2651 = vand.u32 2147483647, %v2650
    %v2653 = vcvt.s32.f32 %v2646
    %v2654 = vmul.f32 %v2653, %v2651
    %v2655 = vxor.u32 %v2654, 2147483648
    %v2656 = vsel %vm2535, %v2655, %v2654
    %v2657 = vsub.s32 4, %v2633
    %v2658 = vsel %vm2535, %v2657, %v2633
    %v2659 = vsel %vm2534, %v2531, %v2656
    %v2660 = vsel %vm2534, 0, %v2658
    %v2661 = vmul.f32 %v2659, %v2659
    %v2662 = vmul.f32 %v2661, -0.001358992
    %v2663 = vadd.f32 %v2662, 0.041655596
    %v2664 = vmul.f32 %v2661, %v2663
    %v2665 = vadd.f32 %v2664, -0.4999988
    %v2666 = vmul.f32 %v2661, %v2665
    %v2667 = vadd.f32 1.0, %v2666
    %v2668 = vmul.f32 %v2659, %v2659
    %v2669 = vmul.f32 %v2668, -0.00019511016
    %v2670 = vadd.f32 %v2669, 0.008332121
    %v2671 = vmul.f32 %v2668, %v2670
    %v2672 = vadd.f32 %v2671, -0.16666654
    %v2673 = vmul.f32 %v2668, %v2672
    %v2674 = vadd.f32 %v2673, 1.0
    %v2675 = vmul.f32 %v2674, %v2659
    %vm2676 = vweird.f32 %v2531
    %v2677 = vadd.s32 %v2660, 3
    %v2678 = vand.u32 %v2677, 3
    %vm2679 = vcmp.lt.s32.totalorder %v2678, 2
    %vm2680 = vcmp.eq.s32.totalorder %v2678, 0
    %v2681 = vxor.u32 %v2675, 2147483648
    %v2682 = vsel %vm2680, %v2667, %v2681
    %vm2683 = vcmp.eq.s32.totalorder %v2678, 2
    %v2684 = vxor.u32 %v2667, 2147483648
    %v2685 = vsel %vm2683, %v2684, %v2675
    %v2686 = vsel %vm2679, %v2682, %v2685
    %v2687 = vsel %vm2676, nan, %v2686
    %v2689 = vrot.slane %v2687, 1
    %v2690 = vrot.slane %v2687, 2
    %v2691 = vrot.slane %v2687, 3
    %v2692 = vrot.slane %v2687, 4
    %v2693 = vrot.slane %v2687, 5
    %v2694 = vrot.slane %v2687, 6
    %v2695 = vrot.slane %v2687, 7
    %2703 = vst.msk [vmem:[#allocation4 + $0x4] sm:$0x1] %vm558, %v2687
    %2704 = vst.msk [vmem:[#allocation4 + $0x14] sm:$0x1] %vm558, %v2689
    %2705 = vst.msk [vmem:[#allocation4 + $0x24] sm:$0x1] %vm558, %v2690
    %2706 = vst.msk [vmem:[#allocation4 + $0x34] sm:$0x1] %vm558, %v2691
    %2707 = vst.msk [vmem:[#allocation4 + $0x44] sm:$0x1] %vm558, %v2692
    %2708 = vst.msk [vmem:[#allocation4 + $0x54] sm:$0x1] %vm558, %v2693
    %2709 = vst.msk [vmem:[#allocation4 + $0x64] sm:$0x1] %vm558, %v2694
    %2710 = vst.msk [vmem:[#allocation4 + $0x74] sm:$0x1] %vm558, %v2695
    %s2711 = scalar_lea.vmem [#allocation2], 640
    %v2712 = vld [vmem:[%s2711] sm:$0xff]
    %v2713 = vld [vmem:[%s2711 + $0x8] sm:$0xff]
    %v2714 = vld [vmem:[%s2711 + $0x10] sm:$0xff]
    %v2715 = vld [vmem:[%s2711 + $0x18] sm:$0xff]
    %v2716 = vld [vmem:[%s2711 + $0x20] sm:$0xff]
    %v2717 = vld [vmem:[%s2711 + $0x28] sm:$0xff]
    %v2718 = vld [vmem:[%s2711 + $0x30] sm:$0xff]
    %v2719 = vld [vmem:[%s2711 + $0x38] sm:$0xff]
    %v2720 = vld [vmem:[%s2711 + $0x40] sm:$0xff]
    %v2721 = vld [vmem:[%s2711 + $0x48] sm:$0xff]
    %v2722 = vld [vmem:[%s2711 + $0x50] sm:$0xff]
    %v2723 = vld [vmem:[%s2711 + $0x58] sm:$0xff]
    %v2724 = vld [vmem:[%s2711 + $0x60] sm:$0xff]
    %v2725 = vld [vmem:[%s2711 + $0x68] sm:$0xff]
    %v2726 = vld [vmem:[%s2711 + $0x70] sm:$0xff]
    %v2727 = vld [vmem:[%s2711 + $0x78] sm:$0xff]
    %v2728 = vand.u32 %v2727, 4294901760
    %2729 = vmatpush.msra.mxu0 %v2728
    %v2730 = vand.u32 %v2726, 4294901760
    %2731 = vmatpush.msra.mxu0 %v2730
    %v2732 = vand.u32 %v2725, 4294901760
    %2733 = vmatpush.msra.mxu0 %v2732
    %v2734 = vand.u32 %v2724, 4294901760
    %2735 = vmatpush.msra.mxu0 %v2734
    %v2736 = vand.u32 %v2723, 4294901760
    %2737 = vmatpush.msra.mxu0 %v2736
    %v2738 = vand.u32 %v2722, 4294901760
    %2739 = vmatpush.msra.mxu0 %v2738
    %v2740 = vand.u32 %v2721, 4294901760
    %2741 = vmatpush.msra.mxu0 %v2740
    %v2742 = vand.u32 %v2720, 4294901760
    %2743 = vmatpush.msra.mxu0 %v2742
    %v2744 = vand.u32 %v2719, 4294901760
    %2745 = vmatpush.msra.mxu0 %v2744
    %v2746 = vand.u32 %v2718, 4294901760
    %2747 = vmatpush.msra.mxu0 %v2746
    %v2748 = vand.u32 %v2717, 4294901760
    %2749 = vmatpush.msra.mxu0 %v2748
    %v2750 = vand.u32 %v2716, 4294901760
    %2751 = vmatpush.msra.mxu0 %v2750
    %v2752 = vand.u32 %v2715, 4294901760
    %2753 = vmatpush.msra.mxu0 %v2752
    %v2754 = vand.u32 %v2714, 4294901760
    %2755 = vmatpush.msra.mxu0 %v2754
    %v2756 = vand.u32 %v2713, 4294901760
    %2757 = vmatpush.msra.mxu0 %v2756
    %v2758 = vand.u32 %v2712, 4294901760
    %2759 = vmatpush.msra.mxu0 %v2758
    %v2760 = vand.u32 %v27, 4294901760
    %v2761 = vsub.f32 %v27, %v2760
    %v2762 = vand.u32 %v2761, 4294901760
    %v2763 = vsub.f32 %v2761, %v2762
    %v2764 = vand.u32 %v2763, 4294901760
    %2765 = vmatmul.f32.gmra.mxu0 %v2764
    %v2766 = vpop.f32.mrf.mxu0
    %v2767 = vadd.f32 0.0, %v2766
    %2768 = vdwg.mxu0
    %v2769 = vand.u32 %v2727, 4294901760
    %v2770 = vsub.f32 %v2727, %v2769
    %v2771 = vand.u32 %v2770, 4294901760
    %v2772 = vsub.f32 %v2770, %v2771
    %v2773 = vand.u32 %v2772, 4294901760
    %2774 = vmatpush.msra.mxu0 %v2773
    %v2775 = vand.u32 %v2726, 4294901760
    %v2776 = vsub.f32 %v2726, %v2775
    %v2777 = vand.u32 %v2776, 4294901760
    %v2778 = vsub.f32 %v2776, %v2777
    %v2779 = vand.u32 %v2778, 4294901760
    %2780 = vmatpush.msra.mxu0 %v2779
    %v2781 = vand.u32 %v2725, 4294901760
    %v2782 = vsub.f32 %v2725, %v2781
    %v2783 = vand.u32 %v2782, 4294901760
    %v2784 = vsub.f32 %v2782, %v2783
    %v2785 = vand.u32 %v2784, 4294901760
    %2786 = vmatpush.msra.mxu0 %v2785
    %v2787 = vand.u32 %v2724, 4294901760
    %v2788 = vsub.f32 %v2724, %v2787
    %v2789 = vand.u32 %v2788, 4294901760
    %v2790 = vsub.f32 %v2788, %v2789
    %v2791 = vand.u32 %v2790, 4294901760
    %2792 = vmatpush.msra.mxu0 %v2791
    %v2793 = vand.u32 %v2723, 4294901760
    %v2794 = vsub.f32 %v2723, %v2793
    %v2795 = vand.u32 %v2794, 4294901760
    %v2796 = vsub.f32 %v2794, %v2795
    %v2797 = vand.u32 %v2796, 4294901760
    %2798 = vmatpush.msra.mxu0 %v2797
    %v2799 = vand.u32 %v2722, 4294901760
    %v2800 = vsub.f32 %v2722, %v2799
    %v2801 = vand.u32 %v2800, 4294901760
    %v2802 = vsub.f32 %v2800, %v2801
    %v2803 = vand.u32 %v2802, 4294901760
    %2804 = vmatpush.msra.mxu0 %v2803
    %v2805 = vand.u32 %v2721, 4294901760
    %v2806 = vsub.f32 %v2721, %v2805
    %v2807 = vand.u32 %v2806, 4294901760
    %v2808 = vsub.f32 %v2806, %v2807
    %v2809 = vand.u32 %v2808, 4294901760
    %2810 = vmatpush.msra.mxu0 %v2809
    %v2811 = vand.u32 %v2720, 4294901760
    %v2812 = vsub.f32 %v2720, %v2811
    %v2813 = vand.u32 %v2812, 4294901760
    %v2814 = vsub.f32 %v2812, %v2813
    %v2815 = vand.u32 %v2814, 4294901760
    %2816 = vmatpush.msra.mxu0 %v2815
    %v2817 = vand.u32 %v2719, 4294901760
    %v2818 = vsub.f32 %v2719, %v2817
    %v2819 = vand.u32 %v2818, 4294901760
    %v2820 = vsub.f32 %v2818, %v2819
    %v2821 = vand.u32 %v2820, 4294901760
    %2822 = vmatpush.msra.mxu0 %v2821
    %v2823 = vand.u32 %v2718, 4294901760
    %v2824 = vsub.f32 %v2718, %v2823
    %v2825 = vand.u32 %v2824, 4294901760
    %v2826 = vsub.f32 %v2824, %v2825
    %v2827 = vand.u32 %v2826, 4294901760
    %2828 = vmatpush.msra.mxu0 %v2827
    %v2829 = vand.u32 %v2717, 4294901760
    %v2830 = vsub.f32 %v2717, %v2829
    %v2831 = vand.u32 %v2830, 4294901760
    %v2832 = vsub.f32 %v2830, %v2831
    %v2833 = vand.u32 %v2832, 4294901760
    %2834 = vmatpush.msra.mxu0 %v2833
    %v2835 = vand.u32 %v2716, 4294901760
    %v2836 = vsub.f32 %v2716, %v2835
    %v2837 = vand.u32 %v2836, 4294901760
    %v2838 = vsub.f32 %v2836, %v2837
    %v2839 = vand.u32 %v2838, 4294901760
    %2840 = vmatpush.msra.mxu0 %v2839
    %v2841 = vand.u32 %v2715, 4294901760
    %v2842 = vsub.f32 %v2715, %v2841
    %v2843 = vand.u32 %v2842, 4294901760
    %v2844 = vsub.f32 %v2842, %v2843
    %v2845 = vand.u32 %v2844, 4294901760
    %2846 = vmatpush.msra.mxu0 %v2845
    %v2847 = vand.u32 %v2714, 4294901760
    %v2848 = vsub.f32 %v2714, %v2847
    %v2849 = vand.u32 %v2848, 4294901760
    %v2850 = vsub.f32 %v2848, %v2849
    %v2851 = vand.u32 %v2850, 4294901760
    %2852 = vmatpush.msra.mxu0 %v2851
    %v2853 = vand.u32 %v2713, 4294901760
    %v2854 = vsub.f32 %v2713, %v2853
    %v2855 = vand.u32 %v2854, 4294901760
    %v2856 = vsub.f32 %v2854, %v2855
    %v2857 = vand.u32 %v2856, 4294901760
    %2858 = vmatpush.msra.mxu0 %v2857
    %v2859 = vand.u32 %v2712, 4294901760
    %v2860 = vsub.f32 %v2712, %v2859
    %v2861 = vand.u32 %v2860, 4294901760
    %v2862 = vsub.f32 %v2860, %v2861
    %v2863 = vand.u32 %v2862, 4294901760
    %2864 = vmatpush.msra.mxu0 %v2863
    %v2865 = vand.u32 %v27, 4294901760
    %2866 = vmatmul.f32.gmra.mxu0 %v2865
    %v2867 = vpop.f32.mrf.mxu0
    %v2868 = vadd.f32 %v2767, %v2867
    %2869 = vdwg.mxu0
    %v2870 = vand.u32 %v2727, 4294901760
    %v2871 = vsub.f32 %v2727, %v2870
    %2872 = vmatpush.msra.mxu0 %v2871
    %v2873 = vand.u32 %v2726, 4294901760
    %v2874 = vsub.f32 %v2726, %v2873
    %2875 = vmatpush.msra.mxu0 %v2874
    %v2876 = vand.u32 %v2725, 4294901760
    %v2877 = vsub.f32 %v2725, %v2876
    %2878 = vmatpush.msra.mxu0 %v2877
    %v2879 = vand.u32 %v2724, 4294901760
    %v2880 = vsub.f32 %v2724, %v2879
    %2881 = vmatpush.msra.mxu0 %v2880
    %v2882 = vand.u32 %v2723, 4294901760
    %v2883 = vsub.f32 %v2723, %v2882
    %2884 = vmatpush.msra.mxu0 %v2883
    %v2885 = vand.u32 %v2722, 4294901760
    %v2886 = vsub.f32 %v2722, %v2885
    %2887 = vmatpush.msra.mxu0 %v2886
    %v2888 = vand.u32 %v2721, 4294901760
    %v2889 = vsub.f32 %v2721, %v2888
    %2890 = vmatpush.msra.mxu0 %v2889
    %v2891 = vand.u32 %v2720, 4294901760
    %v2892 = vsub.f32 %v2720, %v2891
    %2893 = vmatpush.msra.mxu0 %v2892
    %v2894 = vand.u32 %v2719, 4294901760
    %v2895 = vsub.f32 %v2719, %v2894
    %2896 = vmatpush.msra.mxu0 %v2895
    %v2897 = vand.u32 %v2718, 4294901760
    %v2898 = vsub.f32 %v2718, %v2897
    %2899 = vmatpush.msra.mxu0 %v2898
    %v2900 = vand.u32 %v2717, 4294901760
    %v2901 = vsub.f32 %v2717, %v2900
    %2902 = vmatpush.msra.mxu0 %v2901
    %v2903 = vand.u32 %v2716, 4294901760
    %v2904 = vsub.f32 %v2716, %v2903
    %2905 = vmatpush.msra.mxu0 %v2904
    %v2906 = vand.u32 %v2715, 4294901760
    %v2907 = vsub.f32 %v2715, %v2906
    %2908 = vmatpush.msra.mxu0 %v2907
    %v2909 = vand.u32 %v2714, 4294901760
    %v2910 = vsub.f32 %v2714, %v2909
    %2911 = vmatpush.msra.mxu0 %v2910
    %v2912 = vand.u32 %v2713, 4294901760
    %v2913 = vsub.f32 %v2713, %v2912
    %2914 = vmatpush.msra.mxu0 %v2913
    %v2915 = vand.u32 %v2712, 4294901760
    %v2916 = vsub.f32 %v2712, %v2915
    %2917 = vmatpush.msra.mxu0 %v2916
    %v2918 = vand.u32 %v27, 4294901760
    %v2919 = vsub.f32 %v27, %v2918
    %2920 = vmatmul.f32.gmra.mxu0 %v2919
    %v2921 = vpop.f32.mrf.mxu0
    %v2922 = vadd.f32 %v2868, %v2921
    %2923 = vdwg.mxu0
    %v2924 = vand.u32 %v2727, 4294901760
    %2925 = vmatpush.msra.mxu0 %v2924
    %v2926 = vand.u32 %v2726, 4294901760
    %2927 = vmatpush.msra.mxu0 %v2926
    %v2928 = vand.u32 %v2725, 4294901760
    %2929 = vmatpush.msra.mxu0 %v2928
    %v2930 = vand.u32 %v2724, 4294901760
    %2931 = vmatpush.msra.mxu0 %v2930
    %v2932 = vand.u32 %v2723, 4294901760
    %2933 = vmatpush.msra.mxu0 %v2932
    %v2934 = vand.u32 %v2722, 4294901760
    %2935 = vmatpush.msra.mxu0 %v2934
    %v2936 = vand.u32 %v2721, 4294901760
    %2937 = vmatpush.msra.mxu0 %v2936
    %v2938 = vand.u32 %v2720, 4294901760
    %2939 = vmatpush.msra.mxu0 %v2938
    %v2940 = vand.u32 %v2719, 4294901760
    %2941 = vmatpush.msra.mxu0 %v2940
    %v2942 = vand.u32 %v2718, 4294901760
    %2943 = vmatpush.msra.mxu0 %v2942
    %v2944 = vand.u32 %v2717, 4294901760
    %2945 = vmatpush.msra.mxu0 %v2944
    %v2946 = vand.u32 %v2716, 4294901760
    %2947 = vmatpush.msra.mxu0 %v2946
    %v2948 = vand.u32 %v2715, 4294901760
    %2949 = vmatpush.msra.mxu0 %v2948
    %v2950 = vand.u32 %v2714, 4294901760
    %2951 = vmatpush.msra.mxu0 %v2950
    %v2952 = vand.u32 %v2713, 4294901760
    %2953 = vmatpush.msra.mxu0 %v2952
    %v2954 = vand.u32 %v2712, 4294901760
    %2955 = vmatpush.msra.mxu0 %v2954
    %v2956 = vand.u32 %v27, 4294901760
    %v2957 = vsub.f32 %v27, %v2956
    %v2958 = vand.u32 %v2957, 4294901760
    %2959 = vmatmul.f32.gmra.mxu0 %v2958
    %v2960 = vpop.f32.mrf.mxu0
    %v2961 = vadd.f32 %v2922, %v2960
    %2962 = vdwg.mxu0
    %v2963 = vand.u32 %v2727, 4294901760
    %v2964 = vsub.f32 %v2727, %v2963
    %v2965 = vand.u32 %v2964, 4294901760
    %2966 = vmatpush.msra.mxu0 %v2965
    %v2967 = vand.u32 %v2726, 4294901760
    %v2968 = vsub.f32 %v2726, %v2967
    %v2969 = vand.u32 %v2968, 4294901760
    %2970 = vmatpush.msra.mxu0 %v2969
    %v2971 = vand.u32 %v2725, 4294901760
    %v2972 = vsub.f32 %v2725, %v2971
    %v2973 = vand.u32 %v2972, 4294901760
    %2974 = vmatpush.msra.mxu0 %v2973
    %v2975 = vand.u32 %v2724, 4294901760
    %v2976 = vsub.f32 %v2724, %v2975
    %v2977 = vand.u32 %v2976, 4294901760
    %2978 = vmatpush.msra.mxu0 %v2977
    %v2979 = vand.u32 %v2723, 4294901760
    %v2980 = vsub.f32 %v2723, %v2979
    %v2981 = vand.u32 %v2980, 4294901760
    %2982 = vmatpush.msra.mxu0 %v2981
    %v2983 = vand.u32 %v2722, 4294901760
    %v2984 = vsub.f32 %v2722, %v2983
    %v2985 = vand.u32 %v2984, 4294901760
    %2986 = vmatpush.msra.mxu0 %v2985
    %v2987 = vand.u32 %v2721, 4294901760
    %v2988 = vsub.f32 %v2721, %v2987
    %v2989 = vand.u32 %v2988, 4294901760
    %2990 = vmatpush.msra.mxu0 %v2989
    %v2991 = vand.u32 %v2720, 4294901760
    %v2992 = vsub.f32 %v2720, %v2991
    %v2993 = vand.u32 %v2992, 4294901760
    %2994 = vmatpush.msra.mxu0 %v2993
    %v2995 = vand.u32 %v2719, 4294901760
    %v2996 = vsub.f32 %v2719, %v2995
    %v2997 = vand.u32 %v2996, 4294901760
    %2998 = vmatpush.msra.mxu0 %v2997
    %v2999 = vand.u32 %v2718, 4294901760
    %v3000 = vsub.f32 %v2718, %v2999
    %v3001 = vand.u32 %v3000, 4294901760
    %3002 = vmatpush.msra.mxu0 %v3001
    %v3003 = vand.u32 %v2717, 4294901760
    %v3004 = vsub.f32 %v2717, %v3003
    %v3005 = vand.u32 %v3004, 4294901760
    %3006 = vmatpush.msra.mxu0 %v3005
    %v3007 = vand.u32 %v2716, 4294901760
    %v3008 = vsub.f32 %v2716, %v3007
    %v3009 = vand.u32 %v3008, 4294901760
    %3010 = vmatpush.msra.mxu0 %v3009
    %v3011 = vand.u32 %v2715, 4294901760
    %v3012 = vsub.f32 %v2715, %v3011
    %v3013 = vand.u32 %v3012, 4294901760
    %3014 = vmatpush.msra.mxu0 %v3013
    %v3015 = vand.u32 %v2714, 4294901760
    %v3016 = vsub.f32 %v2714, %v3015
    %v3017 = vand.u32 %v3016, 4294901760
    %3018 = vmatpush.msra.mxu0 %v3017
    %v3019 = vand.u32 %v2713, 4294901760
    %v3020 = vsub.f32 %v2713, %v3019
    %v3021 = vand.u32 %v3020, 4294901760
    %3022 = vmatpush.msra.mxu0 %v3021
    %v3023 = vand.u32 %v2712, 4294901760
    %v3024 = vsub.f32 %v2712, %v3023
    %v3025 = vand.u32 %v3024, 4294901760
    %3026 = vmatpush.msra.mxu0 %v3025
    %v3027 = vand.u32 %v27, 4294901760
    %3028 = vmatmul.f32.gmra.mxu0 %v3027
    %v3029 = vpop.f32.mrf.mxu0
    %v3030 = vadd.f32 %v2961, %v3029
    %3031 = vdwg.mxu0
    %v3032 = vand.u32 %v2727, 4294901760
    %3033 = vmatpush.msra.mxu0 %v3032
    %v3034 = vand.u32 %v2726, 4294901760
    %3035 = vmatpush.msra.mxu0 %v3034
    %v3036 = vand.u32 %v2725, 4294901760
    %3037 = vmatpush.msra.mxu0 %v3036
    %v3038 = vand.u32 %v2724, 4294901760
    %3039 = vmatpush.msra.mxu0 %v3038
    %v3040 = vand.u32 %v2723, 4294901760
    %3041 = vmatpush.msra.mxu0 %v3040
    %v3042 = vand.u32 %v2722, 4294901760
    %3043 = vmatpush.msra.mxu0 %v3042
    %v3044 = vand.u32 %v2721, 4294901760
    %3045 = vmatpush.msra.mxu0 %v3044
    %v3046 = vand.u32 %v2720, 4294901760
    %3047 = vmatpush.msra.mxu0 %v3046
    %v3048 = vand.u32 %v2719, 4294901760
    %3049 = vmatpush.msra.mxu0 %v3048
    %v3050 = vand.u32 %v2718, 4294901760
    %3051 = vmatpush.msra.mxu0 %v3050
    %v3052 = vand.u32 %v2717, 4294901760
    %3053 = vmatpush.msra.mxu0 %v3052
    %v3054 = vand.u32 %v2716, 4294901760
    %3055 = vmatpush.msra.mxu0 %v3054
    %v3056 = vand.u32 %v2715, 4294901760
    %3057 = vmatpush.msra.mxu0 %v3056
    %v3058 = vand.u32 %v2714, 4294901760
    %3059 = vmatpush.msra.mxu0 %v3058
    %v3060 = vand.u32 %v2713, 4294901760
    %3061 = vmatpush.msra.mxu0 %v3060
    %v3062 = vand.u32 %v2712, 4294901760
    %3063 = vmatpush.msra.mxu0 %v3062
    %v3064 = vand.u32 %v27, 4294901760
    %3065 = vmatmul.f32.gmra.mxu0 %v3064
    %v3066 = vpop.f32.mrf.mxu0
    %v3067 = vadd.f32 %v3030, %v3066
    %3068 = vdwg.mxu0
    %v3069 = vand.u32 2147483647, %v3067
    %vm3070 = vcmp.le.f32.partialorder %v3069, 0.7853982
    %vm3071 = vcmp.lt.s32.totalorder %v3067, 0
    %v3072 = vand.u32 %v3067, 2139095040
    %v3073 = vshrl.u32 %v3072, 23
    %v3074 = vsub.s32 %v3073, 127
    %v3075 = vand.u32 2147483647, %v3067
    %v3076 = vand.u32 %v3075, 8388607
    %v3077 = vor.u32 %v3076, 8388608
    %v3078 = vsub.s32 0, %v3077
    %v3079 = vadd.s32 %v3074, 1
    %vm3080 = vcmp.gt.s32.totalorder %v3079, 0
    %v3081 = vsel %vm3080, %v3079, 0
    %v3082 = vshrl.u32 %v3081, 5
    %v3083 = vand.u32 %v3081, 31
    %v3084 = vsub.s32 32, %v3083
    %v3085 = vshrl.u32 683565275, %v3084
    %v3086 = vshll.u32 683565275, %v3083
    %v3087 = vshrl.u32 2475754826, %v3084
    %v3088 = vor.u32 %v3086, %v3087
    %v3089 = vshll.u32 2475754826, %v3083
    %v3090 = vshrl.u32 2131351028, %v3084
    %v3091 = vor.u32 %v3089, %v3090
    %v3092 = vshll.u32 2131351028, %v3083
    %v3093 = vshrl.u32 2102212464, %v3084
    %v3094 = vor.u32 %v3092, %v3093
    %v3095 = vshll.u32 2102212464, %v3083
    %v3096 = vshrl.u32 920167782, %v3084
    %v3097 = vor.u32 %v3095, %v3096
    %v3098 = vshll.u32 920167782, %v3083
    %v3099 = vshrl.u32 1326507024, %v3084
    %v3100 = vor.u32 %v3098, %v3099
    %vm3101 = vcmp.lt.s32.totalorder %v3082, 1
    %vm3102 = vcmp.lt.s32.totalorder %v3082, 2
    %vm3103 = vcmp.lt.s32.totalorder %v3082, 3
    %vm3104 = vcmp.lt.s32.totalorder %v3082, 4
    %v3105 = vsel %vm3101, %v3085, %v3088
    %v3106 = vsel %vm3104, %v3094, 2102212464
    %v3107 = vsel %vm3103, %v3091, %v3106
    %v3108 = vsel %vm3102, %v3105, %v3107
    %v3109 = vsel %vm3101, %v3088, %v3091
    %v3110 = vsel %vm3104, %v3097, 920167782
    %v3111 = vsel %vm3103, %v3094, %v3110
    %v3112 = vsel %vm3102, %v3109, %v3111
    %v3113 = vsel %vm3101, %v3091, %v3094
    %v3114 = vsel %vm3104, %v3100, 1326507024
    %v3115 = vsel %vm3103, %v3097, %v3114
    %v3116 = vsel %vm3102, %v3113, %v3115
    %v3117 = vshll.u32 %v3077, 8
    %v3118 = vand.u32 %v3117, 65535
    %v3119 = vshrl.u32 %v3117, 16
    %v3120 = vand.u32 %v3116, 65535
    %v3121 = vshrl.u32 %v3116, 16
    %v3122 = vmul.u32 %v3118, %v3120
    %v3123 = vmul.u32 %v3118, %v3121
    %v3124 = vmul.u32 %v3119, %v3120
    %v3125 = vmul.u32 %v3119, %v3121
    %v3126 = vshll.u32 %v3123, 16
    %v3127 = vshrl.u32 %v3123, 16
    %v3128 = vshll.u32 %v3124, 16
    %v3129 = vshrl.u32 %v3124, 16
    %vm3130 = vc.u32 %v3122, %v3126
    %v3131 = vsel %vm3130, 1, 0
    %v3132 = vadd.s32 %v3122, %v3126
    %v3133 = vadd.s32 %v3125, %v3131
    %vm3134 = vc.u32 %v3132, %v3128
    %v3135 = vsel %vm3134, 1, 0
    %v3136 = vadd.s32 %v3132, %v3128
    %v3137 = vadd.s32 %v3133, %v3135
    %v3138 = vadd.s32 %v3137, %v3127
    %v3139 = vadd.s32 %v3138, %v3129
    %v3140 = vand.u32 %v3117, 65535
    %v3141 = vshrl.u32 %v3117, 16
    %v3142 = vand.u32 %v3112, 65535
    %v3143 = vshrl.u32 %v3112, 16
    %v3144 = vmul.u32 %v3140, %v3142
    %v3145 = vmul.u32 %v3140, %v3143
    %v3146 = vmul.u32 %v3141, %v3142
    %v3147 = vmul.u32 %v3141, %v3143
    %v3148 = vshll.u32 %v3145, 16
    %v3149 = vshrl.u32 %v3145, 16
    %v3150 = vshll.u32 %v3146, 16
    %v3151 = vshrl.u32 %v3146, 16
    %vm3152 = vc.u32 %v3144, %v3148
    %v3153 = vsel %vm3152, 1, 0
    %v3154 = vadd.s32 %v3144, %v3148
    %v3155 = vadd.s32 %v3147, %v3153
    %vm3156 = vc.u32 %v3154, %v3150
    %v3157 = vsel %vm3156, 1, 0
    %v3158 = vadd.s32 %v3154, %v3150
    %v3159 = vadd.s32 %v3155, %v3157
    %v3160 = vadd.s32 %v3159, %v3149
    %v3161 = vadd.s32 %v3160, %v3151
    %v3162 = vmul.u32 %v3117, %v3108
    %v3163 = vadd.s32 %v3139, %v3158
    %vm3164 = vc.u32 %v3139, %v3158
    %v3165 = vadd.s32 %v3161, 1
    %v3166 = vsel %vm3164, %v3165, %v3161
    %v3167 = vadd.s32 %v3162, %v3166
    %v3168 = vadd.s32 %v3167, 536870912
    %v3169 = vshrl.u32 %v3168, 30
    %v3170 = vshll.u32 %v3169, 30
    %v3171 = vsub.s32 %v3167, %v3170
    %vm3172 = vcmp.lt.s32.totalorder %v3171, 0
    %v3173 = vsub.s32 0, %v3171
    %v3174 = vsel %vm3172, %v3173, %v3171
    %v3175 = vclz %v3174
    %v3176 = vsub.s32 %v3175, 2
    %vm3177 = vcmp.gt.s32.totalorder 0, %v3176
    %v3178 = vsel %vm3177, 0, %v3176
    %v3179 = vsub.s32 32, %v3178
    %v3180 = vshll.u32 %v3171, %v3178
    %v3181 = vshrl.u32 %v3163, %v3179
    %v3182 = vor.u32 %v3180, %v3181
    %v3183 = vsub.s32 4294967266, %v3178
    %v3184 = vadd.s32 %v3183, 127
    %v3185 = vshll.u32 %v3184, 23
    %v3186 = vor.u32 4788187, %v3185
    %v3187 = vand.u32 2147483647, %v3186
    %v3189 = vcvt.s32.f32 %v3182
    %v3190 = vmul.f32 %v3189, %v3187
    %v3191 = vxor.u32 %v3190, 2147483648
    %v3192 = vsel %vm3071, %v3191, %v3190
    %v3193 = vsub.s32 4, %v3169
    %v3194 = vsel %vm3071, %v3193, %v3169
    %v3195 = vsel %vm3070, %v3067, %v3192
    %v3196 = vsel %vm3070, 0, %v3194
    %v3197 = vmul.f32 %v3195, %v3195
    %v3198 = vmul.f32 %v3197, -0.001358992
    %v3199 = vadd.f32 %v3198, 0.041655596
    %v3200 = vmul.f32 %v3197, %v3199
    %v3201 = vadd.f32 %v3200, -0.4999988
    %v3202 = vmul.f32 %v3197, %v3201
    %v3203 = vadd.f32 1.0, %v3202
    %v3204 = vmul.f32 %v3195, %v3195
    %v3205 = vmul.f32 %v3204, -0.00019511016
    %v3206 = vadd.f32 %v3205, 0.008332121
    %v3207 = vmul.f32 %v3204, %v3206
    %v3208 = vadd.f32 %v3207, -0.16666654
    %v3209 = vmul.f32 %v3204, %v3208
    %v3210 = vadd.f32 %v3209, 1.0
    %v3211 = vmul.f32 %v3210, %v3195
    %vm3212 = vweird.f32 %v3067
    %v3213 = vadd.s32 %v3196, 3
    %v3214 = vand.u32 %v3213, 3
    %vm3215 = vcmp.lt.s32.totalorder %v3214, 2
    %vm3216 = vcmp.eq.s32.totalorder %v3214, 0
    %v3217 = vxor.u32 %v3211, 2147483648
    %v3218 = vsel %vm3216, %v3203, %v3217
    %vm3219 = vcmp.eq.s32.totalorder %v3214, 2
    %v3220 = vxor.u32 %v3203, 2147483648
    %v3221 = vsel %vm3219, %v3220, %v3211
    %v3222 = vsel %vm3215, %v3218, %v3221
    %v3223 = vsel %vm3212, nan, %v3222
    %v3225 = vrot.slane %v3223, 1
    %v3226 = vrot.slane %v3223, 2
    %v3227 = vrot.slane %v3223, 3
    %v3228 = vrot.slane %v3223, 4
    %v3229 = vrot.slane %v3223, 5
    %v3230 = vrot.slane %v3223, 6
    %v3231 = vrot.slane %v3223, 7
    %3239 = vst.msk [vmem:[#allocation4 + $0x5] sm:$0x1] %vm558, %v3223
    %3240 = vst.msk [vmem:[#allocation4 + $0x15] sm:$0x1] %vm558, %v3225
    %3241 = vst.msk [vmem:[#allocation4 + $0x25] sm:$0x1] %vm558, %v3226
    %3242 = vst.msk [vmem:[#allocation4 + $0x35] sm:$0x1] %vm558, %v3227
    %3243 = vst.msk [vmem:[#allocation4 + $0x45] sm:$0x1] %vm558, %v3228
    %3244 = vst.msk [vmem:[#allocation4 + $0x55] sm:$0x1] %vm558, %v3229
    %3245 = vst.msk [vmem:[#allocation4 + $0x65] sm:$0x1] %vm558, %v3230
    %3246 = vst.msk [vmem:[#allocation4 + $0x75] sm:$0x1] %vm558, %v3231
    %s3247 = scalar_lea.vmem [#allocation2], 768
    %v3248 = vld [vmem:[%s3247] sm:$0xff]
    %v3249 = vld [vmem:[%s3247 + $0x8] sm:$0xff]
    %v3250 = vld [vmem:[%s3247 + $0x10] sm:$0xff]
    %v3251 = vld [vmem:[%s3247 + $0x18] sm:$0xff]
    %v3252 = vld [vmem:[%s3247 + $0x20] sm:$0xff]
    %v3253 = vld [vmem:[%s3247 + $0x28] sm:$0xff]
    %v3254 = vld [vmem:[%s3247 + $0x30] sm:$0xff]
    %v3255 = vld [vmem:[%s3247 + $0x38] sm:$0xff]
    %v3256 = vld [vmem:[%s3247 + $0x40] sm:$0xff]
    %v3257 = vld [vmem:[%s3247 + $0x48] sm:$0xff]
    %v3258 = vld [vmem:[%s3247 + $0x50] sm:$0xff]
    %v3259 = vld [vmem:[%s3247 + $0x58] sm:$0xff]
    %v3260 = vld [vmem:[%s3247 + $0x60] sm:$0xff]
    %v3261 = vld [vmem:[%s3247 + $0x68] sm:$0xff]
    %v3262 = vld [vmem:[%s3247 + $0x70] sm:$0xff]
    %v3263 = vld [vmem:[%s3247 + $0x78] sm:$0xff]
    %v3264 = vand.u32 %v3263, 4294901760
    %3265 = vmatpush.msra.mxu0 %v3264
    %v3266 = vand.u32 %v3262, 4294901760
    %3267 = vmatpush.msra.mxu0 %v3266
    %v3268 = vand.u32 %v3261, 4294901760
    %3269 = vmatpush.msra.mxu0 %v3268
    %v3270 = vand.u32 %v3260, 4294901760
    %3271 = vmatpush.msra.mxu0 %v3270
    %v3272 = vand.u32 %v3259, 4294901760
    %3273 = vmatpush.msra.mxu0 %v3272
    %v3274 = vand.u32 %v3258, 4294901760
    %3275 = vmatpush.msra.mxu0 %v3274
    %v3276 = vand.u32 %v3257, 4294901760
    %3277 = vmatpush.msra.mxu0 %v3276
    %v3278 = vand.u32 %v3256, 4294901760
    %3279 = vmatpush.msra.mxu0 %v3278
    %v3280 = vand.u32 %v3255, 4294901760
    %3281 = vmatpush.msra.mxu0 %v3280
    %v3282 = vand.u32 %v3254, 4294901760
    %3283 = vmatpush.msra.mxu0 %v3282
    %v3284 = vand.u32 %v3253, 4294901760
    %3285 = vmatpush.msra.mxu0 %v3284
    %v3286 = vand.u32 %v3252, 4294901760
    %3287 = vmatpush.msra.mxu0 %v3286
    %v3288 = vand.u32 %v3251, 4294901760
    %3289 = vmatpush.msra.mxu0 %v3288
    %v3290 = vand.u32 %v3250, 4294901760
    %3291 = vmatpush.msra.mxu0 %v3290
    %v3292 = vand.u32 %v3249, 4294901760
    %3293 = vmatpush.msra.mxu0 %v3292
    %v3294 = vand.u32 %v3248, 4294901760
    %3295 = vmatpush.msra.mxu0 %v3294
    %v3296 = vand.u32 %v27, 4294901760
    %v3297 = vsub.f32 %v27, %v3296
    %v3298 = vand.u32 %v3297, 4294901760
    %v3299 = vsub.f32 %v3297, %v3298
    %v3300 = vand.u32 %v3299, 4294901760
    %3301 = vmatmul.f32.gmra.mxu0 %v3300
    %v3302 = vpop.f32.mrf.mxu0
    %v3303 = vadd.f32 0.0, %v3302
    %3304 = vdwg.mxu0
    %v3305 = vand.u32 %v3263, 4294901760
    %v3306 = vsub.f32 %v3263, %v3305
    %v3307 = vand.u32 %v3306, 4294901760
    %v3308 = vsub.f32 %v3306, %v3307
    %v3309 = vand.u32 %v3308, 4294901760
    %3310 = vmatpush.msra.mxu0 %v3309
    %v3311 = vand.u32 %v3262, 4294901760
    %v3312 = vsub.f32 %v3262, %v3311
    %v3313 = vand.u32 %v3312, 4294901760
    %v3314 = vsub.f32 %v3312, %v3313
    %v3315 = vand.u32 %v3314, 4294901760
    %3316 = vmatpush.msra.mxu0 %v3315
    %v3317 = vand.u32 %v3261, 4294901760
    %v3318 = vsub.f32 %v3261, %v3317
    %v3319 = vand.u32 %v3318, 4294901760
    %v3320 = vsub.f32 %v3318, %v3319
    %v3321 = vand.u32 %v3320, 4294901760
    %3322 = vmatpush.msra.mxu0 %v3321
    %v3323 = vand.u32 %v3260, 4294901760
    %v3324 = vsub.f32 %v3260, %v3323
    %v3325 = vand.u32 %v3324, 4294901760
    %v3326 = vsub.f32 %v3324, %v3325
    %v3327 = vand.u32 %v3326, 4294901760
    %3328 = vmatpush.msra.mxu0 %v3327
    %v3329 = vand.u32 %v3259, 4294901760
    %v3330 = vsub.f32 %v3259, %v3329
    %v3331 = vand.u32 %v3330, 4294901760
    %v3332 = vsub.f32 %v3330, %v3331
    %v3333 = vand.u32 %v3332, 4294901760
    %3334 = vmatpush.msra.mxu0 %v3333
    %v3335 = vand.u32 %v3258, 4294901760
    %v3336 = vsub.f32 %v3258, %v3335
    %v3337 = vand.u32 %v3336, 4294901760
    %v3338 = vsub.f32 %v3336, %v3337
    %v3339 = vand.u32 %v3338, 4294901760
    %3340 = vmatpush.msra.mxu0 %v3339
    %v3341 = vand.u32 %v3257, 4294901760
    %v3342 = vsub.f32 %v3257, %v3341
    %v3343 = vand.u32 %v3342, 4294901760
    %v3344 = vsub.f32 %v3342, %v3343
    %v3345 = vand.u32 %v3344, 4294901760
    %3346 = vmatpush.msra.mxu0 %v3345
    %v3347 = vand.u32 %v3256, 4294901760
    %v3348 = vsub.f32 %v3256, %v3347
    %v3349 = vand.u32 %v3348, 4294901760
    %v3350 = vsub.f32 %v3348, %v3349
    %v3351 = vand.u32 %v3350, 4294901760
    %3352 = vmatpush.msra.mxu0 %v3351
    %v3353 = vand.u32 %v3255, 4294901760
    %v3354 = vsub.f32 %v3255, %v3353
    %v3355 = vand.u32 %v3354, 4294901760
    %v3356 = vsub.f32 %v3354, %v3355
    %v3357 = vand.u32 %v3356, 4294901760
    %3358 = vmatpush.msra.mxu0 %v3357
    %v3359 = vand.u32 %v3254, 4294901760
    %v3360 = vsub.f32 %v3254, %v3359
    %v3361 = vand.u32 %v3360, 4294901760
    %v3362 = vsub.f32 %v3360, %v3361
    %v3363 = vand.u32 %v3362, 4294901760
    %3364 = vmatpush.msra.mxu0 %v3363
    %v3365 = vand.u32 %v3253, 4294901760
    %v3366 = vsub.f32 %v3253, %v3365
    %v3367 = vand.u32 %v3366, 4294901760
    %v3368 = vsub.f32 %v3366, %v3367
    %v3369 = vand.u32 %v3368, 4294901760
    %3370 = vmatpush.msra.mxu0 %v3369
    %v3371 = vand.u32 %v3252, 4294901760
    %v3372 = vsub.f32 %v3252, %v3371
    %v3373 = vand.u32 %v3372, 4294901760
    %v3374 = vsub.f32 %v3372, %v3373
    %v3375 = vand.u32 %v3374, 4294901760
    %3376 = vmatpush.msra.mxu0 %v3375
    %v3377 = vand.u32 %v3251, 4294901760
    %v3378 = vsub.f32 %v3251, %v3377
    %v3379 = vand.u32 %v3378, 4294901760
    %v3380 = vsub.f32 %v3378, %v3379
    %v3381 = vand.u32 %v3380, 4294901760
    %3382 = vmatpush.msra.mxu0 %v3381
    %v3383 = vand.u32 %v3250, 4294901760
    %v3384 = vsub.f32 %v3250, %v3383
    %v3385 = vand.u32 %v3384, 4294901760
    %v3386 = vsub.f32 %v3384, %v3385
    %v3387 = vand.u32 %v3386, 4294901760
    %3388 = vmatpush.msra.mxu0 %v3387
    %v3389 = vand.u32 %v3249, 4294901760
    %v3390 = vsub.f32 %v3249, %v3389
    %v3391 = vand.u32 %v3390, 4294901760
    %v3392 = vsub.f32 %v3390, %v3391
    %v3393 = vand.u32 %v3392, 4294901760
    %3394 = vmatpush.msra.mxu0 %v3393
    %v3395 = vand.u32 %v3248, 4294901760
    %v3396 = vsub.f32 %v3248, %v3395
    %v3397 = vand.u32 %v3396, 4294901760
    %v3398 = vsub.f32 %v3396, %v3397
    %v3399 = vand.u32 %v3398, 4294901760
    %3400 = vmatpush.msra.mxu0 %v3399
    %v3401 = vand.u32 %v27, 4294901760
    %3402 = vmatmul.f32.gmra.mxu0 %v3401
    %v3403 = vpop.f32.mrf.mxu0
    %v3404 = vadd.f32 %v3303, %v3403
    %3405 = vdwg.mxu0
    %v3406 = vand.u32 %v3263, 4294901760
    %v3407 = vsub.f32 %v3263, %v3406
    %3408 = vmatpush.msra.mxu0 %v3407
    %v3409 = vand.u32 %v3262, 4294901760
    %v3410 = vsub.f32 %v3262, %v3409
    %3411 = vmatpush.msra.mxu0 %v3410
    %v3412 = vand.u32 %v3261, 4294901760
    %v3413 = vsub.f32 %v3261, %v3412
    %3414 = vmatpush.msra.mxu0 %v3413
    %v3415 = vand.u32 %v3260, 4294901760
    %v3416 = vsub.f32 %v3260, %v3415
    %3417 = vmatpush.msra.mxu0 %v3416
    %v3418 = vand.u32 %v3259, 4294901760
    %v3419 = vsub.f32 %v3259, %v3418
    %3420 = vmatpush.msra.mxu0 %v3419
    %v3421 = vand.u32 %v3258, 4294901760
    %v3422 = vsub.f32 %v3258, %v3421
    %3423 = vmatpush.msra.mxu0 %v3422
    %v3424 = vand.u32 %v3257, 4294901760
    %v3425 = vsub.f32 %v3257, %v3424
    %3426 = vmatpush.msra.mxu0 %v3425
    %v3427 = vand.u32 %v3256, 4294901760
    %v3428 = vsub.f32 %v3256, %v3427
    %3429 = vmatpush.msra.mxu0 %v3428
    %v3430 = vand.u32 %v3255, 4294901760
    %v3431 = vsub.f32 %v3255, %v3430
    %3432 = vmatpush.msra.mxu0 %v3431
    %v3433 = vand.u32 %v3254, 4294901760
    %v3434 = vsub.f32 %v3254, %v3433
    %3435 = vmatpush.msra.mxu0 %v3434
    %v3436 = vand.u32 %v3253, 4294901760
    %v3437 = vsub.f32 %v3253, %v3436
    %3438 = vmatpush.msra.mxu0 %v3437
    %v3439 = vand.u32 %v3252, 4294901760
    %v3440 = vsub.f32 %v3252, %v3439
    %3441 = vmatpush.msra.mxu0 %v3440
    %v3442 = vand.u32 %v3251, 4294901760
    %v3443 = vsub.f32 %v3251, %v3442
    %3444 = vmatpush.msra.mxu0 %v3443
    %v3445 = vand.u32 %v3250, 4294901760
    %v3446 = vsub.f32 %v3250, %v3445
    %3447 = vmatpush.msra.mxu0 %v3446
    %v3448 = vand.u32 %v3249, 4294901760
    %v3449 = vsub.f32 %v3249, %v3448
    %3450 = vmatpush.msra.mxu0 %v3449
    %v3451 = vand.u32 %v3248, 4294901760
    %v3452 = vsub.f32 %v3248, %v3451
    %3453 = vmatpush.msra.mxu0 %v3452
    %v3454 = vand.u32 %v27, 4294901760
    %v3455 = vsub.f32 %v27, %v3454
    %3456 = vmatmul.f32.gmra.mxu0 %v3455
    %v3457 = vpop.f32.mrf.mxu0
    %v3458 = vadd.f32 %v3404, %v3457
    %3459 = vdwg.mxu0
    %v3460 = vand.u32 %v3263, 4294901760
    %3461 = vmatpush.msra.mxu0 %v3460
    %v3462 = vand.u32 %v3262, 4294901760
    %3463 = vmatpush.msra.mxu0 %v3462
    %v3464 = vand.u32 %v3261, 4294901760
    %3465 = vmatpush.msra.mxu0 %v3464
    %v3466 = vand.u32 %v3260, 4294901760
    %3467 = vmatpush.msra.mxu0 %v3466
    %v3468 = vand.u32 %v3259, 4294901760
    %3469 = vmatpush.msra.mxu0 %v3468
    %v3470 = vand.u32 %v3258, 4294901760
    %3471 = vmatpush.msra.mxu0 %v3470
    %v3472 = vand.u32 %v3257, 4294901760
    %3473 = vmatpush.msra.mxu0 %v3472
    %v3474 = vand.u32 %v3256, 4294901760
    %3475 = vmatpush.msra.mxu0 %v3474
    %v3476 = vand.u32 %v3255, 4294901760
    %3477 = vmatpush.msra.mxu0 %v3476
    %v3478 = vand.u32 %v3254, 4294901760
    %3479 = vmatpush.msra.mxu0 %v3478
    %v3480 = vand.u32 %v3253, 4294901760
    %3481 = vmatpush.msra.mxu0 %v3480
    %v3482 = vand.u32 %v3252, 4294901760
    %3483 = vmatpush.msra.mxu0 %v3482
    %v3484 = vand.u32 %v3251, 4294901760
    %3485 = vmatpush.msra.mxu0 %v3484
    %v3486 = vand.u32 %v3250, 4294901760
    %3487 = vmatpush.msra.mxu0 %v3486
    %v3488 = vand.u32 %v3249, 4294901760
    %3489 = vmatpush.msra.mxu0 %v3488
    %v3490 = vand.u32 %v3248, 4294901760
    %3491 = vmatpush.msra.mxu0 %v3490
    %v3492 = vand.u32 %v27, 4294901760
    %v3493 = vsub.f32 %v27, %v3492
    %v3494 = vand.u32 %v3493, 4294901760
    %3495 = vmatmul.f32.gmra.mxu0 %v3494
    %v3496 = vpop.f32.mrf.mxu0
    %v3497 = vadd.f32 %v3458, %v3496
    %3498 = vdwg.mxu0
    %v3499 = vand.u32 %v3263, 4294901760
    %v3500 = vsub.f32 %v3263, %v3499
    %v3501 = vand.u32 %v3500, 4294901760
    %3502 = vmatpush.msra.mxu0 %v3501
    %v3503 = vand.u32 %v3262, 4294901760
    %v3504 = vsub.f32 %v3262, %v3503
    %v3505 = vand.u32 %v3504, 4294901760
    %3506 = vmatpush.msra.mxu0 %v3505
    %v3507 = vand.u32 %v3261, 4294901760
    %v3508 = vsub.f32 %v3261, %v3507
    %v3509 = vand.u32 %v3508, 4294901760
    %3510 = vmatpush.msra.mxu0 %v3509
    %v3511 = vand.u32 %v3260, 4294901760
    %v3512 = vsub.f32 %v3260, %v3511
    %v3513 = vand.u32 %v3512, 4294901760
    %3514 = vmatpush.msra.mxu0 %v3513
    %v3515 = vand.u32 %v3259, 4294901760
    %v3516 = vsub.f32 %v3259, %v3515
    %v3517 = vand.u32 %v3516, 4294901760
    %3518 = vmatpush.msra.mxu0 %v3517
    %v3519 = vand.u32 %v3258, 4294901760
    %v3520 = vsub.f32 %v3258, %v3519
    %v3521 = vand.u32 %v3520, 4294901760
    %3522 = vmatpush.msra.mxu0 %v3521
    %v3523 = vand.u32 %v3257, 4294901760
    %v3524 = vsub.f32 %v3257, %v3523
    %v3525 = vand.u32 %v3524, 4294901760
    %3526 = vmatpush.msra.mxu0 %v3525
    %v3527 = vand.u32 %v3256, 4294901760
    %v3528 = vsub.f32 %v3256, %v3527
    %v3529 = vand.u32 %v3528, 4294901760
    %3530 = vmatpush.msra.mxu0 %v3529
    %v3531 = vand.u32 %v3255, 4294901760
    %v3532 = vsub.f32 %v3255, %v3531
    %v3533 = vand.u32 %v3532, 4294901760
    %3534 = vmatpush.msra.mxu0 %v3533
    %v3535 = vand.u32 %v3254, 4294901760
    %v3536 = vsub.f32 %v3254, %v3535
    %v3537 = vand.u32 %v3536, 4294901760
    %3538 = vmatpush.msra.mxu0 %v3537
    %v3539 = vand.u32 %v3253, 4294901760
    %v3540 = vsub.f32 %v3253, %v3539
    %v3541 = vand.u32 %v3540, 4294901760
    %3542 = vmatpush.msra.mxu0 %v3541
    %v3543 = vand.u32 %v3252, 4294901760
    %v3544 = vsub.f32 %v3252, %v3543
    %v3545 = vand.u32 %v3544, 4294901760
    %3546 = vmatpush.msra.mxu0 %v3545
    %v3547 = vand.u32 %v3251, 4294901760
    %v3548 = vsub.f32 %v3251, %v3547
    %v3549 = vand.u32 %v3548, 4294901760
    %3550 = vmatpush.msra.mxu0 %v3549
    %v3551 = vand.u32 %v3250, 4294901760
    %v3552 = vsub.f32 %v3250, %v3551
    %v3553 = vand.u32 %v3552, 4294901760
    %3554 = vmatpush.msra.mxu0 %v3553
    %v3555 = vand.u32 %v3249, 4294901760
    %v3556 = vsub.f32 %v3249, %v3555
    %v3557 = vand.u32 %v3556, 4294901760
    %3558 = vmatpush.msra.mxu0 %v3557
    %v3559 = vand.u32 %v3248, 4294901760
    %v3560 = vsub.f32 %v3248, %v3559
    %v3561 = vand.u32 %v3560, 4294901760
    %3562 = vmatpush.msra.mxu0 %v3561
    %v3563 = vand.u32 %v27, 4294901760
    %3564 = vmatmul.f32.gmra.mxu0 %v3563
    %v3565 = vpop.f32.mrf.mxu0
    %v3566 = vadd.f32 %v3497, %v3565
    %3567 = vdwg.mxu0
    %v3568 = vand.u32 %v3263, 4294901760
    %3569 = vmatpush.msra.mxu0 %v3568
    %v3570 = vand.u32 %v3262, 4294901760
    %3571 = vmatpush.msra.mxu0 %v3570
    %v3572 = vand.u32 %v3261, 4294901760
    %3573 = vmatpush.msra.mxu0 %v3572
    %v3574 = vand.u32 %v3260, 4294901760
    %3575 = vmatpush.msra.mxu0 %v3574
    %v3576 = vand.u32 %v3259, 4294901760
    %3577 = vmatpush.msra.mxu0 %v3576
    %v3578 = vand.u32 %v3258, 4294901760
    %3579 = vmatpush.msra.mxu0 %v3578
    %v3580 = vand.u32 %v3257, 4294901760
    %3581 = vmatpush.msra.mxu0 %v3580
    %v3582 = vand.u32 %v3256, 4294901760
    %3583 = vmatpush.msra.mxu0 %v3582
    %v3584 = vand.u32 %v3255, 4294901760
    %3585 = vmatpush.msra.mxu0 %v3584
    %v3586 = vand.u32 %v3254, 4294901760
    %3587 = vmatpush.msra.mxu0 %v3586
    %v3588 = vand.u32 %v3253, 4294901760
    %3589 = vmatpush.msra.mxu0 %v3588
    %v3590 = vand.u32 %v3252, 4294901760
    %3591 = vmatpush.msra.mxu0 %v3590
    %v3592 = vand.u32 %v3251, 4294901760
    %3593 = vmatpush.msra.mxu0 %v3592
    %v3594 = vand.u32 %v3250, 4294901760
    %3595 = vmatpush.msra.mxu0 %v3594
    %v3596 = vand.u32 %v3249, 4294901760
    %3597 = vmatpush.msra.mxu0 %v3596
    %v3598 = vand.u32 %v3248, 4294901760
    %3599 = vmatpush.msra.mxu0 %v3598
    %v3600 = vand.u32 %v27, 4294901760
    %3601 = vmatmul.f32.gmra.mxu0 %v3600
    %v3602 = vpop.f32.mrf.mxu0
    %v3603 = vadd.f32 %v3566, %v3602
    %3604 = vdwg.mxu0
    %v3605 = vand.u32 2147483647, %v3603
    %vm3606 = vcmp.le.f32.partialorder %v3605, 0.7853982
    %vm3607 = vcmp.lt.s32.totalorder %v3603, 0
    %v3608 = vand.u32 %v3603, 2139095040
    %v3609 = vshrl.u32 %v3608, 23
    %v3610 = vsub.s32 %v3609, 127
    %v3611 = vand.u32 2147483647, %v3603
    %v3612 = vand.u32 %v3611, 8388607
    %v3613 = vor.u32 %v3612, 8388608
    %v3614 = vsub.s32 0, %v3613
    %v3615 = vadd.s32 %v3610, 1
    %vm3616 = vcmp.gt.s32.totalorder %v3615, 0
    %v3617 = vsel %vm3616, %v3615, 0
    %v3618 = vshrl.u32 %v3617, 5
    %v3619 = vand.u32 %v3617, 31
    %v3620 = vsub.s32 32, %v3619
    %v3621 = vshrl.u32 683565275, %v3620
    %v3622 = vshll.u32 683565275, %v3619
    %v3623 = vshrl.u32 2475754826, %v3620
    %v3624 = vor.u32 %v3622, %v3623
    %v3625 = vshll.u32 2475754826, %v3619
    %v3626 = vshrl.u32 2131351028, %v3620
    %v3627 = vor.u32 %v3625, %v3626
    %v3628 = vshll.u32 2131351028, %v3619
    %v3629 = vshrl.u32 2102212464, %v3620
    %v3630 = vor.u32 %v3628, %v3629
    %v3631 = vshll.u32 2102212464, %v3619
    %v3632 = vshrl.u32 920167782, %v3620
    %v3633 = vor.u32 %v3631, %v3632
    %v3634 = vshll.u32 920167782, %v3619
    %v3635 = vshrl.u32 1326507024, %v3620
    %v3636 = vor.u32 %v3634, %v3635
    %vm3637 = vcmp.lt.s32.totalorder %v3618, 1
    %vm3638 = vcmp.lt.s32.totalorder %v3618, 2
    %vm3639 = vcmp.lt.s32.totalorder %v3618, 3
    %vm3640 = vcmp.lt.s32.totalorder %v3618, 4
    %v3641 = vsel %vm3637, %v3621, %v3624
    %v3642 = vsel %vm3640, %v3630, 2102212464
    %v3643 = vsel %vm3639, %v3627, %v3642
    %v3644 = vsel %vm3638, %v3641, %v3643
    %v3645 = vsel %vm3637, %v3624, %v3627
    %v3646 = vsel %vm3640, %v3633, 920167782
    %v3647 = vsel %vm3639, %v3630, %v3646
    %v3648 = vsel %vm3638, %v3645, %v3647
    %v3649 = vsel %vm3637, %v3627, %v3630
    %v3650 = vsel %vm3640, %v3636, 1326507024
    %v3651 = vsel %vm3639, %v3633, %v3650
    %v3652 = vsel %vm3638, %v3649, %v3651
    %v3653 = vshll.u32 %v3613, 8
    %v3654 = vand.u32 %v3653, 65535
    %v3655 = vshrl.u32 %v3653, 16
    %v3656 = vand.u32 %v3652, 65535
    %v3657 = vshrl.u32 %v3652, 16
    %v3658 = vmul.u32 %v3654, %v3656
    %v3659 = vmul.u32 %v3654, %v3657
    %v3660 = vmul.u32 %v3655, %v3656
    %v3661 = vmul.u32 %v3655, %v3657
    %v3662 = vshll.u32 %v3659, 16
    %v3663 = vshrl.u32 %v3659, 16
    %v3664 = vshll.u32 %v3660, 16
    %v3665 = vshrl.u32 %v3660, 16
    %vm3666 = vc.u32 %v3658, %v3662
    %v3667 = vsel %vm3666, 1, 0
    %v3668 = vadd.s32 %v3658, %v3662
    %v3669 = vadd.s32 %v3661, %v3667
    %vm3670 = vc.u32 %v3668, %v3664
    %v3671 = vsel %vm3670, 1, 0
    %v3672 = vadd.s32 %v3668, %v3664
    %v3673 = vadd.s32 %v3669, %v3671
    %v3674 = vadd.s32 %v3673, %v3663
    %v3675 = vadd.s32 %v3674, %v3665
    %v3676 = vand.u32 %v3653, 65535
    %v3677 = vshrl.u32 %v3653, 16
    %v3678 = vand.u32 %v3648, 65535
    %v3679 = vshrl.u32 %v3648, 16
    %v3680 = vmul.u32 %v3676, %v3678
    %v3681 = vmul.u32 %v3676, %v3679
    %v3682 = vmul.u32 %v3677, %v3678
    %v3683 = vmul.u32 %v3677, %v3679
    %v3684 = vshll.u32 %v3681, 16
    %v3685 = vshrl.u32 %v3681, 16
    %v3686 = vshll.u32 %v3682, 16
    %v3687 = vshrl.u32 %v3682, 16
    %vm3688 = vc.u32 %v3680, %v3684
    %v3689 = vsel %vm3688, 1, 0
    %v3690 = vadd.s32 %v3680, %v3684
    %v3691 = vadd.s32 %v3683, %v3689
    %vm3692 = vc.u32 %v3690, %v3686
    %v3693 = vsel %vm3692, 1, 0
    %v3694 = vadd.s32 %v3690, %v3686
    %v3695 = vadd.s32 %v3691, %v3693
    %v3696 = vadd.s32 %v3695, %v3685
    %v3697 = vadd.s32 %v3696, %v3687
    %v3698 = vmul.u32 %v3653, %v3644
    %v3699 = vadd.s32 %v3675, %v3694
    %vm3700 = vc.u32 %v3675, %v3694
    %v3701 = vadd.s32 %v3697, 1
    %v3702 = vsel %vm3700, %v3701, %v3697
    %v3703 = vadd.s32 %v3698, %v3702
    %v3704 = vadd.s32 %v3703, 536870912
    %v3705 = vshrl.u32 %v3704, 30
    %v3706 = vshll.u32 %v3705, 30
    %v3707 = vsub.s32 %v3703, %v3706
    %vm3708 = vcmp.lt.s32.totalorder %v3707, 0
    %v3709 = vsub.s32 0, %v3707
    %v3710 = vsel %vm3708, %v3709, %v3707
    %v3711 = vclz %v3710
    %v3712 = vsub.s32 %v3711, 2
    %vm3713 = vcmp.gt.s32.totalorder 0, %v3712
    %v3714 = vsel %vm3713, 0, %v3712
    %v3715 = vsub.s32 32, %v3714
    %v3716 = vshll.u32 %v3707, %v3714
    %v3717 = vshrl.u32 %v3699, %v3715
    %v3718 = vor.u32 %v3716, %v3717
    %v3719 = vsub.s32 4294967266, %v3714
    %v3720 = vadd.s32 %v3719, 127
    %v3721 = vshll.u32 %v3720, 23
    %v3722 = vor.u32 4788187, %v3721
    %v3723 = vand.u32 2147483647, %v3722
    %v3725 = vcvt.s32.f32 %v3718
    %v3726 = vmul.f32 %v3725, %v3723
    %v3727 = vxor.u32 %v3726, 2147483648
    %v3728 = vsel %vm3607, %v3727, %v3726
    %v3729 = vsub.s32 4, %v3705
    %v3730 = vsel %vm3607, %v3729, %v3705
    %v3731 = vsel %vm3606, %v3603, %v3728
    %v3732 = vsel %vm3606, 0, %v3730
    %v3733 = vmul.f32 %v3731, %v3731
    %v3734 = vmul.f32 %v3733, -0.001358992
    %v3735 = vadd.f32 %v3734, 0.041655596
    %v3736 = vmul.f32 %v3733, %v3735
    %v3737 = vadd.f32 %v3736, -0.4999988
    %v3738 = vmul.f32 %v3733, %v3737
    %v3739 = vadd.f32 1.0, %v3738
    %v3740 = vmul.f32 %v3731, %v3731
    %v3741 = vmul.f32 %v3740, -0.00019511016
    %v3742 = vadd.f32 %v3741, 0.008332121
    %v3743 = vmul.f32 %v3740, %v3742
    %v3744 = vadd.f32 %v3743, -0.16666654
    %v3745 = vmul.f32 %v3740, %v3744
    %v3746 = vadd.f32 %v3745, 1.0
    %v3747 = vmul.f32 %v3746, %v3731
    %vm3748 = vweird.f32 %v3603
    %v3749 = vadd.s32 %v3732, 3
    %v3750 = vand.u32 %v3749, 3
    %vm3751 = vcmp.lt.s32.totalorder %v3750, 2
    %vm3752 = vcmp.eq.s32.totalorder %v3750, 0
    %v3753 = vxor.u32 %v3747, 2147483648
    %v3754 = vsel %vm3752, %v3739, %v3753
    %vm3755 = vcmp.eq.s32.totalorder %v3750, 2
    %v3756 = vxor.u32 %v3739, 2147483648
    %v3757 = vsel %vm3755, %v3756, %v3747
    %v3758 = vsel %vm3751, %v3754, %v3757
    %v3759 = vsel %vm3748, nan, %v3758
    %v3761 = vrot.slane %v3759, 1
    %v3762 = vrot.slane %v3759, 2
    %v3763 = vrot.slane %v3759, 3
    %v3764 = vrot.slane %v3759, 4
    %v3765 = vrot.slane %v3759, 5
    %v3766 = vrot.slane %v3759, 6
    %v3767 = vrot.slane %v3759, 7
    %3775 = vst.msk [vmem:[#allocation4 + $0x6] sm:$0x1] %vm558, %v3759
    %3776 = vst.msk [vmem:[#allocation4 + $0x16] sm:$0x1] %vm558, %v3761
    %3777 = vst.msk [vmem:[#allocation4 + $0x26] sm:$0x1] %vm558, %v3762
    %3778 = vst.msk [vmem:[#allocation4 + $0x36] sm:$0x1] %vm558, %v3763
    %3779 = vst.msk [vmem:[#allocation4 + $0x46] sm:$0x1] %vm558, %v3764
    %3780 = vst.msk [vmem:[#allocation4 + $0x56] sm:$0x1] %vm558, %v3765
    %3781 = vst.msk [vmem:[#allocation4 + $0x66] sm:$0x1] %vm558, %v3766
    %3782 = vst.msk [vmem:[#allocation4 + $0x76] sm:$0x1] %vm558, %v3767
    %s3783 = scalar_lea.vmem [#allocation2], 896
    %v3784 = vld [vmem:[%s3783] sm:$0xff]
    %v3785 = vld [vmem:[%s3783 + $0x8] sm:$0xff]
    %v3786 = vld [vmem:[%s3783 + $0x10] sm:$0xff]
    %v3787 = vld [vmem:[%s3783 + $0x18] sm:$0xff]
    %v3788 = vld [vmem:[%s3783 + $0x20] sm:$0xff]
    %v3789 = vld [vmem:[%s3783 + $0x28] sm:$0xff]
    %v3790 = vld [vmem:[%s3783 + $0x30] sm:$0xff]
    %v3791 = vld [vmem:[%s3783 + $0x38] sm:$0xff]
    %v3792 = vld [vmem:[%s3783 + $0x40] sm:$0xff]
    %v3793 = vld [vmem:[%s3783 + $0x48] sm:$0xff]
    %v3794 = vld [vmem:[%s3783 + $0x50] sm:$0xff]
    %v3795 = vld [vmem:[%s3783 + $0x58] sm:$0xff]
    %v3796 = vld [vmem:[%s3783 + $0x60] sm:$0xff]
    %v3797 = vld [vmem:[%s3783 + $0x68] sm:$0xff]
    %v3798 = vld [vmem:[%s3783 + $0x70] sm:$0xff]
    %v3799 = vld [vmem:[%s3783 + $0x78] sm:$0xff]
    %v3800 = vand.u32 %v3799, 4294901760
    %3801 = vmatpush.msra.mxu0 %v3800
    %v3802 = vand.u32 %v3798, 4294901760
    %3803 = vmatpush.msra.mxu0 %v3802
    %v3804 = vand.u32 %v3797, 4294901760
    %3805 = vmatpush.msra.mxu0 %v3804
    %v3806 = vand.u32 %v3796, 4294901760
    %3807 = vmatpush.msra.mxu0 %v3806
    %v3808 = vand.u32 %v3795, 4294901760
    %3809 = vmatpush.msra.mxu0 %v3808
    %v3810 = vand.u32 %v3794, 4294901760
    %3811 = vmatpush.msra.mxu0 %v3810
    %v3812 = vand.u32 %v3793, 4294901760
    %3813 = vmatpush.msra.mxu0 %v3812
    %v3814 = vand.u32 %v3792, 4294901760
    %3815 = vmatpush.msra.mxu0 %v3814
    %v3816 = vand.u32 %v3791, 4294901760
    %3817 = vmatpush.msra.mxu0 %v3816
    %v3818 = vand.u32 %v3790, 4294901760
    %3819 = vmatpush.msra.mxu0 %v3818
    %v3820 = vand.u32 %v3789, 4294901760
    %3821 = vmatpush.msra.mxu0 %v3820
    %v3822 = vand.u32 %v3788, 4294901760
    %3823 = vmatpush.msra.mxu0 %v3822
    %v3824 = vand.u32 %v3787, 4294901760
    %3825 = vmatpush.msra.mxu0 %v3824
    %v3826 = vand.u32 %v3786, 4294901760
    %3827 = vmatpush.msra.mxu0 %v3826
    %v3828 = vand.u32 %v3785, 4294901760
    %3829 = vmatpush.msra.mxu0 %v3828
    %v3830 = vand.u32 %v3784, 4294901760
    %3831 = vmatpush.msra.mxu0 %v3830
    %v3832 = vand.u32 %v27, 4294901760
    %v3833 = vsub.f32 %v27, %v3832
    %v3834 = vand.u32 %v3833, 4294901760
    %v3835 = vsub.f32 %v3833, %v3834
    %v3836 = vand.u32 %v3835, 4294901760
    %3837 = vmatmul.f32.gmra.mxu0 %v3836
    %v3838 = vpop.f32.mrf.mxu0
    %v3839 = vadd.f32 0.0, %v3838
    %3840 = vdwg.mxu0
    %v3841 = vand.u32 %v3799, 4294901760
    %v3842 = vsub.f32 %v3799, %v3841
    %v3843 = vand.u32 %v3842, 4294901760
    %v3844 = vsub.f32 %v3842, %v3843
    %v3845 = vand.u32 %v3844, 4294901760
    %3846 = vmatpush.msra.mxu0 %v3845
    %v3847 = vand.u32 %v3798, 4294901760
    %v3848 = vsub.f32 %v3798, %v3847
    %v3849 = vand.u32 %v3848, 4294901760
    %v3850 = vsub.f32 %v3848, %v3849
    %v3851 = vand.u32 %v3850, 4294901760
    %3852 = vmatpush.msra.mxu0 %v3851
    %v3853 = vand.u32 %v3797, 4294901760
    %v3854 = vsub.f32 %v3797, %v3853
    %v3855 = vand.u32 %v3854, 4294901760
    %v3856 = vsub.f32 %v3854, %v3855
    %v3857 = vand.u32 %v3856, 4294901760
    %3858 = vmatpush.msra.mxu0 %v3857
    %v3859 = vand.u32 %v3796, 4294901760
    %v3860 = vsub.f32 %v3796, %v3859
    %v3861 = vand.u32 %v3860, 4294901760
    %v3862 = vsub.f32 %v3860, %v3861
    %v3863 = vand.u32 %v3862, 4294901760
    %3864 = vmatpush.msra.mxu0 %v3863
    %v3865 = vand.u32 %v3795, 4294901760
    %v3866 = vsub.f32 %v3795, %v3865
    %v3867 = vand.u32 %v3866, 4294901760
    %v3868 = vsub.f32 %v3866, %v3867
    %v3869 = vand.u32 %v3868, 4294901760
    %3870 = vmatpush.msra.mxu0 %v3869
    %v3871 = vand.u32 %v3794, 4294901760
    %v3872 = vsub.f32 %v3794, %v3871
    %v3873 = vand.u32 %v3872, 4294901760
    %v3874 = vsub.f32 %v3872, %v3873
    %v3875 = vand.u32 %v3874, 4294901760
    %3876 = vmatpush.msra.mxu0 %v3875
    %v3877 = vand.u32 %v3793, 4294901760
    %v3878 = vsub.f32 %v3793, %v3877
    %v3879 = vand.u32 %v3878, 4294901760
    %v3880 = vsub.f32 %v3878, %v3879
    %v3881 = vand.u32 %v3880, 4294901760
    %3882 = vmatpush.msra.mxu0 %v3881
    %v3883 = vand.u32 %v3792, 4294901760
    %v3884 = vsub.f32 %v3792, %v3883
    %v3885 = vand.u32 %v3884, 4294901760
    %v3886 = vsub.f32 %v3884, %v3885
    %v3887 = vand.u32 %v3886, 4294901760
    %3888 = vmatpush.msra.mxu0 %v3887
    %v3889 = vand.u32 %v3791, 4294901760
    %v3890 = vsub.f32 %v3791, %v3889
    %v3891 = vand.u32 %v3890, 4294901760
    %v3892 = vsub.f32 %v3890, %v3891
    %v3893 = vand.u32 %v3892, 4294901760
    %3894 = vmatpush.msra.mxu0 %v3893
    %v3895 = vand.u32 %v3790, 4294901760
    %v3896 = vsub.f32 %v3790, %v3895
    %v3897 = vand.u32 %v3896, 4294901760
    %v3898 = vsub.f32 %v3896, %v3897
    %v3899 = vand.u32 %v3898, 4294901760
    %3900 = vmatpush.msra.mxu0 %v3899
    %v3901 = vand.u32 %v3789, 4294901760
    %v3902 = vsub.f32 %v3789, %v3901
    %v3903 = vand.u32 %v3902, 4294901760
    %v3904 = vsub.f32 %v3902, %v3903
    %v3905 = vand.u32 %v3904, 4294901760
    %3906 = vmatpush.msra.mxu0 %v3905
    %v3907 = vand.u32 %v3788, 4294901760
    %v3908 = vsub.f32 %v3788, %v3907
    %v3909 = vand.u32 %v3908, 4294901760
    %v3910 = vsub.f32 %v3908, %v3909
    %v3911 = vand.u32 %v3910, 4294901760
    %3912 = vmatpush.msra.mxu0 %v3911
    %v3913 = vand.u32 %v3787, 4294901760
    %v3914 = vsub.f32 %v3787, %v3913
    %v3915 = vand.u32 %v3914, 4294901760
    %v3916 = vsub.f32 %v3914, %v3915
    %v3917 = vand.u32 %v3916, 4294901760
    %3918 = vmatpush.msra.mxu0 %v3917
    %v3919 = vand.u32 %v3786, 4294901760
    %v3920 = vsub.f32 %v3786, %v3919
    %v3921 = vand.u32 %v3920, 4294901760
    %v3922 = vsub.f32 %v3920, %v3921
    %v3923 = vand.u32 %v3922, 4294901760
    %3924 = vmatpush.msra.mxu0 %v3923
    %v3925 = vand.u32 %v3785, 4294901760
    %v3926 = vsub.f32 %v3785, %v3925
    %v3927 = vand.u32 %v3926, 4294901760
    %v3928 = vsub.f32 %v3926, %v3927
    %v3929 = vand.u32 %v3928, 4294901760
    %3930 = vmatpush.msra.mxu0 %v3929
    %v3931 = vand.u32 %v3784, 4294901760
    %v3932 = vsub.f32 %v3784, %v3931
    %v3933 = vand.u32 %v3932, 4294901760
    %v3934 = vsub.f32 %v3932, %v3933
    %v3935 = vand.u32 %v3934, 4294901760
    %3936 = vmatpush.msra.mxu0 %v3935
    %v3937 = vand.u32 %v27, 4294901760
    %3938 = vmatmul.f32.gmra.mxu0 %v3937
    %v3939 = vpop.f32.mrf.mxu0
    %v3940 = vadd.f32 %v3839, %v3939
    %3941 = vdwg.mxu0
    %v3942 = vand.u32 %v3799, 4294901760
    %v3943 = vsub.f32 %v3799, %v3942
    %3944 = vmatpush.msra.mxu0 %v3943
    %v3945 = vand.u32 %v3798, 4294901760
    %v3946 = vsub.f32 %v3798, %v3945
    %3947 = vmatpush.msra.mxu0 %v3946
    %v3948 = vand.u32 %v3797, 4294901760
    %v3949 = vsub.f32 %v3797, %v3948
    %3950 = vmatpush.msra.mxu0 %v3949
    %v3951 = vand.u32 %v3796, 4294901760
    %v3952 = vsub.f32 %v3796, %v3951
    %3953 = vmatpush.msra.mxu0 %v3952
    %v3954 = vand.u32 %v3795, 4294901760
    %v3955 = vsub.f32 %v3795, %v3954
    %3956 = vmatpush.msra.mxu0 %v3955
    %v3957 = vand.u32 %v3794, 4294901760
    %v3958 = vsub.f32 %v3794, %v3957
    %3959 = vmatpush.msra.mxu0 %v3958
    %v3960 = vand.u32 %v3793, 4294901760
    %v3961 = vsub.f32 %v3793, %v3960
    %3962 = vmatpush.msra.mxu0 %v3961
    %v3963 = vand.u32 %v3792, 4294901760
    %v3964 = vsub.f32 %v3792, %v3963
    %3965 = vmatpush.msra.mxu0 %v3964
    %v3966 = vand.u32 %v3791, 4294901760
    %v3967 = vsub.f32 %v3791, %v3966
    %3968 = vmatpush.msra.mxu0 %v3967
    %v3969 = vand.u32 %v3790, 4294901760
    %v3970 = vsub.f32 %v3790, %v3969
    %3971 = vmatpush.msra.mxu0 %v3970
    %v3972 = vand.u32 %v3789, 4294901760
    %v3973 = vsub.f32 %v3789, %v3972
    %3974 = vmatpush.msra.mxu0 %v3973
    %v3975 = vand.u32 %v3788, 4294901760
    %v3976 = vsub.f32 %v3788, %v3975
    %3977 = vmatpush.msra.mxu0 %v3976
    %v3978 = vand.u32 %v3787, 4294901760
    %v3979 = vsub.f32 %v3787, %v3978
    %3980 = vmatpush.msra.mxu0 %v3979
    %v3981 = vand.u32 %v3786, 4294901760
    %v3982 = vsub.f32 %v3786, %v3981
    %3983 = vmatpush.msra.mxu0 %v3982
    %v3984 = vand.u32 %v3785, 4294901760
    %v3985 = vsub.f32 %v3785, %v3984
    %3986 = vmatpush.msra.mxu0 %v3985
    %v3987 = vand.u32 %v3784, 4294901760
    %v3988 = vsub.f32 %v3784, %v3987
    %3989 = vmatpush.msra.mxu0 %v3988
    %v3990 = vand.u32 %v27, 4294901760
    %v3991 = vsub.f32 %v27, %v3990
    %3992 = vmatmul.f32.gmra.mxu0 %v3991
    %v3993 = vpop.f32.mrf.mxu0
    %v3994 = vadd.f32 %v3940, %v3993
    %3995 = vdwg.mxu0
    %v3996 = vand.u32 %v3799, 4294901760
    %3997 = vmatpush.msra.mxu0 %v3996
    %v3998 = vand.u32 %v3798, 4294901760
    %3999 = vmatpush.msra.mxu0 %v3998
    %v4000 = vand.u32 %v3797, 4294901760
    %4001 = vmatpush.msra.mxu0 %v4000
    %v4002 = vand.u32 %v3796, 4294901760
    %4003 = vmatpush.msra.mxu0 %v4002
    %v4004 = vand.u32 %v3795, 4294901760
    %4005 = vmatpush.msra.mxu0 %v4004
    %v4006 = vand.u32 %v3794, 4294901760
    %4007 = vmatpush.msra.mxu0 %v4006
    %v4008 = vand.u32 %v3793, 4294901760
    %4009 = vmatpush.msra.mxu0 %v4008
    %v4010 = vand.u32 %v3792, 4294901760
    %4011 = vmatpush.msra.mxu0 %v4010
    %v4012 = vand.u32 %v3791, 4294901760
    %4013 = vmatpush.msra.mxu0 %v4012
    %v4014 = vand.u32 %v3790, 4294901760
    %4015 = vmatpush.msra.mxu0 %v4014
    %v4016 = vand.u32 %v3789, 4294901760
    %4017 = vmatpush.msra.mxu0 %v4016
    %v4018 = vand.u32 %v3788, 4294901760
    %4019 = vmatpush.msra.mxu0 %v4018
    %v4020 = vand.u32 %v3787, 4294901760
    %4021 = vmatpush.msra.mxu0 %v4020
    %v4022 = vand.u32 %v3786, 4294901760
    %4023 = vmatpush.msra.mxu0 %v4022
    %v4024 = vand.u32 %v3785, 4294901760
    %4025 = vmatpush.msra.mxu0 %v4024
    %v4026 = vand.u32 %v3784, 4294901760
    %4027 = vmatpush.msra.mxu0 %v4026
    %v4028 = vand.u32 %v27, 4294901760
    %v4029 = vsub.f32 %v27, %v4028
    %v4030 = vand.u32 %v4029, 4294901760
    %4031 = vmatmul.f32.gmra.mxu0 %v4030
    %v4032 = vpop.f32.mrf.mxu0
    %v4033 = vadd.f32 %v3994, %v4032
    %4034 = vdwg.mxu0
    %v4035 = vand.u32 %v3799, 4294901760
    %v4036 = vsub.f32 %v3799, %v4035
    %v4037 = vand.u32 %v4036, 4294901760
    %4038 = vmatpush.msra.mxu0 %v4037
    %v4039 = vand.u32 %v3798, 4294901760
    %v4040 = vsub.f32 %v3798, %v4039
    %v4041 = vand.u32 %v4040, 4294901760
    %4042 = vmatpush.msra.mxu0 %v4041
    %v4043 = vand.u32 %v3797, 4294901760
    %v4044 = vsub.f32 %v3797, %v4043
    %v4045 = vand.u32 %v4044, 4294901760
    %4046 = vmatpush.msra.mxu0 %v4045
    %v4047 = vand.u32 %v3796, 4294901760
    %v4048 = vsub.f32 %v3796, %v4047
    %v4049 = vand.u32 %v4048, 4294901760
    %4050 = vmatpush.msra.mxu0 %v4049
    %v4051 = vand.u32 %v3795, 4294901760
    %v4052 = vsub.f32 %v3795, %v4051
    %v4053 = vand.u32 %v4052, 4294901760
    %4054 = vmatpush.msra.mxu0 %v4053
    %v4055 = vand.u32 %v3794, 4294901760
    %v4056 = vsub.f32 %v3794, %v4055
    %v4057 = vand.u32 %v4056, 4294901760
    %4058 = vmatpush.msra.mxu0 %v4057
    %v4059 = vand.u32 %v3793, 4294901760
    %v4060 = vsub.f32 %v3793, %v4059
    %v4061 = vand.u32 %v4060, 4294901760
    %4062 = vmatpush.msra.mxu0 %v4061
    %v4063 = vand.u32 %v3792, 4294901760
    %v4064 = vsub.f32 %v3792, %v4063
    %v4065 = vand.u32 %v4064, 4294901760
    %4066 = vmatpush.msra.mxu0 %v4065
    %v4067 = vand.u32 %v3791, 4294901760
    %v4068 = vsub.f32 %v3791, %v4067
    %v4069 = vand.u32 %v4068, 4294901760
    %4070 = vmatpush.msra.mxu0 %v4069
    %v4071 = vand.u32 %v3790, 4294901760
    %v4072 = vsub.f32 %v3790, %v4071
    %v4073 = vand.u32 %v4072, 4294901760
    %4074 = vmatpush.msra.mxu0 %v4073
    %v4075 = vand.u32 %v3789, 4294901760
    %v4076 = vsub.f32 %v3789, %v4075
    %v4077 = vand.u32 %v4076, 4294901760
    %4078 = vmatpush.msra.mxu0 %v4077
    %v4079 = vand.u32 %v3788, 4294901760
    %v4080 = vsub.f32 %v3788, %v4079
    %v4081 = vand.u32 %v4080, 4294901760
    %4082 = vmatpush.msra.mxu0 %v4081
    %v4083 = vand.u32 %v3787, 4294901760
    %v4084 = vsub.f32 %v3787, %v4083
    %v4085 = vand.u32 %v4084, 4294901760
    %4086 = vmatpush.msra.mxu0 %v4085
    %v4087 = vand.u32 %v3786, 4294901760
    %v4088 = vsub.f32 %v3786, %v4087
    %v4089 = vand.u32 %v4088, 4294901760
    %4090 = vmatpush.msra.mxu0 %v4089
    %v4091 = vand.u32 %v3785, 4294901760
    %v4092 = vsub.f32 %v3785, %v4091
    %v4093 = vand.u32 %v4092, 4294901760
    %4094 = vmatpush.msra.mxu0 %v4093
    %v4095 = vand.u32 %v3784, 4294901760
    %v4096 = vsub.f32 %v3784, %v4095
    %v4097 = vand.u32 %v4096, 4294901760
    %4098 = vmatpush.msra.mxu0 %v4097
    %v4099 = vand.u32 %v27, 4294901760
    %4100 = vmatmul.f32.gmra.mxu0 %v4099
    %v4101 = vpop.f32.mrf.mxu0
    %v4102 = vadd.f32 %v4033, %v4101
    %4103 = vdwg.mxu0
    %v4104 = vand.u32 %v3799, 4294901760
    %4105 = vmatpush.msra.mxu0 %v4104
    %v4106 = vand.u32 %v3798, 4294901760
    %4107 = vmatpush.msra.mxu0 %v4106
    %v4108 = vand.u32 %v3797, 4294901760
    %4109 = vmatpush.msra.mxu0 %v4108
    %v4110 = vand.u32 %v3796, 4294901760
    %4111 = vmatpush.msra.mxu0 %v4110
    %v4112 = vand.u32 %v3795, 4294901760
    %4113 = vmatpush.msra.mxu0 %v4112
    %v4114 = vand.u32 %v3794, 4294901760
    %4115 = vmatpush.msra.mxu0 %v4114
    %v4116 = vand.u32 %v3793, 4294901760
    %4117 = vmatpush.msra.mxu0 %v4116
    %v4118 = vand.u32 %v3792, 4294901760
    %4119 = vmatpush.msra.mxu0 %v4118
    %v4120 = vand.u32 %v3791, 4294901760
    %4121 = vmatpush.msra.mxu0 %v4120
    %v4122 = vand.u32 %v3790, 4294901760
    %4123 = vmatpush.msra.mxu0 %v4122
    %v4124 = vand.u32 %v3789, 4294901760
    %4125 = vmatpush.msra.mxu0 %v4124
    %v4126 = vand.u32 %v3788, 4294901760
    %4127 = vmatpush.msra.mxu0 %v4126
    %v4128 = vand.u32 %v3787, 4294901760
    %4129 = vmatpush.msra.mxu0 %v4128
    %v4130 = vand.u32 %v3786, 4294901760
    %4131 = vmatpush.msra.mxu0 %v4130
    %v4132 = vand.u32 %v3785, 4294901760
    %4133 = vmatpush.msra.mxu0 %v4132
    %v4134 = vand.u32 %v3784, 4294901760
    %4135 = vmatpush.msra.mxu0 %v4134
    %v4136 = vand.u32 %v27, 4294901760
    %4137 = vmatmul.f32.gmra.mxu0 %v4136
    %v4138 = vpop.f32.mrf.mxu0
    %v4139 = vadd.f32 %v4102, %v4138
    %4140 = vdwg.mxu0
    %v4141 = vand.u32 2147483647, %v4139
    %vm4142 = vcmp.le.f32.partialorder %v4141, 0.7853982
    %vm4143 = vcmp.lt.s32.totalorder %v4139, 0
    %v4144 = vand.u32 %v4139, 2139095040
    %v4145 = vshrl.u32 %v4144, 23
    %v4146 = vsub.s32 %v4145, 127
    %v4147 = vand.u32 2147483647, %v4139
    %v4148 = vand.u32 %v4147, 8388607
    %v4149 = vor.u32 %v4148, 8388608
    %v4150 = vsub.s32 0, %v4149
    %v4151 = vadd.s32 %v4146, 1
    %vm4152 = vcmp.gt.s32.totalorder %v4151, 0
    %v4153 = vsel %vm4152, %v4151, 0
    %v4154 = vshrl.u32 %v4153, 5
    %v4155 = vand.u32 %v4153, 31
    %v4156 = vsub.s32 32, %v4155
    %v4157 = vshrl.u32 683565275, %v4156
    %v4158 = vshll.u32 683565275, %v4155
    %v4159 = vshrl.u32 2475754826, %v4156
    %v4160 = vor.u32 %v4158, %v4159
    %v4161 = vshll.u32 2475754826, %v4155
    %v4162 = vshrl.u32 2131351028, %v4156
    %v4163 = vor.u32 %v4161, %v4162
    %v4164 = vshll.u32 2131351028, %v4155
    %v4165 = vshrl.u32 2102212464, %v4156
    %v4166 = vor.u32 %v4164, %v4165
    %v4167 = vshll.u32 2102212464, %v4155
    %v4168 = vshrl.u32 920167782, %v4156
    %v4169 = vor.u32 %v4167, %v4168
    %v4170 = vshll.u32 920167782, %v4155
    %v4171 = vshrl.u32 1326507024, %v4156
    %v4172 = vor.u32 %v4170, %v4171
    %vm4173 = vcmp.lt.s32.totalorder %v4154, 1
    %vm4174 = vcmp.lt.s32.totalorder %v4154, 2
    %vm4175 = vcmp.lt.s32.totalorder %v4154, 3
    %vm4176 = vcmp.lt.s32.totalorder %v4154, 4
    %v4177 = vsel %vm4173, %v4157, %v4160
    %v4178 = vsel %vm4176, %v4166, 2102212464
    %v4179 = vsel %vm4175, %v4163, %v4178
    %v4180 = vsel %vm4174, %v4177, %v4179
    %v4181 = vsel %vm4173, %v4160, %v4163
    %v4182 = vsel %vm4176, %v4169, 920167782
    %v4183 = vsel %vm4175, %v4166, %v4182
    %v4184 = vsel %vm4174, %v4181, %v4183
    %v4185 = vsel %vm4173, %v4163, %v4166
    %v4186 = vsel %vm4176, %v4172, 1326507024
    %v4187 = vsel %vm4175, %v4169, %v4186
    %v4188 = vsel %vm4174, %v4185, %v4187
    %v4189 = vshll.u32 %v4149, 8
    %v4190 = vand.u32 %v4189, 65535
    %v4191 = vshrl.u32 %v4189, 16
    %v4192 = vand.u32 %v4188, 65535
    %v4193 = vshrl.u32 %v4188, 16
    %v4194 = vmul.u32 %v4190, %v4192
    %v4195 = vmul.u32 %v4190, %v4193
    %v4196 = vmul.u32 %v4191, %v4192
    %v4197 = vmul.u32 %v4191, %v4193
    %v4198 = vshll.u32 %v4195, 16
    %v4199 = vshrl.u32 %v4195, 16
    %v4200 = vshll.u32 %v4196, 16
    %v4201 = vshrl.u32 %v4196, 16
    %vm4202 = vc.u32 %v4194, %v4198
    %v4203 = vsel %vm4202, 1, 0
    %v4204 = vadd.s32 %v4194, %v4198
    %v4205 = vadd.s32 %v4197, %v4203
    %vm4206 = vc.u32 %v4204, %v4200
    %v4207 = vsel %vm4206, 1, 0
    %v4208 = vadd.s32 %v4204, %v4200
    %v4209 = vadd.s32 %v4205, %v4207
    %v4210 = vadd.s32 %v4209, %v4199
    %v4211 = vadd.s32 %v4210, %v4201
    %v4212 = vand.u32 %v4189, 65535
    %v4213 = vshrl.u32 %v4189, 16
    %v4214 = vand.u32 %v4184, 65535
    %v4215 = vshrl.u32 %v4184, 16
    %v4216 = vmul.u32 %v4212, %v4214
    %v4217 = vmul.u32 %v4212, %v4215
    %v4218 = vmul.u32 %v4213, %v4214
    %v4219 = vmul.u32 %v4213, %v4215
    %v4220 = vshll.u32 %v4217, 16
    %v4221 = vshrl.u32 %v4217, 16
    %v4222 = vshll.u32 %v4218, 16
    %v4223 = vshrl.u32 %v4218, 16
    %vm4224 = vc.u32 %v4216, %v4220
    %v4225 = vsel %vm4224, 1, 0
    %v4226 = vadd.s32 %v4216, %v4220
    %v4227 = vadd.s32 %v4219, %v4225
    %vm4228 = vc.u32 %v4226, %v4222
    %v4229 = vsel %vm4228, 1, 0
    %v4230 = vadd.s32 %v4226, %v4222
    %v4231 = vadd.s32 %v4227, %v4229
    %v4232 = vadd.s32 %v4231, %v4221
    %v4233 = vadd.s32 %v4232, %v4223
    %v4234 = vmul.u32 %v4189, %v4180
    %v4235 = vadd.s32 %v4211, %v4230
    %vm4236 = vc.u32 %v4211, %v4230
    %v4237 = vadd.s32 %v4233, 1
    %v4238 = vsel %vm4236, %v4237, %v4233
    %v4239 = vadd.s32 %v4234, %v4238
    %v4240 = vadd.s32 %v4239, 536870912
    %v4241 = vshrl.u32 %v4240, 30
    %v4242 = vshll.u32 %v4241, 30
    %v4243 = vsub.s32 %v4239, %v4242
    %vm4244 = vcmp.lt.s32.totalorder %v4243, 0
    %v4245 = vsub.s32 0, %v4243
    %v4246 = vsel %vm4244, %v4245, %v4243
    %v4247 = vclz %v4246
    %v4248 = vsub.s32 %v4247, 2
    %vm4249 = vcmp.gt.s32.totalorder 0, %v4248
    %v4250 = vsel %vm4249, 0, %v4248
    %v4251 = vsub.s32 32, %v4250
    %v4252 = vshll.u32 %v4243, %v4250
    %v4253 = vshrl.u32 %v4235, %v4251
    %v4254 = vor.u32 %v4252, %v4253
    %v4255 = vsub.s32 4294967266, %v4250
    %v4256 = vadd.s32 %v4255, 127
    %v4257 = vshll.u32 %v4256, 23
    %v4258 = vor.u32 4788187, %v4257
    %v4259 = vand.u32 2147483647, %v4258
    %v4261 = vcvt.s32.f32 %v4254
    %v4262 = vmul.f32 %v4261, %v4259
    %v4263 = vxor.u32 %v4262, 2147483648
    %v4264 = vsel %vm4143, %v4263, %v4262
    %v4265 = vsub.s32 4, %v4241
    %v4266 = vsel %vm4143, %v4265, %v4241
    %v4267 = vsel %vm4142, %v4139, %v4264
    %v4268 = vsel %vm4142, 0, %v4266
    %v4269 = vmul.f32 %v4267, %v4267
    %v4270 = vmul.f32 %v4269, -0.001358992
    %v4271 = vadd.f32 %v4270, 0.041655596
    %v4272 = vmul.f32 %v4269, %v4271
    %v4273 = vadd.f32 %v4272, -0.4999988
    %v4274 = vmul.f32 %v4269, %v4273
    %v4275 = vadd.f32 1.0, %v4274
    %v4276 = vmul.f32 %v4267, %v4267
    %v4277 = vmul.f32 %v4276, -0.00019511016
    %v4278 = vadd.f32 %v4277, 0.008332121
    %v4279 = vmul.f32 %v4276, %v4278
    %v4280 = vadd.f32 %v4279, -0.16666654
    %v4281 = vmul.f32 %v4276, %v4280
    %v4282 = vadd.f32 %v4281, 1.0
    %v4283 = vmul.f32 %v4282, %v4267
    %vm4284 = vweird.f32 %v4139
    %v4285 = vadd.s32 %v4268, 3
    %v4286 = vand.u32 %v4285, 3
    %vm4287 = vcmp.lt.s32.totalorder %v4286, 2
    %vm4288 = vcmp.eq.s32.totalorder %v4286, 0
    %v4289 = vxor.u32 %v4283, 2147483648
    %v4290 = vsel %vm4288, %v4275, %v4289
    %vm4291 = vcmp.eq.s32.totalorder %v4286, 2
    %v4292 = vxor.u32 %v4275, 2147483648
    %v4293 = vsel %vm4291, %v4292, %v4283
    %v4294 = vsel %vm4287, %v4290, %v4293
    %v4295 = vsel %vm4284, nan, %v4294
    %v4297 = vrot.slane %v4295, 1
    %v4298 = vrot.slane %v4295, 2
    %v4299 = vrot.slane %v4295, 3
    %v4300 = vrot.slane %v4295, 4
    %v4301 = vrot.slane %v4295, 5
    %v4302 = vrot.slane %v4295, 6
    %v4303 = vrot.slane %v4295, 7
    %4311 = vst.msk [vmem:[#allocation4 + $0x7] sm:$0x1] %vm558, %v4295
    %4312 = vst.msk [vmem:[#allocation4 + $0x17] sm:$0x1] %vm558, %v4297
    %4313 = vst.msk [vmem:[#allocation4 + $0x27] sm:$0x1] %vm558, %v4298
    %4314 = vst.msk [vmem:[#allocation4 + $0x37] sm:$0x1] %vm558, %v4299
    %4315 = vst.msk [vmem:[#allocation4 + $0x47] sm:$0x1] %vm558, %v4300
    %4316 = vst.msk [vmem:[#allocation4 + $0x57] sm:$0x1] %vm558, %v4301
    %4317 = vst.msk [vmem:[#allocation4 + $0x67] sm:$0x1] %vm558, %v4302
    %4318 = vst.msk [vmem:[#allocation4 + $0x77] sm:$0x1] %vm558, %v4303
    %s4319 = scalar_lea.vmem [#allocation2], 1024
    %v4320 = vld [vmem:[%s4319] sm:$0xff]
    %v4321 = vld [vmem:[%s4319 + $0x8] sm:$0xff]
    %v4322 = vld [vmem:[%s4319 + $0x10] sm:$0xff]
    %v4323 = vld [vmem:[%s4319 + $0x18] sm:$0xff]
    %v4324 = vld [vmem:[%s4319 + $0x20] sm:$0xff]
    %v4325 = vld [vmem:[%s4319 + $0x28] sm:$0xff]
    %v4326 = vld [vmem:[%s4319 + $0x30] sm:$0xff]
    %v4327 = vld [vmem:[%s4319 + $0x38] sm:$0xff]
    %v4328 = vld [vmem:[%s4319 + $0x40] sm:$0xff]
    %v4329 = vld [vmem:[%s4319 + $0x48] sm:$0xff]
    %v4330 = vld [vmem:[%s4319 + $0x50] sm:$0xff]
    %v4331 = vld [vmem:[%s4319 + $0x58] sm:$0xff]
    %v4332 = vld [vmem:[%s4319 + $0x60] sm:$0xff]
    %v4333 = vld [vmem:[%s4319 + $0x68] sm:$0xff]
    %v4334 = vld [vmem:[%s4319 + $0x70] sm:$0xff]
    %v4335 = vld [vmem:[%s4319 + $0x78] sm:$0xff]
    %v4336 = vand.u32 %v4335, 4294901760
    %4337 = vmatpush.msra.mxu0 %v4336
    %v4338 = vand.u32 %v4334, 4294901760
    %4339 = vmatpush.msra.mxu0 %v4338
    %v4340 = vand.u32 %v4333, 4294901760
    %4341 = vmatpush.msra.mxu0 %v4340
    %v4342 = vand.u32 %v4332, 4294901760
    %4343 = vmatpush.msra.mxu0 %v4342
    %v4344 = vand.u32 %v4331, 4294901760
    %4345 = vmatpush.msra.mxu0 %v4344
    %v4346 = vand.u32 %v4330, 4294901760
    %4347 = vmatpush.msra.mxu0 %v4346
    %v4348 = vand.u32 %v4329, 4294901760
    %4349 = vmatpush.msra.mxu0 %v4348
    %v4350 = vand.u32 %v4328, 4294901760
    %4351 = vmatpush.msra.mxu0 %v4350
    %v4352 = vand.u32 %v4327, 4294901760
    %4353 = vmatpush.msra.mxu0 %v4352
    %v4354 = vand.u32 %v4326, 4294901760
    %4355 = vmatpush.msra.mxu0 %v4354
    %v4356 = vand.u32 %v4325, 4294901760
    %4357 = vmatpush.msra.mxu0 %v4356
    %v4358 = vand.u32 %v4324, 4294901760
    %4359 = vmatpush.msra.mxu0 %v4358
    %v4360 = vand.u32 %v4323, 4294901760
    %4361 = vmatpush.msra.mxu0 %v4360
    %v4362 = vand.u32 %v4322, 4294901760
    %4363 = vmatpush.msra.mxu0 %v4362
    %v4364 = vand.u32 %v4321, 4294901760
    %4365 = vmatpush.msra.mxu0 %v4364
    %v4366 = vand.u32 %v4320, 4294901760
    %4367 = vmatpush.msra.mxu0 %v4366
    %v4368 = vand.u32 %v27, 4294901760
    %v4369 = vsub.f32 %v27, %v4368
    %v4370 = vand.u32 %v4369, 4294901760
    %v4371 = vsub.f32 %v4369, %v4370
    %v4372 = vand.u32 %v4371, 4294901760
    %4373 = vmatmul.f32.gmra.mxu0 %v4372
    %v4374 = vpop.f32.mrf.mxu0
    %v4375 = vadd.f32 0.0, %v4374
    %4376 = vdwg.mxu0
    %v4377 = vand.u32 %v4335, 4294901760
    %v4378 = vsub.f32 %v4335, %v4377
    %v4379 = vand.u32 %v4378, 4294901760
    %v4380 = vsub.f32 %v4378, %v4379
    %v4381 = vand.u32 %v4380, 4294901760
    %4382 = vmatpush.msra.mxu0 %v4381
    %v4383 = vand.u32 %v4334, 4294901760
    %v4384 = vsub.f32 %v4334, %v4383
    %v4385 = vand.u32 %v4384, 4294901760
    %v4386 = vsub.f32 %v4384, %v4385
    %v4387 = vand.u32 %v4386, 4294901760
    %4388 = vmatpush.msra.mxu0 %v4387
    %v4389 = vand.u32 %v4333, 4294901760
    %v4390 = vsub.f32 %v4333, %v4389
    %v4391 = vand.u32 %v4390, 4294901760
    %v4392 = vsub.f32 %v4390, %v4391
    %v4393 = vand.u32 %v4392, 4294901760
    %4394 = vmatpush.msra.mxu0 %v4393
    %v4395 = vand.u32 %v4332, 4294901760
    %v4396 = vsub.f32 %v4332, %v4395
    %v4397 = vand.u32 %v4396, 4294901760
    %v4398 = vsub.f32 %v4396, %v4397
    %v4399 = vand.u32 %v4398, 4294901760
    %4400 = vmatpush.msra.mxu0 %v4399
    %v4401 = vand.u32 %v4331, 4294901760
    %v4402 = vsub.f32 %v4331, %v4401
    %v4403 = vand.u32 %v4402, 4294901760
    %v4404 = vsub.f32 %v4402, %v4403
    %v4405 = vand.u32 %v4404, 4294901760
    %4406 = vmatpush.msra.mxu0 %v4405
    %v4407 = vand.u32 %v4330, 4294901760
    %v4408 = vsub.f32 %v4330, %v4407
    %v4409 = vand.u32 %v4408, 4294901760
    %v4410 = vsub.f32 %v4408, %v4409
    %v4411 = vand.u32 %v4410, 4294901760
    %4412 = vmatpush.msra.mxu0 %v4411
    %v4413 = vand.u32 %v4329, 4294901760
    %v4414 = vsub.f32 %v4329, %v4413
    %v4415 = vand.u32 %v4414, 4294901760
    %v4416 = vsub.f32 %v4414, %v4415
    %v4417 = vand.u32 %v4416, 4294901760
    %4418 = vmatpush.msra.mxu0 %v4417
    %v4419 = vand.u32 %v4328, 4294901760
    %v4420 = vsub.f32 %v4328, %v4419
    %v4421 = vand.u32 %v4420, 4294901760
    %v4422 = vsub.f32 %v4420, %v4421
    %v4423 = vand.u32 %v4422, 4294901760
    %4424 = vmatpush.msra.mxu0 %v4423
    %v4425 = vand.u32 %v4327, 4294901760
    %v4426 = vsub.f32 %v4327, %v4425
    %v4427 = vand.u32 %v4426, 4294901760
    %v4428 = vsub.f32 %v4426, %v4427
    %v4429 = vand.u32 %v4428, 4294901760
    %4430 = vmatpush.msra.mxu0 %v4429
    %v4431 = vand.u32 %v4326, 4294901760
    %v4432 = vsub.f32 %v4326, %v4431
    %v4433 = vand.u32 %v4432, 4294901760
    %v4434 = vsub.f32 %v4432, %v4433
    %v4435 = vand.u32 %v4434, 4294901760
    %4436 = vmatpush.msra.mxu0 %v4435
    %v4437 = vand.u32 %v4325, 4294901760
    %v4438 = vsub.f32 %v4325, %v4437
    %v4439 = vand.u32 %v4438, 4294901760
    %v4440 = vsub.f32 %v4438, %v4439
    %v4441 = vand.u32 %v4440, 4294901760
    %4442 = vmatpush.msra.mxu0 %v4441
    %v4443 = vand.u32 %v4324, 4294901760
    %v4444 = vsub.f32 %v4324, %v4443
    %v4445 = vand.u32 %v4444, 4294901760
    %v4446 = vsub.f32 %v4444, %v4445
    %v4447 = vand.u32 %v4446, 4294901760
    %4448 = vmatpush.msra.mxu0 %v4447
    %v4449 = vand.u32 %v4323, 4294901760
    %v4450 = vsub.f32 %v4323, %v4449
    %v4451 = vand.u32 %v4450, 4294901760
    %v4452 = vsub.f32 %v4450, %v4451
    %v4453 = vand.u32 %v4452, 4294901760
    %4454 = vmatpush.msra.mxu0 %v4453
    %v4455 = vand.u32 %v4322, 4294901760
    %v4456 = vsub.f32 %v4322, %v4455
    %v4457 = vand.u32 %v4456, 4294901760
    %v4458 = vsub.f32 %v4456, %v4457
    %v4459 = vand.u32 %v4458, 4294901760
    %4460 = vmatpush.msra.mxu0 %v4459
    %v4461 = vand.u32 %v4321, 4294901760
    %v4462 = vsub.f32 %v4321, %v4461
    %v4463 = vand.u32 %v4462, 4294901760
    %v4464 = vsub.f32 %v4462, %v4463
    %v4465 = vand.u32 %v4464, 4294901760
    %4466 = vmatpush.msra.mxu0 %v4465
    %v4467 = vand.u32 %v4320, 4294901760
    %v4468 = vsub.f32 %v4320, %v4467
    %v4469 = vand.u32 %v4468, 4294901760
    %v4470 = vsub.f32 %v4468, %v4469
    %v4471 = vand.u32 %v4470, 4294901760
    %4472 = vmatpush.msra.mxu0 %v4471
    %v4473 = vand.u32 %v27, 4294901760
    %4474 = vmatmul.f32.gmra.mxu0 %v4473
    %v4475 = vpop.f32.mrf.mxu0
    %v4476 = vadd.f32 %v4375, %v4475
    %4477 = vdwg.mxu0
    %v4478 = vand.u32 %v4335, 4294901760
    %v4479 = vsub.f32 %v4335, %v4478
    %4480 = vmatpush.msra.mxu0 %v4479
    %v4481 = vand.u32 %v4334, 4294901760
    %v4482 = vsub.f32 %v4334, %v4481
    %4483 = vmatpush.msra.mxu0 %v4482
    %v4484 = vand.u32 %v4333, 4294901760
    %v4485 = vsub.f32 %v4333, %v4484
    %4486 = vmatpush.msra.mxu0 %v4485
    %v4487 = vand.u32 %v4332, 4294901760
    %v4488 = vsub.f32 %v4332, %v4487
    %4489 = vmatpush.msra.mxu0 %v4488
    %v4490 = vand.u32 %v4331, 4294901760
    %v4491 = vsub.f32 %v4331, %v4490
    %4492 = vmatpush.msra.mxu0 %v4491
    %v4493 = vand.u32 %v4330, 4294901760
    %v4494 = vsub.f32 %v4330, %v4493
    %4495 = vmatpush.msra.mxu0 %v4494
    %v4496 = vand.u32 %v4329, 4294901760
    %v4497 = vsub.f32 %v4329, %v4496
    %4498 = vmatpush.msra.mxu0 %v4497
    %v4499 = vand.u32 %v4328, 4294901760
    %v4500 = vsub.f32 %v4328, %v4499
    %4501 = vmatpush.msra.mxu0 %v4500
    %v4502 = vand.u32 %v4327, 4294901760
    %v4503 = vsub.f32 %v4327, %v4502
    %4504 = vmatpush.msra.mxu0 %v4503
    %v4505 = vand.u32 %v4326, 4294901760
    %v4506 = vsub.f32 %v4326, %v4505
    %4507 = vmatpush.msra.mxu0 %v4506
    %v4508 = vand.u32 %v4325, 4294901760
    %v4509 = vsub.f32 %v4325, %v4508
    %4510 = vmatpush.msra.mxu0 %v4509
    %v4511 = vand.u32 %v4324, 4294901760
    %v4512 = vsub.f32 %v4324, %v4511
    %4513 = vmatpush.msra.mxu0 %v4512
    %v4514 = vand.u32 %v4323, 4294901760
    %v4515 = vsub.f32 %v4323, %v4514
    %4516 = vmatpush.msra.mxu0 %v4515
    %v4517 = vand.u32 %v4322, 4294901760
    %v4518 = vsub.f32 %v4322, %v4517
    %4519 = vmatpush.msra.mxu0 %v4518
    %v4520 = vand.u32 %v4321, 4294901760
    %v4521 = vsub.f32 %v4321, %v4520
    %4522 = vmatpush.msra.mxu0 %v4521
    %v4523 = vand.u32 %v4320, 4294901760
    %v4524 = vsub.f32 %v4320, %v4523
    %4525 = vmatpush.msra.mxu0 %v4524
    %v4526 = vand.u32 %v27, 4294901760
    %v4527 = vsub.f32 %v27, %v4526
    %4528 = vmatmul.f32.gmra.mxu0 %v4527
    %v4529 = vpop.f32.mrf.mxu0
    %v4530 = vadd.f32 %v4476, %v4529
    %4531 = vdwg.mxu0
    %v4532 = vand.u32 %v4335, 4294901760
    %4533 = vmatpush.msra.mxu0 %v4532
    %v4534 = vand.u32 %v4334, 4294901760
    %4535 = vmatpush.msra.mxu0 %v4534
    %v4536 = vand.u32 %v4333, 4294901760
    %4537 = vmatpush.msra.mxu0 %v4536
    %v4538 = vand.u32 %v4332, 4294901760
    %4539 = vmatpush.msra.mxu0 %v4538
    %v4540 = vand.u32 %v4331, 4294901760
    %4541 = vmatpush.msra.mxu0 %v4540
    %v4542 = vand.u32 %v4330, 4294901760
    %4543 = vmatpush.msra.mxu0 %v4542
    %v4544 = vand.u32 %v4329, 4294901760
    %4545 = vmatpush.msra.mxu0 %v4544
    %v4546 = vand.u32 %v4328, 4294901760
    %4547 = vmatpush.msra.mxu0 %v4546
    %v4548 = vand.u32 %v4327, 4294901760
    %4549 = vmatpush.msra.mxu0 %v4548
    %v4550 = vand.u32 %v4326, 4294901760
    %4551 = vmatpush.msra.mxu0 %v4550
    %v4552 = vand.u32 %v4325, 4294901760
    %4553 = vmatpush.msra.mxu0 %v4552
    %v4554 = vand.u32 %v4324, 4294901760
    %4555 = vmatpush.msra.mxu0 %v4554
    %v4556 = vand.u32 %v4323, 4294901760
    %4557 = vmatpush.msra.mxu0 %v4556
    %v4558 = vand.u32 %v4322, 4294901760
    %4559 = vmatpush.msra.mxu0 %v4558
    %v4560 = vand.u32 %v4321, 4294901760
    %4561 = vmatpush.msra.mxu0 %v4560
    %v4562 = vand.u32 %v4320, 4294901760
    %4563 = vmatpush.msra.mxu0 %v4562
    %v4564 = vand.u32 %v27, 4294901760
    %v4565 = vsub.f32 %v27, %v4564
    %v4566 = vand.u32 %v4565, 4294901760
    %4567 = vmatmul.f32.gmra.mxu0 %v4566
    %v4568 = vpop.f32.mrf.mxu0
    %v4569 = vadd.f32 %v4530, %v4568
    %4570 = vdwg.mxu0
    %v4571 = vand.u32 %v4335, 4294901760
    %v4572 = vsub.f32 %v4335, %v4571
    %v4573 = vand.u32 %v4572, 4294901760
    %4574 = vmatpush.msra.mxu0 %v4573
    %v4575 = vand.u32 %v4334, 4294901760
    %v4576 = vsub.f32 %v4334, %v4575
    %v4577 = vand.u32 %v4576, 4294901760
    %4578 = vmatpush.msra.mxu0 %v4577
    %v4579 = vand.u32 %v4333, 4294901760
    %v4580 = vsub.f32 %v4333, %v4579
    %v4581 = vand.u32 %v4580, 4294901760
    %4582 = vmatpush.msra.mxu0 %v4581
    %v4583 = vand.u32 %v4332, 4294901760
    %v4584 = vsub.f32 %v4332, %v4583
    %v4585 = vand.u32 %v4584, 4294901760
    %4586 = vmatpush.msra.mxu0 %v4585
    %v4587 = vand.u32 %v4331, 4294901760
    %v4588 = vsub.f32 %v4331, %v4587
    %v4589 = vand.u32 %v4588, 4294901760
    %4590 = vmatpush.msra.mxu0 %v4589
    %v4591 = vand.u32 %v4330, 4294901760
    %v4592 = vsub.f32 %v4330, %v4591
    %v4593 = vand.u32 %v4592, 4294901760
    %4594 = vmatpush.msra.mxu0 %v4593
    %v4595 = vand.u32 %v4329, 4294901760
    %v4596 = vsub.f32 %v4329, %v4595
    %v4597 = vand.u32 %v4596, 4294901760
    %4598 = vmatpush.msra.mxu0 %v4597
    %v4599 = vand.u32 %v4328, 4294901760
    %v4600 = vsub.f32 %v4328, %v4599
    %v4601 = vand.u32 %v4600, 4294901760
    %4602 = vmatpush.msra.mxu0 %v4601
    %v4603 = vand.u32 %v4327, 4294901760
    %v4604 = vsub.f32 %v4327, %v4603
    %v4605 = vand.u32 %v4604, 4294901760
    %4606 = vmatpush.msra.mxu0 %v4605
    %v4607 = vand.u32 %v4326, 4294901760
    %v4608 = vsub.f32 %v4326, %v4607
    %v4609 = vand.u32 %v4608, 4294901760
    %4610 = vmatpush.msra.mxu0 %v4609
    %v4611 = vand.u32 %v4325, 4294901760
    %v4612 = vsub.f32 %v4325, %v4611
    %v4613 = vand.u32 %v4612, 4294901760
    %4614 = vmatpush.msra.mxu0 %v4613
    %v4615 = vand.u32 %v4324, 4294901760
    %v4616 = vsub.f32 %v4324, %v4615
    %v4617 = vand.u32 %v4616, 4294901760
    %4618 = vmatpush.msra.mxu0 %v4617
    %v4619 = vand.u32 %v4323, 4294901760
    %v4620 = vsub.f32 %v4323, %v4619
    %v4621 = vand.u32 %v4620, 4294901760
    %4622 = vmatpush.msra.mxu0 %v4621
    %v4623 = vand.u32 %v4322, 4294901760
    %v4624 = vsub.f32 %v4322, %v4623
    %v4625 = vand.u32 %v4624, 4294901760
    %4626 = vmatpush.msra.mxu0 %v4625
    %v4627 = vand.u32 %v4321, 4294901760
    %v4628 = vsub.f32 %v4321, %v4627
    %v4629 = vand.u32 %v4628, 4294901760
    %4630 = vmatpush.msra.mxu0 %v4629
    %v4631 = vand.u32 %v4320, 4294901760
    %v4632 = vsub.f32 %v4320, %v4631
    %v4633 = vand.u32 %v4632, 4294901760
    %4634 = vmatpush.msra.mxu0 %v4633
    %v4635 = vand.u32 %v27, 4294901760
    %4636 = vmatmul.f32.gmra.mxu0 %v4635
    %v4637 = vpop.f32.mrf.mxu0
    %v4638 = vadd.f32 %v4569, %v4637
    %4639 = vdwg.mxu0
    %v4640 = vand.u32 %v4335, 4294901760
    %4641 = vmatpush.msra.mxu0 %v4640
    %v4642 = vand.u32 %v4334, 4294901760
    %4643 = vmatpush.msra.mxu0 %v4642
    %v4644 = vand.u32 %v4333, 4294901760
    %4645 = vmatpush.msra.mxu0 %v4644
    %v4646 = vand.u32 %v4332, 4294901760
    %4647 = vmatpush.msra.mxu0 %v4646
    %v4648 = vand.u32 %v4331, 4294901760
    %4649 = vmatpush.msra.mxu0 %v4648
    %v4650 = vand.u32 %v4330, 4294901760
    %4651 = vmatpush.msra.mxu0 %v4650
    %v4652 = vand.u32 %v4329, 4294901760
    %4653 = vmatpush.msra.mxu0 %v4652
    %v4654 = vand.u32 %v4328, 4294901760
    %4655 = vmatpush.msra.mxu0 %v4654
    %v4656 = vand.u32 %v4327, 4294901760
    %4657 = vmatpush.msra.mxu0 %v4656
    %v4658 = vand.u32 %v4326, 4294901760
    %4659 = vmatpush.msra.mxu0 %v4658
    %v4660 = vand.u32 %v4325, 4294901760
    %4661 = vmatpush.msra.mxu0 %v4660
    %v4662 = vand.u32 %v4324, 4294901760
    %4663 = vmatpush.msra.mxu0 %v4662
    %v4664 = vand.u32 %v4323, 4294901760
    %4665 = vmatpush.msra.mxu0 %v4664
    %v4666 = vand.u32 %v4322, 4294901760
    %4667 = vmatpush.msra.mxu0 %v4666
    %v4668 = vand.u32 %v4321, 4294901760
    %4669 = vmatpush.msra.mxu0 %v4668
    %v4670 = vand.u32 %v4320, 4294901760
    %4671 = vmatpush.msra.mxu0 %v4670
    %v4672 = vand.u32 %v27, 4294901760
    %4673 = vmatmul.f32.gmra.mxu0 %v4672
    %v4674 = vpop.f32.mrf.mxu0
    %v4675 = vadd.f32 %v4638, %v4674
    %4676 = vdwg.mxu0
    %v4677 = vand.u32 2147483647, %v4675
    %vm4678 = vcmp.le.f32.partialorder %v4677, 0.7853982
    %vm4679 = vcmp.lt.s32.totalorder %v4675, 0
    %v4680 = vand.u32 %v4675, 2139095040
    %v4681 = vshrl.u32 %v4680, 23
    %v4682 = vsub.s32 %v4681, 127
    %v4683 = vand.u32 2147483647, %v4675
    %v4684 = vand.u32 %v4683, 8388607
    %v4685 = vor.u32 %v4684, 8388608
    %v4686 = vsub.s32 0, %v4685
    %v4687 = vadd.s32 %v4682, 1
    %vm4688 = vcmp.gt.s32.totalorder %v4687, 0
    %v4689 = vsel %vm4688, %v4687, 0
    %v4690 = vshrl.u32 %v4689, 5
    %v4691 = vand.u32 %v4689, 31
    %v4692 = vsub.s32 32, %v4691
    %v4693 = vshrl.u32 683565275, %v4692
    %v4694 = vshll.u32 683565275, %v4691
    %v4695 = vshrl.u32 2475754826, %v4692
    %v4696 = vor.u32 %v4694, %v4695
    %v4697 = vshll.u32 2475754826, %v4691
    %v4698 = vshrl.u32 2131351028, %v4692
    %v4699 = vor.u32 %v4697, %v4698
    %v4700 = vshll.u32 2131351028, %v4691
    %v4701 = vshrl.u32 2102212464, %v4692
    %v4702 = vor.u32 %v4700, %v4701
    %v4703 = vshll.u32 2102212464, %v4691
    %v4704 = vshrl.u32 920167782, %v4692
    %v4705 = vor.u32 %v4703, %v4704
    %v4706 = vshll.u32 920167782, %v4691
    %v4707 = vshrl.u32 1326507024, %v4692
    %v4708 = vor.u32 %v4706, %v4707
    %vm4709 = vcmp.lt.s32.totalorder %v4690, 1
    %vm4710 = vcmp.lt.s32.totalorder %v4690, 2
    %vm4711 = vcmp.lt.s32.totalorder %v4690, 3
    %vm4712 = vcmp.lt.s32.totalorder %v4690, 4
    %v4713 = vsel %vm4709, %v4693, %v4696
    %v4714 = vsel %vm4712, %v4702, 2102212464
    %v4715 = vsel %vm4711, %v4699, %v4714
    %v4716 = vsel %vm4710, %v4713, %v4715
    %v4717 = vsel %vm4709, %v4696, %v4699
    %v4718 = vsel %vm4712, %v4705, 920167782
    %v4719 = vsel %vm4711, %v4702, %v4718
    %v4720 = vsel %vm4710, %v4717, %v4719
    %v4721 = vsel %vm4709, %v4699, %v4702
    %v4722 = vsel %vm4712, %v4708, 1326507024
    %v4723 = vsel %vm4711, %v4705, %v4722
    %v4724 = vsel %vm4710, %v4721, %v4723
    %v4725 = vshll.u32 %v4685, 8
    %v4726 = vand.u32 %v4725, 65535
    %v4727 = vshrl.u32 %v4725, 16
    %v4728 = vand.u32 %v4724, 65535
    %v4729 = vshrl.u32 %v4724, 16
    %v4730 = vmul.u32 %v4726, %v4728
    %v4731 = vmul.u32 %v4726, %v4729
    %v4732 = vmul.u32 %v4727, %v4728
    %v4733 = vmul.u32 %v4727, %v4729
    %v4734 = vshll.u32 %v4731, 16
    %v4735 = vshrl.u32 %v4731, 16
    %v4736 = vshll.u32 %v4732, 16
    %v4737 = vshrl.u32 %v4732, 16
    %vm4738 = vc.u32 %v4730, %v4734
    %v4739 = vsel %vm4738, 1, 0
    %v4740 = vadd.s32 %v4730, %v4734
    %v4741 = vadd.s32 %v4733, %v4739
    %vm4742 = vc.u32 %v4740, %v4736
    %v4743 = vsel %vm4742, 1, 0
    %v4744 = vadd.s32 %v4740, %v4736
    %v4745 = vadd.s32 %v4741, %v4743
    %v4746 = vadd.s32 %v4745, %v4735
    %v4747 = vadd.s32 %v4746, %v4737
    %v4748 = vand.u32 %v4725, 65535
    %v4749 = vshrl.u32 %v4725, 16
    %v4750 = vand.u32 %v4720, 65535
    %v4751 = vshrl.u32 %v4720, 16
    %v4752 = vmul.u32 %v4748, %v4750
    %v4753 = vmul.u32 %v4748, %v4751
    %v4754 = vmul.u32 %v4749, %v4750
    %v4755 = vmul.u32 %v4749, %v4751
    %v4756 = vshll.u32 %v4753, 16
    %v4757 = vshrl.u32 %v4753, 16
    %v4758 = vshll.u32 %v4754, 16
    %v4759 = vshrl.u32 %v4754, 16
    %vm4760 = vc.u32 %v4752, %v4756
    %v4761 = vsel %vm4760, 1, 0
    %v4762 = vadd.s32 %v4752, %v4756
    %v4763 = vadd.s32 %v4755, %v4761
    %vm4764 = vc.u32 %v4762, %v4758
    %v4765 = vsel %vm4764, 1, 0
    %v4766 = vadd.s32 %v4762, %v4758
    %v4767 = vadd.s32 %v4763, %v4765
    %v4768 = vadd.s32 %v4767, %v4757
    %v4769 = vadd.s32 %v4768, %v4759
    %v4770 = vmul.u32 %v4725, %v4716
    %v4771 = vadd.s32 %v4747, %v4766
    %vm4772 = vc.u32 %v4747, %v4766
    %v4773 = vadd.s32 %v4769, 1
    %v4774 = vsel %vm4772, %v4773, %v4769
    %v4775 = vadd.s32 %v4770, %v4774
    %v4776 = vadd.s32 %v4775, 536870912
    %v4777 = vshrl.u32 %v4776, 30
    %v4778 = vshll.u32 %v4777, 30
    %v4779 = vsub.s32 %v4775, %v4778
    %vm4780 = vcmp.lt.s32.totalorder %v4779, 0
    %v4781 = vsub.s32 0, %v4779
    %v4782 = vsel %vm4780, %v4781, %v4779
    %v4783 = vclz %v4782
    %v4784 = vsub.s32 %v4783, 2
    %vm4785 = vcmp.gt.s32.totalorder 0, %v4784
    %v4786 = vsel %vm4785, 0, %v4784
    %v4787 = vsub.s32 32, %v4786
    %v4788 = vshll.u32 %v4779, %v4786
    %v4789 = vshrl.u32 %v4771, %v4787
    %v4790 = vor.u32 %v4788, %v4789
    %v4791 = vsub.s32 4294967266, %v4786
    %v4792 = vadd.s32 %v4791, 127
    %v4793 = vshll.u32 %v4792, 23
    %v4794 = vor.u32 4788187, %v4793
    %v4795 = vand.u32 2147483647, %v4794
    %v4797 = vcvt.s32.f32 %v4790
    %v4798 = vmul.f32 %v4797, %v4795
    %v4799 = vxor.u32 %v4798, 2147483648
    %v4800 = vsel %vm4679, %v4799, %v4798
    %v4801 = vsub.s32 4, %v4777
    %v4802 = vsel %vm4679, %v4801, %v4777
    %v4803 = vsel %vm4678, %v4675, %v4800
    %v4804 = vsel %vm4678, 0, %v4802
    %v4805 = vmul.f32 %v4803, %v4803
    %v4806 = vmul.f32 %v4805, -0.001358992
    %v4807 = vadd.f32 %v4806, 0.041655596
    %v4808 = vmul.f32 %v4805, %v4807
    %v4809 = vadd.f32 %v4808, -0.4999988
    %v4810 = vmul.f32 %v4805, %v4809
    %v4811 = vadd.f32 1.0, %v4810
    %v4812 = vmul.f32 %v4803, %v4803
    %v4813 = vmul.f32 %v4812, -0.00019511016
    %v4814 = vadd.f32 %v4813, 0.008332121
    %v4815 = vmul.f32 %v4812, %v4814
    %v4816 = vadd.f32 %v4815, -0.16666654
    %v4817 = vmul.f32 %v4812, %v4816
    %v4818 = vadd.f32 %v4817, 1.0
    %v4819 = vmul.f32 %v4818, %v4803
    %vm4820 = vweird.f32 %v4675
    %v4821 = vadd.s32 %v4804, 3
    %v4822 = vand.u32 %v4821, 3
    %vm4823 = vcmp.lt.s32.totalorder %v4822, 2
    %vm4824 = vcmp.eq.s32.totalorder %v4822, 0
    %v4825 = vxor.u32 %v4819, 2147483648
    %v4826 = vsel %vm4824, %v4811, %v4825
    %vm4827 = vcmp.eq.s32.totalorder %v4822, 2
    %v4828 = vxor.u32 %v4811, 2147483648
    %v4829 = vsel %vm4827, %v4828, %v4819
    %v4830 = vsel %vm4823, %v4826, %v4829
    %v4831 = vsel %vm4820, nan, %v4830
    %v4833 = vrot.slane %v4831, 1
    %v4834 = vrot.slane %v4831, 2
    %v4835 = vrot.slane %v4831, 3
    %v4836 = vrot.slane %v4831, 4
    %v4837 = vrot.slane %v4831, 5
    %v4838 = vrot.slane %v4831, 6
    %v4839 = vrot.slane %v4831, 7
    %4847 = vst.msk [vmem:[#allocation4 + $0x8] sm:$0x1] %vm558, %v4831
    %4848 = vst.msk [vmem:[#allocation4 + $0x18] sm:$0x1] %vm558, %v4833
    %4849 = vst.msk [vmem:[#allocation4 + $0x28] sm:$0x1] %vm558, %v4834
    %4850 = vst.msk [vmem:[#allocation4 + $0x38] sm:$0x1] %vm558, %v4835
    %4851 = vst.msk [vmem:[#allocation4 + $0x48] sm:$0x1] %vm558, %v4836
    %4852 = vst.msk [vmem:[#allocation4 + $0x58] sm:$0x1] %vm558, %v4837
    %4853 = vst.msk [vmem:[#allocation4 + $0x68] sm:$0x1] %vm558, %v4838
    %4854 = vst.msk [vmem:[#allocation4 + $0x78] sm:$0x1] %vm558, %v4839
    %s4855 = scalar_lea.vmem [#allocation2], 1152
    %v4856 = vld [vmem:[%s4855] sm:$0xff]
    %v4857 = vld [vmem:[%s4855 + $0x8] sm:$0xff]
    %v4858 = vld [vmem:[%s4855 + $0x10] sm:$0xff]
    %v4859 = vld [vmem:[%s4855 + $0x18] sm:$0xff]
    %v4860 = vld [vmem:[%s4855 + $0x20] sm:$0xff]
    %v4861 = vld [vmem:[%s4855 + $0x28] sm:$0xff]
    %v4862 = vld [vmem:[%s4855 + $0x30] sm:$0xff]
    %v4863 = vld [vmem:[%s4855 + $0x38] sm:$0xff]
    %v4864 = vld [vmem:[%s4855 + $0x40] sm:$0xff]
    %v4865 = vld [vmem:[%s4855 + $0x48] sm:$0xff]
    %v4866 = vld [vmem:[%s4855 + $0x50] sm:$0xff]
    %v4867 = vld [vmem:[%s4855 + $0x58] sm:$0xff]
    %v4868 = vld [vmem:[%s4855 + $0x60] sm:$0xff]
    %v4869 = vld [vmem:[%s4855 + $0x68] sm:$0xff]
    %v4870 = vld [vmem:[%s4855 + $0x70] sm:$0xff]
    %v4871 = vld [vmem:[%s4855 + $0x78] sm:$0xff]
    %v4872 = vand.u32 %v4871, 4294901760
    %4873 = vmatpush.msra.mxu0 %v4872
    %v4874 = vand.u32 %v4870, 4294901760
    %4875 = vmatpush.msra.mxu0 %v4874
    %v4876 = vand.u32 %v4869, 4294901760
    %4877 = vmatpush.msra.mxu0 %v4876
    %v4878 = vand.u32 %v4868, 4294901760
    %4879 = vmatpush.msra.mxu0 %v4878
    %v4880 = vand.u32 %v4867, 4294901760
    %4881 = vmatpush.msra.mxu0 %v4880
    %v4882 = vand.u32 %v4866, 4294901760
    %4883 = vmatpush.msra.mxu0 %v4882
    %v4884 = vand.u32 %v4865, 4294901760
    %4885 = vmatpush.msra.mxu0 %v4884
    %v4886 = vand.u32 %v4864, 4294901760
    %4887 = vmatpush.msra.mxu0 %v4886
    %v4888 = vand.u32 %v4863, 4294901760
    %4889 = vmatpush.msra.mxu0 %v4888
    %v4890 = vand.u32 %v4862, 4294901760
    %4891 = vmatpush.msra.mxu0 %v4890
    %v4892 = vand.u32 %v4861, 4294901760
    %4893 = vmatpush.msra.mxu0 %v4892
    %v4894 = vand.u32 %v4860, 4294901760
    %4895 = vmatpush.msra.mxu0 %v4894
    %v4896 = vand.u32 %v4859, 4294901760
    %4897 = vmatpush.msra.mxu0 %v4896
    %v4898 = vand.u32 %v4858, 4294901760
    %4899 = vmatpush.msra.mxu0 %v4898
    %v4900 = vand.u32 %v4857, 4294901760
    %4901 = vmatpush.msra.mxu0 %v4900
    %v4902 = vand.u32 %v4856, 4294901760
    %4903 = vmatpush.msra.mxu0 %v4902
    %v4904 = vand.u32 %v27, 4294901760
    %v4905 = vsub.f32 %v27, %v4904
    %v4906 = vand.u32 %v4905, 4294901760
    %v4907 = vsub.f32 %v4905, %v4906
    %v4908 = vand.u32 %v4907, 4294901760
    %4909 = vmatmul.f32.gmra.mxu0 %v4908
    %v4910 = vpop.f32.mrf.mxu0
    %v4911 = vadd.f32 0.0, %v4910
    %4912 = vdwg.mxu0
    %v4913 = vand.u32 %v4871, 4294901760
    %v4914 = vsub.f32 %v4871, %v4913
    %v4915 = vand.u32 %v4914, 4294901760
    %v4916 = vsub.f32 %v4914, %v4915
    %v4917 = vand.u32 %v4916, 4294901760
    %4918 = vmatpush.msra.mxu0 %v4917
    %v4919 = vand.u32 %v4870, 4294901760
    %v4920 = vsub.f32 %v4870, %v4919
    %v4921 = vand.u32 %v4920, 4294901760
    %v4922 = vsub.f32 %v4920, %v4921
    %v4923 = vand.u32 %v4922, 4294901760
    %4924 = vmatpush.msra.mxu0 %v4923
    %v4925 = vand.u32 %v4869, 4294901760
    %v4926 = vsub.f32 %v4869, %v4925
    %v4927 = vand.u32 %v4926, 4294901760
    %v4928 = vsub.f32 %v4926, %v4927
    %v4929 = vand.u32 %v4928, 4294901760
    %4930 = vmatpush.msra.mxu0 %v4929
    %v4931 = vand.u32 %v4868, 4294901760
    %v4932 = vsub.f32 %v4868, %v4931
    %v4933 = vand.u32 %v4932, 4294901760
    %v4934 = vsub.f32 %v4932, %v4933
    %v4935 = vand.u32 %v4934, 4294901760
    %4936 = vmatpush.msra.mxu0 %v4935
    %v4937 = vand.u32 %v4867, 4294901760
    %v4938 = vsub.f32 %v4867, %v4937
    %v4939 = vand.u32 %v4938, 4294901760
    %v4940 = vsub.f32 %v4938, %v4939
    %v4941 = vand.u32 %v4940, 4294901760
    %4942 = vmatpush.msra.mxu0 %v4941
    %v4943 = vand.u32 %v4866, 4294901760
    %v4944 = vsub.f32 %v4866, %v4943
    %v4945 = vand.u32 %v4944, 4294901760
    %v4946 = vsub.f32 %v4944, %v4945
    %v4947 = vand.u32 %v4946, 4294901760
    %4948 = vmatpush.msra.mxu0 %v4947
    %v4949 = vand.u32 %v4865, 4294901760
    %v4950 = vsub.f32 %v4865, %v4949
    %v4951 = vand.u32 %v4950, 4294901760
    %v4952 = vsub.f32 %v4950, %v4951
    %v4953 = vand.u32 %v4952, 4294901760
    %4954 = vmatpush.msra.mxu0 %v4953
    %v4955 = vand.u32 %v4864, 4294901760
    %v4956 = vsub.f32 %v4864, %v4955
    %v4957 = vand.u32 %v4956, 4294901760
    %v4958 = vsub.f32 %v4956, %v4957
    %v4959 = vand.u32 %v4958, 4294901760
    %4960 = vmatpush.msra.mxu0 %v4959
    %v4961 = vand.u32 %v4863, 4294901760
    %v4962 = vsub.f32 %v4863, %v4961
    %v4963 = vand.u32 %v4962, 4294901760
    %v4964 = vsub.f32 %v4962, %v4963
    %v4965 = vand.u32 %v4964, 4294901760
    %4966 = vmatpush.msra.mxu0 %v4965
    %v4967 = vand.u32 %v4862, 4294901760
    %v4968 = vsub.f32 %v4862, %v4967
    %v4969 = vand.u32 %v4968, 4294901760
    %v4970 = vsub.f32 %v4968, %v4969
    %v4971 = vand.u32 %v4970, 4294901760
    %4972 = vmatpush.msra.mxu0 %v4971
    %v4973 = vand.u32 %v4861, 4294901760
    %v4974 = vsub.f32 %v4861, %v4973
    %v4975 = vand.u32 %v4974, 4294901760
    %v4976 = vsub.f32 %v4974, %v4975
    %v4977 = vand.u32 %v4976, 4294901760
    %4978 = vmatpush.msra.mxu0 %v4977
    %v4979 = vand.u32 %v4860, 4294901760
    %v4980 = vsub.f32 %v4860, %v4979
    %v4981 = vand.u32 %v4980, 4294901760
    %v4982 = vsub.f32 %v4980, %v4981
    %v4983 = vand.u32 %v4982, 4294901760
    %4984 = vmatpush.msra.mxu0 %v4983
    %v4985 = vand.u32 %v4859, 4294901760
    %v4986 = vsub.f32 %v4859, %v4985
    %v4987 = vand.u32 %v4986, 4294901760
    %v4988 = vsub.f32 %v4986, %v4987
    %v4989 = vand.u32 %v4988, 4294901760
    %4990 = vmatpush.msra.mxu0 %v4989
    %v4991 = vand.u32 %v4858, 4294901760
    %v4992 = vsub.f32 %v4858, %v4991
    %v4993 = vand.u32 %v4992, 4294901760
    %v4994 = vsub.f32 %v4992, %v4993
    %v4995 = vand.u32 %v4994, 4294901760
    %4996 = vmatpush.msra.mxu0 %v4995
    %v4997 = vand.u32 %v4857, 4294901760
    %v4998 = vsub.f32 %v4857, %v4997
    %v4999 = vand.u32 %v4998, 4294901760
    %v5000 = vsub.f32 %v4998, %v4999
    %v5001 = vand.u32 %v5000, 4294901760
    %5002 = vmatpush.msra.mxu0 %v5001
    %v5003 = vand.u32 %v4856, 4294901760
    %v5004 = vsub.f32 %v4856, %v5003
    %v5005 = vand.u32 %v5004, 4294901760
    %v5006 = vsub.f32 %v5004, %v5005
    %v5007 = vand.u32 %v5006, 4294901760
    %5008 = vmatpush.msra.mxu0 %v5007
    %v5009 = vand.u32 %v27, 4294901760
    %5010 = vmatmul.f32.gmra.mxu0 %v5009
    %v5011 = vpop.f32.mrf.mxu0
    %v5012 = vadd.f32 %v4911, %v5011
    %5013 = vdwg.mxu0
    %v5014 = vand.u32 %v4871, 4294901760
    %v5015 = vsub.f32 %v4871, %v5014
    %5016 = vmatpush.msra.mxu0 %v5015
    %v5017 = vand.u32 %v4870, 4294901760
    %v5018 = vsub.f32 %v4870, %v5017
    %5019 = vmatpush.msra.mxu0 %v5018
    %v5020 = vand.u32 %v4869, 4294901760
    %v5021 = vsub.f32 %v4869, %v5020
    %5022 = vmatpush.msra.mxu0 %v5021
    %v5023 = vand.u32 %v4868, 4294901760
    %v5024 = vsub.f32 %v4868, %v5023
    %5025 = vmatpush.msra.mxu0 %v5024
    %v5026 = vand.u32 %v4867, 4294901760
    %v5027 = vsub.f32 %v4867, %v5026
    %5028 = vmatpush.msra.mxu0 %v5027
    %v5029 = vand.u32 %v4866, 4294901760
    %v5030 = vsub.f32 %v4866, %v5029
    %5031 = vmatpush.msra.mxu0 %v5030
    %v5032 = vand.u32 %v4865, 4294901760
    %v5033 = vsub.f32 %v4865, %v5032
    %5034 = vmatpush.msra.mxu0 %v5033
    %v5035 = vand.u32 %v4864, 4294901760
    %v5036 = vsub.f32 %v4864, %v5035
    %5037 = vmatpush.msra.mxu0 %v5036
    %v5038 = vand.u32 %v4863, 4294901760
    %v5039 = vsub.f32 %v4863, %v5038
    %5040 = vmatpush.msra.mxu0 %v5039
    %v5041 = vand.u32 %v4862, 4294901760
    %v5042 = vsub.f32 %v4862, %v5041
    %5043 = vmatpush.msra.mxu0 %v5042
    %v5044 = vand.u32 %v4861, 4294901760
    %v5045 = vsub.f32 %v4861, %v5044
    %5046 = vmatpush.msra.mxu0 %v5045
    %v5047 = vand.u32 %v4860, 4294901760
    %v5048 = vsub.f32 %v4860, %v5047
    %5049 = vmatpush.msra.mxu0 %v5048
    %v5050 = vand.u32 %v4859, 4294901760
    %v5051 = vsub.f32 %v4859, %v5050
    %5052 = vmatpush.msra.mxu0 %v5051
    %v5053 = vand.u32 %v4858, 4294901760
    %v5054 = vsub.f32 %v4858, %v5053
    %5055 = vmatpush.msra.mxu0 %v5054
    %v5056 = vand.u32 %v4857, 4294901760
    %v5057 = vsub.f32 %v4857, %v5056
    %5058 = vmatpush.msra.mxu0 %v5057
    %v5059 = vand.u32 %v4856, 4294901760
    %v5060 = vsub.f32 %v4856, %v5059
    %5061 = vmatpush.msra.mxu0 %v5060
    %v5062 = vand.u32 %v27, 4294901760
    %v5063 = vsub.f32 %v27, %v5062
    %5064 = vmatmul.f32.gmra.mxu0 %v5063
    %v5065 = vpop.f32.mrf.mxu0
    %v5066 = vadd.f32 %v5012, %v5065
    %5067 = vdwg.mxu0
    %v5068 = vand.u32 %v4871, 4294901760
    %5069 = vmatpush.msra.mxu0 %v5068
    %v5070 = vand.u32 %v4870, 4294901760
    %5071 = vmatpush.msra.mxu0 %v5070
    %v5072 = vand.u32 %v4869, 4294901760
    %5073 = vmatpush.msra.mxu0 %v5072
    %v5074 = vand.u32 %v4868, 4294901760
    %5075 = vmatpush.msra.mxu0 %v5074
    %v5076 = vand.u32 %v4867, 4294901760
    %5077 = vmatpush.msra.mxu0 %v5076
    %v5078 = vand.u32 %v4866, 4294901760
    %5079 = vmatpush.msra.mxu0 %v5078
    %v5080 = vand.u32 %v4865, 4294901760
    %5081 = vmatpush.msra.mxu0 %v5080
    %v5082 = vand.u32 %v4864, 4294901760
    %5083 = vmatpush.msra.mxu0 %v5082
    %v5084 = vand.u32 %v4863, 4294901760
    %5085 = vmatpush.msra.mxu0 %v5084
    %v5086 = vand.u32 %v4862, 4294901760
    %5087 = vmatpush.msra.mxu0 %v5086
    %v5088 = vand.u32 %v4861, 4294901760
    %5089 = vmatpush.msra.mxu0 %v5088
    %v5090 = vand.u32 %v4860, 4294901760
    %5091 = vmatpush.msra.mxu0 %v5090
    %v5092 = vand.u32 %v4859, 4294901760
    %5093 = vmatpush.msra.mxu0 %v5092
    %v5094 = vand.u32 %v4858, 4294901760
    %5095 = vmatpush.msra.mxu0 %v5094
    %v5096 = vand.u32 %v4857, 4294901760
    %5097 = vmatpush.msra.mxu0 %v5096
    %v5098 = vand.u32 %v4856, 4294901760
    %5099 = vmatpush.msra.mxu0 %v5098
    %v5100 = vand.u32 %v27, 4294901760
    %v5101 = vsub.f32 %v27, %v5100
    %v5102 = vand.u32 %v5101, 4294901760
    %5103 = vmatmul.f32.gmra.mxu0 %v5102
    %v5104 = vpop.f32.mrf.mxu0
    %v5105 = vadd.f32 %v5066, %v5104
    %5106 = vdwg.mxu0
    %v5107 = vand.u32 %v4871, 4294901760
    %v5108 = vsub.f32 %v4871, %v5107
    %v5109 = vand.u32 %v5108, 4294901760
    %5110 = vmatpush.msra.mxu0 %v5109
    %v5111 = vand.u32 %v4870, 4294901760
    %v5112 = vsub.f32 %v4870, %v5111
    %v5113 = vand.u32 %v5112, 4294901760
    %5114 = vmatpush.msra.mxu0 %v5113
    %v5115 = vand.u32 %v4869, 4294901760
    %v5116 = vsub.f32 %v4869, %v5115
    %v5117 = vand.u32 %v5116, 4294901760
    %5118 = vmatpush.msra.mxu0 %v5117
    %v5119 = vand.u32 %v4868, 4294901760
    %v5120 = vsub.f32 %v4868, %v5119
    %v5121 = vand.u32 %v5120, 4294901760
    %5122 = vmatpush.msra.mxu0 %v5121
    %v5123 = vand.u32 %v4867, 4294901760
    %v5124 = vsub.f32 %v4867, %v5123
    %v5125 = vand.u32 %v5124, 4294901760
    %5126 = vmatpush.msra.mxu0 %v5125
    %v5127 = vand.u32 %v4866, 4294901760
    %v5128 = vsub.f32 %v4866, %v5127
    %v5129 = vand.u32 %v5128, 4294901760
    %5130 = vmatpush.msra.mxu0 %v5129
    %v5131 = vand.u32 %v4865, 4294901760
    %v5132 = vsub.f32 %v4865, %v5131
    %v5133 = vand.u32 %v5132, 4294901760
    %5134 = vmatpush.msra.mxu0 %v5133
    %v5135 = vand.u32 %v4864, 4294901760
    %v5136 = vsub.f32 %v4864, %v5135
    %v5137 = vand.u32 %v5136, 4294901760
    %5138 = vmatpush.msra.mxu0 %v5137
    %v5139 = vand.u32 %v4863, 4294901760
    %v5140 = vsub.f32 %v4863, %v5139
    %v5141 = vand.u32 %v5140, 4294901760
    %5142 = vmatpush.msra.mxu0 %v5141
    %v5143 = vand.u32 %v4862, 4294901760
    %v5144 = vsub.f32 %v4862, %v5143
    %v5145 = vand.u32 %v5144, 4294901760
    %5146 = vmatpush.msra.mxu0 %v5145
    %v5147 = vand.u32 %v4861, 4294901760
    %v5148 = vsub.f32 %v4861, %v5147
    %v5149 = vand.u32 %v5148, 4294901760
    %5150 = vmatpush.msra.mxu0 %v5149
    %v5151 = vand.u32 %v4860, 4294901760
    %v5152 = vsub.f32 %v4860, %v5151
    %v5153 = vand.u32 %v5152, 4294901760
    %5154 = vmatpush.msra.mxu0 %v5153
    %v5155 = vand.u32 %v4859, 4294901760
    %v5156 = vsub.f32 %v4859, %v5155
    %v5157 = vand.u32 %v5156, 4294901760
    %5158 = vmatpush.msra.mxu0 %v5157
    %v5159 = vand.u32 %v4858, 4294901760
    %v5160 = vsub.f32 %v4858, %v5159
    %v5161 = vand.u32 %v5160, 4294901760
    %5162 = vmatpush.msra.mxu0 %v5161
    %v5163 = vand.u32 %v4857, 4294901760
    %v5164 = vsub.f32 %v4857, %v5163
    %v5165 = vand.u32 %v5164, 4294901760
    %5166 = vmatpush.msra.mxu0 %v5165
    %v5167 = vand.u32 %v4856, 4294901760
    %v5168 = vsub.f32 %v4856, %v5167
    %v5169 = vand.u32 %v5168, 4294901760
    %5170 = vmatpush.msra.mxu0 %v5169
    %v5171 = vand.u32 %v27, 4294901760
    %5172 = vmatmul.f32.gmra.mxu0 %v5171
    %v5173 = vpop.f32.mrf.mxu0
    %v5174 = vadd.f32 %v5105, %v5173
    %5175 = vdwg.mxu0
    %v5176 = vand.u32 %v4871, 4294901760
    %5177 = vmatpush.msra.mxu0 %v5176
    %v5178 = vand.u32 %v4870, 4294901760
    %5179 = vmatpush.msra.mxu0 %v5178
    %v5180 = vand.u32 %v4869, 4294901760
    %5181 = vmatpush.msra.mxu0 %v5180
    %v5182 = vand.u32 %v4868, 4294901760
    %5183 = vmatpush.msra.mxu0 %v5182
    %v5184 = vand.u32 %v4867, 4294901760
    %5185 = vmatpush.msra.mxu0 %v5184
    %v5186 = vand.u32 %v4866, 4294901760
    %5187 = vmatpush.msra.mxu0 %v5186
    %v5188 = vand.u32 %v4865, 4294901760
    %5189 = vmatpush.msra.mxu0 %v5188
    %v5190 = vand.u32 %v4864, 4294901760
    %5191 = vmatpush.msra.mxu0 %v5190
    %v5192 = vand.u32 %v4863, 4294901760
    %5193 = vmatpush.msra.mxu0 %v5192
    %v5194 = vand.u32 %v4862, 4294901760
    %5195 = vmatpush.msra.mxu0 %v5194
    %v5196 = vand.u32 %v4861, 4294901760
    %5197 = vmatpush.msra.mxu0 %v5196
    %v5198 = vand.u32 %v4860, 4294901760
    %5199 = vmatpush.msra.mxu0 %v5198
    %v5200 = vand.u32 %v4859, 4294901760
    %5201 = vmatpush.msra.mxu0 %v5200
    %v5202 = vand.u32 %v4858, 4294901760
    %5203 = vmatpush.msra.mxu0 %v5202
    %v5204 = vand.u32 %v4857, 4294901760
    %5205 = vmatpush.msra.mxu0 %v5204
    %v5206 = vand.u32 %v4856, 4294901760
    %5207 = vmatpush.msra.mxu0 %v5206
    %v5208 = vand.u32 %v27, 4294901760
    %5209 = vmatmul.f32.gmra.mxu0 %v5208
    %v5210 = vpop.f32.mrf.mxu0
    %v5211 = vadd.f32 %v5174, %v5210
    %5212 = vdwg.mxu0
    %v5213 = vand.u32 2147483647, %v5211
    %vm5214 = vcmp.le.f32.partialorder %v5213, 0.7853982
    %vm5215 = vcmp.lt.s32.totalorder %v5211, 0
    %v5216 = vand.u32 %v5211, 2139095040
    %v5217 = vshrl.u32 %v5216, 23
    %v5218 = vsub.s32 %v5217, 127
    %v5219 = vand.u32 2147483647, %v5211
    %v5220 = vand.u32 %v5219, 8388607
    %v5221 = vor.u32 %v5220, 8388608
    %v5222 = vsub.s32 0, %v5221
    %v5223 = vadd.s32 %v5218, 1
    %vm5224 = vcmp.gt.s32.totalorder %v5223, 0
    %v5225 = vsel %vm5224, %v5223, 0
    %v5226 = vshrl.u32 %v5225, 5
    %v5227 = vand.u32 %v5225, 31
    %v5228 = vsub.s32 32, %v5227
    %v5229 = vshrl.u32 683565275, %v5228
    %v5230 = vshll.u32 683565275, %v5227
    %v5231 = vshrl.u32 2475754826, %v5228
    %v5232 = vor.u32 %v5230, %v5231
    %v5233 = vshll.u32 2475754826, %v5227
    %v5234 = vshrl.u32 2131351028, %v5228
    %v5235 = vor.u32 %v5233, %v5234
    %v5236 = vshll.u32 2131351028, %v5227
    %v5237 = vshrl.u32 2102212464, %v5228
    %v5238 = vor.u32 %v5236, %v5237
    %v5239 = vshll.u32 2102212464, %v5227
    %v5240 = vshrl.u32 920167782, %v5228
    %v5241 = vor.u32 %v5239, %v5240
    %v5242 = vshll.u32 920167782, %v5227
    %v5243 = vshrl.u32 1326507024, %v5228
    %v5244 = vor.u32 %v5242, %v5243
    %vm5245 = vcmp.lt.s32.totalorder %v5226, 1
    %vm5246 = vcmp.lt.s32.totalorder %v5226, 2
    %vm5247 = vcmp.lt.s32.totalorder %v5226, 3
    %vm5248 = vcmp.lt.s32.totalorder %v5226, 4
    %v5249 = vsel %vm5245, %v5229, %v5232
    %v5250 = vsel %vm5248, %v5238, 2102212464
    %v5251 = vsel %vm5247, %v5235, %v5250
    %v5252 = vsel %vm5246, %v5249, %v5251
    %v5253 = vsel %vm5245, %v5232, %v5235
    %v5254 = vsel %vm5248, %v5241, 920167782
    %v5255 = vsel %vm5247, %v5238, %v5254
    %v5256 = vsel %vm5246, %v5253, %v5255
    %v5257 = vsel %vm5245, %v5235, %v5238
    %v5258 = vsel %vm5248, %v5244, 1326507024
    %v5259 = vsel %vm5247, %v5241, %v5258
    %v5260 = vsel %vm5246, %v5257, %v5259
    %v5261 = vshll.u32 %v5221, 8
    %v5262 = vand.u32 %v5261, 65535
    %v5263 = vshrl.u32 %v5261, 16
    %v5264 = vand.u32 %v5260, 65535
    %v5265 = vshrl.u32 %v5260, 16
    %v5266 = vmul.u32 %v5262, %v5264
    %v5267 = vmul.u32 %v5262, %v5265
    %v5268 = vmul.u32 %v5263, %v5264
    %v5269 = vmul.u32 %v5263, %v5265
    %v5270 = vshll.u32 %v5267, 16
    %v5271 = vshrl.u32 %v5267, 16
    %v5272 = vshll.u32 %v5268, 16
    %v5273 = vshrl.u32 %v5268, 16
    %vm5274 = vc.u32 %v5266, %v5270
    %v5275 = vsel %vm5274, 1, 0
    %v5276 = vadd.s32 %v5266, %v5270
    %v5277 = vadd.s32 %v5269, %v5275
    %vm5278 = vc.u32 %v5276, %v5272
    %v5279 = vsel %vm5278, 1, 0
    %v5280 = vadd.s32 %v5276, %v5272
    %v5281 = vadd.s32 %v5277, %v5279
    %v5282 = vadd.s32 %v5281, %v5271
    %v5283 = vadd.s32 %v5282, %v5273
    %v5284 = vand.u32 %v5261, 65535
    %v5285 = vshrl.u32 %v5261, 16
    %v5286 = vand.u32 %v5256, 65535
    %v5287 = vshrl.u32 %v5256, 16
    %v5288 = vmul.u32 %v5284, %v5286
    %v5289 = vmul.u32 %v5284, %v5287
    %v5290 = vmul.u32 %v5285, %v5286
    %v5291 = vmul.u32 %v5285, %v5287
    %v5292 = vshll.u32 %v5289, 16
    %v5293 = vshrl.u32 %v5289, 16
    %v5294 = vshll.u32 %v5290, 16
    %v5295 = vshrl.u32 %v5290, 16
    %vm5296 = vc.u32 %v5288, %v5292
    %v5297 = vsel %vm5296, 1, 0
    %v5298 = vadd.s32 %v5288, %v5292
    %v5299 = vadd.s32 %v5291, %v5297
    %vm5300 = vc.u32 %v5298, %v5294
    %v5301 = vsel %vm5300, 1, 0
    %v5302 = vadd.s32 %v5298, %v5294
    %v5303 = vadd.s32 %v5299, %v5301
    %v5304 = vadd.s32 %v5303, %v5293
    %v5305 = vadd.s32 %v5304, %v5295
    %v5306 = vmul.u32 %v5261, %v5252
    %v5307 = vadd.s32 %v5283, %v5302
    %vm5308 = vc.u32 %v5283, %v5302
    %v5309 = vadd.s32 %v5305, 1
    %v5310 = vsel %vm5308, %v5309, %v5305
    %v5311 = vadd.s32 %v5306, %v5310
    %v5312 = vadd.s32 %v5311, 536870912
    %v5313 = vshrl.u32 %v5312, 30
    %v5314 = vshll.u32 %v5313, 30
    %v5315 = vsub.s32 %v5311, %v5314
    %vm5316 = vcmp.lt.s32.totalorder %v5315, 0
    %v5317 = vsub.s32 0, %v5315
    %v5318 = vsel %vm5316, %v5317, %v5315
    %v5319 = vclz %v5318
    %v5320 = vsub.s32 %v5319, 2
    %vm5321 = vcmp.gt.s32.totalorder 0, %v5320
    %v5322 = vsel %vm5321, 0, %v5320
    %v5323 = vsub.s32 32, %v5322
    %v5324 = vshll.u32 %v5315, %v5322
    %v5325 = vshrl.u32 %v5307, %v5323
    %v5326 = vor.u32 %v5324, %v5325
    %v5327 = vsub.s32 4294967266, %v5322
    %v5328 = vadd.s32 %v5327, 127
    %v5329 = vshll.u32 %v5328, 23
    %v5330 = vor.u32 4788187, %v5329
    %v5331 = vand.u32 2147483647, %v5330
    %v5333 = vcvt.s32.f32 %v5326
    %v5334 = vmul.f32 %v5333, %v5331
    %v5335 = vxor.u32 %v5334, 2147483648
    %v5336 = vsel %vm5215, %v5335, %v5334
    %v5337 = vsub.s32 4, %v5313
    %v5338 = vsel %vm5215, %v5337, %v5313
    %v5339 = vsel %vm5214, %v5211, %v5336
    %v5340 = vsel %vm5214, 0, %v5338
    %v5341 = vmul.f32 %v5339, %v5339
    %v5342 = vmul.f32 %v5341, -0.001358992
    %v5343 = vadd.f32 %v5342, 0.041655596
    %v5344 = vmul.f32 %v5341, %v5343
    %v5345 = vadd.f32 %v5344, -0.4999988
    %v5346 = vmul.f32 %v5341, %v5345
    %v5347 = vadd.f32 1.0, %v5346
    %v5348 = vmul.f32 %v5339, %v5339
    %v5349 = vmul.f32 %v5348, -0.00019511016
    %v5350 = vadd.f32 %v5349, 0.008332121
    %v5351 = vmul.f32 %v5348, %v5350
    %v5352 = vadd.f32 %v5351, -0.16666654
    %v5353 = vmul.f32 %v5348, %v5352
    %v5354 = vadd.f32 %v5353, 1.0
    %v5355 = vmul.f32 %v5354, %v5339
    %vm5356 = vweird.f32 %v5211
    %v5357 = vadd.s32 %v5340, 3
    %v5358 = vand.u32 %v5357, 3
    %vm5359 = vcmp.lt.s32.totalorder %v5358, 2
    %vm5360 = vcmp.eq.s32.totalorder %v5358, 0
    %v5361 = vxor.u32 %v5355, 2147483648
    %v5362 = vsel %vm5360, %v5347, %v5361
    %vm5363 = vcmp.eq.s32.totalorder %v5358, 2
    %v5364 = vxor.u32 %v5347, 2147483648
    %v5365 = vsel %vm5363, %v5364, %v5355
    %v5366 = vsel %vm5359, %v5362, %v5365
    %v5367 = vsel %vm5356, nan, %v5366
    %v5369 = vrot.slane %v5367, 1
    %v5370 = vrot.slane %v5367, 2
    %v5371 = vrot.slane %v5367, 3
    %v5372 = vrot.slane %v5367, 4
    %v5373 = vrot.slane %v5367, 5
    %v5374 = vrot.slane %v5367, 6
    %v5375 = vrot.slane %v5367, 7
    %5383 = vst.msk [vmem:[#allocation4 + $0x9] sm:$0x1] %vm558, %v5367
    %5384 = vst.msk [vmem:[#allocation4 + $0x19] sm:$0x1] %vm558, %v5369
    %5385 = vst.msk [vmem:[#allocation4 + $0x29] sm:$0x1] %vm558, %v5370
    %5386 = vst.msk [vmem:[#allocation4 + $0x39] sm:$0x1] %vm558, %v5371
    %5387 = vst.msk [vmem:[#allocation4 + $0x49] sm:$0x1] %vm558, %v5372
    %5388 = vst.msk [vmem:[#allocation4 + $0x59] sm:$0x1] %vm558, %v5373
    %5389 = vst.msk [vmem:[#allocation4 + $0x69] sm:$0x1] %vm558, %v5374
    %5390 = vst.msk [vmem:[#allocation4 + $0x79] sm:$0x1] %vm558, %v5375
    %s5391 = scalar_lea.vmem [#allocation2], 1280
    %v5392 = vld [vmem:[%s5391] sm:$0xff]
    %v5393 = vld [vmem:[%s5391 + $0x8] sm:$0xff]
    %v5394 = vld [vmem:[%s5391 + $0x10] sm:$0xff]
    %v5395 = vld [vmem:[%s5391 + $0x18] sm:$0xff]
    %v5396 = vld [vmem:[%s5391 + $0x20] sm:$0xff]
    %v5397 = vld [vmem:[%s5391 + $0x28] sm:$0xff]
    %v5398 = vld [vmem:[%s5391 + $0x30] sm:$0xff]
    %v5399 = vld [vmem:[%s5391 + $0x38] sm:$0xff]
    %v5400 = vld [vmem:[%s5391 + $0x40] sm:$0xff]
    %v5401 = vld [vmem:[%s5391 + $0x48] sm:$0xff]
    %v5402 = vld [vmem:[%s5391 + $0x50] sm:$0xff]
    %v5403 = vld [vmem:[%s5391 + $0x58] sm:$0xff]
    %v5404 = vld [vmem:[%s5391 + $0x60] sm:$0xff]
    %v5405 = vld [vmem:[%s5391 + $0x68] sm:$0xff]
    %v5406 = vld [vmem:[%s5391 + $0x70] sm:$0xff]
    %v5407 = vld [vmem:[%s5391 + $0x78] sm:$0xff]
    %v5408 = vand.u32 %v5407, 4294901760
    %5409 = vmatpush.msra.mxu0 %v5408
    %v5410 = vand.u32 %v5406, 4294901760
    %5411 = vmatpush.msra.mxu0 %v5410
    %v5412 = vand.u32 %v5405, 4294901760
    %5413 = vmatpush.msra.mxu0 %v5412
    %v5414 = vand.u32 %v5404, 4294901760
    %5415 = vmatpush.msra.mxu0 %v5414
    %v5416 = vand.u32 %v5403, 4294901760
    %5417 = vmatpush.msra.mxu0 %v5416
    %v5418 = vand.u32 %v5402, 4294901760
    %5419 = vmatpush.msra.mxu0 %v5418
    %v5420 = vand.u32 %v5401, 4294901760
    %5421 = vmatpush.msra.mxu0 %v5420
    %v5422 = vand.u32 %v5400, 4294901760
    %5423 = vmatpush.msra.mxu0 %v5422
    %v5424 = vand.u32 %v5399, 4294901760
    %5425 = vmatpush.msra.mxu0 %v5424
    %v5426 = vand.u32 %v5398, 4294901760
    %5427 = vmatpush.msra.mxu0 %v5426
    %v5428 = vand.u32 %v5397, 4294901760
    %5429 = vmatpush.msra.mxu0 %v5428
    %v5430 = vand.u32 %v5396, 4294901760
    %5431 = vmatpush.msra.mxu0 %v5430
    %v5432 = vand.u32 %v5395, 4294901760
    %5433 = vmatpush.msra.mxu0 %v5432
    %v5434 = vand.u32 %v5394, 4294901760
    %5435 = vmatpush.msra.mxu0 %v5434
    %v5436 = vand.u32 %v5393, 4294901760
    %5437 = vmatpush.msra.mxu0 %v5436
    %v5438 = vand.u32 %v5392, 4294901760
    %5439 = vmatpush.msra.mxu0 %v5438
    %v5440 = vand.u32 %v27, 4294901760
    %v5441 = vsub.f32 %v27, %v5440
    %v5442 = vand.u32 %v5441, 4294901760
    %v5443 = vsub.f32 %v5441, %v5442
    %v5444 = vand.u32 %v5443, 4294901760
    %5445 = vmatmul.f32.gmra.mxu0 %v5444
    %v5446 = vpop.f32.mrf.mxu0
    %v5447 = vadd.f32 0.0, %v5446
    %5448 = vdwg.mxu0
    %v5449 = vand.u32 %v5407, 4294901760
    %v5450 = vsub.f32 %v5407, %v5449
    %v5451 = vand.u32 %v5450, 4294901760
    %v5452 = vsub.f32 %v5450, %v5451
    %v5453 = vand.u32 %v5452, 4294901760
    %5454 = vmatpush.msra.mxu0 %v5453
    %v5455 = vand.u32 %v5406, 4294901760
    %v5456 = vsub.f32 %v5406, %v5455
    %v5457 = vand.u32 %v5456, 4294901760
    %v5458 = vsub.f32 %v5456, %v5457
    %v5459 = vand.u32 %v5458, 4294901760
    %5460 = vmatpush.msra.mxu0 %v5459
    %v5461 = vand.u32 %v5405, 4294901760
    %v5462 = vsub.f32 %v5405, %v5461
    %v5463 = vand.u32 %v5462, 4294901760
    %v5464 = vsub.f32 %v5462, %v5463
    %v5465 = vand.u32 %v5464, 4294901760
    %5466 = vmatpush.msra.mxu0 %v5465
    %v5467 = vand.u32 %v5404, 4294901760
    %v5468 = vsub.f32 %v5404, %v5467
    %v5469 = vand.u32 %v5468, 4294901760
    %v5470 = vsub.f32 %v5468, %v5469
    %v5471 = vand.u32 %v5470, 4294901760
    %5472 = vmatpush.msra.mxu0 %v5471
    %v5473 = vand.u32 %v5403, 4294901760
    %v5474 = vsub.f32 %v5403, %v5473
    %v5475 = vand.u32 %v5474, 4294901760
    %v5476 = vsub.f32 %v5474, %v5475
    %v5477 = vand.u32 %v5476, 4294901760
    %5478 = vmatpush.msra.mxu0 %v5477
    %v5479 = vand.u32 %v5402, 4294901760
    %v5480 = vsub.f32 %v5402, %v5479
    %v5481 = vand.u32 %v5480, 4294901760
    %v5482 = vsub.f32 %v5480, %v5481
    %v5483 = vand.u32 %v5482, 4294901760
    %5484 = vmatpush.msra.mxu0 %v5483
    %v5485 = vand.u32 %v5401, 4294901760
    %v5486 = vsub.f32 %v5401, %v5485
    %v5487 = vand.u32 %v5486, 4294901760
    %v5488 = vsub.f32 %v5486, %v5487
    %v5489 = vand.u32 %v5488, 4294901760
    %5490 = vmatpush.msra.mxu0 %v5489
    %v5491 = vand.u32 %v5400, 4294901760
    %v5492 = vsub.f32 %v5400, %v5491
    %v5493 = vand.u32 %v5492, 4294901760
    %v5494 = vsub.f32 %v5492, %v5493
    %v5495 = vand.u32 %v5494, 4294901760
    %5496 = vmatpush.msra.mxu0 %v5495
    %v5497 = vand.u32 %v5399, 4294901760
    %v5498 = vsub.f32 %v5399, %v5497
    %v5499 = vand.u32 %v5498, 4294901760
    %v5500 = vsub.f32 %v5498, %v5499
    %v5501 = vand.u32 %v5500, 4294901760
    %5502 = vmatpush.msra.mxu0 %v5501
    %v5503 = vand.u32 %v5398, 4294901760
    %v5504 = vsub.f32 %v5398, %v5503
    %v5505 = vand.u32 %v5504, 4294901760
    %v5506 = vsub.f32 %v5504, %v5505
    %v5507 = vand.u32 %v5506, 4294901760
    %5508 = vmatpush.msra.mxu0 %v5507
    %v5509 = vand.u32 %v5397, 4294901760
    %v5510 = vsub.f32 %v5397, %v5509
    %v5511 = vand.u32 %v5510, 4294901760
    %v5512 = vsub.f32 %v5510, %v5511
    %v5513 = vand.u32 %v5512, 4294901760
    %5514 = vmatpush.msra.mxu0 %v5513
    %v5515 = vand.u32 %v5396, 4294901760
    %v5516 = vsub.f32 %v5396, %v5515
    %v5517 = vand.u32 %v5516, 4294901760
    %v5518 = vsub.f32 %v5516, %v5517
    %v5519 = vand.u32 %v5518, 4294901760
    %5520 = vmatpush.msra.mxu0 %v5519
    %v5521 = vand.u32 %v5395, 4294901760
    %v5522 = vsub.f32 %v5395, %v5521
    %v5523 = vand.u32 %v5522, 4294901760
    %v5524 = vsub.f32 %v5522, %v5523
    %v5525 = vand.u32 %v5524, 4294901760
    %5526 = vmatpush.msra.mxu0 %v5525
    %v5527 = vand.u32 %v5394, 4294901760
    %v5528 = vsub.f32 %v5394, %v5527
    %v5529 = vand.u32 %v5528, 4294901760
    %v5530 = vsub.f32 %v5528, %v5529
    %v5531 = vand.u32 %v5530, 4294901760
    %5532 = vmatpush.msra.mxu0 %v5531
    %v5533 = vand.u32 %v5393, 4294901760
    %v5534 = vsub.f32 %v5393, %v5533
    %v5535 = vand.u32 %v5534, 4294901760
    %v5536 = vsub.f32 %v5534, %v5535
    %v5537 = vand.u32 %v5536, 4294901760
    %5538 = vmatpush.msra.mxu0 %v5537
    %v5539 = vand.u32 %v5392, 4294901760
    %v5540 = vsub.f32 %v5392, %v5539
    %v5541 = vand.u32 %v5540, 4294901760
    %v5542 = vsub.f32 %v5540, %v5541
    %v5543 = vand.u32 %v5542, 4294901760
    %5544 = vmatpush.msra.mxu0 %v5543
    %v5545 = vand.u32 %v27, 4294901760
    %5546 = vmatmul.f32.gmra.mxu0 %v5545
    %v5547 = vpop.f32.mrf.mxu0
    %v5548 = vadd.f32 %v5447, %v5547
    %5549 = vdwg.mxu0
    %v5550 = vand.u32 %v5407, 4294901760
    %v5551 = vsub.f32 %v5407, %v5550
    %5552 = vmatpush.msra.mxu0 %v5551
    %v5553 = vand.u32 %v5406, 4294901760
    %v5554 = vsub.f32 %v5406, %v5553
    %5555 = vmatpush.msra.mxu0 %v5554
    %v5556 = vand.u32 %v5405, 4294901760
    %v5557 = vsub.f32 %v5405, %v5556
    %5558 = vmatpush.msra.mxu0 %v5557
    %v5559 = vand.u32 %v5404, 4294901760
    %v5560 = vsub.f32 %v5404, %v5559
    %5561 = vmatpush.msra.mxu0 %v5560
    %v5562 = vand.u32 %v5403, 4294901760
    %v5563 = vsub.f32 %v5403, %v5562
    %5564 = vmatpush.msra.mxu0 %v5563
    %v5565 = vand.u32 %v5402, 4294901760
    %v5566 = vsub.f32 %v5402, %v5565
    %5567 = vmatpush.msra.mxu0 %v5566
    %v5568 = vand.u32 %v5401, 4294901760
    %v5569 = vsub.f32 %v5401, %v5568
    %5570 = vmatpush.msra.mxu0 %v5569
    %v5571 = vand.u32 %v5400, 4294901760
    %v5572 = vsub.f32 %v5400, %v5571
    %5573 = vmatpush.msra.mxu0 %v5572
    %v5574 = vand.u32 %v5399, 4294901760
    %v5575 = vsub.f32 %v5399, %v5574
    %5576 = vmatpush.msra.mxu0 %v5575
    %v5577 = vand.u32 %v5398, 4294901760
    %v5578 = vsub.f32 %v5398, %v5577
    %5579 = vmatpush.msra.mxu0 %v5578
    %v5580 = vand.u32 %v5397, 4294901760
    %v5581 = vsub.f32 %v5397, %v5580
    %5582 = vmatpush.msra.mxu0 %v5581
    %v5583 = vand.u32 %v5396, 4294901760
    %v5584 = vsub.f32 %v5396, %v5583
    %5585 = vmatpush.msra.mxu0 %v5584
    %v5586 = vand.u32 %v5395, 4294901760
    %v5587 = vsub.f32 %v5395, %v5586
    %5588 = vmatpush.msra.mxu0 %v5587
    %v5589 = vand.u32 %v5394, 4294901760
    %v5590 = vsub.f32 %v5394, %v5589
    %5591 = vmatpush.msra.mxu0 %v5590
    %v5592 = vand.u32 %v5393, 4294901760
    %v5593 = vsub.f32 %v5393, %v5592
    %5594 = vmatpush.msra.mxu0 %v5593
    %v5595 = vand.u32 %v5392, 4294901760
    %v5596 = vsub.f32 %v5392, %v5595
    %5597 = vmatpush.msra.mxu0 %v5596
    %v5598 = vand.u32 %v27, 4294901760
    %v5599 = vsub.f32 %v27, %v5598
    %5600 = vmatmul.f32.gmra.mxu0 %v5599
    %v5601 = vpop.f32.mrf.mxu0
    %v5602 = vadd.f32 %v5548, %v5601
    %5603 = vdwg.mxu0
    %v5604 = vand.u32 %v5407, 4294901760
    %5605 = vmatpush.msra.mxu0 %v5604
    %v5606 = vand.u32 %v5406, 4294901760
    %5607 = vmatpush.msra.mxu0 %v5606
    %v5608 = vand.u32 %v5405, 4294901760
    %5609 = vmatpush.msra.mxu0 %v5608
    %v5610 = vand.u32 %v5404, 4294901760
    %5611 = vmatpush.msra.mxu0 %v5610
    %v5612 = vand.u32 %v5403, 4294901760
    %5613 = vmatpush.msra.mxu0 %v5612
    %v5614 = vand.u32 %v5402, 4294901760
    %5615 = vmatpush.msra.mxu0 %v5614
    %v5616 = vand.u32 %v5401, 4294901760
    %5617 = vmatpush.msra.mxu0 %v5616
    %v5618 = vand.u32 %v5400, 4294901760
    %5619 = vmatpush.msra.mxu0 %v5618
    %v5620 = vand.u32 %v5399, 4294901760
    %5621 = vmatpush.msra.mxu0 %v5620
    %v5622 = vand.u32 %v5398, 4294901760
    %5623 = vmatpush.msra.mxu0 %v5622
    %v5624 = vand.u32 %v5397, 4294901760
    %5625 = vmatpush.msra.mxu0 %v5624
    %v5626 = vand.u32 %v5396, 4294901760
    %5627 = vmatpush.msra.mxu0 %v5626
    %v5628 = vand.u32 %v5395, 4294901760
    %5629 = vmatpush.msra.mxu0 %v5628
    %v5630 = vand.u32 %v5394, 4294901760
    %5631 = vmatpush.msra.mxu0 %v5630
    %v5632 = vand.u32 %v5393, 4294901760
    %5633 = vmatpush.msra.mxu0 %v5632
    %v5634 = vand.u32 %v5392, 4294901760
    %5635 = vmatpush.msra.mxu0 %v5634
    %v5636 = vand.u32 %v27, 4294901760
    %v5637 = vsub.f32 %v27, %v5636
    %v5638 = vand.u32 %v5637, 4294901760
    %5639 = vmatmul.f32.gmra.mxu0 %v5638
    %v5640 = vpop.f32.mrf.mxu0
    %v5641 = vadd.f32 %v5602, %v5640
    %5642 = vdwg.mxu0
    %v5643 = vand.u32 %v5407, 4294901760
    %v5644 = vsub.f32 %v5407, %v5643
    %v5645 = vand.u32 %v5644, 4294901760
    %5646 = vmatpush.msra.mxu0 %v5645
    %v5647 = vand.u32 %v5406, 4294901760
    %v5648 = vsub.f32 %v5406, %v5647
    %v5649 = vand.u32 %v5648, 4294901760
    %5650 = vmatpush.msra.mxu0 %v5649
    %v5651 = vand.u32 %v5405, 4294901760
    %v5652 = vsub.f32 %v5405, %v5651
    %v5653 = vand.u32 %v5652, 4294901760
    %5654 = vmatpush.msra.mxu0 %v5653
    %v5655 = vand.u32 %v5404, 4294901760
    %v5656 = vsub.f32 %v5404, %v5655
    %v5657 = vand.u32 %v5656, 4294901760
    %5658 = vmatpush.msra.mxu0 %v5657
    %v5659 = vand.u32 %v5403, 4294901760
    %v5660 = vsub.f32 %v5403, %v5659
    %v5661 = vand.u32 %v5660, 4294901760
    %5662 = vmatpush.msra.mxu0 %v5661
    %v5663 = vand.u32 %v5402, 4294901760
    %v5664 = vsub.f32 %v5402, %v5663
    %v5665 = vand.u32 %v5664, 4294901760
    %5666 = vmatpush.msra.mxu0 %v5665
    %v5667 = vand.u32 %v5401, 4294901760
    %v5668 = vsub.f32 %v5401, %v5667
    %v5669 = vand.u32 %v5668, 4294901760
    %5670 = vmatpush.msra.mxu0 %v5669
    %v5671 = vand.u32 %v5400, 4294901760
    %v5672 = vsub.f32 %v5400, %v5671
    %v5673 = vand.u32 %v5672, 4294901760
    %5674 = vmatpush.msra.mxu0 %v5673
    %v5675 = vand.u32 %v5399, 4294901760
    %v5676 = vsub.f32 %v5399, %v5675
    %v5677 = vand.u32 %v5676, 4294901760
    %5678 = vmatpush.msra.mxu0 %v5677
    %v5679 = vand.u32 %v5398, 4294901760
    %v5680 = vsub.f32 %v5398, %v5679
    %v5681 = vand.u32 %v5680, 4294901760
    %5682 = vmatpush.msra.mxu0 %v5681
    %v5683 = vand.u32 %v5397, 4294901760
    %v5684 = vsub.f32 %v5397, %v5683
    %v5685 = vand.u32 %v5684, 4294901760
    %5686 = vmatpush.msra.mxu0 %v5685
    %v5687 = vand.u32 %v5396, 4294901760
    %v5688 = vsub.f32 %v5396, %v5687
    %v5689 = vand.u32 %v5688, 4294901760
    %5690 = vmatpush.msra.mxu0 %v5689
    %v5691 = vand.u32 %v5395, 4294901760
    %v5692 = vsub.f32 %v5395, %v5691
    %v5693 = vand.u32 %v5692, 4294901760
    %5694 = vmatpush.msra.mxu0 %v5693
    %v5695 = vand.u32 %v5394, 4294901760
    %v5696 = vsub.f32 %v5394, %v5695
    %v5697 = vand.u32 %v5696, 4294901760
    %5698 = vmatpush.msra.mxu0 %v5697
    %v5699 = vand.u32 %v5393, 4294901760
    %v5700 = vsub.f32 %v5393, %v5699
    %v5701 = vand.u32 %v5700, 4294901760
    %5702 = vmatpush.msra.mxu0 %v5701
    %v5703 = vand.u32 %v5392, 4294901760
    %v5704 = vsub.f32 %v5392, %v5703
    %v5705 = vand.u32 %v5704, 4294901760
    %5706 = vmatpush.msra.mxu0 %v5705
    %v5707 = vand.u32 %v27, 4294901760
    %5708 = vmatmul.f32.gmra.mxu0 %v5707
    %v5709 = vpop.f32.mrf.mxu0
    %v5710 = vadd.f32 %v5641, %v5709
    %5711 = vdwg.mxu0
    %v5712 = vand.u32 %v5407, 4294901760
    %5713 = vmatpush.msra.mxu0 %v5712
    %v5714 = vand.u32 %v5406, 4294901760
    %5715 = vmatpush.msra.mxu0 %v5714
    %v5716 = vand.u32 %v5405, 4294901760
    %5717 = vmatpush.msra.mxu0 %v5716
    %v5718 = vand.u32 %v5404, 4294901760
    %5719 = vmatpush.msra.mxu0 %v5718
    %v5720 = vand.u32 %v5403, 4294901760
    %5721 = vmatpush.msra.mxu0 %v5720
    %v5722 = vand.u32 %v5402, 4294901760
    %5723 = vmatpush.msra.mxu0 %v5722
    %v5724 = vand.u32 %v5401, 4294901760
    %5725 = vmatpush.msra.mxu0 %v5724
    %v5726 = vand.u32 %v5400, 4294901760
    %5727 = vmatpush.msra.mxu0 %v5726
    %v5728 = vand.u32 %v5399, 4294901760
    %5729 = vmatpush.msra.mxu0 %v5728
    %v5730 = vand.u32 %v5398, 4294901760
    %5731 = vmatpush.msra.mxu0 %v5730
    %v5732 = vand.u32 %v5397, 4294901760
    %5733 = vmatpush.msra.mxu0 %v5732
    %v5734 = vand.u32 %v5396, 4294901760
    %5735 = vmatpush.msra.mxu0 %v5734
    %v5736 = vand.u32 %v5395, 4294901760
    %5737 = vmatpush.msra.mxu0 %v5736
    %v5738 = vand.u32 %v5394, 4294901760
    %5739 = vmatpush.msra.mxu0 %v5738
    %v5740 = vand.u32 %v5393, 4294901760
    %5741 = vmatpush.msra.mxu0 %v5740
    %v5742 = vand.u32 %v5392, 4294901760
    %5743 = vmatpush.msra.mxu0 %v5742
    %v5744 = vand.u32 %v27, 4294901760
    %5745 = vmatmul.f32.gmra.mxu0 %v5744
    %v5746 = vpop.f32.mrf.mxu0
    %v5747 = vadd.f32 %v5710, %v5746
    %5748 = vdwg.mxu0
    %v5749 = vand.u32 2147483647, %v5747
    %vm5750 = vcmp.le.f32.partialorder %v5749, 0.7853982
    %vm5751 = vcmp.lt.s32.totalorder %v5747, 0
    %v5752 = vand.u32 %v5747, 2139095040
    %v5753 = vshrl.u32 %v5752, 23
    %v5754 = vsub.s32 %v5753, 127
    %v5755 = vand.u32 2147483647, %v5747
    %v5756 = vand.u32 %v5755, 8388607
    %v5757 = vor.u32 %v5756, 8388608
    %v5758 = vsub.s32 0, %v5757
    %v5759 = vadd.s32 %v5754, 1
    %vm5760 = vcmp.gt.s32.totalorder %v5759, 0
    %v5761 = vsel %vm5760, %v5759, 0
    %v5762 = vshrl.u32 %v5761, 5
    %v5763 = vand.u32 %v5761, 31
    %v5764 = vsub.s32 32, %v5763
    %v5765 = vshrl.u32 683565275, %v5764
    %v5766 = vshll.u32 683565275, %v5763
    %v5767 = vshrl.u32 2475754826, %v5764
    %v5768 = vor.u32 %v5766, %v5767
    %v5769 = vshll.u32 2475754826, %v5763
    %v5770 = vshrl.u32 2131351028, %v5764
    %v5771 = vor.u32 %v5769, %v5770
    %v5772 = vshll.u32 2131351028, %v5763
    %v5773 = vshrl.u32 2102212464, %v5764
    %v5774 = vor.u32 %v5772, %v5773
    %v5775 = vshll.u32 2102212464, %v5763
    %v5776 = vshrl.u32 920167782, %v5764
    %v5777 = vor.u32 %v5775, %v5776
    %v5778 = vshll.u32 920167782, %v5763
    %v5779 = vshrl.u32 1326507024, %v5764
    %v5780 = vor.u32 %v5778, %v5779
    %vm5781 = vcmp.lt.s32.totalorder %v5762, 1
    %vm5782 = vcmp.lt.s32.totalorder %v5762, 2
    %vm5783 = vcmp.lt.s32.totalorder %v5762, 3
    %vm5784 = vcmp.lt.s32.totalorder %v5762, 4
    %v5785 = vsel %vm5781, %v5765, %v5768
    %v5786 = vsel %vm5784, %v5774, 2102212464
    %v5787 = vsel %vm5783, %v5771, %v5786
    %v5788 = vsel %vm5782, %v5785, %v5787
    %v5789 = vsel %vm5781, %v5768, %v5771
    %v5790 = vsel %vm5784, %v5777, 920167782
    %v5791 = vsel %vm5783, %v5774, %v5790
    %v5792 = vsel %vm5782, %v5789, %v5791
    %v5793 = vsel %vm5781, %v5771, %v5774
    %v5794 = vsel %vm5784, %v5780, 1326507024
    %v5795 = vsel %vm5783, %v5777, %v5794
    %v5796 = vsel %vm5782, %v5793, %v5795
    %v5797 = vshll.u32 %v5757, 8
    %v5798 = vand.u32 %v5797, 65535
    %v5799 = vshrl.u32 %v5797, 16
    %v5800 = vand.u32 %v5796, 65535
    %v5801 = vshrl.u32 %v5796, 16
    %v5802 = vmul.u32 %v5798, %v5800
    %v5803 = vmul.u32 %v5798, %v5801
    %v5804 = vmul.u32 %v5799, %v5800
    %v5805 = vmul.u32 %v5799, %v5801
    %v5806 = vshll.u32 %v5803, 16
    %v5807 = vshrl.u32 %v5803, 16
    %v5808 = vshll.u32 %v5804, 16
    %v5809 = vshrl.u32 %v5804, 16
    %vm5810 = vc.u32 %v5802, %v5806
    %v5811 = vsel %vm5810, 1, 0
    %v5812 = vadd.s32 %v5802, %v5806
    %v5813 = vadd.s32 %v5805, %v5811
    %vm5814 = vc.u32 %v5812, %v5808
    %v5815 = vsel %vm5814, 1, 0
    %v5816 = vadd.s32 %v5812, %v5808
    %v5817 = vadd.s32 %v5813, %v5815
    %v5818 = vadd.s32 %v5817, %v5807
    %v5819 = vadd.s32 %v5818, %v5809
    %v5820 = vand.u32 %v5797, 65535
    %v5821 = vshrl.u32 %v5797, 16
    %v5822 = vand.u32 %v5792, 65535
    %v5823 = vshrl.u32 %v5792, 16
    %v5824 = vmul.u32 %v5820, %v5822
    %v5825 = vmul.u32 %v5820, %v5823
    %v5826 = vmul.u32 %v5821, %v5822
    %v5827 = vmul.u32 %v5821, %v5823
    %v5828 = vshll.u32 %v5825, 16
    %v5829 = vshrl.u32 %v5825, 16
    %v5830 = vshll.u32 %v5826, 16
    %v5831 = vshrl.u32 %v5826, 16
    %vm5832 = vc.u32 %v5824, %v5828
    %v5833 = vsel %vm5832, 1, 0
    %v5834 = vadd.s32 %v5824, %v5828
    %v5835 = vadd.s32 %v5827, %v5833
    %vm5836 = vc.u32 %v5834, %v5830
    %v5837 = vsel %vm5836, 1, 0
    %v5838 = vadd.s32 %v5834, %v5830
    %v5839 = vadd.s32 %v5835, %v5837
    %v5840 = vadd.s32 %v5839, %v5829
    %v5841 = vadd.s32 %v5840, %v5831
    %v5842 = vmul.u32 %v5797, %v5788
    %v5843 = vadd.s32 %v5819, %v5838
    %vm5844 = vc.u32 %v5819, %v5838
    %v5845 = vadd.s32 %v5841, 1
    %v5846 = vsel %vm5844, %v5845, %v5841
    %v5847 = vadd.s32 %v5842, %v5846
    %v5848 = vadd.s32 %v5847, 536870912
    %v5849 = vshrl.u32 %v5848, 30
    %v5850 = vshll.u32 %v5849, 30
    %v5851 = vsub.s32 %v5847, %v5850
    %vm5852 = vcmp.lt.s32.totalorder %v5851, 0
    %v5853 = vsub.s32 0, %v5851
    %v5854 = vsel %vm5852, %v5853, %v5851
    %v5855 = vclz %v5854
    %v5856 = vsub.s32 %v5855, 2
    %vm5857 = vcmp.gt.s32.totalorder 0, %v5856
    %v5858 = vsel %vm5857, 0, %v5856
    %v5859 = vsub.s32 32, %v5858
    %v5860 = vshll.u32 %v5851, %v5858
    %v5861 = vshrl.u32 %v5843, %v5859
    %v5862 = vor.u32 %v5860, %v5861
    %v5863 = vsub.s32 4294967266, %v5858
    %v5864 = vadd.s32 %v5863, 127
    %v5865 = vshll.u32 %v5864, 23
    %v5866 = vor.u32 4788187, %v5865
    %v5867 = vand.u32 2147483647, %v5866
    %v5869 = vcvt.s32.f32 %v5862
    %v5870 = vmul.f32 %v5869, %v5867
    %v5871 = vxor.u32 %v5870, 2147483648
    %v5872 = vsel %vm5751, %v5871, %v5870
    %v5873 = vsub.s32 4, %v5849
    %v5874 = vsel %vm5751, %v5873, %v5849
    %v5875 = vsel %vm5750, %v5747, %v5872
    %v5876 = vsel %vm5750, 0, %v5874
    %v5877 = vmul.f32 %v5875, %v5875
    %v5878 = vmul.f32 %v5877, -0.001358992
    %v5879 = vadd.f32 %v5878, 0.041655596
    %v5880 = vmul.f32 %v5877, %v5879
    %v5881 = vadd.f32 %v5880, -0.4999988
    %v5882 = vmul.f32 %v5877, %v5881
    %v5883 = vadd.f32 1.0, %v5882
    %v5884 = vmul.f32 %v5875, %v5875
    %v5885 = vmul.f32 %v5884, -0.00019511016
    %v5886 = vadd.f32 %v5885, 0.008332121
    %v5887 = vmul.f32 %v5884, %v5886
    %v5888 = vadd.f32 %v5887, -0.16666654
    %v5889 = vmul.f32 %v5884, %v5888
    %v5890 = vadd.f32 %v5889, 1.0
    %v5891 = vmul.f32 %v5890, %v5875
    %vm5892 = vweird.f32 %v5747
    %v5893 = vadd.s32 %v5876, 3
    %v5894 = vand.u32 %v5893, 3
    %vm5895 = vcmp.lt.s32.totalorder %v5894, 2
    %vm5896 = vcmp.eq.s32.totalorder %v5894, 0
    %v5897 = vxor.u32 %v5891, 2147483648
    %v5898 = vsel %vm5896, %v5883, %v5897
    %vm5899 = vcmp.eq.s32.totalorder %v5894, 2
    %v5900 = vxor.u32 %v5883, 2147483648
    %v5901 = vsel %vm5899, %v5900, %v5891
    %v5902 = vsel %vm5895, %v5898, %v5901
    %v5903 = vsel %vm5892, nan, %v5902
    %v5905 = vrot.slane %v5903, 1
    %v5906 = vrot.slane %v5903, 2
    %v5907 = vrot.slane %v5903, 3
    %v5908 = vrot.slane %v5903, 4
    %v5909 = vrot.slane %v5903, 5
    %v5910 = vrot.slane %v5903, 6
    %v5911 = vrot.slane %v5903, 7
    %5919 = vst.msk [vmem:[#allocation4 + $0xa] sm:$0x1] %vm558, %v5903
    %5920 = vst.msk [vmem:[#allocation4 + $0x1a] sm:$0x1] %vm558, %v5905
    %5921 = vst.msk [vmem:[#allocation4 + $0x2a] sm:$0x1] %vm558, %v5906
    %5922 = vst.msk [vmem:[#allocation4 + $0x3a] sm:$0x1] %vm558, %v5907
    %5923 = vst.msk [vmem:[#allocation4 + $0x4a] sm:$0x1] %vm558, %v5908
    %5924 = vst.msk [vmem:[#allocation4 + $0x5a] sm:$0x1] %vm558, %v5909
    %5925 = vst.msk [vmem:[#allocation4 + $0x6a] sm:$0x1] %vm558, %v5910
    %5926 = vst.msk [vmem:[#allocation4 + $0x7a] sm:$0x1] %vm558, %v5911
    %s5927 = scalar_lea.vmem [#allocation2], 1408
    %v5928 = vld [vmem:[%s5927] sm:$0xff]
    %v5929 = vld [vmem:[%s5927 + $0x8] sm:$0xff]
    %v5930 = vld [vmem:[%s5927 + $0x10] sm:$0xff]
    %v5931 = vld [vmem:[%s5927 + $0x18] sm:$0xff]
    %v5932 = vld [vmem:[%s5927 + $0x20] sm:$0xff]
    %v5933 = vld [vmem:[%s5927 + $0x28] sm:$0xff]
    %v5934 = vld [vmem:[%s5927 + $0x30] sm:$0xff]
    %v5935 = vld [vmem:[%s5927 + $0x38] sm:$0xff]
    %v5936 = vld [vmem:[%s5927 + $0x40] sm:$0xff]
    %v5937 = vld [vmem:[%s5927 + $0x48] sm:$0xff]
    %v5938 = vld [vmem:[%s5927 + $0x50] sm:$0xff]
    %v5939 = vld [vmem:[%s5927 + $0x58] sm:$0xff]
    %v5940 = vld [vmem:[%s5927 + $0x60] sm:$0xff]
    %v5941 = vld [vmem:[%s5927 + $0x68] sm:$0xff]
    %v5942 = vld [vmem:[%s5927 + $0x70] sm:$0xff]
    %v5943 = vld [vmem:[%s5927 + $0x78] sm:$0xff]
    %v5944 = vand.u32 %v5943, 4294901760
    %5945 = vmatpush.msra.mxu0 %v5944
    %v5946 = vand.u32 %v5942, 4294901760
    %5947 = vmatpush.msra.mxu0 %v5946
    %v5948 = vand.u32 %v5941, 4294901760
    %5949 = vmatpush.msra.mxu0 %v5948
    %v5950 = vand.u32 %v5940, 4294901760
    %5951 = vmatpush.msra.mxu0 %v5950
    %v5952 = vand.u32 %v5939, 4294901760
    %5953 = vmatpush.msra.mxu0 %v5952
    %v5954 = vand.u32 %v5938, 4294901760
    %5955 = vmatpush.msra.mxu0 %v5954
    %v5956 = vand.u32 %v5937, 4294901760
    %5957 = vmatpush.msra.mxu0 %v5956
    %v5958 = vand.u32 %v5936, 4294901760
    %5959 = vmatpush.msra.mxu0 %v5958
    %v5960 = vand.u32 %v5935, 4294901760
    %5961 = vmatpush.msra.mxu0 %v5960
    %v5962 = vand.u32 %v5934, 4294901760
    %5963 = vmatpush.msra.mxu0 %v5962
    %v5964 = vand.u32 %v5933, 4294901760
    %5965 = vmatpush.msra.mxu0 %v5964
    %v5966 = vand.u32 %v5932, 4294901760
    %5967 = vmatpush.msra.mxu0 %v5966
    %v5968 = vand.u32 %v5931, 4294901760
    %5969 = vmatpush.msra.mxu0 %v5968
    %v5970 = vand.u32 %v5930, 4294901760
    %5971 = vmatpush.msra.mxu0 %v5970
    %v5972 = vand.u32 %v5929, 4294901760
    %5973 = vmatpush.msra.mxu0 %v5972
    %v5974 = vand.u32 %v5928, 4294901760
    %5975 = vmatpush.msra.mxu0 %v5974
    %v5976 = vand.u32 %v27, 4294901760
    %v5977 = vsub.f32 %v27, %v5976
    %v5978 = vand.u32 %v5977, 4294901760
    %v5979 = vsub.f32 %v5977, %v5978
    %v5980 = vand.u32 %v5979, 4294901760
    %5981 = vmatmul.f32.gmra.mxu0 %v5980
    %v5982 = vpop.f32.mrf.mxu0
    %v5983 = vadd.f32 0.0, %v5982
    %5984 = vdwg.mxu0
    %v5985 = vand.u32 %v5943, 4294901760
    %v5986 = vsub.f32 %v5943, %v5985
    %v5987 = vand.u32 %v5986, 4294901760
    %v5988 = vsub.f32 %v5986, %v5987
    %v5989 = vand.u32 %v5988, 4294901760
    %5990 = vmatpush.msra.mxu0 %v5989
    %v5991 = vand.u32 %v5942, 4294901760
    %v5992 = vsub.f32 %v5942, %v5991
    %v5993 = vand.u32 %v5992, 4294901760
    %v5994 = vsub.f32 %v5992, %v5993
    %v5995 = vand.u32 %v5994, 4294901760
    %5996 = vmatpush.msra.mxu0 %v5995
    %v5997 = vand.u32 %v5941, 4294901760
    %v5998 = vsub.f32 %v5941, %v5997
    %v5999 = vand.u32 %v5998, 4294901760
    %v6000 = vsub.f32 %v5998, %v5999
    %v6001 = vand.u32 %v6000, 4294901760
    %6002 = vmatpush.msra.mxu0 %v6001
    %v6003 = vand.u32 %v5940, 4294901760
    %v6004 = vsub.f32 %v5940, %v6003
    %v6005 = vand.u32 %v6004, 4294901760
    %v6006 = vsub.f32 %v6004, %v6005
    %v6007 = vand.u32 %v6006, 4294901760
    %6008 = vmatpush.msra.mxu0 %v6007
    %v6009 = vand.u32 %v5939, 4294901760
    %v6010 = vsub.f32 %v5939, %v6009
    %v6011 = vand.u32 %v6010, 4294901760
    %v6012 = vsub.f32 %v6010, %v6011
    %v6013 = vand.u32 %v6012, 4294901760
    %6014 = vmatpush.msra.mxu0 %v6013
    %v6015 = vand.u32 %v5938, 4294901760
    %v6016 = vsub.f32 %v5938, %v6015
    %v6017 = vand.u32 %v6016, 4294901760
    %v6018 = vsub.f32 %v6016, %v6017
    %v6019 = vand.u32 %v6018, 4294901760
    %6020 = vmatpush.msra.mxu0 %v6019
    %v6021 = vand.u32 %v5937, 4294901760
    %v6022 = vsub.f32 %v5937, %v6021
    %v6023 = vand.u32 %v6022, 4294901760
    %v6024 = vsub.f32 %v6022, %v6023
    %v6025 = vand.u32 %v6024, 4294901760
    %6026 = vmatpush.msra.mxu0 %v6025
    %v6027 = vand.u32 %v5936, 4294901760
    %v6028 = vsub.f32 %v5936, %v6027
    %v6029 = vand.u32 %v6028, 4294901760
    %v6030 = vsub.f32 %v6028, %v6029
    %v6031 = vand.u32 %v6030, 4294901760
    %6032 = vmatpush.msra.mxu0 %v6031
    %v6033 = vand.u32 %v5935, 4294901760
    %v6034 = vsub.f32 %v5935, %v6033
    %v6035 = vand.u32 %v6034, 4294901760
    %v6036 = vsub.f32 %v6034, %v6035
    %v6037 = vand.u32 %v6036, 4294901760
    %6038 = vmatpush.msra.mxu0 %v6037
    %v6039 = vand.u32 %v5934, 4294901760
    %v6040 = vsub.f32 %v5934, %v6039
    %v6041 = vand.u32 %v6040, 4294901760
    %v6042 = vsub.f32 %v6040, %v6041
    %v6043 = vand.u32 %v6042, 4294901760
    %6044 = vmatpush.msra.mxu0 %v6043
    %v6045 = vand.u32 %v5933, 4294901760
    %v6046 = vsub.f32 %v5933, %v6045
    %v6047 = vand.u32 %v6046, 4294901760
    %v6048 = vsub.f32 %v6046, %v6047
    %v6049 = vand.u32 %v6048, 4294901760
    %6050 = vmatpush.msra.mxu0 %v6049
    %v6051 = vand.u32 %v5932, 4294901760
    %v6052 = vsub.f32 %v5932, %v6051
    %v6053 = vand.u32 %v6052, 4294901760
    %v6054 = vsub.f32 %v6052, %v6053
    %v6055 = vand.u32 %v6054, 4294901760
    %6056 = vmatpush.msra.mxu0 %v6055
    %v6057 = vand.u32 %v5931, 4294901760
    %v6058 = vsub.f32 %v5931, %v6057
    %v6059 = vand.u32 %v6058, 4294901760
    %v6060 = vsub.f32 %v6058, %v6059
    %v6061 = vand.u32 %v6060, 4294901760
    %6062 = vmatpush.msra.mxu0 %v6061
    %v6063 = vand.u32 %v5930, 4294901760
    %v6064 = vsub.f32 %v5930, %v6063
    %v6065 = vand.u32 %v6064, 4294901760
    %v6066 = vsub.f32 %v6064, %v6065
    %v6067 = vand.u32 %v6066, 4294901760
    %6068 = vmatpush.msra.mxu0 %v6067
    %v6069 = vand.u32 %v5929, 4294901760
    %v6070 = vsub.f32 %v5929, %v6069
    %v6071 = vand.u32 %v6070, 4294901760
    %v6072 = vsub.f32 %v6070, %v6071
    %v6073 = vand.u32 %v6072, 4294901760
    %6074 = vmatpush.msra.mxu0 %v6073
    %v6075 = vand.u32 %v5928, 4294901760
    %v6076 = vsub.f32 %v5928, %v6075
    %v6077 = vand.u32 %v6076, 4294901760
    %v6078 = vsub.f32 %v6076, %v6077
    %v6079 = vand.u32 %v6078, 4294901760
    %6080 = vmatpush.msra.mxu0 %v6079
    %v6081 = vand.u32 %v27, 4294901760
    %6082 = vmatmul.f32.gmra.mxu0 %v6081
    %v6083 = vpop.f32.mrf.mxu0
    %v6084 = vadd.f32 %v5983, %v6083
    %6085 = vdwg.mxu0
    %v6086 = vand.u32 %v5943, 4294901760
    %v6087 = vsub.f32 %v5943, %v6086
    %6088 = vmatpush.msra.mxu0 %v6087
    %v6089 = vand.u32 %v5942, 4294901760
    %v6090 = vsub.f32 %v5942, %v6089
    %6091 = vmatpush.msra.mxu0 %v6090
    %v6092 = vand.u32 %v5941, 4294901760
    %v6093 = vsub.f32 %v5941, %v6092
    %6094 = vmatpush.msra.mxu0 %v6093
    %v6095 = vand.u32 %v5940, 4294901760
    %v6096 = vsub.f32 %v5940, %v6095
    %6097 = vmatpush.msra.mxu0 %v6096
    %v6098 = vand.u32 %v5939, 4294901760
    %v6099 = vsub.f32 %v5939, %v6098
    %6100 = vmatpush.msra.mxu0 %v6099
    %v6101 = vand.u32 %v5938, 4294901760
    %v6102 = vsub.f32 %v5938, %v6101
    %6103 = vmatpush.msra.mxu0 %v6102
    %v6104 = vand.u32 %v5937, 4294901760
    %v6105 = vsub.f32 %v5937, %v6104
    %6106 = vmatpush.msra.mxu0 %v6105
    %v6107 = vand.u32 %v5936, 4294901760
    %v6108 = vsub.f32 %v5936, %v6107
    %6109 = vmatpush.msra.mxu0 %v6108
    %v6110 = vand.u32 %v5935, 4294901760
    %v6111 = vsub.f32 %v5935, %v6110
    %6112 = vmatpush.msra.mxu0 %v6111
    %v6113 = vand.u32 %v5934, 4294901760
    %v6114 = vsub.f32 %v5934, %v6113
    %6115 = vmatpush.msra.mxu0 %v6114
    %v6116 = vand.u32 %v5933, 4294901760
    %v6117 = vsub.f32 %v5933, %v6116
    %6118 = vmatpush.msra.mxu0 %v6117
    %v6119 = vand.u32 %v5932, 4294901760
    %v6120 = vsub.f32 %v5932, %v6119
    %6121 = vmatpush.msra.mxu0 %v6120
    %v6122 = vand.u32 %v5931, 4294901760
    %v6123 = vsub.f32 %v5931, %v6122
    %6124 = vmatpush.msra.mxu0 %v6123
    %v6125 = vand.u32 %v5930, 4294901760
    %v6126 = vsub.f32 %v5930, %v6125
    %6127 = vmatpush.msra.mxu0 %v6126
    %v6128 = vand.u32 %v5929, 4294901760
    %v6129 = vsub.f32 %v5929, %v6128
    %6130 = vmatpush.msra.mxu0 %v6129
    %v6131 = vand.u32 %v5928, 4294901760
    %v6132 = vsub.f32 %v5928, %v6131
    %6133 = vmatpush.msra.mxu0 %v6132
    %v6134 = vand.u32 %v27, 4294901760
    %v6135 = vsub.f32 %v27, %v6134
    %6136 = vmatmul.f32.gmra.mxu0 %v6135
    %v6137 = vpop.f32.mrf.mxu0
    %v6138 = vadd.f32 %v6084, %v6137
    %6139 = vdwg.mxu0
    %v6140 = vand.u32 %v5943, 4294901760
    %6141 = vmatpush.msra.mxu0 %v6140
    %v6142 = vand.u32 %v5942, 4294901760
    %6143 = vmatpush.msra.mxu0 %v6142
    %v6144 = vand.u32 %v5941, 4294901760
    %6145 = vmatpush.msra.mxu0 %v6144
    %v6146 = vand.u32 %v5940, 4294901760
    %6147 = vmatpush.msra.mxu0 %v6146
    %v6148 = vand.u32 %v5939, 4294901760
    %6149 = vmatpush.msra.mxu0 %v6148
    %v6150 = vand.u32 %v5938, 4294901760
    %6151 = vmatpush.msra.mxu0 %v6150
    %v6152 = vand.u32 %v5937, 4294901760
    %6153 = vmatpush.msra.mxu0 %v6152
    %v6154 = vand.u32 %v5936, 4294901760
    %6155 = vmatpush.msra.mxu0 %v6154
    %v6156 = vand.u32 %v5935, 4294901760
    %6157 = vmatpush.msra.mxu0 %v6156
    %v6158 = vand.u32 %v5934, 4294901760
    %6159 = vmatpush.msra.mxu0 %v6158
    %v6160 = vand.u32 %v5933, 4294901760
    %6161 = vmatpush.msra.mxu0 %v6160
    %v6162 = vand.u32 %v5932, 4294901760
    %6163 = vmatpush.msra.mxu0 %v6162
    %v6164 = vand.u32 %v5931, 4294901760
    %6165 = vmatpush.msra.mxu0 %v6164
    %v6166 = vand.u32 %v5930, 4294901760
    %6167 = vmatpush.msra.mxu0 %v6166
    %v6168 = vand.u32 %v5929, 4294901760
    %6169 = vmatpush.msra.mxu0 %v6168
    %v6170 = vand.u32 %v5928, 4294901760
    %6171 = vmatpush.msra.mxu0 %v6170
    %v6172 = vand.u32 %v27, 4294901760
    %v6173 = vsub.f32 %v27, %v6172
    %v6174 = vand.u32 %v6173, 4294901760
    %6175 = vmatmul.f32.gmra.mxu0 %v6174
    %v6176 = vpop.f32.mrf.mxu0
    %v6177 = vadd.f32 %v6138, %v6176
    %6178 = vdwg.mxu0
    %v6179 = vand.u32 %v5943, 4294901760
    %v6180 = vsub.f32 %v5943, %v6179
    %v6181 = vand.u32 %v6180, 4294901760
    %6182 = vmatpush.msra.mxu0 %v6181
    %v6183 = vand.u32 %v5942, 4294901760
    %v6184 = vsub.f32 %v5942, %v6183
    %v6185 = vand.u32 %v6184, 4294901760
    %6186 = vmatpush.msra.mxu0 %v6185
    %v6187 = vand.u32 %v5941, 4294901760
    %v6188 = vsub.f32 %v5941, %v6187
    %v6189 = vand.u32 %v6188, 4294901760
    %6190 = vmatpush.msra.mxu0 %v6189
    %v6191 = vand.u32 %v5940, 4294901760
    %v6192 = vsub.f32 %v5940, %v6191
    %v6193 = vand.u32 %v6192, 4294901760
    %6194 = vmatpush.msra.mxu0 %v6193
    %v6195 = vand.u32 %v5939, 4294901760
    %v6196 = vsub.f32 %v5939, %v6195
    %v6197 = vand.u32 %v6196, 4294901760
    %6198 = vmatpush.msra.mxu0 %v6197
    %v6199 = vand.u32 %v5938, 4294901760
    %v6200 = vsub.f32 %v5938, %v6199
    %v6201 = vand.u32 %v6200, 4294901760
    %6202 = vmatpush.msra.mxu0 %v6201
    %v6203 = vand.u32 %v5937, 4294901760
    %v6204 = vsub.f32 %v5937, %v6203
    %v6205 = vand.u32 %v6204, 4294901760
    %6206 = vmatpush.msra.mxu0 %v6205
    %v6207 = vand.u32 %v5936, 4294901760
    %v6208 = vsub.f32 %v5936, %v6207
    %v6209 = vand.u32 %v6208, 4294901760
    %6210 = vmatpush.msra.mxu0 %v6209
    %v6211 = vand.u32 %v5935, 4294901760
    %v6212 = vsub.f32 %v5935, %v6211
    %v6213 = vand.u32 %v6212, 4294901760
    %6214 = vmatpush.msra.mxu0 %v6213
    %v6215 = vand.u32 %v5934, 4294901760
    %v6216 = vsub.f32 %v5934, %v6215
    %v6217 = vand.u32 %v6216, 4294901760
    %6218 = vmatpush.msra.mxu0 %v6217
    %v6219 = vand.u32 %v5933, 4294901760
    %v6220 = vsub.f32 %v5933, %v6219
    %v6221 = vand.u32 %v6220, 4294901760
    %6222 = vmatpush.msra.mxu0 %v6221
    %v6223 = vand.u32 %v5932, 4294901760
    %v6224 = vsub.f32 %v5932, %v6223
    %v6225 = vand.u32 %v6224, 4294901760
    %6226 = vmatpush.msra.mxu0 %v6225
    %v6227 = vand.u32 %v5931, 4294901760
    %v6228 = vsub.f32 %v5931, %v6227
    %v6229 = vand.u32 %v6228, 4294901760
    %6230 = vmatpush.msra.mxu0 %v6229
    %v6231 = vand.u32 %v5930, 4294901760
    %v6232 = vsub.f32 %v5930, %v6231
    %v6233 = vand.u32 %v6232, 4294901760
    %6234 = vmatpush.msra.mxu0 %v6233
    %v6235 = vand.u32 %v5929, 4294901760
    %v6236 = vsub.f32 %v5929, %v6235
    %v6237 = vand.u32 %v6236, 4294901760
    %6238 = vmatpush.msra.mxu0 %v6237
    %v6239 = vand.u32 %v5928, 4294901760
    %v6240 = vsub.f32 %v5928, %v6239
    %v6241 = vand.u32 %v6240, 4294901760
    %6242 = vmatpush.msra.mxu0 %v6241
    %v6243 = vand.u32 %v27, 4294901760
    %6244 = vmatmul.f32.gmra.mxu0 %v6243
    %v6245 = vpop.f32.mrf.mxu0
    %v6246 = vadd.f32 %v6177, %v6245
    %6247 = vdwg.mxu0
    %v6248 = vand.u32 %v5943, 4294901760
    %6249 = vmatpush.msra.mxu0 %v6248
    %v6250 = vand.u32 %v5942, 4294901760
    %6251 = vmatpush.msra.mxu0 %v6250
    %v6252 = vand.u32 %v5941, 4294901760
    %6253 = vmatpush.msra.mxu0 %v6252
    %v6254 = vand.u32 %v5940, 4294901760
    %6255 = vmatpush.msra.mxu0 %v6254
    %v6256 = vand.u32 %v5939, 4294901760
    %6257 = vmatpush.msra.mxu0 %v6256
    %v6258 = vand.u32 %v5938, 4294901760
    %6259 = vmatpush.msra.mxu0 %v6258
    %v6260 = vand.u32 %v5937, 4294901760
    %6261 = vmatpush.msra.mxu0 %v6260
    %v6262 = vand.u32 %v5936, 4294901760
    %6263 = vmatpush.msra.mxu0 %v6262
    %v6264 = vand.u32 %v5935, 4294901760
    %6265 = vmatpush.msra.mxu0 %v6264
    %v6266 = vand.u32 %v5934, 4294901760
    %6267 = vmatpush.msra.mxu0 %v6266
    %v6268 = vand.u32 %v5933, 4294901760
    %6269 = vmatpush.msra.mxu0 %v6268
    %v6270 = vand.u32 %v5932, 4294901760
    %6271 = vmatpush.msra.mxu0 %v6270
    %v6272 = vand.u32 %v5931, 4294901760
    %6273 = vmatpush.msra.mxu0 %v6272
    %v6274 = vand.u32 %v5930, 4294901760
    %6275 = vmatpush.msra.mxu0 %v6274
    %v6276 = vand.u32 %v5929, 4294901760
    %6277 = vmatpush.msra.mxu0 %v6276
    %v6278 = vand.u32 %v5928, 4294901760
    %6279 = vmatpush.msra.mxu0 %v6278
    %v6280 = vand.u32 %v27, 4294901760
    %6281 = vmatmul.f32.gmra.mxu0 %v6280
    %v6282 = vpop.f32.mrf.mxu0
    %v6283 = vadd.f32 %v6246, %v6282
    %6284 = vdwg.mxu0
    %v6285 = vand.u32 2147483647, %v6283
    %vm6286 = vcmp.le.f32.partialorder %v6285, 0.7853982
    %vm6287 = vcmp.lt.s32.totalorder %v6283, 0
    %v6288 = vand.u32 %v6283, 2139095040
    %v6289 = vshrl.u32 %v6288, 23
    %v6290 = vsub.s32 %v6289, 127
    %v6291 = vand.u32 2147483647, %v6283
    %v6292 = vand.u32 %v6291, 8388607
    %v6293 = vor.u32 %v6292, 8388608
    %v6294 = vsub.s32 0, %v6293
    %v6295 = vadd.s32 %v6290, 1
    %vm6296 = vcmp.gt.s32.totalorder %v6295, 0
    %v6297 = vsel %vm6296, %v6295, 0
    %v6298 = vshrl.u32 %v6297, 5
    %v6299 = vand.u32 %v6297, 31
    %v6300 = vsub.s32 32, %v6299
    %v6301 = vshrl.u32 683565275, %v6300
    %v6302 = vshll.u32 683565275, %v6299
    %v6303 = vshrl.u32 2475754826, %v6300
    %v6304 = vor.u32 %v6302, %v6303
    %v6305 = vshll.u32 2475754826, %v6299
    %v6306 = vshrl.u32 2131351028, %v6300
    %v6307 = vor.u32 %v6305, %v6306
    %v6308 = vshll.u32 2131351028, %v6299
    %v6309 = vshrl.u32 2102212464, %v6300
    %v6310 = vor.u32 %v6308, %v6309
    %v6311 = vshll.u32 2102212464, %v6299
    %v6312 = vshrl.u32 920167782, %v6300
    %v6313 = vor.u32 %v6311, %v6312
    %v6314 = vshll.u32 920167782, %v6299
    %v6315 = vshrl.u32 1326507024, %v6300
    %v6316 = vor.u32 %v6314, %v6315
    %vm6317 = vcmp.lt.s32.totalorder %v6298, 1
    %vm6318 = vcmp.lt.s32.totalorder %v6298, 2
    %vm6319 = vcmp.lt.s32.totalorder %v6298, 3
    %vm6320 = vcmp.lt.s32.totalorder %v6298, 4
    %v6321 = vsel %vm6317, %v6301, %v6304
    %v6322 = vsel %vm6320, %v6310, 2102212464
    %v6323 = vsel %vm6319, %v6307, %v6322
    %v6324 = vsel %vm6318, %v6321, %v6323
    %v6325 = vsel %vm6317, %v6304, %v6307
    %v6326 = vsel %vm6320, %v6313, 920167782
    %v6327 = vsel %vm6319, %v6310, %v6326
    %v6328 = vsel %vm6318, %v6325, %v6327
    %v6329 = vsel %vm6317, %v6307, %v6310
    %v6330 = vsel %vm6320, %v6316, 1326507024
    %v6331 = vsel %vm6319, %v6313, %v6330
    %v6332 = vsel %vm6318, %v6329, %v6331
    %v6333 = vshll.u32 %v6293, 8
    %v6334 = vand.u32 %v6333, 65535
    %v6335 = vshrl.u32 %v6333, 16
    %v6336 = vand.u32 %v6332, 65535
    %v6337 = vshrl.u32 %v6332, 16
    %v6338 = vmul.u32 %v6334, %v6336
    %v6339 = vmul.u32 %v6334, %v6337
    %v6340 = vmul.u32 %v6335, %v6336
    %v6341 = vmul.u32 %v6335, %v6337
    %v6342 = vshll.u32 %v6339, 16
    %v6343 = vshrl.u32 %v6339, 16
    %v6344 = vshll.u32 %v6340, 16
    %v6345 = vshrl.u32 %v6340, 16
    %vm6346 = vc.u32 %v6338, %v6342
    %v6347 = vsel %vm6346, 1, 0
    %v6348 = vadd.s32 %v6338, %v6342
    %v6349 = vadd.s32 %v6341, %v6347
    %vm6350 = vc.u32 %v6348, %v6344
    %v6351 = vsel %vm6350, 1, 0
    %v6352 = vadd.s32 %v6348, %v6344
    %v6353 = vadd.s32 %v6349, %v6351
    %v6354 = vadd.s32 %v6353, %v6343
    %v6355 = vadd.s32 %v6354, %v6345
    %v6356 = vand.u32 %v6333, 65535
    %v6357 = vshrl.u32 %v6333, 16
    %v6358 = vand.u32 %v6328, 65535
    %v6359 = vshrl.u32 %v6328, 16
    %v6360 = vmul.u32 %v6356, %v6358
    %v6361 = vmul.u32 %v6356, %v6359
    %v6362 = vmul.u32 %v6357, %v6358
    %v6363 = vmul.u32 %v6357, %v6359
    %v6364 = vshll.u32 %v6361, 16
    %v6365 = vshrl.u32 %v6361, 16
    %v6366 = vshll.u32 %v6362, 16
    %v6367 = vshrl.u32 %v6362, 16
    %vm6368 = vc.u32 %v6360, %v6364
    %v6369 = vsel %vm6368, 1, 0
    %v6370 = vadd.s32 %v6360, %v6364
    %v6371 = vadd.s32 %v6363, %v6369
    %vm6372 = vc.u32 %v6370, %v6366
    %v6373 = vsel %vm6372, 1, 0
    %v6374 = vadd.s32 %v6370, %v6366
    %v6375 = vadd.s32 %v6371, %v6373
    %v6376 = vadd.s32 %v6375, %v6365
    %v6377 = vadd.s32 %v6376, %v6367
    %v6378 = vmul.u32 %v6333, %v6324
    %v6379 = vadd.s32 %v6355, %v6374
    %vm6380 = vc.u32 %v6355, %v6374
    %v6381 = vadd.s32 %v6377, 1
    %v6382 = vsel %vm6380, %v6381, %v6377
    %v6383 = vadd.s32 %v6378, %v6382
    %v6384 = vadd.s32 %v6383, 536870912
    %v6385 = vshrl.u32 %v6384, 30
    %v6386 = vshll.u32 %v6385, 30
    %v6387 = vsub.s32 %v6383, %v6386
    %vm6388 = vcmp.lt.s32.totalorder %v6387, 0
    %v6389 = vsub.s32 0, %v6387
    %v6390 = vsel %vm6388, %v6389, %v6387
    %v6391 = vclz %v6390
    %v6392 = vsub.s32 %v6391, 2
    %vm6393 = vcmp.gt.s32.totalorder 0, %v6392
    %v6394 = vsel %vm6393, 0, %v6392
    %v6395 = vsub.s32 32, %v6394
    %v6396 = vshll.u32 %v6387, %v6394
    %v6397 = vshrl.u32 %v6379, %v6395
    %v6398 = vor.u32 %v6396, %v6397
    %v6399 = vsub.s32 4294967266, %v6394
    %v6400 = vadd.s32 %v6399, 127
    %v6401 = vshll.u32 %v6400, 23
    %v6402 = vor.u32 4788187, %v6401
    %v6403 = vand.u32 2147483647, %v6402
    %v6405 = vcvt.s32.f32 %v6398
    %v6406 = vmul.f32 %v6405, %v6403
    %v6407 = vxor.u32 %v6406, 2147483648
    %v6408 = vsel %vm6287, %v6407, %v6406
    %v6409 = vsub.s32 4, %v6385
    %v6410 = vsel %vm6287, %v6409, %v6385
    %v6411 = vsel %vm6286, %v6283, %v6408
    %v6412 = vsel %vm6286, 0, %v6410
    %v6413 = vmul.f32 %v6411, %v6411
    %v6414 = vmul.f32 %v6413, -0.001358992
    %v6415 = vadd.f32 %v6414, 0.041655596
    %v6416 = vmul.f32 %v6413, %v6415
    %v6417 = vadd.f32 %v6416, -0.4999988
    %v6418 = vmul.f32 %v6413, %v6417
    %v6419 = vadd.f32 1.0, %v6418
    %v6420 = vmul.f32 %v6411, %v6411
    %v6421 = vmul.f32 %v6420, -0.00019511016
    %v6422 = vadd.f32 %v6421, 0.008332121
    %v6423 = vmul.f32 %v6420, %v6422
    %v6424 = vadd.f32 %v6423, -0.16666654
    %v6425 = vmul.f32 %v6420, %v6424
    %v6426 = vadd.f32 %v6425, 1.0
    %v6427 = vmul.f32 %v6426, %v6411
    %vm6428 = vweird.f32 %v6283
    %v6429 = vadd.s32 %v6412, 3
    %v6430 = vand.u32 %v6429, 3
    %vm6431 = vcmp.lt.s32.totalorder %v6430, 2
    %vm6432 = vcmp.eq.s32.totalorder %v6430, 0
    %v6433 = vxor.u32 %v6427, 2147483648
    %v6434 = vsel %vm6432, %v6419, %v6433
    %vm6435 = vcmp.eq.s32.totalorder %v6430, 2
    %v6436 = vxor.u32 %v6419, 2147483648
    %v6437 = vsel %vm6435, %v6436, %v6427
    %v6438 = vsel %vm6431, %v6434, %v6437
    %v6439 = vsel %vm6428, nan, %v6438
    %v6441 = vrot.slane %v6439, 1
    %v6442 = vrot.slane %v6439, 2
    %v6443 = vrot.slane %v6439, 3
    %v6444 = vrot.slane %v6439, 4
    %v6445 = vrot.slane %v6439, 5
    %v6446 = vrot.slane %v6439, 6
    %v6447 = vrot.slane %v6439, 7
    %6455 = vst.msk [vmem:[#allocation4 + $0xb] sm:$0x1] %vm558, %v6439
    %6456 = vst.msk [vmem:[#allocation4 + $0x1b] sm:$0x1] %vm558, %v6441
    %6457 = vst.msk [vmem:[#allocation4 + $0x2b] sm:$0x1] %vm558, %v6442
    %6458 = vst.msk [vmem:[#allocation4 + $0x3b] sm:$0x1] %vm558, %v6443
    %6459 = vst.msk [vmem:[#allocation4 + $0x4b] sm:$0x1] %vm558, %v6444
    %6460 = vst.msk [vmem:[#allocation4 + $0x5b] sm:$0x1] %vm558, %v6445
    %6461 = vst.msk [vmem:[#allocation4 + $0x6b] sm:$0x1] %vm558, %v6446
    %6462 = vst.msk [vmem:[#allocation4 + $0x7b] sm:$0x1] %vm558, %v6447
    %s6463 = scalar_lea.vmem [#allocation2], 1536
    %v6464 = vld [vmem:[%s6463] sm:$0xff]
    %v6465 = vld [vmem:[%s6463 + $0x8] sm:$0xff]
    %v6466 = vld [vmem:[%s6463 + $0x10] sm:$0xff]
    %v6467 = vld [vmem:[%s6463 + $0x18] sm:$0xff]
    %v6468 = vld [vmem:[%s6463 + $0x20] sm:$0xff]
    %v6469 = vld [vmem:[%s6463 + $0x28] sm:$0xff]
    %v6470 = vld [vmem:[%s6463 + $0x30] sm:$0xff]
    %v6471 = vld [vmem:[%s6463 + $0x38] sm:$0xff]
    %v6472 = vld [vmem:[%s6463 + $0x40] sm:$0xff]
    %v6473 = vld [vmem:[%s6463 + $0x48] sm:$0xff]
    %v6474 = vld [vmem:[%s6463 + $0x50] sm:$0xff]
    %v6475 = vld [vmem:[%s6463 + $0x58] sm:$0xff]
    %v6476 = vld [vmem:[%s6463 + $0x60] sm:$0xff]
    %v6477 = vld [vmem:[%s6463 + $0x68] sm:$0xff]
    %v6478 = vld [vmem:[%s6463 + $0x70] sm:$0xff]
    %v6479 = vld [vmem:[%s6463 + $0x78] sm:$0xff]
    %v6480 = vand.u32 %v6479, 4294901760
    %6481 = vmatpush.msra.mxu0 %v6480
    %v6482 = vand.u32 %v6478, 4294901760
    %6483 = vmatpush.msra.mxu0 %v6482
    %v6484 = vand.u32 %v6477, 4294901760
    %6485 = vmatpush.msra.mxu0 %v6484
    %v6486 = vand.u32 %v6476, 4294901760
    %6487 = vmatpush.msra.mxu0 %v6486
    %v6488 = vand.u32 %v6475, 4294901760
    %6489 = vmatpush.msra.mxu0 %v6488
    %v6490 = vand.u32 %v6474, 4294901760
    %6491 = vmatpush.msra.mxu0 %v6490
    %v6492 = vand.u32 %v6473, 4294901760
    %6493 = vmatpush.msra.mxu0 %v6492
    %v6494 = vand.u32 %v6472, 4294901760
    %6495 = vmatpush.msra.mxu0 %v6494
    %v6496 = vand.u32 %v6471, 4294901760
    %6497 = vmatpush.msra.mxu0 %v6496
    %v6498 = vand.u32 %v6470, 4294901760
    %6499 = vmatpush.msra.mxu0 %v6498
    %v6500 = vand.u32 %v6469, 4294901760
    %6501 = vmatpush.msra.mxu0 %v6500
    %v6502 = vand.u32 %v6468, 4294901760
    %6503 = vmatpush.msra.mxu0 %v6502
    %v6504 = vand.u32 %v6467, 4294901760
    %6505 = vmatpush.msra.mxu0 %v6504
    %v6506 = vand.u32 %v6466, 4294901760
    %6507 = vmatpush.msra.mxu0 %v6506
    %v6508 = vand.u32 %v6465, 4294901760
    %6509 = vmatpush.msra.mxu0 %v6508
    %v6510 = vand.u32 %v6464, 4294901760
    %6511 = vmatpush.msra.mxu0 %v6510
    %v6512 = vand.u32 %v27, 4294901760
    %v6513 = vsub.f32 %v27, %v6512
    %v6514 = vand.u32 %v6513, 4294901760
    %v6515 = vsub.f32 %v6513, %v6514
    %v6516 = vand.u32 %v6515, 4294901760
    %6517 = vmatmul.f32.gmra.mxu0 %v6516
    %v6518 = vpop.f32.mrf.mxu0
    %v6519 = vadd.f32 0.0, %v6518
    %6520 = vdwg.mxu0
    %v6521 = vand.u32 %v6479, 4294901760
    %v6522 = vsub.f32 %v6479, %v6521
    %v6523 = vand.u32 %v6522, 4294901760
    %v6524 = vsub.f32 %v6522, %v6523
    %v6525 = vand.u32 %v6524, 4294901760
    %6526 = vmatpush.msra.mxu0 %v6525
    %v6527 = vand.u32 %v6478, 4294901760
    %v6528 = vsub.f32 %v6478, %v6527
    %v6529 = vand.u32 %v6528, 4294901760
    %v6530 = vsub.f32 %v6528, %v6529
    %v6531 = vand.u32 %v6530, 4294901760
    %6532 = vmatpush.msra.mxu0 %v6531
    %v6533 = vand.u32 %v6477, 4294901760
    %v6534 = vsub.f32 %v6477, %v6533
    %v6535 = vand.u32 %v6534, 4294901760
    %v6536 = vsub.f32 %v6534, %v6535
    %v6537 = vand.u32 %v6536, 4294901760
    %6538 = vmatpush.msra.mxu0 %v6537
    %v6539 = vand.u32 %v6476, 4294901760
    %v6540 = vsub.f32 %v6476, %v6539
    %v6541 = vand.u32 %v6540, 4294901760
    %v6542 = vsub.f32 %v6540, %v6541
    %v6543 = vand.u32 %v6542, 4294901760
    %6544 = vmatpush.msra.mxu0 %v6543
    %v6545 = vand.u32 %v6475, 4294901760
    %v6546 = vsub.f32 %v6475, %v6545
    %v6547 = vand.u32 %v6546, 4294901760
    %v6548 = vsub.f32 %v6546, %v6547
    %v6549 = vand.u32 %v6548, 4294901760
    %6550 = vmatpush.msra.mxu0 %v6549
    %v6551 = vand.u32 %v6474, 4294901760
    %v6552 = vsub.f32 %v6474, %v6551
    %v6553 = vand.u32 %v6552, 4294901760
    %v6554 = vsub.f32 %v6552, %v6553
    %v6555 = vand.u32 %v6554, 4294901760
    %6556 = vmatpush.msra.mxu0 %v6555
    %v6557 = vand.u32 %v6473, 4294901760
    %v6558 = vsub.f32 %v6473, %v6557
    %v6559 = vand.u32 %v6558, 4294901760
    %v6560 = vsub.f32 %v6558, %v6559
    %v6561 = vand.u32 %v6560, 4294901760
    %6562 = vmatpush.msra.mxu0 %v6561
    %v6563 = vand.u32 %v6472, 4294901760
    %v6564 = vsub.f32 %v6472, %v6563
    %v6565 = vand.u32 %v6564, 4294901760
    %v6566 = vsub.f32 %v6564, %v6565
    %v6567 = vand.u32 %v6566, 4294901760
    %6568 = vmatpush.msra.mxu0 %v6567
    %v6569 = vand.u32 %v6471, 4294901760
    %v6570 = vsub.f32 %v6471, %v6569
    %v6571 = vand.u32 %v6570, 4294901760
    %v6572 = vsub.f32 %v6570, %v6571
    %v6573 = vand.u32 %v6572, 4294901760
    %6574 = vmatpush.msra.mxu0 %v6573
    %v6575 = vand.u32 %v6470, 4294901760
    %v6576 = vsub.f32 %v6470, %v6575
    %v6577 = vand.u32 %v6576, 4294901760
    %v6578 = vsub.f32 %v6576, %v6577
    %v6579 = vand.u32 %v6578, 4294901760
    %6580 = vmatpush.msra.mxu0 %v6579
    %v6581 = vand.u32 %v6469, 4294901760
    %v6582 = vsub.f32 %v6469, %v6581
    %v6583 = vand.u32 %v6582, 4294901760
    %v6584 = vsub.f32 %v6582, %v6583
    %v6585 = vand.u32 %v6584, 4294901760
    %6586 = vmatpush.msra.mxu0 %v6585
    %v6587 = vand.u32 %v6468, 4294901760
    %v6588 = vsub.f32 %v6468, %v6587
    %v6589 = vand.u32 %v6588, 4294901760
    %v6590 = vsub.f32 %v6588, %v6589
    %v6591 = vand.u32 %v6590, 4294901760
    %6592 = vmatpush.msra.mxu0 %v6591
    %v6593 = vand.u32 %v6467, 4294901760
    %v6594 = vsub.f32 %v6467, %v6593
    %v6595 = vand.u32 %v6594, 4294901760
    %v6596 = vsub.f32 %v6594, %v6595
    %v6597 = vand.u32 %v6596, 4294901760
    %6598 = vmatpush.msra.mxu0 %v6597
    %v6599 = vand.u32 %v6466, 4294901760
    %v6600 = vsub.f32 %v6466, %v6599
    %v6601 = vand.u32 %v6600, 4294901760
    %v6602 = vsub.f32 %v6600, %v6601
    %v6603 = vand.u32 %v6602, 4294901760
    %6604 = vmatpush.msra.mxu0 %v6603
    %v6605 = vand.u32 %v6465, 4294901760
    %v6606 = vsub.f32 %v6465, %v6605
    %v6607 = vand.u32 %v6606, 4294901760
    %v6608 = vsub.f32 %v6606, %v6607
    %v6609 = vand.u32 %v6608, 4294901760
    %6610 = vmatpush.msra.mxu0 %v6609
    %v6611 = vand.u32 %v6464, 4294901760
    %v6612 = vsub.f32 %v6464, %v6611
    %v6613 = vand.u32 %v6612, 4294901760
    %v6614 = vsub.f32 %v6612, %v6613
    %v6615 = vand.u32 %v6614, 4294901760
    %6616 = vmatpush.msra.mxu0 %v6615
    %v6617 = vand.u32 %v27, 4294901760
    %6618 = vmatmul.f32.gmra.mxu0 %v6617
    %v6619 = vpop.f32.mrf.mxu0
    %v6620 = vadd.f32 %v6519, %v6619
    %6621 = vdwg.mxu0
    %v6622 = vand.u32 %v6479, 4294901760
    %v6623 = vsub.f32 %v6479, %v6622
    %6624 = vmatpush.msra.mxu0 %v6623
    %v6625 = vand.u32 %v6478, 4294901760
    %v6626 = vsub.f32 %v6478, %v6625
    %6627 = vmatpush.msra.mxu0 %v6626
    %v6628 = vand.u32 %v6477, 4294901760
    %v6629 = vsub.f32 %v6477, %v6628
    %6630 = vmatpush.msra.mxu0 %v6629
    %v6631 = vand.u32 %v6476, 4294901760
    %v6632 = vsub.f32 %v6476, %v6631
    %6633 = vmatpush.msra.mxu0 %v6632
    %v6634 = vand.u32 %v6475, 4294901760
    %v6635 = vsub.f32 %v6475, %v6634
    %6636 = vmatpush.msra.mxu0 %v6635
    %v6637 = vand.u32 %v6474, 4294901760
    %v6638 = vsub.f32 %v6474, %v6637
    %6639 = vmatpush.msra.mxu0 %v6638
    %v6640 = vand.u32 %v6473, 4294901760
    %v6641 = vsub.f32 %v6473, %v6640
    %6642 = vmatpush.msra.mxu0 %v6641
    %v6643 = vand.u32 %v6472, 4294901760
    %v6644 = vsub.f32 %v6472, %v6643
    %6645 = vmatpush.msra.mxu0 %v6644
    %v6646 = vand.u32 %v6471, 4294901760
    %v6647 = vsub.f32 %v6471, %v6646
    %6648 = vmatpush.msra.mxu0 %v6647
    %v6649 = vand.u32 %v6470, 4294901760
    %v6650 = vsub.f32 %v6470, %v6649
    %6651 = vmatpush.msra.mxu0 %v6650
    %v6652 = vand.u32 %v6469, 4294901760
    %v6653 = vsub.f32 %v6469, %v6652
    %6654 = vmatpush.msra.mxu0 %v6653
    %v6655 = vand.u32 %v6468, 4294901760
    %v6656 = vsub.f32 %v6468, %v6655
    %6657 = vmatpush.msra.mxu0 %v6656
    %v6658 = vand.u32 %v6467, 4294901760
    %v6659 = vsub.f32 %v6467, %v6658
    %6660 = vmatpush.msra.mxu0 %v6659
    %v6661 = vand.u32 %v6466, 4294901760
    %v6662 = vsub.f32 %v6466, %v6661
    %6663 = vmatpush.msra.mxu0 %v6662
    %v6664 = vand.u32 %v6465, 4294901760
    %v6665 = vsub.f32 %v6465, %v6664
    %6666 = vmatpush.msra.mxu0 %v6665
    %v6667 = vand.u32 %v6464, 4294901760
    %v6668 = vsub.f32 %v6464, %v6667
    %6669 = vmatpush.msra.mxu0 %v6668
    %v6670 = vand.u32 %v27, 4294901760
    %v6671 = vsub.f32 %v27, %v6670
    %6672 = vmatmul.f32.gmra.mxu0 %v6671
    %v6673 = vpop.f32.mrf.mxu0
    %v6674 = vadd.f32 %v6620, %v6673
    %6675 = vdwg.mxu0
    %v6676 = vand.u32 %v6479, 4294901760
    %6677 = vmatpush.msra.mxu0 %v6676
    %v6678 = vand.u32 %v6478, 4294901760
    %6679 = vmatpush.msra.mxu0 %v6678
    %v6680 = vand.u32 %v6477, 4294901760
    %6681 = vmatpush.msra.mxu0 %v6680
    %v6682 = vand.u32 %v6476, 4294901760
    %6683 = vmatpush.msra.mxu0 %v6682
    %v6684 = vand.u32 %v6475, 4294901760
    %6685 = vmatpush.msra.mxu0 %v6684
    %v6686 = vand.u32 %v6474, 4294901760
    %6687 = vmatpush.msra.mxu0 %v6686
    %v6688 = vand.u32 %v6473, 4294901760
    %6689 = vmatpush.msra.mxu0 %v6688
    %v6690 = vand.u32 %v6472, 4294901760
    %6691 = vmatpush.msra.mxu0 %v6690
    %v6692 = vand.u32 %v6471, 4294901760
    %6693 = vmatpush.msra.mxu0 %v6692
    %v6694 = vand.u32 %v6470, 4294901760
    %6695 = vmatpush.msra.mxu0 %v6694
    %v6696 = vand.u32 %v6469, 4294901760
    %6697 = vmatpush.msra.mxu0 %v6696
    %v6698 = vand.u32 %v6468, 4294901760
    %6699 = vmatpush.msra.mxu0 %v6698
    %v6700 = vand.u32 %v6467, 4294901760
    %6701 = vmatpush.msra.mxu0 %v6700
    %v6702 = vand.u32 %v6466, 4294901760
    %6703 = vmatpush.msra.mxu0 %v6702
    %v6704 = vand.u32 %v6465, 4294901760
    %6705 = vmatpush.msra.mxu0 %v6704
    %v6706 = vand.u32 %v6464, 4294901760
    %6707 = vmatpush.msra.mxu0 %v6706
    %v6708 = vand.u32 %v27, 4294901760
    %v6709 = vsub.f32 %v27, %v6708
    %v6710 = vand.u32 %v6709, 4294901760
    %6711 = vmatmul.f32.gmra.mxu0 %v6710
    %v6712 = vpop.f32.mrf.mxu0
    %v6713 = vadd.f32 %v6674, %v6712
    %6714 = vdwg.mxu0
    %v6715 = vand.u32 %v6479, 4294901760
    %v6716 = vsub.f32 %v6479, %v6715
    %v6717 = vand.u32 %v6716, 4294901760
    %6718 = vmatpush.msra.mxu0 %v6717
    %v6719 = vand.u32 %v6478, 4294901760
    %v6720 = vsub.f32 %v6478, %v6719
    %v6721 = vand.u32 %v6720, 4294901760
    %6722 = vmatpush.msra.mxu0 %v6721
    %v6723 = vand.u32 %v6477, 4294901760
    %v6724 = vsub.f32 %v6477, %v6723
    %v6725 = vand.u32 %v6724, 4294901760
    %6726 = vmatpush.msra.mxu0 %v6725
    %v6727 = vand.u32 %v6476, 4294901760
    %v6728 = vsub.f32 %v6476, %v6727
    %v6729 = vand.u32 %v6728, 4294901760
    %6730 = vmatpush.msra.mxu0 %v6729
    %v6731 = vand.u32 %v6475, 4294901760
    %v6732 = vsub.f32 %v6475, %v6731
    %v6733 = vand.u32 %v6732, 4294901760
    %6734 = vmatpush.msra.mxu0 %v6733
    %v6735 = vand.u32 %v6474, 4294901760
    %v6736 = vsub.f32 %v6474, %v6735
    %v6737 = vand.u32 %v6736, 4294901760
    %6738 = vmatpush.msra.mxu0 %v6737
    %v6739 = vand.u32 %v6473, 4294901760
    %v6740 = vsub.f32 %v6473, %v6739
    %v6741 = vand.u32 %v6740, 4294901760
    %6742 = vmatpush.msra.mxu0 %v6741
    %v6743 = vand.u32 %v6472, 4294901760
    %v6744 = vsub.f32 %v6472, %v6743
    %v6745 = vand.u32 %v6744, 4294901760
    %6746 = vmatpush.msra.mxu0 %v6745
    %v6747 = vand.u32 %v6471, 4294901760
    %v6748 = vsub.f32 %v6471, %v6747
    %v6749 = vand.u32 %v6748, 4294901760
    %6750 = vmatpush.msra.mxu0 %v6749
    %v6751 = vand.u32 %v6470, 4294901760
    %v6752 = vsub.f32 %v6470, %v6751
    %v6753 = vand.u32 %v6752, 4294901760
    %6754 = vmatpush.msra.mxu0 %v6753
    %v6755 = vand.u32 %v6469, 4294901760
    %v6756 = vsub.f32 %v6469, %v6755
    %v6757 = vand.u32 %v6756, 4294901760
    %6758 = vmatpush.msra.mxu0 %v6757
    %v6759 = vand.u32 %v6468, 4294901760
    %v6760 = vsub.f32 %v6468, %v6759
    %v6761 = vand.u32 %v6760, 4294901760
    %6762 = vmatpush.msra.mxu0 %v6761
    %v6763 = vand.u32 %v6467, 4294901760
    %v6764 = vsub.f32 %v6467, %v6763
    %v6765 = vand.u32 %v6764, 4294901760
    %6766 = vmatpush.msra.mxu0 %v6765
    %v6767 = vand.u32 %v6466, 4294901760
    %v6768 = vsub.f32 %v6466, %v6767
    %v6769 = vand.u32 %v6768, 4294901760
    %6770 = vmatpush.msra.mxu0 %v6769
    %v6771 = vand.u32 %v6465, 4294901760
    %v6772 = vsub.f32 %v6465, %v6771
    %v6773 = vand.u32 %v6772, 4294901760
    %6774 = vmatpush.msra.mxu0 %v6773
    %v6775 = vand.u32 %v6464, 4294901760
    %v6776 = vsub.f32 %v6464, %v6775
    %v6777 = vand.u32 %v6776, 4294901760
    %6778 = vmatpush.msra.mxu0 %v6777
    %v6779 = vand.u32 %v27, 4294901760
    %6780 = vmatmul.f32.gmra.mxu0 %v6779
    %v6781 = vpop.f32.mrf.mxu0
    %v6782 = vadd.f32 %v6713, %v6781
    %6783 = vdwg.mxu0
    %v6784 = vand.u32 %v6479, 4294901760
    %6785 = vmatpush.msra.mxu0 %v6784
    %v6786 = vand.u32 %v6478, 4294901760
    %6787 = vmatpush.msra.mxu0 %v6786
    %v6788 = vand.u32 %v6477, 4294901760
    %6789 = vmatpush.msra.mxu0 %v6788
    %v6790 = vand.u32 %v6476, 4294901760
    %6791 = vmatpush.msra.mxu0 %v6790
    %v6792 = vand.u32 %v6475, 4294901760
    %6793 = vmatpush.msra.mxu0 %v6792
    %v6794 = vand.u32 %v6474, 4294901760
    %6795 = vmatpush.msra.mxu0 %v6794
    %v6796 = vand.u32 %v6473, 4294901760
    %6797 = vmatpush.msra.mxu0 %v6796
    %v6798 = vand.u32 %v6472, 4294901760
    %6799 = vmatpush.msra.mxu0 %v6798
    %v6800 = vand.u32 %v6471, 4294901760
    %6801 = vmatpush.msra.mxu0 %v6800
    %v6802 = vand.u32 %v6470, 4294901760
    %6803 = vmatpush.msra.mxu0 %v6802
    %v6804 = vand.u32 %v6469, 4294901760
    %6805 = vmatpush.msra.mxu0 %v6804
    %v6806 = vand.u32 %v6468, 4294901760
    %6807 = vmatpush.msra.mxu0 %v6806
    %v6808 = vand.u32 %v6467, 4294901760
    %6809 = vmatpush.msra.mxu0 %v6808
    %v6810 = vand.u32 %v6466, 4294901760
    %6811 = vmatpush.msra.mxu0 %v6810
    %v6812 = vand.u32 %v6465, 4294901760
    %6813 = vmatpush.msra.mxu0 %v6812
    %v6814 = vand.u32 %v6464, 4294901760
    %6815 = vmatpush.msra.mxu0 %v6814
    %v6816 = vand.u32 %v27, 4294901760
    %6817 = vmatmul.f32.gmra.mxu0 %v6816
    %v6818 = vpop.f32.mrf.mxu0
    %v6819 = vadd.f32 %v6782, %v6818
    %6820 = vdwg.mxu0
    %v6821 = vand.u32 2147483647, %v6819
    %vm6822 = vcmp.le.f32.partialorder %v6821, 0.7853982
    %vm6823 = vcmp.lt.s32.totalorder %v6819, 0
    %v6824 = vand.u32 %v6819, 2139095040
    %v6825 = vshrl.u32 %v6824, 23
    %v6826 = vsub.s32 %v6825, 127
    %v6827 = vand.u32 2147483647, %v6819
    %v6828 = vand.u32 %v6827, 8388607
    %v6829 = vor.u32 %v6828, 8388608
    %v6830 = vsub.s32 0, %v6829
    %v6831 = vadd.s32 %v6826, 1
    %vm6832 = vcmp.gt.s32.totalorder %v6831, 0
    %v6833 = vsel %vm6832, %v6831, 0
    %v6834 = vshrl.u32 %v6833, 5
    %v6835 = vand.u32 %v6833, 31
    %v6836 = vsub.s32 32, %v6835
    %v6837 = vshrl.u32 683565275, %v6836
    %v6838 = vshll.u32 683565275, %v6835
    %v6839 = vshrl.u32 2475754826, %v6836
    %v6840 = vor.u32 %v6838, %v6839
    %v6841 = vshll.u32 2475754826, %v6835
    %v6842 = vshrl.u32 2131351028, %v6836
    %v6843 = vor.u32 %v6841, %v6842
    %v6844 = vshll.u32 2131351028, %v6835
    %v6845 = vshrl.u32 2102212464, %v6836
    %v6846 = vor.u32 %v6844, %v6845
    %v6847 = vshll.u32 2102212464, %v6835
    %v6848 = vshrl.u32 920167782, %v6836
    %v6849 = vor.u32 %v6847, %v6848
    %v6850 = vshll.u32 920167782, %v6835
    %v6851 = vshrl.u32 1326507024, %v6836
    %v6852 = vor.u32 %v6850, %v6851
    %vm6853 = vcmp.lt.s32.totalorder %v6834, 1
    %vm6854 = vcmp.lt.s32.totalorder %v6834, 2
    %vm6855 = vcmp.lt.s32.totalorder %v6834, 3
    %vm6856 = vcmp.lt.s32.totalorder %v6834, 4
    %v6857 = vsel %vm6853, %v6837, %v6840
    %v6858 = vsel %vm6856, %v6846, 2102212464
    %v6859 = vsel %vm6855, %v6843, %v6858
    %v6860 = vsel %vm6854, %v6857, %v6859
    %v6861 = vsel %vm6853, %v6840, %v6843
    %v6862 = vsel %vm6856, %v6849, 920167782
    %v6863 = vsel %vm6855, %v6846, %v6862
    %v6864 = vsel %vm6854, %v6861, %v6863
    %v6865 = vsel %vm6853, %v6843, %v6846
    %v6866 = vsel %vm6856, %v6852, 1326507024
    %v6867 = vsel %vm6855, %v6849, %v6866
    %v6868 = vsel %vm6854, %v6865, %v6867
    %v6869 = vshll.u32 %v6829, 8
    %v6870 = vand.u32 %v6869, 65535
    %v6871 = vshrl.u32 %v6869, 16
    %v6872 = vand.u32 %v6868, 65535
    %v6873 = vshrl.u32 %v6868, 16
    %v6874 = vmul.u32 %v6870, %v6872
    %v6875 = vmul.u32 %v6870, %v6873
    %v6876 = vmul.u32 %v6871, %v6872
    %v6877 = vmul.u32 %v6871, %v6873
    %v6878 = vshll.u32 %v6875, 16
    %v6879 = vshrl.u32 %v6875, 16
    %v6880 = vshll.u32 %v6876, 16
    %v6881 = vshrl.u32 %v6876, 16
    %vm6882 = vc.u32 %v6874, %v6878
    %v6883 = vsel %vm6882, 1, 0
    %v6884 = vadd.s32 %v6874, %v6878
    %v6885 = vadd.s32 %v6877, %v6883
    %vm6886 = vc.u32 %v6884, %v6880
    %v6887 = vsel %vm6886, 1, 0
    %v6888 = vadd.s32 %v6884, %v6880
    %v6889 = vadd.s32 %v6885, %v6887
    %v6890 = vadd.s32 %v6889, %v6879
    %v6891 = vadd.s32 %v6890, %v6881
    %v6892 = vand.u32 %v6869, 65535
    %v6893 = vshrl.u32 %v6869, 16
    %v6894 = vand.u32 %v6864, 65535
    %v6895 = vshrl.u32 %v6864, 16
    %v6896 = vmul.u32 %v6892, %v6894
    %v6897 = vmul.u32 %v6892, %v6895
    %v6898 = vmul.u32 %v6893, %v6894
    %v6899 = vmul.u32 %v6893, %v6895
    %v6900 = vshll.u32 %v6897, 16
    %v6901 = vshrl.u32 %v6897, 16
    %v6902 = vshll.u32 %v6898, 16
    %v6903 = vshrl.u32 %v6898, 16
    %vm6904 = vc.u32 %v6896, %v6900
    %v6905 = vsel %vm6904, 1, 0
    %v6906 = vadd.s32 %v6896, %v6900
    %v6907 = vadd.s32 %v6899, %v6905
    %vm6908 = vc.u32 %v6906, %v6902
    %v6909 = vsel %vm6908, 1, 0
    %v6910 = vadd.s32 %v6906, %v6902
    %v6911 = vadd.s32 %v6907, %v6909
    %v6912 = vadd.s32 %v6911, %v6901
    %v6913 = vadd.s32 %v6912, %v6903
    %v6914 = vmul.u32 %v6869, %v6860
    %v6915 = vadd.s32 %v6891, %v6910
    %vm6916 = vc.u32 %v6891, %v6910
    %v6917 = vadd.s32 %v6913, 1
    %v6918 = vsel %vm6916, %v6917, %v6913
    %v6919 = vadd.s32 %v6914, %v6918
    %v6920 = vadd.s32 %v6919, 536870912
    %v6921 = vshrl.u32 %v6920, 30
    %v6922 = vshll.u32 %v6921, 30
    %v6923 = vsub.s32 %v6919, %v6922
    %vm6924 = vcmp.lt.s32.totalorder %v6923, 0
    %v6925 = vsub.s32 0, %v6923
    %v6926 = vsel %vm6924, %v6925, %v6923
    %v6927 = vclz %v6926
    %v6928 = vsub.s32 %v6927, 2
    %vm6929 = vcmp.gt.s32.totalorder 0, %v6928
    %v6930 = vsel %vm6929, 0, %v6928
    %v6931 = vsub.s32 32, %v6930
    %v6932 = vshll.u32 %v6923, %v6930
    %v6933 = vshrl.u32 %v6915, %v6931
    %v6934 = vor.u32 %v6932, %v6933
    %v6935 = vsub.s32 4294967266, %v6930
    %v6936 = vadd.s32 %v6935, 127
    %v6937 = vshll.u32 %v6936, 23
    %v6938 = vor.u32 4788187, %v6937
    %v6939 = vand.u32 2147483647, %v6938
    %v6941 = vcvt.s32.f32 %v6934
    %v6942 = vmul.f32 %v6941, %v6939
    %v6943 = vxor.u32 %v6942, 2147483648
    %v6944 = vsel %vm6823, %v6943, %v6942
    %v6945 = vsub.s32 4, %v6921
    %v6946 = vsel %vm6823, %v6945, %v6921
    %v6947 = vsel %vm6822, %v6819, %v6944
    %v6948 = vsel %vm6822, 0, %v6946
    %v6949 = vmul.f32 %v6947, %v6947
    %v6950 = vmul.f32 %v6949, -0.001358992
    %v6951 = vadd.f32 %v6950, 0.041655596
    %v6952 = vmul.f32 %v6949, %v6951
    %v6953 = vadd.f32 %v6952, -0.4999988
    %v6954 = vmul.f32 %v6949, %v6953
    %v6955 = vadd.f32 1.0, %v6954
    %v6956 = vmul.f32 %v6947, %v6947
    %v6957 = vmul.f32 %v6956, -0.00019511016
    %v6958 = vadd.f32 %v6957, 0.008332121
    %v6959 = vmul.f32 %v6956, %v6958
    %v6960 = vadd.f32 %v6959, -0.16666654
    %v6961 = vmul.f32 %v6956, %v6960
    %v6962 = vadd.f32 %v6961, 1.0
    %v6963 = vmul.f32 %v6962, %v6947
    %vm6964 = vweird.f32 %v6819
    %v6965 = vadd.s32 %v6948, 3
    %v6966 = vand.u32 %v6965, 3
    %vm6967 = vcmp.lt.s32.totalorder %v6966, 2
    %vm6968 = vcmp.eq.s32.totalorder %v6966, 0
    %v6969 = vxor.u32 %v6963, 2147483648
    %v6970 = vsel %vm6968, %v6955, %v6969
    %vm6971 = vcmp.eq.s32.totalorder %v6966, 2
    %v6972 = vxor.u32 %v6955, 2147483648
    %v6973 = vsel %vm6971, %v6972, %v6963
    %v6974 = vsel %vm6967, %v6970, %v6973
    %v6975 = vsel %vm6964, nan, %v6974
    %v6977 = vrot.slane %v6975, 1
    %v6978 = vrot.slane %v6975, 2
    %v6979 = vrot.slane %v6975, 3
    %v6980 = vrot.slane %v6975, 4
    %v6981 = vrot.slane %v6975, 5
    %v6982 = vrot.slane %v6975, 6
    %v6983 = vrot.slane %v6975, 7
    %6991 = vst.msk [vmem:[#allocation4 + $0xc] sm:$0x1] %vm558, %v6975
    %6992 = vst.msk [vmem:[#allocation4 + $0x1c] sm:$0x1] %vm558, %v6977
    %6993 = vst.msk [vmem:[#allocation4 + $0x2c] sm:$0x1] %vm558, %v6978
    %6994 = vst.msk [vmem:[#allocation4 + $0x3c] sm:$0x1] %vm558, %v6979
    %6995 = vst.msk [vmem:[#allocation4 + $0x4c] sm:$0x1] %vm558, %v6980
    %6996 = vst.msk [vmem:[#allocation4 + $0x5c] sm:$0x1] %vm558, %v6981
    %6997 = vst.msk [vmem:[#allocation4 + $0x6c] sm:$0x1] %vm558, %v6982
    %6998 = vst.msk [vmem:[#allocation4 + $0x7c] sm:$0x1] %vm558, %v6983
    %s6999 = scalar_lea.vmem [#allocation2], 1664
    %v7000 = vld [vmem:[%s6999] sm:$0xff]
    %v7001 = vld [vmem:[%s6999 + $0x8] sm:$0xff]
    %v7002 = vld [vmem:[%s6999 + $0x10] sm:$0xff]
    %v7003 = vld [vmem:[%s6999 + $0x18] sm:$0xff]
    %v7004 = vld [vmem:[%s6999 + $0x20] sm:$0xff]
    %v7005 = vld [vmem:[%s6999 + $0x28] sm:$0xff]
    %v7006 = vld [vmem:[%s6999 + $0x30] sm:$0xff]
    %v7007 = vld [vmem:[%s6999 + $0x38] sm:$0xff]
    %v7008 = vld [vmem:[%s6999 + $0x40] sm:$0xff]
    %v7009 = vld [vmem:[%s6999 + $0x48] sm:$0xff]
    %v7010 = vld [vmem:[%s6999 + $0x50] sm:$0xff]
    %v7011 = vld [vmem:[%s6999 + $0x58] sm:$0xff]
    %v7012 = vld [vmem:[%s6999 + $0x60] sm:$0xff]
    %v7013 = vld [vmem:[%s6999 + $0x68] sm:$0xff]
    %v7014 = vld [vmem:[%s6999 + $0x70] sm:$0xff]
    %v7015 = vld [vmem:[%s6999 + $0x78] sm:$0xff]
    %v7016 = vand.u32 %v7015, 4294901760
    %7017 = vmatpush.msra.mxu0 %v7016
    %v7018 = vand.u32 %v7014, 4294901760
    %7019 = vmatpush.msra.mxu0 %v7018
    %v7020 = vand.u32 %v7013, 4294901760
    %7021 = vmatpush.msra.mxu0 %v7020
    %v7022 = vand.u32 %v7012, 4294901760
    %7023 = vmatpush.msra.mxu0 %v7022
    %v7024 = vand.u32 %v7011, 4294901760
    %7025 = vmatpush.msra.mxu0 %v7024
    %v7026 = vand.u32 %v7010, 4294901760
    %7027 = vmatpush.msra.mxu0 %v7026
    %v7028 = vand.u32 %v7009, 4294901760
    %7029 = vmatpush.msra.mxu0 %v7028
    %v7030 = vand.u32 %v7008, 4294901760
    %7031 = vmatpush.msra.mxu0 %v7030
    %v7032 = vand.u32 %v7007, 4294901760
    %7033 = vmatpush.msra.mxu0 %v7032
    %v7034 = vand.u32 %v7006, 4294901760
    %7035 = vmatpush.msra.mxu0 %v7034
    %v7036 = vand.u32 %v7005, 4294901760
    %7037 = vmatpush.msra.mxu0 %v7036
    %v7038 = vand.u32 %v7004, 4294901760
    %7039 = vmatpush.msra.mxu0 %v7038
    %v7040 = vand.u32 %v7003, 4294901760
    %7041 = vmatpush.msra.mxu0 %v7040
    %v7042 = vand.u32 %v7002, 4294901760
    %7043 = vmatpush.msra.mxu0 %v7042
    %v7044 = vand.u32 %v7001, 4294901760
    %7045 = vmatpush.msra.mxu0 %v7044
    %v7046 = vand.u32 %v7000, 4294901760
    %7047 = vmatpush.msra.mxu0 %v7046
    %v7048 = vand.u32 %v27, 4294901760
    %v7049 = vsub.f32 %v27, %v7048
    %v7050 = vand.u32 %v7049, 4294901760
    %v7051 = vsub.f32 %v7049, %v7050
    %v7052 = vand.u32 %v7051, 4294901760
    %7053 = vmatmul.f32.gmra.mxu0 %v7052
    %v7054 = vpop.f32.mrf.mxu0
    %v7055 = vadd.f32 0.0, %v7054
    %7056 = vdwg.mxu0
    %v7057 = vand.u32 %v7015, 4294901760
    %v7058 = vsub.f32 %v7015, %v7057
    %v7059 = vand.u32 %v7058, 4294901760
    %v7060 = vsub.f32 %v7058, %v7059
    %v7061 = vand.u32 %v7060, 4294901760
    %7062 = vmatpush.msra.mxu0 %v7061
    %v7063 = vand.u32 %v7014, 4294901760
    %v7064 = vsub.f32 %v7014, %v7063
    %v7065 = vand.u32 %v7064, 4294901760
    %v7066 = vsub.f32 %v7064, %v7065
    %v7067 = vand.u32 %v7066, 4294901760
    %7068 = vmatpush.msra.mxu0 %v7067
    %v7069 = vand.u32 %v7013, 4294901760
    %v7070 = vsub.f32 %v7013, %v7069
    %v7071 = vand.u32 %v7070, 4294901760
    %v7072 = vsub.f32 %v7070, %v7071
    %v7073 = vand.u32 %v7072, 4294901760
    %7074 = vmatpush.msra.mxu0 %v7073
    %v7075 = vand.u32 %v7012, 4294901760
    %v7076 = vsub.f32 %v7012, %v7075
    %v7077 = vand.u32 %v7076, 4294901760
    %v7078 = vsub.f32 %v7076, %v7077
    %v7079 = vand.u32 %v7078, 4294901760
    %7080 = vmatpush.msra.mxu0 %v7079
    %v7081 = vand.u32 %v7011, 4294901760
    %v7082 = vsub.f32 %v7011, %v7081
    %v7083 = vand.u32 %v7082, 4294901760
    %v7084 = vsub.f32 %v7082, %v7083
    %v7085 = vand.u32 %v7084, 4294901760
    %7086 = vmatpush.msra.mxu0 %v7085
    %v7087 = vand.u32 %v7010, 4294901760
    %v7088 = vsub.f32 %v7010, %v7087
    %v7089 = vand.u32 %v7088, 4294901760
    %v7090 = vsub.f32 %v7088, %v7089
    %v7091 = vand.u32 %v7090, 4294901760
    %7092 = vmatpush.msra.mxu0 %v7091
    %v7093 = vand.u32 %v7009, 4294901760
    %v7094 = vsub.f32 %v7009, %v7093
    %v7095 = vand.u32 %v7094, 4294901760
    %v7096 = vsub.f32 %v7094, %v7095
    %v7097 = vand.u32 %v7096, 4294901760
    %7098 = vmatpush.msra.mxu0 %v7097
    %v7099 = vand.u32 %v7008, 4294901760
    %v7100 = vsub.f32 %v7008, %v7099
    %v7101 = vand.u32 %v7100, 4294901760
    %v7102 = vsub.f32 %v7100, %v7101
    %v7103 = vand.u32 %v7102, 4294901760
    %7104 = vmatpush.msra.mxu0 %v7103
    %v7105 = vand.u32 %v7007, 4294901760
    %v7106 = vsub.f32 %v7007, %v7105
    %v7107 = vand.u32 %v7106, 4294901760
    %v7108 = vsub.f32 %v7106, %v7107
    %v7109 = vand.u32 %v7108, 4294901760
    %7110 = vmatpush.msra.mxu0 %v7109
    %v7111 = vand.u32 %v7006, 4294901760
    %v7112 = vsub.f32 %v7006, %v7111
    %v7113 = vand.u32 %v7112, 4294901760
    %v7114 = vsub.f32 %v7112, %v7113
    %v7115 = vand.u32 %v7114, 4294901760
    %7116 = vmatpush.msra.mxu0 %v7115
    %v7117 = vand.u32 %v7005, 4294901760
    %v7118 = vsub.f32 %v7005, %v7117
    %v7119 = vand.u32 %v7118, 4294901760
    %v7120 = vsub.f32 %v7118, %v7119
    %v7121 = vand.u32 %v7120, 4294901760
    %7122 = vmatpush.msra.mxu0 %v7121
    %v7123 = vand.u32 %v7004, 4294901760
    %v7124 = vsub.f32 %v7004, %v7123
    %v7125 = vand.u32 %v7124, 4294901760
    %v7126 = vsub.f32 %v7124, %v7125
    %v7127 = vand.u32 %v7126, 4294901760
    %7128 = vmatpush.msra.mxu0 %v7127
    %v7129 = vand.u32 %v7003, 4294901760
    %v7130 = vsub.f32 %v7003, %v7129
    %v7131 = vand.u32 %v7130, 4294901760
    %v7132 = vsub.f32 %v7130, %v7131
    %v7133 = vand.u32 %v7132, 4294901760
    %7134 = vmatpush.msra.mxu0 %v7133
    %v7135 = vand.u32 %v7002, 4294901760
    %v7136 = vsub.f32 %v7002, %v7135
    %v7137 = vand.u32 %v7136, 4294901760
    %v7138 = vsub.f32 %v7136, %v7137
    %v7139 = vand.u32 %v7138, 4294901760
    %7140 = vmatpush.msra.mxu0 %v7139
    %v7141 = vand.u32 %v7001, 4294901760
    %v7142 = vsub.f32 %v7001, %v7141
    %v7143 = vand.u32 %v7142, 4294901760
    %v7144 = vsub.f32 %v7142, %v7143
    %v7145 = vand.u32 %v7144, 4294901760
    %7146 = vmatpush.msra.mxu0 %v7145
    %v7147 = vand.u32 %v7000, 4294901760
    %v7148 = vsub.f32 %v7000, %v7147
    %v7149 = vand.u32 %v7148, 4294901760
    %v7150 = vsub.f32 %v7148, %v7149
    %v7151 = vand.u32 %v7150, 4294901760
    %7152 = vmatpush.msra.mxu0 %v7151
    %v7153 = vand.u32 %v27, 4294901760
    %7154 = vmatmul.f32.gmra.mxu0 %v7153
    %v7155 = vpop.f32.mrf.mxu0
    %v7156 = vadd.f32 %v7055, %v7155
    %7157 = vdwg.mxu0
    %v7158 = vand.u32 %v7015, 4294901760
    %v7159 = vsub.f32 %v7015, %v7158
    %7160 = vmatpush.msra.mxu0 %v7159
    %v7161 = vand.u32 %v7014, 4294901760
    %v7162 = vsub.f32 %v7014, %v7161
    %7163 = vmatpush.msra.mxu0 %v7162
    %v7164 = vand.u32 %v7013, 4294901760
    %v7165 = vsub.f32 %v7013, %v7164
    %7166 = vmatpush.msra.mxu0 %v7165
    %v7167 = vand.u32 %v7012, 4294901760
    %v7168 = vsub.f32 %v7012, %v7167
    %7169 = vmatpush.msra.mxu0 %v7168
    %v7170 = vand.u32 %v7011, 4294901760
    %v7171 = vsub.f32 %v7011, %v7170
    %7172 = vmatpush.msra.mxu0 %v7171
    %v7173 = vand.u32 %v7010, 4294901760
    %v7174 = vsub.f32 %v7010, %v7173
    %7175 = vmatpush.msra.mxu0 %v7174
    %v7176 = vand.u32 %v7009, 4294901760
    %v7177 = vsub.f32 %v7009, %v7176
    %7178 = vmatpush.msra.mxu0 %v7177
    %v7179 = vand.u32 %v7008, 4294901760
    %v7180 = vsub.f32 %v7008, %v7179
    %7181 = vmatpush.msra.mxu0 %v7180
    %v7182 = vand.u32 %v7007, 4294901760
    %v7183 = vsub.f32 %v7007, %v7182
    %7184 = vmatpush.msra.mxu0 %v7183
    %v7185 = vand.u32 %v7006, 4294901760
    %v7186 = vsub.f32 %v7006, %v7185
    %7187 = vmatpush.msra.mxu0 %v7186
    %v7188 = vand.u32 %v7005, 4294901760
    %v7189 = vsub.f32 %v7005, %v7188
    %7190 = vmatpush.msra.mxu0 %v7189
    %v7191 = vand.u32 %v7004, 4294901760
    %v7192 = vsub.f32 %v7004, %v7191
    %7193 = vmatpush.msra.mxu0 %v7192
    %v7194 = vand.u32 %v7003, 4294901760
    %v7195 = vsub.f32 %v7003, %v7194
    %7196 = vmatpush.msra.mxu0 %v7195
    %v7197 = vand.u32 %v7002, 4294901760
    %v7198 = vsub.f32 %v7002, %v7197
    %7199 = vmatpush.msra.mxu0 %v7198
    %v7200 = vand.u32 %v7001, 4294901760
    %v7201 = vsub.f32 %v7001, %v7200
    %7202 = vmatpush.msra.mxu0 %v7201
    %v7203 = vand.u32 %v7000, 4294901760
    %v7204 = vsub.f32 %v7000, %v7203
    %7205 = vmatpush.msra.mxu0 %v7204
    %v7206 = vand.u32 %v27, 4294901760
    %v7207 = vsub.f32 %v27, %v7206
    %7208 = vmatmul.f32.gmra.mxu0 %v7207
    %v7209 = vpop.f32.mrf.mxu0
    %v7210 = vadd.f32 %v7156, %v7209
    %7211 = vdwg.mxu0
    %v7212 = vand.u32 %v7015, 4294901760
    %7213 = vmatpush.msra.mxu0 %v7212
    %v7214 = vand.u32 %v7014, 4294901760
    %7215 = vmatpush.msra.mxu0 %v7214
    %v7216 = vand.u32 %v7013, 4294901760
    %7217 = vmatpush.msra.mxu0 %v7216
    %v7218 = vand.u32 %v7012, 4294901760
    %7219 = vmatpush.msra.mxu0 %v7218
    %v7220 = vand.u32 %v7011, 4294901760
    %7221 = vmatpush.msra.mxu0 %v7220
    %v7222 = vand.u32 %v7010, 4294901760
    %7223 = vmatpush.msra.mxu0 %v7222
    %v7224 = vand.u32 %v7009, 4294901760
    %7225 = vmatpush.msra.mxu0 %v7224
    %v7226 = vand.u32 %v7008, 4294901760
    %7227 = vmatpush.msra.mxu0 %v7226
    %v7228 = vand.u32 %v7007, 4294901760
    %7229 = vmatpush.msra.mxu0 %v7228
    %v7230 = vand.u32 %v7006, 4294901760
    %7231 = vmatpush.msra.mxu0 %v7230
    %v7232 = vand.u32 %v7005, 4294901760
    %7233 = vmatpush.msra.mxu0 %v7232
    %v7234 = vand.u32 %v7004, 4294901760
    %7235 = vmatpush.msra.mxu0 %v7234
    %v7236 = vand.u32 %v7003, 4294901760
    %7237 = vmatpush.msra.mxu0 %v7236
    %v7238 = vand.u32 %v7002, 4294901760
    %7239 = vmatpush.msra.mxu0 %v7238
    %v7240 = vand.u32 %v7001, 4294901760
    %7241 = vmatpush.msra.mxu0 %v7240
    %v7242 = vand.u32 %v7000, 4294901760
    %7243 = vmatpush.msra.mxu0 %v7242
    %v7244 = vand.u32 %v27, 4294901760
    %v7245 = vsub.f32 %v27, %v7244
    %v7246 = vand.u32 %v7245, 4294901760
    %7247 = vmatmul.f32.gmra.mxu0 %v7246
    %v7248 = vpop.f32.mrf.mxu0
    %v7249 = vadd.f32 %v7210, %v7248
    %7250 = vdwg.mxu0
    %v7251 = vand.u32 %v7015, 4294901760
    %v7252 = vsub.f32 %v7015, %v7251
    %v7253 = vand.u32 %v7252, 4294901760
    %7254 = vmatpush.msra.mxu0 %v7253
    %v7255 = vand.u32 %v7014, 4294901760
    %v7256 = vsub.f32 %v7014, %v7255
    %v7257 = vand.u32 %v7256, 4294901760
    %7258 = vmatpush.msra.mxu0 %v7257
    %v7259 = vand.u32 %v7013, 4294901760
    %v7260 = vsub.f32 %v7013, %v7259
    %v7261 = vand.u32 %v7260, 4294901760
    %7262 = vmatpush.msra.mxu0 %v7261
    %v7263 = vand.u32 %v7012, 4294901760
    %v7264 = vsub.f32 %v7012, %v7263
    %v7265 = vand.u32 %v7264, 4294901760
    %7266 = vmatpush.msra.mxu0 %v7265
    %v7267 = vand.u32 %v7011, 4294901760
    %v7268 = vsub.f32 %v7011, %v7267
    %v7269 = vand.u32 %v7268, 4294901760
    %7270 = vmatpush.msra.mxu0 %v7269
    %v7271 = vand.u32 %v7010, 4294901760
    %v7272 = vsub.f32 %v7010, %v7271
    %v7273 = vand.u32 %v7272, 4294901760
    %7274 = vmatpush.msra.mxu0 %v7273
    %v7275 = vand.u32 %v7009, 4294901760
    %v7276 = vsub.f32 %v7009, %v7275
    %v7277 = vand.u32 %v7276, 4294901760
    %7278 = vmatpush.msra.mxu0 %v7277
    %v7279 = vand.u32 %v7008, 4294901760
    %v7280 = vsub.f32 %v7008, %v7279
    %v7281 = vand.u32 %v7280, 4294901760
    %7282 = vmatpush.msra.mxu0 %v7281
    %v7283 = vand.u32 %v7007, 4294901760
    %v7284 = vsub.f32 %v7007, %v7283
    %v7285 = vand.u32 %v7284, 4294901760
    %7286 = vmatpush.msra.mxu0 %v7285
    %v7287 = vand.u32 %v7006, 4294901760
    %v7288 = vsub.f32 %v7006, %v7287
    %v7289 = vand.u32 %v7288, 4294901760
    %7290 = vmatpush.msra.mxu0 %v7289
    %v7291 = vand.u32 %v7005, 4294901760
    %v7292 = vsub.f32 %v7005, %v7291
    %v7293 = vand.u32 %v7292, 4294901760
    %7294 = vmatpush.msra.mxu0 %v7293
    %v7295 = vand.u32 %v7004, 4294901760
    %v7296 = vsub.f32 %v7004, %v7295
    %v7297 = vand.u32 %v7296, 4294901760
    %7298 = vmatpush.msra.mxu0 %v7297
    %v7299 = vand.u32 %v7003, 4294901760
    %v7300 = vsub.f32 %v7003, %v7299
    %v7301 = vand.u32 %v7300, 4294901760
    %7302 = vmatpush.msra.mxu0 %v7301
    %v7303 = vand.u32 %v7002, 4294901760
    %v7304 = vsub.f32 %v7002, %v7303
    %v7305 = vand.u32 %v7304, 4294901760
    %7306 = vmatpush.msra.mxu0 %v7305
    %v7307 = vand.u32 %v7001, 4294901760
    %v7308 = vsub.f32 %v7001, %v7307
    %v7309 = vand.u32 %v7308, 4294901760
    %7310 = vmatpush.msra.mxu0 %v7309
    %v7311 = vand.u32 %v7000, 4294901760
    %v7312 = vsub.f32 %v7000, %v7311
    %v7313 = vand.u32 %v7312, 4294901760
    %7314 = vmatpush.msra.mxu0 %v7313
    %v7315 = vand.u32 %v27, 4294901760
    %7316 = vmatmul.f32.gmra.mxu0 %v7315
    %v7317 = vpop.f32.mrf.mxu0
    %v7318 = vadd.f32 %v7249, %v7317
    %7319 = vdwg.mxu0
    %v7320 = vand.u32 %v7015, 4294901760
    %7321 = vmatpush.msra.mxu0 %v7320
    %v7322 = vand.u32 %v7014, 4294901760
    %7323 = vmatpush.msra.mxu0 %v7322
    %v7324 = vand.u32 %v7013, 4294901760
    %7325 = vmatpush.msra.mxu0 %v7324
    %v7326 = vand.u32 %v7012, 4294901760
    %7327 = vmatpush.msra.mxu0 %v7326
    %v7328 = vand.u32 %v7011, 4294901760
    %7329 = vmatpush.msra.mxu0 %v7328
    %v7330 = vand.u32 %v7010, 4294901760
    %7331 = vmatpush.msra.mxu0 %v7330
    %v7332 = vand.u32 %v7009, 4294901760
    %7333 = vmatpush.msra.mxu0 %v7332
    %v7334 = vand.u32 %v7008, 4294901760
    %7335 = vmatpush.msra.mxu0 %v7334
    %v7336 = vand.u32 %v7007, 4294901760
    %7337 = vmatpush.msra.mxu0 %v7336
    %v7338 = vand.u32 %v7006, 4294901760
    %7339 = vmatpush.msra.mxu0 %v7338
    %v7340 = vand.u32 %v7005, 4294901760
    %7341 = vmatpush.msra.mxu0 %v7340
    %v7342 = vand.u32 %v7004, 4294901760
    %7343 = vmatpush.msra.mxu0 %v7342
    %v7344 = vand.u32 %v7003, 4294901760
    %7345 = vmatpush.msra.mxu0 %v7344
    %v7346 = vand.u32 %v7002, 4294901760
    %7347 = vmatpush.msra.mxu0 %v7346
    %v7348 = vand.u32 %v7001, 4294901760
    %7349 = vmatpush.msra.mxu0 %v7348
    %v7350 = vand.u32 %v7000, 4294901760
    %7351 = vmatpush.msra.mxu0 %v7350
    %v7352 = vand.u32 %v27, 4294901760
    %7353 = vmatmul.f32.gmra.mxu0 %v7352
    %v7354 = vpop.f32.mrf.mxu0
    %v7355 = vadd.f32 %v7318, %v7354
    %7356 = vdwg.mxu0
    %v7357 = vand.u32 2147483647, %v7355
    %vm7358 = vcmp.le.f32.partialorder %v7357, 0.7853982
    %vm7359 = vcmp.lt.s32.totalorder %v7355, 0
    %v7360 = vand.u32 %v7355, 2139095040
    %v7361 = vshrl.u32 %v7360, 23
    %v7362 = vsub.s32 %v7361, 127
    %v7363 = vand.u32 2147483647, %v7355
    %v7364 = vand.u32 %v7363, 8388607
    %v7365 = vor.u32 %v7364, 8388608
    %v7366 = vsub.s32 0, %v7365
    %v7367 = vadd.s32 %v7362, 1
    %vm7368 = vcmp.gt.s32.totalorder %v7367, 0
    %v7369 = vsel %vm7368, %v7367, 0
    %v7370 = vshrl.u32 %v7369, 5
    %v7371 = vand.u32 %v7369, 31
    %v7372 = vsub.s32 32, %v7371
    %v7373 = vshrl.u32 683565275, %v7372
    %v7374 = vshll.u32 683565275, %v7371
    %v7375 = vshrl.u32 2475754826, %v7372
    %v7376 = vor.u32 %v7374, %v7375
    %v7377 = vshll.u32 2475754826, %v7371
    %v7378 = vshrl.u32 2131351028, %v7372
    %v7379 = vor.u32 %v7377, %v7378
    %v7380 = vshll.u32 2131351028, %v7371
    %v7381 = vshrl.u32 2102212464, %v7372
    %v7382 = vor.u32 %v7380, %v7381
    %v7383 = vshll.u32 2102212464, %v7371
    %v7384 = vshrl.u32 920167782, %v7372
    %v7385 = vor.u32 %v7383, %v7384
    %v7386 = vshll.u32 920167782, %v7371
    %v7387 = vshrl.u32 1326507024, %v7372
    %v7388 = vor.u32 %v7386, %v7387
    %vm7389 = vcmp.lt.s32.totalorder %v7370, 1
    %vm7390 = vcmp.lt.s32.totalorder %v7370, 2
    %vm7391 = vcmp.lt.s32.totalorder %v7370, 3
    %vm7392 = vcmp.lt.s32.totalorder %v7370, 4
    %v7393 = vsel %vm7389, %v7373, %v7376
    %v7394 = vsel %vm7392, %v7382, 2102212464
    %v7395 = vsel %vm7391, %v7379, %v7394
    %v7396 = vsel %vm7390, %v7393, %v7395
    %v7397 = vsel %vm7389, %v7376, %v7379
    %v7398 = vsel %vm7392, %v7385, 920167782
    %v7399 = vsel %vm7391, %v7382, %v7398
    %v7400 = vsel %vm7390, %v7397, %v7399
    %v7401 = vsel %vm7389, %v7379, %v7382
    %v7402 = vsel %vm7392, %v7388, 1326507024
    %v7403 = vsel %vm7391, %v7385, %v7402
    %v7404 = vsel %vm7390, %v7401, %v7403
    %v7405 = vshll.u32 %v7365, 8
    %v7406 = vand.u32 %v7405, 65535
    %v7407 = vshrl.u32 %v7405, 16
    %v7408 = vand.u32 %v7404, 65535
    %v7409 = vshrl.u32 %v7404, 16
    %v7410 = vmul.u32 %v7406, %v7408
    %v7411 = vmul.u32 %v7406, %v7409
    %v7412 = vmul.u32 %v7407, %v7408
    %v7413 = vmul.u32 %v7407, %v7409
    %v7414 = vshll.u32 %v7411, 16
    %v7415 = vshrl.u32 %v7411, 16
    %v7416 = vshll.u32 %v7412, 16
    %v7417 = vshrl.u32 %v7412, 16
    %vm7418 = vc.u32 %v7410, %v7414
    %v7419 = vsel %vm7418, 1, 0
    %v7420 = vadd.s32 %v7410, %v7414
    %v7421 = vadd.s32 %v7413, %v7419
    %vm7422 = vc.u32 %v7420, %v7416
    %v7423 = vsel %vm7422, 1, 0
    %v7424 = vadd.s32 %v7420, %v7416
    %v7425 = vadd.s32 %v7421, %v7423
    %v7426 = vadd.s32 %v7425, %v7415
    %v7427 = vadd.s32 %v7426, %v7417
    %v7428 = vand.u32 %v7405, 65535
    %v7429 = vshrl.u32 %v7405, 16
    %v7430 = vand.u32 %v7400, 65535
    %v7431 = vshrl.u32 %v7400, 16
    %v7432 = vmul.u32 %v7428, %v7430
    %v7433 = vmul.u32 %v7428, %v7431
    %v7434 = vmul.u32 %v7429, %v7430
    %v7435 = vmul.u32 %v7429, %v7431
    %v7436 = vshll.u32 %v7433, 16
    %v7437 = vshrl.u32 %v7433, 16
    %v7438 = vshll.u32 %v7434, 16
    %v7439 = vshrl.u32 %v7434, 16
    %vm7440 = vc.u32 %v7432, %v7436
    %v7441 = vsel %vm7440, 1, 0
    %v7442 = vadd.s32 %v7432, %v7436
    %v7443 = vadd.s32 %v7435, %v7441
    %vm7444 = vc.u32 %v7442, %v7438
    %v7445 = vsel %vm7444, 1, 0
    %v7446 = vadd.s32 %v7442, %v7438
    %v7447 = vadd.s32 %v7443, %v7445
    %v7448 = vadd.s32 %v7447, %v7437
    %v7449 = vadd.s32 %v7448, %v7439
    %v7450 = vmul.u32 %v7405, %v7396
    %v7451 = vadd.s32 %v7427, %v7446
    %vm7452 = vc.u32 %v7427, %v7446
    %v7453 = vadd.s32 %v7449, 1
    %v7454 = vsel %vm7452, %v7453, %v7449
    %v7455 = vadd.s32 %v7450, %v7454
    %v7456 = vadd.s32 %v7455, 536870912
    %v7457 = vshrl.u32 %v7456, 30
    %v7458 = vshll.u32 %v7457, 30
    %v7459 = vsub.s32 %v7455, %v7458
    %vm7460 = vcmp.lt.s32.totalorder %v7459, 0
    %v7461 = vsub.s32 0, %v7459
    %v7462 = vsel %vm7460, %v7461, %v7459
    %v7463 = vclz %v7462
    %v7464 = vsub.s32 %v7463, 2
    %vm7465 = vcmp.gt.s32.totalorder 0, %v7464
    %v7466 = vsel %vm7465, 0, %v7464
    %v7467 = vsub.s32 32, %v7466
    %v7468 = vshll.u32 %v7459, %v7466
    %v7469 = vshrl.u32 %v7451, %v7467
    %v7470 = vor.u32 %v7468, %v7469
    %v7471 = vsub.s32 4294967266, %v7466
    %v7472 = vadd.s32 %v7471, 127
    %v7473 = vshll.u32 %v7472, 23
    %v7474 = vor.u32 4788187, %v7473
    %v7475 = vand.u32 2147483647, %v7474
    %v7477 = vcvt.s32.f32 %v7470
    %v7478 = vmul.f32 %v7477, %v7475
    %v7479 = vxor.u32 %v7478, 2147483648
    %v7480 = vsel %vm7359, %v7479, %v7478
    %v7481 = vsub.s32 4, %v7457
    %v7482 = vsel %vm7359, %v7481, %v7457
    %v7483 = vsel %vm7358, %v7355, %v7480
    %v7484 = vsel %vm7358, 0, %v7482
    %v7485 = vmul.f32 %v7483, %v7483
    %v7486 = vmul.f32 %v7485, -0.001358992
    %v7487 = vadd.f32 %v7486, 0.041655596
    %v7488 = vmul.f32 %v7485, %v7487
    %v7489 = vadd.f32 %v7488, -0.4999988
    %v7490 = vmul.f32 %v7485, %v7489
    %v7491 = vadd.f32 1.0, %v7490
    %v7492 = vmul.f32 %v7483, %v7483
    %v7493 = vmul.f32 %v7492, -0.00019511016
    %v7494 = vadd.f32 %v7493, 0.008332121
    %v7495 = vmul.f32 %v7492, %v7494
    %v7496 = vadd.f32 %v7495, -0.16666654
    %v7497 = vmul.f32 %v7492, %v7496
    %v7498 = vadd.f32 %v7497, 1.0
    %v7499 = vmul.f32 %v7498, %v7483
    %vm7500 = vweird.f32 %v7355
    %v7501 = vadd.s32 %v7484, 3
    %v7502 = vand.u32 %v7501, 3
    %vm7503 = vcmp.lt.s32.totalorder %v7502, 2
    %vm7504 = vcmp.eq.s32.totalorder %v7502, 0
    %v7505 = vxor.u32 %v7499, 2147483648
    %v7506 = vsel %vm7504, %v7491, %v7505
    %vm7507 = vcmp.eq.s32.totalorder %v7502, 2
    %v7508 = vxor.u32 %v7491, 2147483648
    %v7509 = vsel %vm7507, %v7508, %v7499
    %v7510 = vsel %vm7503, %v7506, %v7509
    %v7511 = vsel %vm7500, nan, %v7510
    %v7513 = vrot.slane %v7511, 1
    %v7514 = vrot.slane %v7511, 2
    %v7515 = vrot.slane %v7511, 3
    %v7516 = vrot.slane %v7511, 4
    %v7517 = vrot.slane %v7511, 5
    %v7518 = vrot.slane %v7511, 6
    %v7519 = vrot.slane %v7511, 7
    %7527 = vst.msk [vmem:[#allocation4 + $0xd] sm:$0x1] %vm558, %v7511
    %7528 = vst.msk [vmem:[#allocation4 + $0x1d] sm:$0x1] %vm558, %v7513
    %7529 = vst.msk [vmem:[#allocation4 + $0x2d] sm:$0x1] %vm558, %v7514
    %7530 = vst.msk [vmem:[#allocation4 + $0x3d] sm:$0x1] %vm558, %v7515
    %7531 = vst.msk [vmem:[#allocation4 + $0x4d] sm:$0x1] %vm558, %v7516
    %7532 = vst.msk [vmem:[#allocation4 + $0x5d] sm:$0x1] %vm558, %v7517
    %7533 = vst.msk [vmem:[#allocation4 + $0x6d] sm:$0x1] %vm558, %v7518
    %7534 = vst.msk [vmem:[#allocation4 + $0x7d] sm:$0x1] %vm558, %v7519
    %s7535 = scalar_lea.vmem [#allocation2], 1792
    %v7536 = vld [vmem:[%s7535] sm:$0xff]
    %v7537 = vld [vmem:[%s7535 + $0x8] sm:$0xff]
    %v7538 = vld [vmem:[%s7535 + $0x10] sm:$0xff]
    %v7539 = vld [vmem:[%s7535 + $0x18] sm:$0xff]
    %v7540 = vld [vmem:[%s7535 + $0x20] sm:$0xff]
    %v7541 = vld [vmem:[%s7535 + $0x28] sm:$0xff]
    %v7542 = vld [vmem:[%s7535 + $0x30] sm:$0xff]
    %v7543 = vld [vmem:[%s7535 + $0x38] sm:$0xff]
    %v7544 = vld [vmem:[%s7535 + $0x40] sm:$0xff]
    %v7545 = vld [vmem:[%s7535 + $0x48] sm:$0xff]
    %v7546 = vld [vmem:[%s7535 + $0x50] sm:$0xff]
    %v7547 = vld [vmem:[%s7535 + $0x58] sm:$0xff]
    %v7548 = vld [vmem:[%s7535 + $0x60] sm:$0xff]
    %v7549 = vld [vmem:[%s7535 + $0x68] sm:$0xff]
    %v7550 = vld [vmem:[%s7535 + $0x70] sm:$0xff]
    %v7551 = vld [vmem:[%s7535 + $0x78] sm:$0xff]
    %v7552 = vand.u32 %v7551, 4294901760
    %7553 = vmatpush.msra.mxu0 %v7552
    %v7554 = vand.u32 %v7550, 4294901760
    %7555 = vmatpush.msra.mxu0 %v7554
    %v7556 = vand.u32 %v7549, 4294901760
    %7557 = vmatpush.msra.mxu0 %v7556
    %v7558 = vand.u32 %v7548, 4294901760
    %7559 = vmatpush.msra.mxu0 %v7558
    %v7560 = vand.u32 %v7547, 4294901760
    %7561 = vmatpush.msra.mxu0 %v7560
    %v7562 = vand.u32 %v7546, 4294901760
    %7563 = vmatpush.msra.mxu0 %v7562
    %v7564 = vand.u32 %v7545, 4294901760
    %7565 = vmatpush.msra.mxu0 %v7564
    %v7566 = vand.u32 %v7544, 4294901760
    %7567 = vmatpush.msra.mxu0 %v7566
    %v7568 = vand.u32 %v7543, 4294901760
    %7569 = vmatpush.msra.mxu0 %v7568
    %v7570 = vand.u32 %v7542, 4294901760
    %7571 = vmatpush.msra.mxu0 %v7570
    %v7572 = vand.u32 %v7541, 4294901760
    %7573 = vmatpush.msra.mxu0 %v7572
    %v7574 = vand.u32 %v7540, 4294901760
    %7575 = vmatpush.msra.mxu0 %v7574
    %v7576 = vand.u32 %v7539, 4294901760
    %7577 = vmatpush.msra.mxu0 %v7576
    %v7578 = vand.u32 %v7538, 4294901760
    %7579 = vmatpush.msra.mxu0 %v7578
    %v7580 = vand.u32 %v7537, 4294901760
    %7581 = vmatpush.msra.mxu0 %v7580
    %v7582 = vand.u32 %v7536, 4294901760
    %7583 = vmatpush.msra.mxu0 %v7582
    %v7584 = vand.u32 %v27, 4294901760
    %v7585 = vsub.f32 %v27, %v7584
    %v7586 = vand.u32 %v7585, 4294901760
    %v7587 = vsub.f32 %v7585, %v7586
    %v7588 = vand.u32 %v7587, 4294901760
    %7589 = vmatmul.f32.gmra.mxu0 %v7588
    %v7590 = vpop.f32.mrf.mxu0
    %v7591 = vadd.f32 0.0, %v7590
    %7592 = vdwg.mxu0
    %v7593 = vand.u32 %v7551, 4294901760
    %v7594 = vsub.f32 %v7551, %v7593
    %v7595 = vand.u32 %v7594, 4294901760
    %v7596 = vsub.f32 %v7594, %v7595
    %v7597 = vand.u32 %v7596, 4294901760
    %7598 = vmatpush.msra.mxu0 %v7597
    %v7599 = vand.u32 %v7550, 4294901760
    %v7600 = vsub.f32 %v7550, %v7599
    %v7601 = vand.u32 %v7600, 4294901760
    %v7602 = vsub.f32 %v7600, %v7601
    %v7603 = vand.u32 %v7602, 4294901760
    %7604 = vmatpush.msra.mxu0 %v7603
    %v7605 = vand.u32 %v7549, 4294901760
    %v7606 = vsub.f32 %v7549, %v7605
    %v7607 = vand.u32 %v7606, 4294901760
    %v7608 = vsub.f32 %v7606, %v7607
    %v7609 = vand.u32 %v7608, 4294901760
    %7610 = vmatpush.msra.mxu0 %v7609
    %v7611 = vand.u32 %v7548, 4294901760
    %v7612 = vsub.f32 %v7548, %v7611
    %v7613 = vand.u32 %v7612, 4294901760
    %v7614 = vsub.f32 %v7612, %v7613
    %v7615 = vand.u32 %v7614, 4294901760
    %7616 = vmatpush.msra.mxu0 %v7615
    %v7617 = vand.u32 %v7547, 4294901760
    %v7618 = vsub.f32 %v7547, %v7617
    %v7619 = vand.u32 %v7618, 4294901760
    %v7620 = vsub.f32 %v7618, %v7619
    %v7621 = vand.u32 %v7620, 4294901760
    %7622 = vmatpush.msra.mxu0 %v7621
    %v7623 = vand.u32 %v7546, 4294901760
    %v7624 = vsub.f32 %v7546, %v7623
    %v7625 = vand.u32 %v7624, 4294901760
    %v7626 = vsub.f32 %v7624, %v7625
    %v7627 = vand.u32 %v7626, 4294901760
    %7628 = vmatpush.msra.mxu0 %v7627
    %v7629 = vand.u32 %v7545, 4294901760
    %v7630 = vsub.f32 %v7545, %v7629
    %v7631 = vand.u32 %v7630, 4294901760
    %v7632 = vsub.f32 %v7630, %v7631
    %v7633 = vand.u32 %v7632, 4294901760
    %7634 = vmatpush.msra.mxu0 %v7633
    %v7635 = vand.u32 %v7544, 4294901760
    %v7636 = vsub.f32 %v7544, %v7635
    %v7637 = vand.u32 %v7636, 4294901760
    %v7638 = vsub.f32 %v7636, %v7637
    %v7639 = vand.u32 %v7638, 4294901760
    %7640 = vmatpush.msra.mxu0 %v7639
    %v7641 = vand.u32 %v7543, 4294901760
    %v7642 = vsub.f32 %v7543, %v7641
    %v7643 = vand.u32 %v7642, 4294901760
    %v7644 = vsub.f32 %v7642, %v7643
    %v7645 = vand.u32 %v7644, 4294901760
    %7646 = vmatpush.msra.mxu0 %v7645
    %v7647 = vand.u32 %v7542, 4294901760
    %v7648 = vsub.f32 %v7542, %v7647
    %v7649 = vand.u32 %v7648, 4294901760
    %v7650 = vsub.f32 %v7648, %v7649
    %v7651 = vand.u32 %v7650, 4294901760
    %7652 = vmatpush.msra.mxu0 %v7651
    %v7653 = vand.u32 %v7541, 4294901760
    %v7654 = vsub.f32 %v7541, %v7653
    %v7655 = vand.u32 %v7654, 4294901760
    %v7656 = vsub.f32 %v7654, %v7655
    %v7657 = vand.u32 %v7656, 4294901760
    %7658 = vmatpush.msra.mxu0 %v7657
    %v7659 = vand.u32 %v7540, 4294901760
    %v7660 = vsub.f32 %v7540, %v7659
    %v7661 = vand.u32 %v7660, 4294901760
    %v7662 = vsub.f32 %v7660, %v7661
    %v7663 = vand.u32 %v7662, 4294901760
    %7664 = vmatpush.msra.mxu0 %v7663
    %v7665 = vand.u32 %v7539, 4294901760
    %v7666 = vsub.f32 %v7539, %v7665
    %v7667 = vand.u32 %v7666, 4294901760
    %v7668 = vsub.f32 %v7666, %v7667
    %v7669 = vand.u32 %v7668, 4294901760
    %7670 = vmatpush.msra.mxu0 %v7669
    %v7671 = vand.u32 %v7538, 4294901760
    %v7672 = vsub.f32 %v7538, %v7671
    %v7673 = vand.u32 %v7672, 4294901760
    %v7674 = vsub.f32 %v7672, %v7673
    %v7675 = vand.u32 %v7674, 4294901760
    %7676 = vmatpush.msra.mxu0 %v7675
    %v7677 = vand.u32 %v7537, 4294901760
    %v7678 = vsub.f32 %v7537, %v7677
    %v7679 = vand.u32 %v7678, 4294901760
    %v7680 = vsub.f32 %v7678, %v7679
    %v7681 = vand.u32 %v7680, 4294901760
    %7682 = vmatpush.msra.mxu0 %v7681
    %v7683 = vand.u32 %v7536, 4294901760
    %v7684 = vsub.f32 %v7536, %v7683
    %v7685 = vand.u32 %v7684, 4294901760
    %v7686 = vsub.f32 %v7684, %v7685
    %v7687 = vand.u32 %v7686, 4294901760
    %7688 = vmatpush.msra.mxu0 %v7687
    %v7689 = vand.u32 %v27, 4294901760
    %7690 = vmatmul.f32.gmra.mxu0 %v7689
    %v7691 = vpop.f32.mrf.mxu0
    %v7692 = vadd.f32 %v7591, %v7691
    %7693 = vdwg.mxu0
    %v7694 = vand.u32 %v7551, 4294901760
    %v7695 = vsub.f32 %v7551, %v7694
    %7696 = vmatpush.msra.mxu0 %v7695
    %v7697 = vand.u32 %v7550, 4294901760
    %v7698 = vsub.f32 %v7550, %v7697
    %7699 = vmatpush.msra.mxu0 %v7698
    %v7700 = vand.u32 %v7549, 4294901760
    %v7701 = vsub.f32 %v7549, %v7700
    %7702 = vmatpush.msra.mxu0 %v7701
    %v7703 = vand.u32 %v7548, 4294901760
    %v7704 = vsub.f32 %v7548, %v7703
    %7705 = vmatpush.msra.mxu0 %v7704
    %v7706 = vand.u32 %v7547, 4294901760
    %v7707 = vsub.f32 %v7547, %v7706
    %7708 = vmatpush.msra.mxu0 %v7707
    %v7709 = vand.u32 %v7546, 4294901760
    %v7710 = vsub.f32 %v7546, %v7709
    %7711 = vmatpush.msra.mxu0 %v7710
    %v7712 = vand.u32 %v7545, 4294901760
    %v7713 = vsub.f32 %v7545, %v7712
    %7714 = vmatpush.msra.mxu0 %v7713
    %v7715 = vand.u32 %v7544, 4294901760
    %v7716 = vsub.f32 %v7544, %v7715
    %7717 = vmatpush.msra.mxu0 %v7716
    %v7718 = vand.u32 %v7543, 4294901760
    %v7719 = vsub.f32 %v7543, %v7718
    %7720 = vmatpush.msra.mxu0 %v7719
    %v7721 = vand.u32 %v7542, 4294901760
    %v7722 = vsub.f32 %v7542, %v7721
    %7723 = vmatpush.msra.mxu0 %v7722
    %v7724 = vand.u32 %v7541, 4294901760
    %v7725 = vsub.f32 %v7541, %v7724
    %7726 = vmatpush.msra.mxu0 %v7725
    %v7727 = vand.u32 %v7540, 4294901760
    %v7728 = vsub.f32 %v7540, %v7727
    %7729 = vmatpush.msra.mxu0 %v7728
    %v7730 = vand.u32 %v7539, 4294901760
    %v7731 = vsub.f32 %v7539, %v7730
    %7732 = vmatpush.msra.mxu0 %v7731
    %v7733 = vand.u32 %v7538, 4294901760
    %v7734 = vsub.f32 %v7538, %v7733
    %7735 = vmatpush.msra.mxu0 %v7734
    %v7736 = vand.u32 %v7537, 4294901760
    %v7737 = vsub.f32 %v7537, %v7736
    %7738 = vmatpush.msra.mxu0 %v7737
    %v7739 = vand.u32 %v7536, 4294901760
    %v7740 = vsub.f32 %v7536, %v7739
    %7741 = vmatpush.msra.mxu0 %v7740
    %v7742 = vand.u32 %v27, 4294901760
    %v7743 = vsub.f32 %v27, %v7742
    %7744 = vmatmul.f32.gmra.mxu0 %v7743
    %v7745 = vpop.f32.mrf.mxu0
    %v7746 = vadd.f32 %v7692, %v7745
    %7747 = vdwg.mxu0
    %v7748 = vand.u32 %v7551, 4294901760
    %7749 = vmatpush.msra.mxu0 %v7748
    %v7750 = vand.u32 %v7550, 4294901760
    %7751 = vmatpush.msra.mxu0 %v7750
    %v7752 = vand.u32 %v7549, 4294901760
    %7753 = vmatpush.msra.mxu0 %v7752
    %v7754 = vand.u32 %v7548, 4294901760
    %7755 = vmatpush.msra.mxu0 %v7754
    %v7756 = vand.u32 %v7547, 4294901760
    %7757 = vmatpush.msra.mxu0 %v7756
    %v7758 = vand.u32 %v7546, 4294901760
    %7759 = vmatpush.msra.mxu0 %v7758
    %v7760 = vand.u32 %v7545, 4294901760
    %7761 = vmatpush.msra.mxu0 %v7760
    %v7762 = vand.u32 %v7544, 4294901760
    %7763 = vmatpush.msra.mxu0 %v7762
    %v7764 = vand.u32 %v7543, 4294901760
    %7765 = vmatpush.msra.mxu0 %v7764
    %v7766 = vand.u32 %v7542, 4294901760
    %7767 = vmatpush.msra.mxu0 %v7766
    %v7768 = vand.u32 %v7541, 4294901760
    %7769 = vmatpush.msra.mxu0 %v7768
    %v7770 = vand.u32 %v7540, 4294901760
    %7771 = vmatpush.msra.mxu0 %v7770
    %v7772 = vand.u32 %v7539, 4294901760
    %7773 = vmatpush.msra.mxu0 %v7772
    %v7774 = vand.u32 %v7538, 4294901760
    %7775 = vmatpush.msra.mxu0 %v7774
    %v7776 = vand.u32 %v7537, 4294901760
    %7777 = vmatpush.msra.mxu0 %v7776
    %v7778 = vand.u32 %v7536, 4294901760
    %7779 = vmatpush.msra.mxu0 %v7778
    %v7780 = vand.u32 %v27, 4294901760
    %v7781 = vsub.f32 %v27, %v7780
    %v7782 = vand.u32 %v7781, 4294901760
    %7783 = vmatmul.f32.gmra.mxu0 %v7782
    %v7784 = vpop.f32.mrf.mxu0
    %v7785 = vadd.f32 %v7746, %v7784
    %7786 = vdwg.mxu0
    %v7787 = vand.u32 %v7551, 4294901760
    %v7788 = vsub.f32 %v7551, %v7787
    %v7789 = vand.u32 %v7788, 4294901760
    %7790 = vmatpush.msra.mxu0 %v7789
    %v7791 = vand.u32 %v7550, 4294901760
    %v7792 = vsub.f32 %v7550, %v7791
    %v7793 = vand.u32 %v7792, 4294901760
    %7794 = vmatpush.msra.mxu0 %v7793
    %v7795 = vand.u32 %v7549, 4294901760
    %v7796 = vsub.f32 %v7549, %v7795
    %v7797 = vand.u32 %v7796, 4294901760
    %7798 = vmatpush.msra.mxu0 %v7797
    %v7799 = vand.u32 %v7548, 4294901760
    %v7800 = vsub.f32 %v7548, %v7799
    %v7801 = vand.u32 %v7800, 4294901760
    %7802 = vmatpush.msra.mxu0 %v7801
    %v7803 = vand.u32 %v7547, 4294901760
    %v7804 = vsub.f32 %v7547, %v7803
    %v7805 = vand.u32 %v7804, 4294901760
    %7806 = vmatpush.msra.mxu0 %v7805
    %v7807 = vand.u32 %v7546, 4294901760
    %v7808 = vsub.f32 %v7546, %v7807
    %v7809 = vand.u32 %v7808, 4294901760
    %7810 = vmatpush.msra.mxu0 %v7809
    %v7811 = vand.u32 %v7545, 4294901760
    %v7812 = vsub.f32 %v7545, %v7811
    %v7813 = vand.u32 %v7812, 4294901760
    %7814 = vmatpush.msra.mxu0 %v7813
    %v7815 = vand.u32 %v7544, 4294901760
    %v7816 = vsub.f32 %v7544, %v7815
    %v7817 = vand.u32 %v7816, 4294901760
    %7818 = vmatpush.msra.mxu0 %v7817
    %v7819 = vand.u32 %v7543, 4294901760
    %v7820 = vsub.f32 %v7543, %v7819
    %v7821 = vand.u32 %v7820, 4294901760
    %7822 = vmatpush.msra.mxu0 %v7821
    %v7823 = vand.u32 %v7542, 4294901760
    %v7824 = vsub.f32 %v7542, %v7823
    %v7825 = vand.u32 %v7824, 4294901760
    %7826 = vmatpush.msra.mxu0 %v7825
    %v7827 = vand.u32 %v7541, 4294901760
    %v7828 = vsub.f32 %v7541, %v7827
    %v7829 = vand.u32 %v7828, 4294901760
    %7830 = vmatpush.msra.mxu0 %v7829
    %v7831 = vand.u32 %v7540, 4294901760
    %v7832 = vsub.f32 %v7540, %v7831
    %v7833 = vand.u32 %v7832, 4294901760
    %7834 = vmatpush.msra.mxu0 %v7833
    %v7835 = vand.u32 %v7539, 4294901760
    %v7836 = vsub.f32 %v7539, %v7835
    %v7837 = vand.u32 %v7836, 4294901760
    %7838 = vmatpush.msra.mxu0 %v7837
    %v7839 = vand.u32 %v7538, 4294901760
    %v7840 = vsub.f32 %v7538, %v7839
    %v7841 = vand.u32 %v7840, 4294901760
    %7842 = vmatpush.msra.mxu0 %v7841
    %v7843 = vand.u32 %v7537, 4294901760
    %v7844 = vsub.f32 %v7537, %v7843
    %v7845 = vand.u32 %v7844, 4294901760
    %7846 = vmatpush.msra.mxu0 %v7845
    %v7847 = vand.u32 %v7536, 4294901760
    %v7848 = vsub.f32 %v7536, %v7847
    %v7849 = vand.u32 %v7848, 4294901760
    %7850 = vmatpush.msra.mxu0 %v7849
    %v7851 = vand.u32 %v27, 4294901760
    %7852 = vmatmul.f32.gmra.mxu0 %v7851
    %v7853 = vpop.f32.mrf.mxu0
    %v7854 = vadd.f32 %v7785, %v7853
    %7855 = vdwg.mxu0
    %v7856 = vand.u32 %v7551, 4294901760
    %7857 = vmatpush.msra.mxu0 %v7856
    %v7858 = vand.u32 %v7550, 4294901760
    %7859 = vmatpush.msra.mxu0 %v7858
    %v7860 = vand.u32 %v7549, 4294901760
    %7861 = vmatpush.msra.mxu0 %v7860
    %v7862 = vand.u32 %v7548, 4294901760
    %7863 = vmatpush.msra.mxu0 %v7862
    %v7864 = vand.u32 %v7547, 4294901760
    %7865 = vmatpush.msra.mxu0 %v7864
    %v7866 = vand.u32 %v7546, 4294901760
    %7867 = vmatpush.msra.mxu0 %v7866
    %v7868 = vand.u32 %v7545, 4294901760
    %7869 = vmatpush.msra.mxu0 %v7868
    %v7870 = vand.u32 %v7544, 4294901760
    %7871 = vmatpush.msra.mxu0 %v7870
    %v7872 = vand.u32 %v7543, 4294901760
    %7873 = vmatpush.msra.mxu0 %v7872
    %v7874 = vand.u32 %v7542, 4294901760
    %7875 = vmatpush.msra.mxu0 %v7874
    %v7876 = vand.u32 %v7541, 4294901760
    %7877 = vmatpush.msra.mxu0 %v7876
    %v7878 = vand.u32 %v7540, 4294901760
    %7879 = vmatpush.msra.mxu0 %v7878
    %v7880 = vand.u32 %v7539, 4294901760
    %7881 = vmatpush.msra.mxu0 %v7880
    %v7882 = vand.u32 %v7538, 4294901760
    %7883 = vmatpush.msra.mxu0 %v7882
    %v7884 = vand.u32 %v7537, 4294901760
    %7885 = vmatpush.msra.mxu0 %v7884
    %v7886 = vand.u32 %v7536, 4294901760
    %7887 = vmatpush.msra.mxu0 %v7886
    %v7888 = vand.u32 %v27, 4294901760
    %7889 = vmatmul.f32.gmra.mxu0 %v7888
    %v7890 = vpop.f32.mrf.mxu0
    %v7891 = vadd.f32 %v7854, %v7890
    %7892 = vdwg.mxu0
    %v7893 = vand.u32 2147483647, %v7891
    %vm7894 = vcmp.le.f32.partialorder %v7893, 0.7853982
    %vm7895 = vcmp.lt.s32.totalorder %v7891, 0
    %v7896 = vand.u32 %v7891, 2139095040
    %v7897 = vshrl.u32 %v7896, 23
    %v7898 = vsub.s32 %v7897, 127
    %v7899 = vand.u32 2147483647, %v7891
    %v7900 = vand.u32 %v7899, 8388607
    %v7901 = vor.u32 %v7900, 8388608
    %v7902 = vsub.s32 0, %v7901
    %v7903 = vadd.s32 %v7898, 1
    %vm7904 = vcmp.gt.s32.totalorder %v7903, 0
    %v7905 = vsel %vm7904, %v7903, 0
    %v7906 = vshrl.u32 %v7905, 5
    %v7907 = vand.u32 %v7905, 31
    %v7908 = vsub.s32 32, %v7907
    %v7909 = vshrl.u32 683565275, %v7908
    %v7910 = vshll.u32 683565275, %v7907
    %v7911 = vshrl.u32 2475754826, %v7908
    %v7912 = vor.u32 %v7910, %v7911
    %v7913 = vshll.u32 2475754826, %v7907
    %v7914 = vshrl.u32 2131351028, %v7908
    %v7915 = vor.u32 %v7913, %v7914
    %v7916 = vshll.u32 2131351028, %v7907
    %v7917 = vshrl.u32 2102212464, %v7908
    %v7918 = vor.u32 %v7916, %v7917
    %v7919 = vshll.u32 2102212464, %v7907
    %v7920 = vshrl.u32 920167782, %v7908
    %v7921 = vor.u32 %v7919, %v7920
    %v7922 = vshll.u32 920167782, %v7907
    %v7923 = vshrl.u32 1326507024, %v7908
    %v7924 = vor.u32 %v7922, %v7923
    %vm7925 = vcmp.lt.s32.totalorder %v7906, 1
    %vm7926 = vcmp.lt.s32.totalorder %v7906, 2
    %vm7927 = vcmp.lt.s32.totalorder %v7906, 3
    %vm7928 = vcmp.lt.s32.totalorder %v7906, 4
    %v7929 = vsel %vm7925, %v7909, %v7912
    %v7930 = vsel %vm7928, %v7918, 2102212464
    %v7931 = vsel %vm7927, %v7915, %v7930
    %v7932 = vsel %vm7926, %v7929, %v7931
    %v7933 = vsel %vm7925, %v7912, %v7915
    %v7934 = vsel %vm7928, %v7921, 920167782
    %v7935 = vsel %vm7927, %v7918, %v7934
    %v7936 = vsel %vm7926, %v7933, %v7935
    %v7937 = vsel %vm7925, %v7915, %v7918
    %v7938 = vsel %vm7928, %v7924, 1326507024
    %v7939 = vsel %vm7927, %v7921, %v7938
    %v7940 = vsel %vm7926, %v7937, %v7939
    %v7941 = vshll.u32 %v7901, 8
    %v7942 = vand.u32 %v7941, 65535
    %v7943 = vshrl.u32 %v7941, 16
    %v7944 = vand.u32 %v7940, 65535
    %v7945 = vshrl.u32 %v7940, 16
    %v7946 = vmul.u32 %v7942, %v7944
    %v7947 = vmul.u32 %v7942, %v7945
    %v7948 = vmul.u32 %v7943, %v7944
    %v7949 = vmul.u32 %v7943, %v7945
    %v7950 = vshll.u32 %v7947, 16
    %v7951 = vshrl.u32 %v7947, 16
    %v7952 = vshll.u32 %v7948, 16
    %v7953 = vshrl.u32 %v7948, 16
    %vm7954 = vc.u32 %v7946, %v7950
    %v7955 = vsel %vm7954, 1, 0
    %v7956 = vadd.s32 %v7946, %v7950
    %v7957 = vadd.s32 %v7949, %v7955
    %vm7958 = vc.u32 %v7956, %v7952
    %v7959 = vsel %vm7958, 1, 0
    %v7960 = vadd.s32 %v7956, %v7952
    %v7961 = vadd.s32 %v7957, %v7959
    %v7962 = vadd.s32 %v7961, %v7951
    %v7963 = vadd.s32 %v7962, %v7953
    %v7964 = vand.u32 %v7941, 65535
    %v7965 = vshrl.u32 %v7941, 16
    %v7966 = vand.u32 %v7936, 65535
    %v7967 = vshrl.u32 %v7936, 16
    %v7968 = vmul.u32 %v7964, %v7966
    %v7969 = vmul.u32 %v7964, %v7967
    %v7970 = vmul.u32 %v7965, %v7966
    %v7971 = vmul.u32 %v7965, %v7967
    %v7972 = vshll.u32 %v7969, 16
    %v7973 = vshrl.u32 %v7969, 16
    %v7974 = vshll.u32 %v7970, 16
    %v7975 = vshrl.u32 %v7970, 16
    %vm7976 = vc.u32 %v7968, %v7972
    %v7977 = vsel %vm7976, 1, 0
    %v7978 = vadd.s32 %v7968, %v7972
    %v7979 = vadd.s32 %v7971, %v7977
    %vm7980 = vc.u32 %v7978, %v7974
    %v7981 = vsel %vm7980, 1, 0
    %v7982 = vadd.s32 %v7978, %v7974
    %v7983 = vadd.s32 %v7979, %v7981
    %v7984 = vadd.s32 %v7983, %v7973
    %v7985 = vadd.s32 %v7984, %v7975
    %v7986 = vmul.u32 %v7941, %v7932
    %v7987 = vadd.s32 %v7963, %v7982
    %vm7988 = vc.u32 %v7963, %v7982
    %v7989 = vadd.s32 %v7985, 1
    %v7990 = vsel %vm7988, %v7989, %v7985
    %v7991 = vadd.s32 %v7986, %v7990
    %v7992 = vadd.s32 %v7991, 536870912
    %v7993 = vshrl.u32 %v7992, 30
    %v7994 = vshll.u32 %v7993, 30
    %v7995 = vsub.s32 %v7991, %v7994
    %vm7996 = vcmp.lt.s32.totalorder %v7995, 0
    %v7997 = vsub.s32 0, %v7995
    %v7998 = vsel %vm7996, %v7997, %v7995
    %v7999 = vclz %v7998
    %v8000 = vsub.s32 %v7999, 2
    %vm8001 = vcmp.gt.s32.totalorder 0, %v8000
    %v8002 = vsel %vm8001, 0, %v8000
    %v8003 = vsub.s32 32, %v8002
    %v8004 = vshll.u32 %v7995, %v8002
    %v8005 = vshrl.u32 %v7987, %v8003
    %v8006 = vor.u32 %v8004, %v8005
    %v8007 = vsub.s32 4294967266, %v8002
    %v8008 = vadd.s32 %v8007, 127
    %v8009 = vshll.u32 %v8008, 23
    %v8010 = vor.u32 4788187, %v8009
    %v8011 = vand.u32 2147483647, %v8010
    %v8013 = vcvt.s32.f32 %v8006
    %v8014 = vmul.f32 %v8013, %v8011
    %v8015 = vxor.u32 %v8014, 2147483648
    %v8016 = vsel %vm7895, %v8015, %v8014
    %v8017 = vsub.s32 4, %v7993
    %v8018 = vsel %vm7895, %v8017, %v7993
    %v8019 = vsel %vm7894, %v7891, %v8016
    %v8020 = vsel %vm7894, 0, %v8018
    %v8021 = vmul.f32 %v8019, %v8019
    %v8022 = vmul.f32 %v8021, -0.001358992
    %v8023 = vadd.f32 %v8022, 0.041655596
    %v8024 = vmul.f32 %v8021, %v8023
    %v8025 = vadd.f32 %v8024, -0.4999988
    %v8026 = vmul.f32 %v8021, %v8025
    %v8027 = vadd.f32 1.0, %v8026
    %v8028 = vmul.f32 %v8019, %v8019
    %v8029 = vmul.f32 %v8028, -0.00019511016
    %v8030 = vadd.f32 %v8029, 0.008332121
    %v8031 = vmul.f32 %v8028, %v8030
    %v8032 = vadd.f32 %v8031, -0.16666654
    %v8033 = vmul.f32 %v8028, %v8032
    %v8034 = vadd.f32 %v8033, 1.0
    %v8035 = vmul.f32 %v8034, %v8019
    %vm8036 = vweird.f32 %v7891
    %v8037 = vadd.s32 %v8020, 3
    %v8038 = vand.u32 %v8037, 3
    %vm8039 = vcmp.lt.s32.totalorder %v8038, 2
    %vm8040 = vcmp.eq.s32.totalorder %v8038, 0
    %v8041 = vxor.u32 %v8035, 2147483648
    %v8042 = vsel %vm8040, %v8027, %v8041
    %vm8043 = vcmp.eq.s32.totalorder %v8038, 2
    %v8044 = vxor.u32 %v8027, 2147483648
    %v8045 = vsel %vm8043, %v8044, %v8035
    %v8046 = vsel %vm8039, %v8042, %v8045
    %v8047 = vsel %vm8036, nan, %v8046
    %v8049 = vrot.slane %v8047, 1
    %v8050 = vrot.slane %v8047, 2
    %v8051 = vrot.slane %v8047, 3
    %v8052 = vrot.slane %v8047, 4
    %v8053 = vrot.slane %v8047, 5
    %v8054 = vrot.slane %v8047, 6
    %v8055 = vrot.slane %v8047, 7
    %8063 = vst.msk [vmem:[#allocation4 + $0xe] sm:$0x1] %vm558, %v8047
    %8064 = vst.msk [vmem:[#allocation4 + $0x1e] sm:$0x1] %vm558, %v8049
    %8065 = vst.msk [vmem:[#allocation4 + $0x2e] sm:$0x1] %vm558, %v8050
    %8066 = vst.msk [vmem:[#allocation4 + $0x3e] sm:$0x1] %vm558, %v8051
    %8067 = vst.msk [vmem:[#allocation4 + $0x4e] sm:$0x1] %vm558, %v8052
    %8068 = vst.msk [vmem:[#allocation4 + $0x5e] sm:$0x1] %vm558, %v8053
    %8069 = vst.msk [vmem:[#allocation4 + $0x6e] sm:$0x1] %vm558, %v8054
    %8070 = vst.msk [vmem:[#allocation4 + $0x7e] sm:$0x1] %vm558, %v8055
    %s8071 = scalar_lea.vmem [#allocation2], 1920
    %v8072 = vld [vmem:[%s8071] sm:$0xff]
    %v8073 = vld [vmem:[%s8071 + $0x8] sm:$0xff]
    %v8074 = vld [vmem:[%s8071 + $0x10] sm:$0xff]
    %v8075 = vld [vmem:[%s8071 + $0x18] sm:$0xff]
    %v8076 = vld [vmem:[%s8071 + $0x20] sm:$0xff]
    %v8077 = vld [vmem:[%s8071 + $0x28] sm:$0xff]
    %v8078 = vld [vmem:[%s8071 + $0x30] sm:$0xff]
    %v8079 = vld [vmem:[%s8071 + $0x38] sm:$0xff]
    %v8080 = vld [vmem:[%s8071 + $0x40] sm:$0xff]
    %v8081 = vld [vmem:[%s8071 + $0x48] sm:$0xff]
    %v8082 = vld [vmem:[%s8071 + $0x50] sm:$0xff]
    %v8083 = vld [vmem:[%s8071 + $0x58] sm:$0xff]
    %v8084 = vld [vmem:[%s8071 + $0x60] sm:$0xff]
    %v8085 = vld [vmem:[%s8071 + $0x68] sm:$0xff]
    %v8086 = vld [vmem:[%s8071 + $0x70] sm:$0xff]
    %v8087 = vld [vmem:[%s8071 + $0x78] sm:$0xff]
    %v8088 = vand.u32 %v8087, 4294901760
    %8089 = vmatpush.msra.mxu0 %v8088
    %v8090 = vand.u32 %v8086, 4294901760
    %8091 = vmatpush.msra.mxu0 %v8090
    %v8092 = vand.u32 %v8085, 4294901760
    %8093 = vmatpush.msra.mxu0 %v8092
    %v8094 = vand.u32 %v8084, 4294901760
    %8095 = vmatpush.msra.mxu0 %v8094
    %v8096 = vand.u32 %v8083, 4294901760
    %8097 = vmatpush.msra.mxu0 %v8096
    %v8098 = vand.u32 %v8082, 4294901760
    %8099 = vmatpush.msra.mxu0 %v8098
    %v8100 = vand.u32 %v8081, 4294901760
    %8101 = vmatpush.msra.mxu0 %v8100
    %v8102 = vand.u32 %v8080, 4294901760
    %8103 = vmatpush.msra.mxu0 %v8102
    %v8104 = vand.u32 %v8079, 4294901760
    %8105 = vmatpush.msra.mxu0 %v8104
    %v8106 = vand.u32 %v8078, 4294901760
    %8107 = vmatpush.msra.mxu0 %v8106
    %v8108 = vand.u32 %v8077, 4294901760
    %8109 = vmatpush.msra.mxu0 %v8108
    %v8110 = vand.u32 %v8076, 4294901760
    %8111 = vmatpush.msra.mxu0 %v8110
    %v8112 = vand.u32 %v8075, 4294901760
    %8113 = vmatpush.msra.mxu0 %v8112
    %v8114 = vand.u32 %v8074, 4294901760
    %8115 = vmatpush.msra.mxu0 %v8114
    %v8116 = vand.u32 %v8073, 4294901760
    %8117 = vmatpush.msra.mxu0 %v8116
    %v8118 = vand.u32 %v8072, 4294901760
    %8119 = vmatpush.msra.mxu0 %v8118
    %v8120 = vand.u32 %v27, 4294901760
    %v8121 = vsub.f32 %v27, %v8120
    %v8122 = vand.u32 %v8121, 4294901760
    %v8123 = vsub.f32 %v8121, %v8122
    %v8124 = vand.u32 %v8123, 4294901760
    %8125 = vmatmul.f32.gmra.mxu0 %v8124
    %v8126 = vpop.f32.mrf.mxu0
    %v8127 = vadd.f32 0.0, %v8126
    %8128 = vdwg.mxu0
    %v8129 = vand.u32 %v8087, 4294901760
    %v8130 = vsub.f32 %v8087, %v8129
    %v8131 = vand.u32 %v8130, 4294901760
    %v8132 = vsub.f32 %v8130, %v8131
    %v8133 = vand.u32 %v8132, 4294901760
    %8134 = vmatpush.msra.mxu0 %v8133
    %v8135 = vand.u32 %v8086, 4294901760
    %v8136 = vsub.f32 %v8086, %v8135
    %v8137 = vand.u32 %v8136, 4294901760
    %v8138 = vsub.f32 %v8136, %v8137
    %v8139 = vand.u32 %v8138, 4294901760
    %8140 = vmatpush.msra.mxu0 %v8139
    %v8141 = vand.u32 %v8085, 4294901760
    %v8142 = vsub.f32 %v8085, %v8141
    %v8143 = vand.u32 %v8142, 4294901760
    %v8144 = vsub.f32 %v8142, %v8143
    %v8145 = vand.u32 %v8144, 4294901760
    %8146 = vmatpush.msra.mxu0 %v8145
    %v8147 = vand.u32 %v8084, 4294901760
    %v8148 = vsub.f32 %v8084, %v8147
    %v8149 = vand.u32 %v8148, 4294901760
    %v8150 = vsub.f32 %v8148, %v8149
    %v8151 = vand.u32 %v8150, 4294901760
    %8152 = vmatpush.msra.mxu0 %v8151
    %v8153 = vand.u32 %v8083, 4294901760
    %v8154 = vsub.f32 %v8083, %v8153
    %v8155 = vand.u32 %v8154, 4294901760
    %v8156 = vsub.f32 %v8154, %v8155
    %v8157 = vand.u32 %v8156, 4294901760
    %8158 = vmatpush.msra.mxu0 %v8157
    %v8159 = vand.u32 %v8082, 4294901760
    %v8160 = vsub.f32 %v8082, %v8159
    %v8161 = vand.u32 %v8160, 4294901760
    %v8162 = vsub.f32 %v8160, %v8161
    %v8163 = vand.u32 %v8162, 4294901760
    %8164 = vmatpush.msra.mxu0 %v8163
    %v8165 = vand.u32 %v8081, 4294901760
    %v8166 = vsub.f32 %v8081, %v8165
    %v8167 = vand.u32 %v8166, 4294901760
    %v8168 = vsub.f32 %v8166, %v8167
    %v8169 = vand.u32 %v8168, 4294901760
    %8170 = vmatpush.msra.mxu0 %v8169
    %v8171 = vand.u32 %v8080, 4294901760
    %v8172 = vsub.f32 %v8080, %v8171
    %v8173 = vand.u32 %v8172, 4294901760
    %v8174 = vsub.f32 %v8172, %v8173
    %v8175 = vand.u32 %v8174, 4294901760
    %8176 = vmatpush.msra.mxu0 %v8175
    %v8177 = vand.u32 %v8079, 4294901760
    %v8178 = vsub.f32 %v8079, %v8177
    %v8179 = vand.u32 %v8178, 4294901760
    %v8180 = vsub.f32 %v8178, %v8179
    %v8181 = vand.u32 %v8180, 4294901760
    %8182 = vmatpush.msra.mxu0 %v8181
    %v8183 = vand.u32 %v8078, 4294901760
    %v8184 = vsub.f32 %v8078, %v8183
    %v8185 = vand.u32 %v8184, 4294901760
    %v8186 = vsub.f32 %v8184, %v8185
    %v8187 = vand.u32 %v8186, 4294901760
    %8188 = vmatpush.msra.mxu0 %v8187
    %v8189 = vand.u32 %v8077, 4294901760
    %v8190 = vsub.f32 %v8077, %v8189
    %v8191 = vand.u32 %v8190, 4294901760
    %v8192 = vsub.f32 %v8190, %v8191
    %v8193 = vand.u32 %v8192, 4294901760
    %8194 = vmatpush.msra.mxu0 %v8193
    %v8195 = vand.u32 %v8076, 4294901760
    %v8196 = vsub.f32 %v8076, %v8195
    %v8197 = vand.u32 %v8196, 4294901760
    %v8198 = vsub.f32 %v8196, %v8197
    %v8199 = vand.u32 %v8198, 4294901760
    %8200 = vmatpush.msra.mxu0 %v8199
    %v8201 = vand.u32 %v8075, 4294901760
    %v8202 = vsub.f32 %v8075, %v8201
    %v8203 = vand.u32 %v8202, 4294901760
    %v8204 = vsub.f32 %v8202, %v8203
    %v8205 = vand.u32 %v8204, 4294901760
    %8206 = vmatpush.msra.mxu0 %v8205
    %v8207 = vand.u32 %v8074, 4294901760
    %v8208 = vsub.f32 %v8074, %v8207
    %v8209 = vand.u32 %v8208, 4294901760
    %v8210 = vsub.f32 %v8208, %v8209
    %v8211 = vand.u32 %v8210, 4294901760
    %8212 = vmatpush.msra.mxu0 %v8211
    %v8213 = vand.u32 %v8073, 4294901760
    %v8214 = vsub.f32 %v8073, %v8213
    %v8215 = vand.u32 %v8214, 4294901760
    %v8216 = vsub.f32 %v8214, %v8215
    %v8217 = vand.u32 %v8216, 4294901760
    %8218 = vmatpush.msra.mxu0 %v8217
    %v8219 = vand.u32 %v8072, 4294901760
    %v8220 = vsub.f32 %v8072, %v8219
    %v8221 = vand.u32 %v8220, 4294901760
    %v8222 = vsub.f32 %v8220, %v8221
    %v8223 = vand.u32 %v8222, 4294901760
    %8224 = vmatpush.msra.mxu0 %v8223
    %v8225 = vand.u32 %v27, 4294901760
    %8226 = vmatmul.f32.gmra.mxu0 %v8225
    %v8227 = vpop.f32.mrf.mxu0
    %v8228 = vadd.f32 %v8127, %v8227
    %8229 = vdwg.mxu0
    %v8230 = vand.u32 %v8087, 4294901760
    %v8231 = vsub.f32 %v8087, %v8230
    %8232 = vmatpush.msra.mxu0 %v8231
    %v8233 = vand.u32 %v8086, 4294901760
    %v8234 = vsub.f32 %v8086, %v8233
    %8235 = vmatpush.msra.mxu0 %v8234
    %v8236 = vand.u32 %v8085, 4294901760
    %v8237 = vsub.f32 %v8085, %v8236
    %8238 = vmatpush.msra.mxu0 %v8237
    %v8239 = vand.u32 %v8084, 4294901760
    %v8240 = vsub.f32 %v8084, %v8239
    %8241 = vmatpush.msra.mxu0 %v8240
    %v8242 = vand.u32 %v8083, 4294901760
    %v8243 = vsub.f32 %v8083, %v8242
    %8244 = vmatpush.msra.mxu0 %v8243
    %v8245 = vand.u32 %v8082, 4294901760
    %v8246 = vsub.f32 %v8082, %v8245
    %8247 = vmatpush.msra.mxu0 %v8246
    %v8248 = vand.u32 %v8081, 4294901760
    %v8249 = vsub.f32 %v8081, %v8248
    %8250 = vmatpush.msra.mxu0 %v8249
    %v8251 = vand.u32 %v8080, 4294901760
    %v8252 = vsub.f32 %v8080, %v8251
    %8253 = vmatpush.msra.mxu0 %v8252
    %v8254 = vand.u32 %v8079, 4294901760
    %v8255 = vsub.f32 %v8079, %v8254
    %8256 = vmatpush.msra.mxu0 %v8255
    %v8257 = vand.u32 %v8078, 4294901760
    %v8258 = vsub.f32 %v8078, %v8257
    %8259 = vmatpush.msra.mxu0 %v8258
    %v8260 = vand.u32 %v8077, 4294901760
    %v8261 = vsub.f32 %v8077, %v8260
    %8262 = vmatpush.msra.mxu0 %v8261
    %v8263 = vand.u32 %v8076, 4294901760
    %v8264 = vsub.f32 %v8076, %v8263
    %8265 = vmatpush.msra.mxu0 %v8264
    %v8266 = vand.u32 %v8075, 4294901760
    %v8267 = vsub.f32 %v8075, %v8266
    %8268 = vmatpush.msra.mxu0 %v8267
    %v8269 = vand.u32 %v8074, 4294901760
    %v8270 = vsub.f32 %v8074, %v8269
    %8271 = vmatpush.msra.mxu0 %v8270
    %v8272 = vand.u32 %v8073, 4294901760
    %v8273 = vsub.f32 %v8073, %v8272
    %8274 = vmatpush.msra.mxu0 %v8273
    %v8275 = vand.u32 %v8072, 4294901760
    %v8276 = vsub.f32 %v8072, %v8275
    %8277 = vmatpush.msra.mxu0 %v8276
    %v8278 = vand.u32 %v27, 4294901760
    %v8279 = vsub.f32 %v27, %v8278
    %8280 = vmatmul.f32.gmra.mxu0 %v8279
    %v8281 = vpop.f32.mrf.mxu0
    %v8282 = vadd.f32 %v8228, %v8281
    %8283 = vdwg.mxu0
    %v8284 = vand.u32 %v8087, 4294901760
    %8285 = vmatpush.msra.mxu0 %v8284
    %v8286 = vand.u32 %v8086, 4294901760
    %8287 = vmatpush.msra.mxu0 %v8286
    %v8288 = vand.u32 %v8085, 4294901760
    %8289 = vmatpush.msra.mxu0 %v8288
    %v8290 = vand.u32 %v8084, 4294901760
    %8291 = vmatpush.msra.mxu0 %v8290
    %v8292 = vand.u32 %v8083, 4294901760
    %8293 = vmatpush.msra.mxu0 %v8292
    %v8294 = vand.u32 %v8082, 4294901760
    %8295 = vmatpush.msra.mxu0 %v8294
    %v8296 = vand.u32 %v8081, 4294901760
    %8297 = vmatpush.msra.mxu0 %v8296
    %v8298 = vand.u32 %v8080, 4294901760
    %8299 = vmatpush.msra.mxu0 %v8298
    %v8300 = vand.u32 %v8079, 4294901760
    %8301 = vmatpush.msra.mxu0 %v8300
    %v8302 = vand.u32 %v8078, 4294901760
    %8303 = vmatpush.msra.mxu0 %v8302
    %v8304 = vand.u32 %v8077, 4294901760
    %8305 = vmatpush.msra.mxu0 %v8304
    %v8306 = vand.u32 %v8076, 4294901760
    %8307 = vmatpush.msra.mxu0 %v8306
    %v8308 = vand.u32 %v8075, 4294901760
    %8309 = vmatpush.msra.mxu0 %v8308
    %v8310 = vand.u32 %v8074, 4294901760
    %8311 = vmatpush.msra.mxu0 %v8310
    %v8312 = vand.u32 %v8073, 4294901760
    %8313 = vmatpush.msra.mxu0 %v8312
    %v8314 = vand.u32 %v8072, 4294901760
    %8315 = vmatpush.msra.mxu0 %v8314
    %v8316 = vand.u32 %v27, 4294901760
    %v8317 = vsub.f32 %v27, %v8316
    %v8318 = vand.u32 %v8317, 4294901760
    %8319 = vmatmul.f32.gmra.mxu0 %v8318
    %v8320 = vpop.f32.mrf.mxu0
    %v8321 = vadd.f32 %v8282, %v8320
    %8322 = vdwg.mxu0
    %v8323 = vand.u32 %v8087, 4294901760
    %v8324 = vsub.f32 %v8087, %v8323
    %v8325 = vand.u32 %v8324, 4294901760
    %8326 = vmatpush.msra.mxu0 %v8325
    %v8327 = vand.u32 %v8086, 4294901760
    %v8328 = vsub.f32 %v8086, %v8327
    %v8329 = vand.u32 %v8328, 4294901760
    %8330 = vmatpush.msra.mxu0 %v8329
    %v8331 = vand.u32 %v8085, 4294901760
    %v8332 = vsub.f32 %v8085, %v8331
    %v8333 = vand.u32 %v8332, 4294901760
    %8334 = vmatpush.msra.mxu0 %v8333
    %v8335 = vand.u32 %v8084, 4294901760
    %v8336 = vsub.f32 %v8084, %v8335
    %v8337 = vand.u32 %v8336, 4294901760
    %8338 = vmatpush.msra.mxu0 %v8337
    %v8339 = vand.u32 %v8083, 4294901760
    %v8340 = vsub.f32 %v8083, %v8339
    %v8341 = vand.u32 %v8340, 4294901760
    %8342 = vmatpush.msra.mxu0 %v8341
    %v8343 = vand.u32 %v8082, 4294901760
    %v8344 = vsub.f32 %v8082, %v8343
    %v8345 = vand.u32 %v8344, 4294901760
    %8346 = vmatpush.msra.mxu0 %v8345
    %v8347 = vand.u32 %v8081, 4294901760
    %v8348 = vsub.f32 %v8081, %v8347
    %v8349 = vand.u32 %v8348, 4294901760
    %8350 = vmatpush.msra.mxu0 %v8349
    %v8351 = vand.u32 %v8080, 4294901760
    %v8352 = vsub.f32 %v8080, %v8351
    %v8353 = vand.u32 %v8352, 4294901760
    %8354 = vmatpush.msra.mxu0 %v8353
    %v8355 = vand.u32 %v8079, 4294901760
    %v8356 = vsub.f32 %v8079, %v8355
    %v8357 = vand.u32 %v8356, 4294901760
    %8358 = vmatpush.msra.mxu0 %v8357
    %v8359 = vand.u32 %v8078, 4294901760
    %v8360 = vsub.f32 %v8078, %v8359
    %v8361 = vand.u32 %v8360, 4294901760
    %8362 = vmatpush.msra.mxu0 %v8361
    %v8363 = vand.u32 %v8077, 4294901760
    %v8364 = vsub.f32 %v8077, %v8363
    %v8365 = vand.u32 %v8364, 4294901760
    %8366 = vmatpush.msra.mxu0 %v8365
    %v8367 = vand.u32 %v8076, 4294901760
    %v8368 = vsub.f32 %v8076, %v8367
    %v8369 = vand.u32 %v8368, 4294901760
    %8370 = vmatpush.msra.mxu0 %v8369
    %v8371 = vand.u32 %v8075, 4294901760
    %v8372 = vsub.f32 %v8075, %v8371
    %v8373 = vand.u32 %v8372, 4294901760
    %8374 = vmatpush.msra.mxu0 %v8373
    %v8375 = vand.u32 %v8074, 4294901760
    %v8376 = vsub.f32 %v8074, %v8375
    %v8377 = vand.u32 %v8376, 4294901760
    %8378 = vmatpush.msra.mxu0 %v8377
    %v8379 = vand.u32 %v8073, 4294901760
    %v8380 = vsub.f32 %v8073, %v8379
    %v8381 = vand.u32 %v8380, 4294901760
    %8382 = vmatpush.msra.mxu0 %v8381
    %v8383 = vand.u32 %v8072, 4294901760
    %v8384 = vsub.f32 %v8072, %v8383
    %v8385 = vand.u32 %v8384, 4294901760
    %8386 = vmatpush.msra.mxu0 %v8385
    %v8387 = vand.u32 %v27, 4294901760
    %8388 = vmatmul.f32.gmra.mxu0 %v8387
    %v8389 = vpop.f32.mrf.mxu0
    %v8390 = vadd.f32 %v8321, %v8389
    %8391 = vdwg.mxu0
    %v8392 = vand.u32 %v8087, 4294901760
    %8393 = vmatpush.msra.mxu0 %v8392
    %v8394 = vand.u32 %v8086, 4294901760
    %8395 = vmatpush.msra.mxu0 %v8394
    %v8396 = vand.u32 %v8085, 4294901760
    %8397 = vmatpush.msra.mxu0 %v8396
    %v8398 = vand.u32 %v8084, 4294901760
    %8399 = vmatpush.msra.mxu0 %v8398
    %v8400 = vand.u32 %v8083, 4294901760
    %8401 = vmatpush.msra.mxu0 %v8400
    %v8402 = vand.u32 %v8082, 4294901760
    %8403 = vmatpush.msra.mxu0 %v8402
    %v8404 = vand.u32 %v8081, 4294901760
    %8405 = vmatpush.msra.mxu0 %v8404
    %v8406 = vand.u32 %v8080, 4294901760
    %8407 = vmatpush.msra.mxu0 %v8406
    %v8408 = vand.u32 %v8079, 4294901760
    %8409 = vmatpush.msra.mxu0 %v8408
    %v8410 = vand.u32 %v8078, 4294901760
    %8411 = vmatpush.msra.mxu0 %v8410
    %v8412 = vand.u32 %v8077, 4294901760
    %8413 = vmatpush.msra.mxu0 %v8412
    %v8414 = vand.u32 %v8076, 4294901760
    %8415 = vmatpush.msra.mxu0 %v8414
    %v8416 = vand.u32 %v8075, 4294901760
    %8417 = vmatpush.msra.mxu0 %v8416
    %v8418 = vand.u32 %v8074, 4294901760
    %8419 = vmatpush.msra.mxu0 %v8418
    %v8420 = vand.u32 %v8073, 4294901760
    %8421 = vmatpush.msra.mxu0 %v8420
    %v8422 = vand.u32 %v8072, 4294901760
    %8423 = vmatpush.msra.mxu0 %v8422
    %v8424 = vand.u32 %v27, 4294901760
    %8425 = vmatmul.f32.gmra.mxu0 %v8424
    %v8426 = vpop.f32.mrf.mxu0
    %v8427 = vadd.f32 %v8390, %v8426
    %8428 = vdwg.mxu0
    %v8429 = vand.u32 2147483647, %v8427
    %vm8430 = vcmp.le.f32.partialorder %v8429, 0.7853982
    %vm8431 = vcmp.lt.s32.totalorder %v8427, 0
    %v8432 = vand.u32 %v8427, 2139095040
    %v8433 = vshrl.u32 %v8432, 23
    %v8434 = vsub.s32 %v8433, 127
    %v8435 = vand.u32 2147483647, %v8427
    %v8436 = vand.u32 %v8435, 8388607
    %v8437 = vor.u32 %v8436, 8388608
    %v8438 = vsub.s32 0, %v8437
    %v8439 = vadd.s32 %v8434, 1
    %vm8440 = vcmp.gt.s32.totalorder %v8439, 0
    %v8441 = vsel %vm8440, %v8439, 0
    %v8442 = vshrl.u32 %v8441, 5
    %v8443 = vand.u32 %v8441, 31
    %v8444 = vsub.s32 32, %v8443
    %v8445 = vshrl.u32 683565275, %v8444
    %v8446 = vshll.u32 683565275, %v8443
    %v8447 = vshrl.u32 2475754826, %v8444
    %v8448 = vor.u32 %v8446, %v8447
    %v8449 = vshll.u32 2475754826, %v8443
    %v8450 = vshrl.u32 2131351028, %v8444
    %v8451 = vor.u32 %v8449, %v8450
    %v8452 = vshll.u32 2131351028, %v8443
    %v8453 = vshrl.u32 2102212464, %v8444
    %v8454 = vor.u32 %v8452, %v8453
    %v8455 = vshll.u32 2102212464, %v8443
    %v8456 = vshrl.u32 920167782, %v8444
    %v8457 = vor.u32 %v8455, %v8456
    %v8458 = vshll.u32 920167782, %v8443
    %v8459 = vshrl.u32 1326507024, %v8444
    %v8460 = vor.u32 %v8458, %v8459
    %vm8461 = vcmp.lt.s32.totalorder %v8442, 1
    %vm8462 = vcmp.lt.s32.totalorder %v8442, 2
    %vm8463 = vcmp.lt.s32.totalorder %v8442, 3
    %vm8464 = vcmp.lt.s32.totalorder %v8442, 4
    %v8465 = vsel %vm8461, %v8445, %v8448
    %v8466 = vsel %vm8464, %v8454, 2102212464
    %v8467 = vsel %vm8463, %v8451, %v8466
    %v8468 = vsel %vm8462, %v8465, %v8467
    %v8469 = vsel %vm8461, %v8448, %v8451
    %v8470 = vsel %vm8464, %v8457, 920167782
    %v8471 = vsel %vm8463, %v8454, %v8470
    %v8472 = vsel %vm8462, %v8469, %v8471
    %v8473 = vsel %vm8461, %v8451, %v8454
    %v8474 = vsel %vm8464, %v8460, 1326507024
    %v8475 = vsel %vm8463, %v8457, %v8474
    %v8476 = vsel %vm8462, %v8473, %v8475
    %v8477 = vshll.u32 %v8437, 8
    %v8478 = vand.u32 %v8477, 65535
    %v8479 = vshrl.u32 %v8477, 16
    %v8480 = vand.u32 %v8476, 65535
    %v8481 = vshrl.u32 %v8476, 16
    %v8482 = vmul.u32 %v8478, %v8480
    %v8483 = vmul.u32 %v8478, %v8481
    %v8484 = vmul.u32 %v8479, %v8480
    %v8485 = vmul.u32 %v8479, %v8481
    %v8486 = vshll.u32 %v8483, 16
    %v8487 = vshrl.u32 %v8483, 16
    %v8488 = vshll.u32 %v8484, 16
    %v8489 = vshrl.u32 %v8484, 16
    %vm8490 = vc.u32 %v8482, %v8486
    %v8491 = vsel %vm8490, 1, 0
    %v8492 = vadd.s32 %v8482, %v8486
    %v8493 = vadd.s32 %v8485, %v8491
    %vm8494 = vc.u32 %v8492, %v8488
    %v8495 = vsel %vm8494, 1, 0
    %v8496 = vadd.s32 %v8492, %v8488
    %v8497 = vadd.s32 %v8493, %v8495
    %v8498 = vadd.s32 %v8497, %v8487
    %v8499 = vadd.s32 %v8498, %v8489
    %v8500 = vand.u32 %v8477, 65535
    %v8501 = vshrl.u32 %v8477, 16
    %v8502 = vand.u32 %v8472, 65535
    %v8503 = vshrl.u32 %v8472, 16
    %v8504 = vmul.u32 %v8500, %v8502
    %v8505 = vmul.u32 %v8500, %v8503
    %v8506 = vmul.u32 %v8501, %v8502
    %v8507 = vmul.u32 %v8501, %v8503
    %v8508 = vshll.u32 %v8505, 16
    %v8509 = vshrl.u32 %v8505, 16
    %v8510 = vshll.u32 %v8506, 16
    %v8511 = vshrl.u32 %v8506, 16
    %vm8512 = vc.u32 %v8504, %v8508
    %v8513 = vsel %vm8512, 1, 0
    %v8514 = vadd.s32 %v8504, %v8508
    %v8515 = vadd.s32 %v8507, %v8513
    %vm8516 = vc.u32 %v8514, %v8510
    %v8517 = vsel %vm8516, 1, 0
    %v8518 = vadd.s32 %v8514, %v8510
    %v8519 = vadd.s32 %v8515, %v8517
    %v8520 = vadd.s32 %v8519, %v8509
    %v8521 = vadd.s32 %v8520, %v8511
    %v8522 = vmul.u32 %v8477, %v8468
    %v8523 = vadd.s32 %v8499, %v8518
    %vm8524 = vc.u32 %v8499, %v8518
    %v8525 = vadd.s32 %v8521, 1
    %v8526 = vsel %vm8524, %v8525, %v8521
    %v8527 = vadd.s32 %v8522, %v8526
    %v8528 = vadd.s32 %v8527, 536870912
    %v8529 = vshrl.u32 %v8528, 30
    %v8530 = vshll.u32 %v8529, 30
    %v8531 = vsub.s32 %v8527, %v8530
    %vm8532 = vcmp.lt.s32.totalorder %v8531, 0
    %v8533 = vsub.s32 0, %v8531
    %v8534 = vsel %vm8532, %v8533, %v8531
    %v8535 = vclz %v8534
    %v8536 = vsub.s32 %v8535, 2
    %vm8537 = vcmp.gt.s32.totalorder 0, %v8536
    %v8538 = vsel %vm8537, 0, %v8536
    %v8539 = vsub.s32 32, %v8538
    %v8540 = vshll.u32 %v8531, %v8538
    %v8541 = vshrl.u32 %v8523, %v8539
    %v8542 = vor.u32 %v8540, %v8541
    %v8543 = vsub.s32 4294967266, %v8538
    %v8544 = vadd.s32 %v8543, 127
    %v8545 = vshll.u32 %v8544, 23
    %v8546 = vor.u32 4788187, %v8545
    %v8547 = vand.u32 2147483647, %v8546
    %v8549 = vcvt.s32.f32 %v8542
    %v8550 = vmul.f32 %v8549, %v8547
    %v8551 = vxor.u32 %v8550, 2147483648
    %v8552 = vsel %vm8431, %v8551, %v8550
    %v8553 = vsub.s32 4, %v8529
    %v8554 = vsel %vm8431, %v8553, %v8529
    %v8555 = vsel %vm8430, %v8427, %v8552
    %v8556 = vsel %vm8430, 0, %v8554
    %v8557 = vmul.f32 %v8555, %v8555
    %v8558 = vmul.f32 %v8557, -0.001358992
    %v8559 = vadd.f32 %v8558, 0.041655596
    %v8560 = vmul.f32 %v8557, %v8559
    %v8561 = vadd.f32 %v8560, -0.4999988
    %v8562 = vmul.f32 %v8557, %v8561
    %v8563 = vadd.f32 1.0, %v8562
    %v8564 = vmul.f32 %v8555, %v8555
    %v8565 = vmul.f32 %v8564, -0.00019511016
    %v8566 = vadd.f32 %v8565, 0.008332121
    %v8567 = vmul.f32 %v8564, %v8566
    %v8568 = vadd.f32 %v8567, -0.16666654
    %v8569 = vmul.f32 %v8564, %v8568
    %v8570 = vadd.f32 %v8569, 1.0
    %v8571 = vmul.f32 %v8570, %v8555
    %vm8572 = vweird.f32 %v8427
    %v8573 = vadd.s32 %v8556, 3
    %v8574 = vand.u32 %v8573, 3
    %vm8575 = vcmp.lt.s32.totalorder %v8574, 2
    %vm8576 = vcmp.eq.s32.totalorder %v8574, 0
    %v8577 = vxor.u32 %v8571, 2147483648
    %v8578 = vsel %vm8576, %v8563, %v8577
    %vm8579 = vcmp.eq.s32.totalorder %v8574, 2
    %v8580 = vxor.u32 %v8563, 2147483648
    %v8581 = vsel %vm8579, %v8580, %v8571
    %v8582 = vsel %vm8575, %v8578, %v8581
    %v8583 = vsel %vm8572, nan, %v8582
    %v8585 = vrot.slane %v8583, 1
    %v8586 = vrot.slane %v8583, 2
    %v8587 = vrot.slane %v8583, 3
    %v8588 = vrot.slane %v8583, 4
    %v8589 = vrot.slane %v8583, 5
    %v8590 = vrot.slane %v8583, 6
    %v8591 = vrot.slane %v8583, 7
    %8599 = vst.msk [vmem:[#allocation4 + $0xf] sm:$0x1] %vm558, %v8583
    %8600 = vst.msk [vmem:[#allocation4 + $0x1f] sm:$0x1] %vm558, %v8585
    %8601 = vst.msk [vmem:[#allocation4 + $0x2f] sm:$0x1] %vm558, %v8586
    %8602 = vst.msk [vmem:[#allocation4 + $0x3f] sm:$0x1] %vm558, %v8587
    %8603 = vst.msk [vmem:[#allocation4 + $0x4f] sm:$0x1] %vm558, %v8588
    %8604 = vst.msk [vmem:[#allocation4 + $0x5f] sm:$0x1] %vm558, %v8589
    %8605 = vst.msk [vmem:[#allocation4 + $0x6f] sm:$0x1] %vm558, %v8590
    %8606 = vst.msk [vmem:[#allocation4 + $0x7f] sm:$0x1] %vm558, %v8591
    // Predicated region
    $region14: #{radial_bessel.1} parent=1 // pred_check
      _
    $region15: #{radial_bessel.1} parent=1 // pred_check_branch
      %8608 = sbr.rel (0) target = $region17
    $region16: #{radial_bessel.1} parent=1 // pred_region
      // Predicated region
      $region18: #{radial_bessel.1} parent=16 // pred_check
        _
      $region19: #{radial_bessel.1} parent=16 // pred_check_branch
        %8610 = sbr.rel (0) target = $region21
      $region20: #{radial_bessel.1} parent=16 // pred_region
        // Predicated region
        $region22: #{radial_bessel.1} parent=20 // pred_check
          _
        $region23: #{radial_bessel.1} parent=20 // pred_check_branch
          %8612 = sbr.rel (0) target = $region25
        $region24: #{radial_bessel.1} parent=20 // pred_region
          loop: start=0, step=1, limit=1
          $region26: #{radial_bessel.1} parent=24 // loop_pre_header
            _
          $region27: #{radial_bessel.1} parent=24 // loop_header
            %s8614 = sphi 0, %s8618
            %p8615 = scmp.ge.s32.totalorder %s8614, 1
            %s8619 = sphi [#allocation4], [#allocation4]
            %s8620 = sphi %s2, %s2
          $region28: #{radial_bessel.1} parent=24 // loop_header_branch
            %8617 = sbr.rel (%p8615) target = $region32
          $region29: #{radial_bessel.1} parent=24 // loop_body
            %v8621 = vld [vmem:[%s8619] sm:$0xff]
            %8622 = vst [vmem:[%s8620] sm:$0xff] %v8621
            %v8623 = vld [vmem:[%s8619 + $0x8] sm:$0xff]
            %8624 = vst [vmem:[%s8620 + $0x8] sm:$0xff] %v8623
          $region30: #{radial_bessel.1} parent=24 // loop_footer
            %s8618 = sadd.s32 1, %s8614
          $region31: #{radial_bessel.1} parent=24 // loop_footer_branch
            %8613 = sbr.rel target = $region27
          $region32: #{radial_bessel.1} parent=24 // loop_exit
            _
        $region25: #{radial_bessel.1} parent=20 // pred_fallthru
          _
        // Predicated region
        $region33: #{radial_bessel.1} parent=20 // pred_check
          _
        $region34: #{radial_bessel.1} parent=20 // pred_check_branch
          %8626 = sbr.rel target = $region36
        $region35: #{radial_bessel.1} parent=20 // pred_region
          _
        $region36: #{radial_bessel.1} parent=20 // pred_fallthru
          _
      $region21: #{radial_bessel.1} parent=16 // pred_fallthru
        _
      %8627 = vnop
    $region17: #{radial_bessel.1} parent=1 // pred_fallthru
      _
    // Predicated region
    $region37: #{radial_bessel.1} parent=1 // pred_check
      _
    $region38: #{radial_bessel.1} parent=1 // pred_check_branch
      %8629 = sbr.rel (0) target = $region40
    $region39: #{radial_bessel.1} parent=1 // pred_region
      _
    $region40: #{radial_bessel.1} parent=1 // pred_fallthru
      _
    %8630 = vsyncpa [#allocation3], 1

</llo_original>
